<compile_context>
chip_gen: v7x
topology: tpu7x:2x2x1
jax: 0.10.0
libtpu: 0.0.40
codegen_flags: <defaults>
</compile_context>

<pallas_src>
import functools

import jax
import jax.numpy as jnp
from jax.experimental import pallas as pl
from jax.experimental.pallas import tpu as pltpu

EPS = 1e-5     # nn.BatchNorm1d default eps
LANE = 128
Z_SUBLANE = 16  # bf16 sublane multiple for the w1 fan-in pad


def _bn_relu_block(h_bf16, w_ref, g_ref, beta_ref, inv_n):
    """Linear (bias-free; bias absorbed exactly by BN) -> BN(train) -> ReLU."""
    # MXU: bf16 inputs, f32 accumulation.
    y = jnp.dot(h_bf16, w_ref[...], preferred_element_type=jnp.float32)

    # Single-pass batch moments (biased variance, like PyTorch training mode).
    s1 = jnp.sum(y, axis=0, keepdims=True)           # (1, D)
    s2 = jnp.sum(y * y, axis=0, keepdims=True)       # (1, D)
    mean = s1 * inv_n
    # Clamp: E[y^2]-mean^2 can go slightly negative from cancellation -> NaN via rsqrt.
    var = jnp.maximum(s2 * inv_n - mean * mean, 0.0)

    # Fold normalize + affine into one scale/shift (per-row (1,D) math is cheap).
    scale = g_ref[...] * jax.lax.rsqrt(var + EPS)
    shift = beta_ref[...] - mean * scale

    h = jnp.maximum(y * scale + shift, 0.0)           # 2 full-tile VPU passes
    return h.astype(jnp.bfloat16)                     # bf16 feeds the next MXU dot


def generator_kernel(
    x_ref,
    w1, g1, bt1,
    w2, g2, bt2,
    w3, g3, bt3,
    g4, bt4,
    b5,
    w4_hbm, w5_hbm,
    out_ref,
    w4_vmem, w5_vmem, sem,
):
    # Kick off the two big weight DMAs immediately; they overlap blocks 1-3.
    w4_cp = pltpu.make_async_copy(w4_hbm, w4_vmem, sem.at[0])
    w5_cp = pltpu.make_async_copy(w5_hbm, w5_vmem, sem.at[1])
    w4_cp.start()
    w5_cp.start()

    inv_n = jnp.float32(1.0 / x_ref.shape[0])
    h = x_ref[...].astype(jnp.bfloat16)
    h = _bn_relu_block(h, w1, g1, bt1, inv_n)
    h = _bn_relu_block(h, w2, g2, bt2, inv_n)
    h = _bn_relu_block(h, w3, g3, bt3, inv_n)
    w4_cp.wait()
    h = _bn_relu_block(h, w4_vmem, g4, bt4, inv_n)
    w5_cp.wait()
    z = jnp.dot(h, w5_vmem[...], preferred_element_type=jnp.float32) + b5[...]
    out_ref[...] = jax.nn.sigmoid(z).astype(out_ref.dtype)   # EUP slot, bf16 store


def init_generator_params(key, z_dim=10, im_dim=784, hidden_dim=128):
    """Synthetic parameters with the same shapes as the PyTorch module.
    Weights stored already transposed to (in_dim, out_dim).
    Layout per hidden block: [W, b, gamma, beta]; final layer: [W, b]."""
    dims = [z_dim, hidden_dim, hidden_dim * 2, hidden_dim * 4, hidden_dim * 8, im_dim]
    params = []
    for i in range(5):
        fan_in, fan_out = dims[i], dims[i + 1]
        key, kw, kb = jax.random.split(key, 3)
        bound = 1.0 / jnp.sqrt(fan_in)
        w = jax.random.uniform(kw, (fan_in, fan_out), jnp.float32, -bound, bound)
        b = jax.random.uniform(kb, (1, fan_out), jnp.float32, -bound, bound)
        params.append(w)
        params.append(b)
        if i < 4:  # BatchNorm1d affine params (gamma=1, beta=0 at init)
            params.append(jnp.ones((1, fan_out), jnp.float32))
            params.append(jnp.zeros((1, fan_out), jnp.float32))
    return params


def prepare_generator_params(params, z_dim=10, im_dim=784):
    """ONE-TIME conversion to kernel-ready tensors (bf16 cast + all padding).

    Kept out of the per-call path so generator_forward launches only the kernel.
    Returns args in kernel order (after the noise input):
      (w1, g1, bt1, w2, g2, bt2, w3, g3, bt3, g4, bt4, b5, w4, w5)
    """
    ready = []
    idx = 0
    for layer in range(4):
        w, _b, g, bt = params[idx:idx + 4]      # b dropped: absorbed by train-mode BN
        idx += 4
        if layer == 0:
            z_pad = pl.cdiv(z_dim, Z_SUBLANE) * Z_SUBLANE   # 10 -> 16
            w = jnp.pad(w, ((0, z_pad - z_dim), (0, 0)))    # zero rows: pad cols are inert
        ready += [w.astype(jnp.bfloat16), g, bt]
    w5, b5 = params[idx:idx + 2]
    im_pad = pl.cdiv(im_dim, LANE) * LANE                   # 784 -> 896 (lane-dense stores)
    pad = im_pad - im_dim
    w5 = jnp.pad(w5, ((0, 0), (0, pad))).astype(jnp.bfloat16)
    b5 = jnp.pad(b5, ((0, 0), (0, pad)))

    w1, g1, bt1, w2, g2, bt2, w3, g3, bt3, w4, g4, bt4 = ready
    return (w1, g1, bt1, w2, g2, bt2, w3, g3, bt3, g4, bt4, b5, w4, w5)


@functools.partial(jax.jit, static_argnames=("im_dim", "slice_output"))
def generator_forward(noise, kernel_params, im_dim=784, slice_output=True):
    (w1, g1, bt1, w2, g2, bt2, w3, g3, bt3, g4, bt4, b5, w4, w5) = kernel_params
    n = noise.shape[0]
    z_pad = w1.shape[0]
    im_pad = w5.shape[1]

    # Tiny per-call pad of the noise columns to the pre-padded fan-in of w1
    # (matching w1 rows are zero, so the result is unchanged).
    noise_p = jnp.pad(noise, ((0, 0), (0, z_pad - noise.shape[1])))

    vmem = pl.BlockSpec(memory_space=pltpu.MemorySpace.VMEM)
    anyspace = pl.BlockSpec(memory_space=pl.ANY)   # w4/w5 stay in HBM; DMA'd manually

    out_padded = pl.pallas_call(
        generator_kernel,
        out_shape=jax.ShapeDtypeStruct((n, im_pad), jnp.bfloat16),
        in_specs=[vmem] * 13 + [anyspace, anyspace],
        out_specs=vmem,
        scratch_shapes=[
            pltpu.VMEM(w4.shape, w4.dtype),
            pltpu.VMEM(w5.shape, w5.dtype),
            pltpu.SemaphoreType.DMA((2,)),
        ],
        compiler_params=pltpu.CompilerParams(vmem_limit_bytes=32 * 1024 * 1024),
    )(noise_p, w1, g1, bt1, w2, g2, bt2, w3, g3, bt3, g4, bt4, b5, w4, w5)

    if slice_output:
        return out_padded[:, :im_dim]
    # Padded columns hold sigmoid(0) = 0.5; consumer must slice to [:, :im_dim].
    return out_padded


def generator_reference(noise, params):
    """Pure-JAX f32 reference with the exact PyTorch semantics (incl. biases)."""
    h = noise.astype(jnp.float32)
    idx = 0
    for _ in range(4):
        w, b, g, bt = params[idx:idx + 4]
        idx += 4
        y = h @ w + b
        mean = jnp.mean(y, axis=0, keepdims=True)
        var = jnp.mean((y - mean) ** 2, axis=0, keepdims=True)
        h = jnp.maximum((y - mean) * jax.lax.rsqrt(var + EPS) * g + bt, 0.0)
    w, b = params[idx:idx + 2]
    return jax.nn.sigmoid(h @ w + b)


if __name__ == "__main__":
    # Module defaults (lane-aligned hidden widths); batch tile of 128 rows so the
    # MXU sees full-height tiles and BN stats are over a reasonable batch.
    Z_DIM, IM_DIM, HIDDEN_DIM, BATCH = 10, 784, 128, 128

    key = jax.random.PRNGKey(0)
    key_params, key_noise = jax.random.split(key)

    params = init_generator_params(key_params, Z_DIM, IM_DIM, HIDDEN_DIM)
    # One-time prep (bf16 cast + padding) -- NOT in the per-call path.
    kernel_params = prepare_generator_params(params, Z_DIM, IM_DIM)
    kernel_params = jax.tree_util.tree_map(jax.block_until_ready, kernel_params)

    noise = jax.random.normal(key_noise, (BATCH, Z_DIM), jnp.float32)

    out = generator_forward(noise, kernel_params, im_dim=IM_DIM)
    out = jax.block_until_ready(out)

    ref = generator_reference(noise, params)
    assert out.shape == (BATCH, IM_DIM), out.shape
    # bf16 MXU inputs + bf16 output + folded BN / one-pass variance => loose
    # absolute tolerance vs the pure-f32 PyTorch-semantics reference ([0,1] range).
    diff = jnp.max(jnp.abs(out.astype(jnp.float32) - ref))
    assert jnp.allclose(out.astype(jnp.float32), ref, atol=3e-2, rtol=0.0), (
        "mismatch vs reference, max abs diff = %e" % float(diff)
    )

    print("KERNEL_OK")
</pallas_src>

<mosaic_0001>
module attributes {stable_mosaic.version = 11 : i64} {
  func.func @generator_kernel(%arg0: memref<128x16xf32, #tpu.memory_space<vmem>>, %arg1: memref<16x128xbf16, #tpu.memory_space<vmem>>, %arg2: memref<1x128xf32, #tpu.memory_space<vmem>>, %arg3: memref<1x128xf32, #tpu.memory_space<vmem>>, %arg4: memref<128x256xbf16, #tpu.memory_space<vmem>>, %arg5: memref<1x256xf32, #tpu.memory_space<vmem>>, %arg6: memref<1x256xf32, #tpu.memory_space<vmem>>, %arg7: memref<256x512xbf16, #tpu.memory_space<vmem>>, %arg8: memref<1x512xf32, #tpu.memory_space<vmem>>, %arg9: memref<1x512xf32, #tpu.memory_space<vmem>>, %arg10: memref<1x1024xf32, #tpu.memory_space<vmem>>, %arg11: memref<1x1024xf32, #tpu.memory_space<vmem>>, %arg12: memref<1x896xf32, #tpu.memory_space<vmem>>, %arg13: memref<512x1024xbf16, #tpu.memory_space<any>>, %arg14: memref<1024x896xbf16, #tpu.memory_space<any>>, %arg15: memref<128x896xbf16, #tpu.memory_space<vmem>>, %arg16: memref<512x1024xbf16, #tpu.memory_space<vmem>>, %arg17: memref<1024x896xbf16, #tpu.memory_space<vmem>>, %arg18: memref<2x!tpu.dma_semaphore, #tpu.memory_space<semaphore_mem>>) attributes {dimension_semantics = [], scalar_prefetch = 0 : i64, scratch_operands = 3 : i64, tpu.core_type = #tpu.core_type<tc>} {
    %c0_i32 = arith.constant 0 : i32
    %0 = tpu.memref_slice %arg18[%c0_i32] : memref<2x!tpu.dma_semaphore, #tpu.memory_space<semaphore_mem>> -> memref<1x!tpu.dma_semaphore, #tpu.memory_space<semaphore_mem>>
    %1 = tpu.memref_squeeze %0 : memref<1x!tpu.dma_semaphore, #tpu.memory_space<semaphore_mem>> -> memref<!tpu.dma_semaphore, #tpu.memory_space<semaphore_mem>>
    tpu.enqueue_dma source(%arg13 : memref<512x1024xbf16, #tpu.memory_space<any>>) target(%arg16 : memref<512x1024xbf16, #tpu.memory_space<vmem>>) target_semaphore(%1 : memref<!tpu.dma_semaphore, #tpu.memory_space<semaphore_mem>>)
    %c1_i32 = arith.constant 1 : i32
    %2 = tpu.memref_slice %arg18[%c1_i32] : memref<2x!tpu.dma_semaphore, #tpu.memory_space<semaphore_mem>> -> memref<1x!tpu.dma_semaphore, #tpu.memory_space<semaphore_mem>>
    %3 = tpu.memref_squeeze %2 : memref<1x!tpu.dma_semaphore, #tpu.memory_space<semaphore_mem>> -> memref<!tpu.dma_semaphore, #tpu.memory_space<semaphore_mem>>
    tpu.enqueue_dma source(%arg14 : memref<1024x896xbf16, #tpu.memory_space<any>>) target(%arg17 : memref<1024x896xbf16, #tpu.memory_space<vmem>>) target_semaphore(%3 : memref<!tpu.dma_semaphore, #tpu.memory_space<semaphore_mem>>)
    %c0 = arith.constant 0 : index
    %c0_0 = arith.constant 0 : index
    %4 = vector.load %arg0[%c0, %c0_0] : memref<128x16xf32, #tpu.memory_space<vmem>>, vector<128x16xf32>
    %5 = arith.truncf %4 : vector<128x16xf32> to vector<128x16xbf16>
    %c0_1 = arith.constant 0 : index
    %c0_2 = arith.constant 0 : index
    %6 = vector.load %arg1[%c0_1, %c0_2] : memref<16x128xbf16, #tpu.memory_space<vmem>>, vector<16x128xbf16>
    %cst = arith.constant dense<0.000000e+00> : vector<128x128xf32>
    %7 = tpu.matmul %5, %6, %cst {dimension_numbers = #tpu.dot_dimension_numbers<[1], [0], [0], [1], [0, 0, 1, 1], [], []>} : vector<128x16xbf16>, vector<16x128xbf16>, vector<128x128xf32> -> vector<128x128xf32>
    %cst_3 = arith.constant dense<0.000000e+00> : vector<128xf32>
    %8 = vector.multi_reduction <add>, %7, %cst_3 [0] : vector<128x128xf32> to vector<128xf32>
    %9 = vector.shape_cast %8 : vector<128xf32> to vector<1x128xf32>
    %10 = arith.mulf %7, %7 : vector<128x128xf32>
    %cst_4 = arith.constant dense<0.000000e+00> : vector<128xf32>
    %11 = vector.multi_reduction <add>, %10, %cst_4 [0] : vector<128x128xf32> to vector<128xf32>
    %12 = vector.shape_cast %11 : vector<128xf32> to vector<1x128xf32>
    %cst_5 = arith.constant 7.812500e-03 : f32
    %13 = vector.broadcast %cst_5 : f32 to vector<1x128xf32>
    %14 = arith.mulf %9, %13 : vector<1x128xf32>
    %cst_6 = arith.constant 7.812500e-03 : f32
    %15 = vector.broadcast %cst_6 : f32 to vector<1x128xf32>
    %16 = arith.mulf %12, %15 : vector<1x128xf32>
    %17 = arith.mulf %14, %14 : vector<1x128xf32>
    %18 = arith.subf %16, %17 : vector<1x128xf32>
    %cst_7 = arith.constant 0.000000e+00 : f32
    %19 = vector.broadcast %cst_7 : f32 to vector<1x128xf32>
    %20 = arith.maximumf %18, %19 : vector<1x128xf32>
    %c0_8 = arith.constant 0 : index
    %c0_9 = arith.constant 0 : index
    %21 = vector.load %arg2[%c0_8, %c0_9] : memref<1x128xf32, #tpu.memory_space<vmem>>, vector<1x128xf32>
    %cst_10 = arith.constant 9.99999974E-6 : f32
    %22 = vector.broadcast %cst_10 : f32 to vector<1x128xf32>
    %23 = arith.addf %20, %22 : vector<1x128xf32>
    %24 = math.rsqrt %23 : vector<1x128xf32>
    %25 = arith.mulf %21, %24 : vector<1x128xf32>
    %c0_11 = arith.constant 0 : index
    %c0_12 = arith.constant 0 : index
    %26 = vector.load %arg3[%c0_11, %c0_12] : memref<1x128xf32, #tpu.memory_space<vmem>>, vector<1x128xf32>
    %27 = arith.mulf %14, %25 : vector<1x128xf32>
    %28 = arith.subf %26, %27 : vector<1x128xf32>
    %29 = vector.broadcast %25 : vector<1x128xf32> to vector<128x128xf32>
    %30 = arith.mulf %7, %29 : vector<128x128xf32>
    %31 = vector.broadcast %28 : vector<1x128xf32> to vector<128x128xf32>
    %32 = arith.addf %30, %31 : vector<128x128xf32>
    %cst_13 = arith.constant 0.000000e+00 : f32
    %33 = vector.broadcast %cst_13 : f32 to vector<128x128xf32>
    %34 = arith.maximumf %32, %33 : vector<128x128xf32>
    %35 = arith.truncf %34 : vector<128x128xf32> to vector<128x128xbf16>
    %c0_14 = arith.constant 0 : index
    %c0_15 = arith.constant 0 : index
    %36 = vector.load %arg4[%c0_14, %c0_15] : memref<128x256xbf16, #tpu.memory_space<vmem>>, vector<128x256xbf16>
    %cst_16 = arith.constant dense<0.000000e+00> : vector<128x256xf32>
    %37 = tpu.matmul %35, %36, %cst_16 {dimension_numbers = #tpu.dot_dimension_numbers<[1], [0], [0], [1], [0, 0, 1, 1], [], []>} : vector<128x128xbf16>, vector<128x256xbf16>, vector<128x256xf32> -> vector<128x256xf32>
    %cst_17 = arith.constant dense<0.000000e+00> : vector<256xf32>
    %38 = vector.multi_reduction <add>, %37, %cst_17 [0] : vector<128x256xf32> to vector<256xf32>
    %39 = vector.shape_cast %38 : vector<256xf32> to vector<1x256xf32>
    %40 = arith.mulf %37, %37 : vector<128x256xf32>
    %cst_18 = arith.constant dense<0.000000e+00> : vector<256xf32>
    %41 = vector.multi_reduction <add>, %40, %cst_18 [0] : vector<128x256xf32> to vector<256xf32>
    %42 = vector.shape_cast %41 : vector<256xf32> to vector<1x256xf32>
    %cst_19 = arith.constant 7.812500e-03 : f32
    %43 = vector.broadcast %cst_19 : f32 to vector<1x256xf32>
    %44 = arith.mulf %39, %43 : vector<1x256xf32>
    %cst_20 = arith.constant 7.812500e-03 : f32
    %45 = vector.broadcast %cst_20 : f32 to vector<1x256xf32>
    %46 = arith.mulf %42, %45 : vector<1x256xf32>
    %47 = arith.mulf %44, %44 : vector<1x256xf32>
    %48 = arith.subf %46, %47 : vector<1x256xf32>
    %cst_21 = arith.constant 0.000000e+00 : f32
    %49 = vector.broadcast %cst_21 : f32 to vector<1x256xf32>
    %50 = arith.maximumf %48, %49 : vector<1x256xf32>
    %c0_22 = arith.constant 0 : index
    %c0_23 = arith.constant 0 : index
    %51 = vector.load %arg5[%c0_22, %c0_23] : memref<1x256xf32, #tpu.memory_space<vmem>>, vector<1x256xf32>
    %cst_24 = arith.constant 9.99999974E-6 : f32
    %52 = vector.broadcast %cst_24 : f32 to vector<1x256xf32>
    %53 = arith.addf %50, %52 : vector<1x256xf32>
    %54 = math.rsqrt %53 : vector<1x256xf32>
    %55 = arith.mulf %51, %54 : vector<1x256xf32>
    %c0_25 = arith.constant 0 : index
    %c0_26 = arith.constant 0 : index
    %56 = vector.load %arg6[%c0_25, %c0_26] : memref<1x256xf32, #tpu.memory_space<vmem>>, vector<1x256xf32>
    %57 = arith.mulf %44, %55 : vector<1x256xf32>
    %58 = arith.subf %56, %57 : vector<1x256xf32>
    %59 = vector.broadcast %55 : vector<1x256xf32> to vector<128x256xf32>
    %60 = arith.mulf %37, %59 : vector<128x256xf32>
    %61 = vector.broadcast %58 : vector<1x256xf32> to vector<128x256xf32>
    %62 = arith.addf %60, %61 : vector<128x256xf32>
    %cst_27 = arith.constant 0.000000e+00 : f32
    %63 = vector.broadcast %cst_27 : f32 to vector<128x256xf32>
    %64 = arith.maximumf %62, %63 : vector<128x256xf32>
    %65 = arith.truncf %64 : vector<128x256xf32> to vector<128x256xbf16>
    %c0_28 = arith.constant 0 : index
    %c0_29 = arith.constant 0 : index
    %66 = vector.load %arg7[%c0_28, %c0_29] : memref<256x512xbf16, #tpu.memory_space<vmem>>, vector<256x512xbf16>
    %cst_30 = arith.constant dense<0.000000e+00> : vector<128x512xf32>
    %67 = tpu.matmul %65, %66, %cst_30 {dimension_numbers = #tpu.dot_dimension_numbers<[1], [0], [0], [1], [0, 0, 1, 1], [], []>} : vector<128x256xbf16>, vector<256x512xbf16>, vector<128x512xf32> -> vector<128x512xf32>
    %cst_31 = arith.constant dense<0.000000e+00> : vector<512xf32>
    %68 = vector.multi_reduction <add>, %67, %cst_31 [0] : vector<128x512xf32> to vector<512xf32>
    %69 = vector.shape_cast %68 : vector<512xf32> to vector<1x512xf32>
    %70 = arith.mulf %67, %67 : vector<128x512xf32>
    %cst_32 = arith.constant dense<0.000000e+00> : vector<512xf32>
    %71 = vector.multi_reduction <add>, %70, %cst_32 [0] : vector<128x512xf32> to vector<512xf32>
    %72 = vector.shape_cast %71 : vector<512xf32> to vector<1x512xf32>
    %cst_33 = arith.constant 7.812500e-03 : f32
    %73 = vector.broadcast %cst_33 : f32 to vector<1x512xf32>
    %74 = arith.mulf %69, %73 : vector<1x512xf32>
    %cst_34 = arith.constant 7.812500e-03 : f32
    %75 = vector.broadcast %cst_34 : f32 to vector<1x512xf32>
    %76 = arith.mulf %72, %75 : vector<1x512xf32>
    %77 = arith.mulf %74, %74 : vector<1x512xf32>
    %78 = arith.subf %76, %77 : vector<1x512xf32>
    %cst_35 = arith.constant 0.000000e+00 : f32
    %79 = vector.broadcast %cst_35 : f32 to vector<1x512xf32>
    %80 = arith.maximumf %78, %79 : vector<1x512xf32>
    %c0_36 = arith.constant 0 : index
    %c0_37 = arith.constant 0 : index
    %81 = vector.load %arg8[%c0_36, %c0_37] : memref<1x512xf32, #tpu.memory_space<vmem>>, vector<1x512xf32>
    %cst_38 = arith.constant 9.99999974E-6 : f32
    %82 = vector.broadcast %cst_38 : f32 to vector<1x512xf32>
    %83 = arith.addf %80, %82 : vector<1x512xf32>
    %84 = math.rsqrt %83 : vector<1x512xf32>
    %85 = arith.mulf %81, %84 : vector<1x512xf32>
    %c0_39 = arith.constant 0 : index
    %c0_40 = arith.constant 0 : index
    %86 = vector.load %arg9[%c0_39, %c0_40] : memref<1x512xf32, #tpu.memory_space<vmem>>, vector<1x512xf32>
    %87 = arith.mulf %74, %85 : vector<1x512xf32>
    %88 = arith.subf %86, %87 : vector<1x512xf32>
    %89 = vector.broadcast %85 : vector<1x512xf32> to vector<128x512xf32>
    %90 = arith.mulf %67, %89 : vector<128x512xf32>
    %91 = vector.broadcast %88 : vector<1x512xf32> to vector<128x512xf32>
    %92 = arith.addf %90, %91 : vector<128x512xf32>
    %cst_41 = arith.constant 0.000000e+00 : f32
    %93 = vector.broadcast %cst_41 : f32 to vector<128x512xf32>
    %94 = arith.maximumf %92, %93 : vector<128x512xf32>
    %95 = arith.truncf %94 : vector<128x512xf32> to vector<128x512xbf16>
    %c0_i32_42 = arith.constant 0 : i32
    %96 = tpu.memref_slice %arg18[%c0_i32_42] : memref<2x!tpu.dma_semaphore, #tpu.memory_space<semaphore_mem>> -> memref<1x!tpu.dma_semaphore, #tpu.memory_space<semaphore_mem>>
    %97 = tpu.memref_squeeze %96 : memref<1x!tpu.dma_semaphore, #tpu.memory_space<semaphore_mem>> -> memref<!tpu.dma_semaphore, #tpu.memory_space<semaphore_mem>>
    tpu.wait_dma2 semaphore(%97 : memref<!tpu.dma_semaphore, #tpu.memory_space<semaphore_mem>>) src(%arg13 : memref<512x1024xbf16, #tpu.memory_space<any>>) dst(%arg16 : memref<512x1024xbf16, #tpu.memory_space<vmem>>)
    %c0_43 = arith.constant 0 : index
    %c0_44 = arith.constant 0 : index
    %98 = vector.load %arg16[%c0_43, %c0_44] : memref<512x1024xbf16, #tpu.memory_space<vmem>>, vector<512x1024xbf16>
    %cst_45 = arith.constant dense<0.000000e+00> : vector<128x1024xf32>
    %99 = tpu.matmul %95, %98, %cst_45 {dimension_numbers = #tpu.dot_dimension_numbers<[1], [0], [0], [1], [0, 0, 1, 1], [], []>} : vector<128x512xbf16>, vector<512x1024xbf16>, vector<128x1024xf32> -> vector<128x1024xf32>
    %cst_46 = arith.constant dense<0.000000e+00> : vector<1024xf32>
    %100 = vector.multi_reduction <add>, %99, %cst_46 [0] : vector<128x1024xf32> to vector<1024xf32>
    %101 = vector.shape_cast %100 : vector<1024xf32> to vector<1x1024xf32>
    %102 = arith.mulf %99, %99 : vector<128x1024xf32>
    %cst_47 = arith.constant dense<0.000000e+00> : vector<1024xf32>
    %103 = vector.multi_reduction <add>, %102, %cst_47 [0] : vector<128x1024xf32> to vector<1024xf32>
    %104 = vector.shape_cast %103 : vector<1024xf32> to vector<1x1024xf32>
    %cst_48 = arith.constant 7.812500e-03 : f32
    %105 = vector.broadcast %cst_48 : f32 to vector<1x1024xf32>
    %106 = arith.mulf %101, %105 : vector<1x1024xf32>
    %cst_49 = arith.constant 7.812500e-03 : f32
    %107 = vector.broadcast %cst_49 : f32 to vector<1x1024xf32>
    %108 = arith.mulf %104, %107 : vector<1x1024xf32>
    %109 = arith.mulf %106, %106 : vector<1x1024xf32>
    %110 = arith.subf %108, %109 : vector<1x1024xf32>
    %cst_50 = arith.constant 0.000000e+00 : f32
    %111 = vector.broadcast %cst_50 : f32 to vector<1x1024xf32>
    %112 = arith.maximumf %110, %111 : vector<1x1024xf32>
    %c0_51 = arith.constant 0 : index
    %c0_52 = arith.constant 0 : index
    %113 = vector.load %arg10[%c0_51, %c0_52] : memref<1x1024xf32, #tpu.memory_space<vmem>>, vector<1x1024xf32>
    %cst_53 = arith.constant 9.99999974E-6 : f32
    %114 = vector.broadcast %cst_53 : f32 to vector<1x1024xf32>
    %115 = arith.addf %112, %114 : vector<1x1024xf32>
    %116 = math.rsqrt %115 : vector<1x1024xf32>
    %117 = arith.mulf %113, %116 : vector<1x1024xf32>
    %c0_54 = arith.constant 0 : index
    %c0_55 = arith.constant 0 : index
    %118 = vector.load %arg11[%c0_54, %c0_55] : memref<1x1024xf32, #tpu.memory_space<vmem>>, vector<1x1024xf32>
    %119 = arith.mulf %106, %117 : vector<1x1024xf32>
    %120 = arith.subf %118, %119 : vector<1x1024xf32>
    %121 = vector.broadcast %117 : vector<1x1024xf32> to vector<128x1024xf32>
    %122 = arith.mulf %99, %121 : vector<128x1024xf32>
    %123 = vector.broadcast %120 : vector<1x1024xf32> to vector<128x1024xf32>
    %124 = arith.addf %122, %123 : vector<128x1024xf32>
    %cst_56 = arith.constant 0.000000e+00 : f32
    %125 = vector.broadcast %cst_56 : f32 to vector<128x1024xf32>
    %126 = arith.maximumf %124, %125 : vector<128x1024xf32>
    %127 = arith.truncf %126 : vector<128x1024xf32> to vector<128x1024xbf16>
    %c1_i32_57 = arith.constant 1 : i32
    %128 = tpu.memref_slice %arg18[%c1_i32_57] : memref<2x!tpu.dma_semaphore, #tpu.memory_space<semaphore_mem>> -> memref<1x!tpu.dma_semaphore, #tpu.memory_space<semaphore_mem>>
    %129 = tpu.memref_squeeze %128 : memref<1x!tpu.dma_semaphore, #tpu.memory_space<semaphore_mem>> -> memref<!tpu.dma_semaphore, #tpu.memory_space<semaphore_mem>>
    tpu.wait_dma2 semaphore(%129 : memref<!tpu.dma_semaphore, #tpu.memory_space<semaphore_mem>>) src(%arg14 : memref<1024x896xbf16, #tpu.memory_space<any>>) dst(%arg17 : memref<1024x896xbf16, #tpu.memory_space<vmem>>)
    %c0_58 = arith.constant 0 : index
    %c0_59 = arith.constant 0 : index
    %130 = vector.load %arg17[%c0_58, %c0_59] : memref<1024x896xbf16, #tpu.memory_space<vmem>>, vector<1024x896xbf16>
    %cst_60 = arith.constant dense<0.000000e+00> : vector<128x896xf32>
    %131 = tpu.matmul %127, %130, %cst_60 {dimension_numbers = #tpu.dot_dimension_numbers<[1], [0], [0], [1], [0, 0, 1, 1], [], []>} : vector<128x1024xbf16>, vector<1024x896xbf16>, vector<128x896xf32> -> vector<128x896xf32>
    %c0_61 = arith.constant 0 : index
    %c0_62 = arith.constant 0 : index
    %132 = vector.load %arg12[%c0_61, %c0_62] : memref<1x896xf32, #tpu.memory_space<vmem>>, vector<1x896xf32>
    %133 = vector.broadcast %132 : vector<1x896xf32> to vector<128x896xf32>
    %134 = arith.addf %131, %133 : vector<128x896xf32>
    %135 = arith.negf %134 : vector<128x896xf32>
    %136 = math.exp %135 : vector<128x896xf32>
    %cst_63 = arith.constant 1.000000e+00 : f32
    %137 = vector.broadcast %cst_63 : f32 to vector<128x896xf32>
    %138 = arith.addf %137, %136 : vector<128x896xf32>
    %139 = arith.divf %137, %138 : vector<128x896xf32>
    %140 = arith.truncf %139 : vector<128x896xf32> to vector<128x896xbf16>
    %c0_64 = arith.constant 0 : index
    %c0_65 = arith.constant 0 : index
    %141 = vector.load %arg15[%c0_64, %c0_65] : memref<128x896xbf16, #tpu.memory_space<vmem>>, vector<128x896xbf16>
    tpu.vector_store %arg15[%c0_64, %c0_65], %140 {strides = array<i32>} : memref<128x896xbf16, #tpu.memory_space<vmem>>, vector<128x896xbf16>,
    return
  }
}

</mosaic_0001>

<llo_original>
// kernel: generator_forward.1
$region0: #{generator_forward.1}
  #allocation0 [shape = 'u32[]', space=smem, size = 0x4, offset = 0x4, fixed_abs, tag = 'smem constant byte address 0x4 - core index']
  #allocation1 [shape = 'u32[144,128]{1,0:T(1,128)}', space=vmem, size = 0x12000, scoped, tag = 'internal scratch']
  #allocation2 [shape = 'bf16[512,1024]{1,0:T(16,128)(2,1)}', space=vmem, size = 0x100000, scoped, tag = 'scratch operand']
  #allocation3 [shape = 'bf16[1024,896]{1,0:T(16,128)(2,1)}', space=vmem, size = 0x1c0000, scoped, tag = 'scratch operand']
  #allocation4 [shape = 's32[2]{0}', space=sflag, size = 0x8, scoped, tag = 'scratch operand']
  #allocation24 [shape = 's32[]', space=sflag, size = 0x4, offset = 0, fixed_abs, tag = 'sflag constant byte address 0x0 - dummy sync flag']
  #allocation26 [shape = 's32[]', space=sflag, size = 0x4, offset = 0, fixed_abs, tag = 'sflag constant byte address 0x0 - dummy sync flag']
  %s0 = inlined_call_operand.vmem [shape: f32[128,16], index: 0, kind: input, shape index: {}]
  %s1 = inlined_call_operand.hbm [shape: bf16[16,128], index: 1, kind: input, shape index: {}]
  %s2 = inlined_call_operand.hbm [shape: f32[1,128], index: 2, kind: input, shape index: {}]
  %s3 = inlined_call_operand.hbm [shape: f32[1,128], index: 3, kind: input, shape index: {}]
  %s4 = inlined_call_operand.hbm [shape: bf16[128,256], index: 4, kind: input, shape index: {}]
  %s5 = inlined_call_operand.hbm [shape: f32[1,256], index: 5, kind: input, shape index: {}]
  %s6 = inlined_call_operand.hbm [shape: f32[1,256], index: 6, kind: input, shape index: {}]
  %s7 = inlined_call_operand.hbm [shape: bf16[256,512], index: 7, kind: input, shape index: {}]
  %s8 = inlined_call_operand.hbm [shape: f32[1,512], index: 8, kind: input, shape index: {}]
  %s9 = inlined_call_operand.hbm [shape: f32[1,512], index: 9, kind: input, shape index: {}]
  %s10 = inlined_call_operand.hbm [shape: f32[1,1024], index: 10, kind: input, shape index: {}]
  %s11 = inlined_call_operand.hbm [shape: f32[1,1024], index: 11, kind: input, shape index: {}]
  %s12 = inlined_call_operand.hbm [shape: f32[1,896], index: 12, kind: input, shape index: {}]
  %s13 = inlined_call_operand.hbm [shape: bf16[512,1024], index: 13, kind: input, shape index: {}]
  %s14 = inlined_call_operand.hbm [shape: bf16[1024,896], index: 14, kind: input, shape index: {}]
  %s15 = inlined_call_operand.vmem [shape: bf16[128,896], index: 15, kind: output, shape index: {}]
  %s16 = sld [smem:[#allocation0]]
  $region110: #{generator_forward.1} parent=0
    _
  %s18 = ssub.s32 1, %s16
  %s19 = scalar_select 0, %s18, %s16
  $region1: #{generator_forward.1} parent=0
    #allocation5 [shape = 'u8[4096]{0}', space=vmem, size = 0x1000, scoped, tag = 'input window, operand 1, single buffered']
    #allocation6 [shape = 's32[1]{0}', space=sflag, size = 0x4, scoped, tag = 'scoped memory for generator_forward.1']
    #allocation7 [shape = 'u8[512]{0}', space=vmem, size = 0x400, scoped, tag = 'input window, operand 2, single buffered']
    #allocation8 [shape = 's32[1]{0}', space=sflag, size = 0x4, scoped, tag = 'scoped memory for generator_forward.1']
    #allocation9 [shape = 'u8[512]{0}', space=vmem, size = 0x400, scoped, tag = 'input window, operand 3, single buffered']
    #allocation10 [shape = 'u8[65536]{0}', space=vmem, size = 0x10000, scoped, tag = 'input window, operand 4, single buffered']
    #allocation11 [shape = 's32[1]{0}', space=sflag, size = 0x4, scoped, tag = 'scoped memory for generator_forward.1']
    #allocation12 [shape = 'u8[1024]{0}', space=vmem, size = 0x400, scoped, tag = 'input window, operand 5, single buffered']
    #allocation13 [shape = 'u8[1024]{0}', space=vmem, size = 0x400, scoped, tag = 'input window, operand 6, single buffered']
    #allocation14 [shape = 's32[1]{0}', space=sflag, size = 0x4, scoped, tag = 'scoped memory for generator_forward.1']
    #allocation15 [shape = 'u8[262144]{0}', space=vmem, size = 0x40000, scoped, tag = 'input window, operand 7, single buffered']
    #allocation16 [shape = 'u8[2048]{0}', space=vmem, size = 0x800, scoped, tag = 'input window, operand 8, single buffered']
    #allocation17 [shape = 's32[1]{0}', space=sflag, size = 0x4, scoped, tag = 'scoped memory for generator_forward.1']
    #allocation18 [shape = 'u8[2048]{0}', space=vmem, size = 0x800, scoped, tag = 'input window, operand 9, single buffered']
    #allocation19 [shape = 'u8[4096]{0}', space=vmem, size = 0x1000, scoped, tag = 'input window, operand 10, single buffered']
    #allocation20 [shape = 's32[1]{0}', space=sflag, size = 0x4, scoped, tag = 'scoped memory for generator_forward.1']
    #allocation21 [shape = 'u8[4096]{0}', space=vmem, size = 0x1000, scoped, tag = 'input window, operand 11, single buffered']
    #allocation22 [shape = 'u8[3584]{0}', space=vmem, size = 0x1000, scoped, tag = 'input window, operand 12, single buffered']
    #allocation23 [shape = 's32[1]{0}', space=sflag, size = 0x4, scoped, tag = 'scoped memory for generator_forward.1']
    #allocation25 [shape = 'u32[9]{0}', space=smem, size = 0x24, scoped, tag = 'DMA stride descriptor']
    #allocation27 [shape = 'u32[9]{0}', space=smem, size = 0x24, scoped, tag = 'DMA stride descriptor']
    %20 = vsyncpa [#allocation6], 0
    %21 = vsyncpa [#allocation8], 0
    %22 = vsyncpa [#allocation11], 0
    %23 = vsyncpa [#allocation14], 0
    %24 = vsyncpa [#allocation17], 0
    %25 = vsyncpa [#allocation20], 0
    %26 = vsyncpa [#allocation23], 0
    // Predicated region
    $region2: #{generator_forward.1} parent=1 // pred_check
      _
    $region3: #{generator_forward.1} parent=1 // pred_check_branch
      %28 = sbr.rel (0) target = $region5
    $region4: #{generator_forward.1} parent=1 // pred_region
      _
    $region5: #{generator_forward.1} parent=1 // pred_fallthru
      _
    // Predicated region
    $region6: #{generator_forward.1} parent=1 // pred_check
      _
    $region7: #{generator_forward.1} parent=1 // pred_check_branch
      %30 = sbr.rel (0) target = $region9
    $region8: #{generator_forward.1} parent=1 // pred_region
      %s32 = ssub.s32 128, 128
      %33 = vsyncadd [#allocation6], %s32
      %s34 = sshll.u32 [#allocation5], 4
      %s35 = int_to_ptr.vmem [resolvable:$true] %s34
      %40 = dma.hbm_to_vmem [thread:$0]  %s1, 128, %s35, [#allocation6], 64, 64, 4
    $region9: #{generator_forward.1} parent=1 // pred_fallthru
      _
    // Predicated region
    $region10: #{generator_forward.1} parent=1 // pred_check
      _
    $region11: #{generator_forward.1} parent=1 // pred_check_branch
      %42 = sbr.rel (0) target = $region13
    $region12: #{generator_forward.1} parent=1 // pred_region
      %s44 = ssub.s32 16, 16
      %45 = vsyncadd [#allocation8], %s44
      %s47 = sshll.u32 [#allocation7], 4
      %s48 = int_to_ptr.vmem [resolvable:$true] %s47
      %50 = dma.hbm_to_vmem [thread:$0]  %s2, 16, %s48, [#allocation8]
    $region13: #{generator_forward.1} parent=1 // pred_fallthru
      _
    // Predicated region
    $region14: #{generator_forward.1} parent=1 // pred_check
      _
    $region15: #{generator_forward.1} parent=1 // pred_check_branch
      %52 = sbr.rel (0) target = $region17
    $region16: #{generator_forward.1} parent=1 // pred_region
      %s54 = ssub.s32 16, 16
      %55 = vsyncadd [#allocation8], %s54
      %s57 = sshll.u32 [#allocation9], 4
      %s58 = int_to_ptr.vmem [resolvable:$true] %s57
      %60 = dma.hbm_to_vmem [thread:$0]  %s3, 16, %s58, [#allocation8]
    $region17: #{generator_forward.1} parent=1 // pred_fallthru
      _
    // Predicated region
    $region18: #{generator_forward.1} parent=1 // pred_check
      _
    $region19: #{generator_forward.1} parent=1 // pred_check_branch
      %62 = sbr.rel (0) target = $region21
    $region20: #{generator_forward.1} parent=1 // pred_region
      %s64 = ssub.s32 2048, 2048
      %65 = vsyncadd [#allocation11], %s64
      %s66 = sshll.u32 [#allocation10], 4
      %s67 = int_to_ptr.vmem [resolvable:$true] %s66
      %72 = dma.hbm_to_vmem [thread:$0]  %s4, 2048, %s67, [#allocation11], 128, 128, 8
    $region21: #{generator_forward.1} parent=1 // pred_fallthru
      _
    // Predicated region
    $region22: #{generator_forward.1} parent=1 // pred_check
      _
    $region23: #{generator_forward.1} parent=1 // pred_check_branch
      %74 = sbr.rel (0) target = $region25
    $region24: #{generator_forward.1} parent=1 // pred_region
      %s76 = ssub.s32 32, 32
      %77 = vsyncadd [#allocation11], %s76
      %s79 = sshll.u32 [#allocation12], 4
      %s80 = int_to_ptr.vmem [resolvable:$true] %s79
      %82 = dma.hbm_to_vmem [thread:$0]  %s5, 32, %s80, [#allocation11]
    $region25: #{generator_forward.1} parent=1 // pred_fallthru
      _
    // Predicated region
    $region26: #{generator_forward.1} parent=1 // pred_check
      _
    $region27: #{generator_forward.1} parent=1 // pred_check_branch
      %84 = sbr.rel (0) target = $region29
    $region28: #{generator_forward.1} parent=1 // pred_region
      %s86 = ssub.s32 32, 32
      %87 = vsyncadd [#allocation14], %s86
      %s89 = sshll.u32 [#allocation13], 4
      %s90 = int_to_ptr.vmem [resolvable:$true] %s89
      %92 = dma.hbm_to_vmem [thread:$0]  %s6, 32, %s90, [#allocation14]
    $region29: #{generator_forward.1} parent=1 // pred_fallthru
      _
    // Predicated region
    $region30: #{generator_forward.1} parent=1 // pred_check
      _
    $region31: #{generator_forward.1} parent=1 // pred_check_branch
      %94 = sbr.rel (0) target = $region33
    $region32: #{generator_forward.1} parent=1 // pred_region
      %s96 = ssub.s32 8192, 8192
      %97 = vsyncadd [#allocation14], %s96
      %s98 = sshll.u32 [#allocation15], 4
      %s99 = int_to_ptr.vmem [resolvable:$true] %s98
      %104 = dma.hbm_to_vmem [thread:$0]  %s7, 8192, %s99, [#allocation14], 256, 256, 16
    $region33: #{generator_forward.1} parent=1 // pred_fallthru
      _
    // Predicated region
    $region34: #{generator_forward.1} parent=1 // pred_check
      _
    $region35: #{generator_forward.1} parent=1 // pred_check_branch
      %106 = sbr.rel (0) target = $region37
    $region36: #{generator_forward.1} parent=1 // pred_region
      %s108 = ssub.s32 64, 64
      %109 = vsyncadd [#allocation17], %s108
      %s111 = sshll.u32 [#allocation16], 4
      %s112 = int_to_ptr.vmem [resolvable:$true] %s111
      %114 = dma.hbm_to_vmem [thread:$0]  %s8, 64, %s112, [#allocation17]
    $region37: #{generator_forward.1} parent=1 // pred_fallthru
      _
    // Predicated region
    $region38: #{generator_forward.1} parent=1 // pred_check
      _
    $region39: #{generator_forward.1} parent=1 // pred_check_branch
      %116 = sbr.rel (0) target = $region41
    $region40: #{generator_forward.1} parent=1 // pred_region
      %s118 = ssub.s32 64, 64
      %119 = vsyncadd [#allocation17], %s118
      %s121 = sshll.u32 [#allocation18], 4
      %s122 = int_to_ptr.vmem [resolvable:$true] %s121
      %124 = dma.hbm_to_vmem [thread:$0]  %s9, 64, %s122, [#allocation17]
    $region41: #{generator_forward.1} parent=1 // pred_fallthru
      _
    // Predicated region
    $region42: #{generator_forward.1} parent=1 // pred_check
      _
    $region43: #{generator_forward.1} parent=1 // pred_check_branch
      %126 = sbr.rel (0) target = $region45
    $region44: #{generator_forward.1} parent=1 // pred_region
      %s128 = ssub.s32 128, 128
      %129 = vsyncadd [#allocation20], %s128
      %s131 = sshll.u32 [#allocation19], 4
      %s132 = int_to_ptr.vmem [resolvable:$true] %s131
      %134 = dma.hbm_to_vmem [thread:$0]  %s10, 128, %s132, [#allocation20]
    $region45: #{generator_forward.1} parent=1 // pred_fallthru
      _
    // Predicated region
    $region46: #{generator_forward.1} parent=1 // pred_check
      _
    $region47: #{generator_forward.1} parent=1 // pred_check_branch
      %136 = sbr.rel (0) target = $region49
    $region48: #{generator_forward.1} parent=1 // pred_region
      %s138 = ssub.s32 128, 128
      %139 = vsyncadd [#allocation20], %s138
      %s141 = sshll.u32 [#allocation21], 4
      %s142 = int_to_ptr.vmem [resolvable:$true] %s141
      %144 = dma.hbm_to_vmem [thread:$0]  %s11, 128, %s142, [#allocation20]
    $region49: #{generator_forward.1} parent=1 // pred_fallthru
      _
    // Predicated region
    $region50: #{generator_forward.1} parent=1 // pred_check
      _
    $region51: #{generator_forward.1} parent=1 // pred_check_branch
      %146 = sbr.rel (0) target = $region53
    $region52: #{generator_forward.1} parent=1 // pred_region
      %s148 = ssub.s32 112, 112
      %149 = vsyncadd [#allocation23], %s148
      %s151 = sshll.u32 [#allocation22], 4
      %s152 = int_to_ptr.vmem [resolvable:$true] %s151
      %154 = dma.hbm_to_vmem [thread:$0]  %s12, 112, %s152, [#allocation23]
    $region53: #{generator_forward.1} parent=1 // pred_fallthru
      _
    // Predicated region
    $region54: #{generator_forward.1} parent=1 // pred_check
      _
    $region55: #{generator_forward.1} parent=1 // pred_check_branch
      %156 = sbr.rel (0) target = $region57
    $region56: #{generator_forward.1} parent=1 // pred_region
      %157 = dma.done [#allocation6], 128
    $region57: #{generator_forward.1} parent=1 // pred_fallthru
      _
    // Predicated region
    $region58: #{generator_forward.1} parent=1 // pred_check
      _
    $region59: #{generator_forward.1} parent=1 // pred_check_branch
      %159 = sbr.rel (0) target = $region61
    $region60: #{generator_forward.1} parent=1 // pred_region
      %160 = dma.done [#allocation8], 16
    $region61: #{generator_forward.1} parent=1 // pred_fallthru
      _
    // Predicated region
    $region62: #{generator_forward.1} parent=1 // pred_check
      _
    $region63: #{generator_forward.1} parent=1 // pred_check_branch
      %162 = sbr.rel (0) target = $region65
    $region64: #{generator_forward.1} parent=1 // pred_region
      %163 = dma.done [#allocation8], 16
    $region65: #{generator_forward.1} parent=1 // pred_fallthru
      _
    // Predicated region
    $region66: #{generator_forward.1} parent=1 // pred_check
      _
    $region67: #{generator_forward.1} parent=1 // pred_check_branch
      %165 = sbr.rel (0) target = $region69
    $region68: #{generator_forward.1} parent=1 // pred_region
      %166 = dma.done [#allocation11], 2048
    $region69: #{generator_forward.1} parent=1 // pred_fallthru
      _
    // Predicated region
    $region70: #{generator_forward.1} parent=1 // pred_check
      _
    $region71: #{generator_forward.1} parent=1 // pred_check_branch
      %168 = sbr.rel (0) target = $region73
    $region72: #{generator_forward.1} parent=1 // pred_region
      %169 = dma.done [#allocation11], 32
    $region73: #{generator_forward.1} parent=1 // pred_fallthru
      _
    // Predicated region
    $region74: #{generator_forward.1} parent=1 // pred_check
      _
    $region75: #{generator_forward.1} parent=1 // pred_check_branch
      %171 = sbr.rel (0) target = $region77
    $region76: #{generator_forward.1} parent=1 // pred_region
      %172 = dma.done [#allocation14], 32
    $region77: #{generator_forward.1} parent=1 // pred_fallthru
      _
    // Predicated region
    $region78: #{generator_forward.1} parent=1 // pred_check
      _
    $region79: #{generator_forward.1} parent=1 // pred_check_branch
      %174 = sbr.rel (0) target = $region81
    $region80: #{generator_forward.1} parent=1 // pred_region
      %175 = dma.done [#allocation14], 8192
    $region81: #{generator_forward.1} parent=1 // pred_fallthru
      _
    // Predicated region
    $region82: #{generator_forward.1} parent=1 // pred_check
      _
    $region83: #{generator_forward.1} parent=1 // pred_check_branch
      %177 = sbr.rel (0) target = $region85
    $region84: #{generator_forward.1} parent=1 // pred_region
      %178 = dma.done [#allocation17], 64
    $region85: #{generator_forward.1} parent=1 // pred_fallthru
      _
    // Predicated region
    $region86: #{generator_forward.1} parent=1 // pred_check
      _
    $region87: #{generator_forward.1} parent=1 // pred_check_branch
      %180 = sbr.rel (0) target = $region89
    $region88: #{generator_forward.1} parent=1 // pred_region
      %181 = dma.done [#allocation17], 64
    $region89: #{generator_forward.1} parent=1 // pred_fallthru
      _
    // Predicated region
    $region90: #{generator_forward.1} parent=1 // pred_check
      _
    $region91: #{generator_forward.1} parent=1 // pred_check_branch
      %183 = sbr.rel (0) target = $region93
    $region92: #{generator_forward.1} parent=1 // pred_region
      %184 = dma.done [#allocation20], 128
    $region93: #{generator_forward.1} parent=1 // pred_fallthru
      _
    // Predicated region
    $region94: #{generator_forward.1} parent=1 // pred_check
      _
    $region95: #{generator_forward.1} parent=1 // pred_check_branch
      %186 = sbr.rel (0) target = $region97
    $region96: #{generator_forward.1} parent=1 // pred_region
      %187 = dma.done [#allocation20], 128
    $region97: #{generator_forward.1} parent=1 // pred_fallthru
      _
    // Predicated region
    $region98: #{generator_forward.1} parent=1 // pred_check
      _
    $region99: #{generator_forward.1} parent=1 // pred_check_branch
      %189 = sbr.rel (0) target = $region101
    $region100: #{generator_forward.1} parent=1 // pred_region
      %190 = dma.done [#allocation23], 112
    $region101: #{generator_forward.1} parent=1 // pred_fallthru
      _
    %s193 = sshll.u32 1, 14
    %s194 = sxor.u32 4294967295, %s193
    %s196 = sld [smem:[#allocation0]]
    %s197 = sadd.s32 2, %s196
    %s199 = sshll.u32 7, 26
    %s200 = sxor.u32 4294967295, %s199
    %s201 = sand.u32 0, %s200
    %s202 = sshll.u32 %s197, 26
    %s203 = sor.u32 %s201, %s202
    %s204 = sshll.u32 [#allocation2], 4
    %s205 = int_to_ptr.vmem [resolvable:$true] %s204
    %208 = sst [smem:[#allocation25]] 1024
    %s209 = scalar_lea.smem [#allocation25], 1
    %210 = sst [smem:[%s209]] 1024
    %s211 = scalar_lea.smem [#allocation25], 2
    %212 = sst [smem:[%s211]] 8
    %s213 = scalar_lea.smem [#allocation25], 3
    %214 = sst [smem:[%s213]] 64
    %s215 = scalar_lea.smem [#allocation25], 4
    %216 = sst [smem:[%s215]] 128
    %s217 = scalar_lea.smem [#allocation25], 5
    %218 = sst [smem:[%s217]] 2
    %s219 = scalar_lea.smem [#allocation25], 6
    %220 = sst [smem:[%s219]] 512
    %s221 = scalar_lea.smem [#allocation25], 7
    %222 = sst [smem:[%s221]] 64
    %s223 = scalar_lea.smem [#allocation25], 8
    %224 = sst [smem:[%s223]] 4
    %226 = dma.general %s13, 32768, %s205, [#allocation4], [#allocation24], [#allocation25], %s203, 0
    %s227 = scalar_lea.sflag [#allocation4], 1
    %s229 = sshll.u32 1, 14
    %s230 = sxor.u32 4294967295, %s229
    %s232 = sadd.s32 2, %s196
    %s234 = sshll.u32 7, 26
    %s235 = sxor.u32 4294967295, %s234
    %s236 = sand.u32 0, %s235
    %s237 = sshll.u32 %s232, 26
    %s238 = sor.u32 %s236, %s237
    %s239 = sshll.u32 [#allocation3], 4
    %s240 = int_to_ptr.vmem [resolvable:$true] %s239
    %243 = sst [smem:[#allocation27]] 896
    %s244 = scalar_lea.smem [#allocation27], 1
    %245 = sst [smem:[%s244]] 896
    %s246 = scalar_lea.smem [#allocation27], 2
    %247 = sst [smem:[%s246]] 7
    %s248 = scalar_lea.smem [#allocation27], 3
    %249 = sst [smem:[%s248]] 64
    %s250 = scalar_lea.smem [#allocation27], 4
    %251 = sst [smem:[%s250]] 128
    %s252 = scalar_lea.smem [#allocation27], 5
    %253 = sst [smem:[%s252]] 2
    %s254 = scalar_lea.smem [#allocation27], 6
    %255 = sst [smem:[%s254]] 448
    %s256 = scalar_lea.smem [#allocation27], 7
    %257 = sst [smem:[%s256]] 64
    %s258 = scalar_lea.smem [#allocation27], 8
    %259 = sst [smem:[%s258]] 4
    %261 = dma.general %s14, 57344, %s240, %s227, [#allocation26], [#allocation27], %s238, 0
    %v262 = vld [vmem:[%s0] sm:$0xff]
    %v263 = vld [vmem:[%s0 + $0x8] sm:$0xff]
    %v264 = vld [vmem:[%s0 + $0x10] sm:$0xff]
    %v265 = vld [vmem:[%s0 + $0x18] sm:$0xff]
    %v266 = vld [vmem:[%s0 + $0x20] sm:$0xff]
    %v267 = vld [vmem:[%s0 + $0x28] sm:$0xff]
    %v268 = vld [vmem:[%s0 + $0x30] sm:$0xff]
    %v269 = vld [vmem:[%s0 + $0x38] sm:$0xff]
    %v270 = vld [vmem:[%s0 + $0x40] sm:$0xff]
    %v271 = vld [vmem:[%s0 + $0x48] sm:$0xff]
    %v272 = vld [vmem:[%s0 + $0x50] sm:$0xff]
    %v273 = vld [vmem:[%s0 + $0x58] sm:$0xff]
    %v274 = vld [vmem:[%s0 + $0x60] sm:$0xff]
    %v275 = vld [vmem:[%s0 + $0x68] sm:$0xff]
    %v276 = vld [vmem:[%s0 + $0x70] sm:$0xff]
    %v277 = vld [vmem:[%s0 + $0x78] sm:$0xff]
    %v278 = vpack.c.bf16 %v263, %v262
    %v279 = vpack.c.bf16 %v265, %v264
    %v280 = vpack.c.bf16 %v267, %v266
    %v281 = vpack.c.bf16 %v269, %v268
    %v282 = vpack.c.bf16 %v271, %v270
    %v283 = vpack.c.bf16 %v273, %v272
    %v284 = vpack.c.bf16 %v275, %v274
    %v285 = vpack.c.bf16 %v277, %v276
    %v286 = vld [vmem:[#allocation5] sm:$0xf]
    %v287 = vld [vmem:[#allocation5 + $0x4] sm:$0xf]
    %v290 = vunpack.c.l.b16 %v286
    %v291 = vunpack.c.l.b16 %v287
    %v292 = vpack.c.b16 %v291, %v290
    %vm294 = vcmask 130048
    %v296 = vsel %vm294, %v278, 0
    %v299 = vsel %vm294, %v279, 0
    %v302 = vsel %vm294, %v280, 0
    %v305 = vsel %vm294, %v281, 0
    %v308 = vsel %vm294, %v282, 0
    %v311 = vsel %vm294, %v283, 0
    %v314 = vsel %vm294, %v284, 0
    %v317 = vsel %vm294, %v285, 0
    %319 = vmatprep.subr.bf16.mxu0 0
    %320 = vmatpush1.bf16.msra.mxu0 %v292
    %321 = vmatprep.subr.bf16.mxu0 0
    %322 = vmatpush1.bf16.msra.mxu0 0
    %323 = vmatprep.subr.bf16.mxu0 0
    %324 = vmatpush1.bf16.msra.mxu0 0
    %325 = vmatprep.subr.bf16.mxu0 0
    %326 = vmatpush1.bf16.msra.mxu0 0
    %327 = vmatprep.subr.bf16.mxu0 0
    %328 = vmatpush1.bf16.msra.mxu0 0
    %329 = vmatprep.subr.bf16.mxu0 0
    %330 = vmatpush1.bf16.msra.mxu0 0
    %331 = vmatprep.subr.bf16.mxu0 0
    %332 = vmatpush1.bf16.msra.mxu0 0
    %333 = vmatprep.subr.bf16.mxu0 0
    %334 = vmatpush1.bf16.msra.mxu0 0
    %335 = vmatprep.subr.bf16.mxu0 0
    %336 = vmatpush1.bf16.msra.mxu0 0
    %337 = vmatprep.subr.bf16.mxu0 0
    %338 = vmatpush1.bf16.msra.mxu0 0
    %339 = vmatprep.subr.bf16.mxu0 0
    %340 = vmatpush1.bf16.msra.mxu0 0
    %341 = vmatprep.subr.bf16.mxu0 0
    %342 = vmatpush1.bf16.msra.mxu0 0
    %343 = vmatprep.subr.bf16.mxu0 0
    %344 = vmatpush1.bf16.msra.mxu0 0
    %345 = vmatprep.subr.bf16.mxu0 0
    %346 = vmatpush1.bf16.msra.mxu0 0
    %347 = vmatprep.subr.bf16.mxu0 0
    %348 = vmatpush1.bf16.msra.mxu0 0
    %349 = vmatprep.subr.bf16.mxu0 0
    %350 = vmatpush1.bf16.msra.mxu0 0
    %351 = vmatprep.mubr.bf16.mxu0 0
    %352 = vmatmul.mubr.bf16.gmra.mrb[0].mxu0 %v296
    %v353 = vpop.f32.mrb[0].mxu0
    %v354 = vadd.f32 0.0, %v353
    %v355 = vpop.f32.mrb[0].mxu0
    %v356 = vpop.f32.mrb[0].mxu0
    %v357 = vadd.f32 0.0, %v356
    %v358 = vpop.f32.mrb[0].mxu0
    %359 = vmatprep.mubr.bf16.mxu0 0
    %360 = vmatmul.mubr.bf16.gmra.mrb[0].mxu0 %v299
    %v361 = vpop.f32.mrb[0].mxu0
    %v362 = vadd.f32 0.0, %v361
    %v363 = vpop.f32.mrb[0].mxu0
    %v364 = vpop.f32.mrb[0].mxu0
    %v365 = vadd.f32 0.0, %v364
    %v366 = vpop.f32.mrb[0].mxu0
    %367 = vmatprep.mubr.bf16.mxu0 0
    %368 = vmatmul.mubr.bf16.gmra.mrb[0].mxu0 %v302
    %v369 = vpop.f32.mrb[0].mxu0
    %v370 = vadd.f32 0.0, %v369
    %v371 = vpop.f32.mrb[0].mxu0
    %v372 = vpop.f32.mrb[0].mxu0
    %v373 = vadd.f32 0.0, %v372
    %v374 = vpop.f32.mrb[0].mxu0
    %375 = vmatprep.mubr.bf16.mxu0 0
    %376 = vmatmul.mubr.bf16.gmra.mrb[0].mxu0 %v305
    %v377 = vpop.f32.mrb[0].mxu0
    %v378 = vadd.f32 0.0, %v377
    %v379 = vpop.f32.mrb[0].mxu0
    %v380 = vpop.f32.mrb[0].mxu0
    %v381 = vadd.f32 0.0, %v380
    %v382 = vpop.f32.mrb[0].mxu0
    %383 = vmatprep.mubr.bf16.mxu0 0
    %384 = vmatmul.mubr.bf16.gmra.mrb[0].mxu0 %v308
    %v385 = vpop.f32.mrb[0].mxu0
    %v386 = vadd.f32 0.0, %v385
    %v387 = vpop.f32.mrb[0].mxu0
    %v388 = vpop.f32.mrb[0].mxu0
    %v389 = vadd.f32 0.0, %v388
    %v390 = vpop.f32.mrb[0].mxu0
    %391 = vmatprep.mubr.bf16.mxu0 0
    %392 = vmatmul.mubr.bf16.gmra.mrb[0].mxu0 %v311
    %v393 = vpop.f32.mrb[0].mxu0
    %v394 = vadd.f32 0.0, %v393
    %v395 = vpop.f32.mrb[0].mxu0
    %v396 = vpop.f32.mrb[0].mxu0
    %v397 = vadd.f32 0.0, %v396
    %v398 = vpop.f32.mrb[0].mxu0
    %399 = vmatprep.mubr.bf16.mxu0 0
    %400 = vmatmul.mubr.bf16.gmra.mrb[0].mxu0 %v314
    %v401 = vpop.f32.mrb[0].mxu0
    %v402 = vadd.f32 0.0, %v401
    %v403 = vpop.f32.mrb[0].mxu0
    %v404 = vpop.f32.mrb[0].mxu0
    %v405 = vadd.f32 0.0, %v404
    %v406 = vpop.f32.mrb[0].mxu0
    %407 = vmatprep.mubr.bf16.mxu0 0
    %408 = vmatmul.mubr.bf16.gmra.mrb[0].mxu0 %v317
    %v409 = vpop.f32.mrb[0].mxu0
    %v410 = vadd.f32 0.0, %v409
    %v411 = vpop.f32.mrb[0].mxu0
    %v412 = vpop.f32.mrb[0].mxu0
    %v413 = vadd.f32 0.0, %v412
    %v414 = vpop.f32.mrb[0].mxu0
    %415 = vdwg.mxu0
    %v416 = vadd.f32 %v354, %v357
    %v417 = vadd.f32 %v416, %v362
    %v418 = vadd.f32 %v417, %v365
    %v419 = vadd.f32 %v418, %v370
    %v420 = vadd.f32 %v419, %v373
    %v421 = vadd.f32 %v420, %v378
    %v422 = vadd.f32 %v421, %v381
    %v423 = vadd.f32 %v422, %v386
    %v424 = vadd.f32 %v423, %v389
    %v425 = vadd.f32 %v424, %v394
    %v426 = vadd.f32 %v425, %v397
    %v427 = vadd.f32 %v426, %v402
    %v428 = vadd.f32 %v427, %v405
    %v429 = vadd.f32 %v428, %v410
    %v430 = vadd.f32 %v429, %v413
    %v431 = vrot.slane %v430, 4
    %v432 = vadd.f32 %v430, %v431
    %v433 = vrot.slane %v432, 2
    %v434 = vadd.f32 %v432, %v433
    %v435 = vrot.slane %v434, 1
    %v436 = vadd.f32 %v434, %v435
    %v437 = vmul.f32 %v354, %v354
    %v438 = vmul.f32 %v357, %v357
    %v439 = vmul.f32 %v362, %v362
    %v440 = vmul.f32 %v365, %v365
    %v441 = vmul.f32 %v370, %v370
    %v442 = vmul.f32 %v373, %v373
    %v443 = vmul.f32 %v378, %v378
    %v444 = vmul.f32 %v381, %v381
    %v445 = vmul.f32 %v386, %v386
    %v446 = vmul.f32 %v389, %v389
    %v447 = vmul.f32 %v394, %v394
    %v448 = vmul.f32 %v397, %v397
    %v449 = vmul.f32 %v402, %v402
    %v450 = vmul.f32 %v405, %v405
    %v451 = vmul.f32 %v410, %v410
    %v452 = vmul.f32 %v413, %v413
    %v453 = vadd.f32 %v437, %v438
    %v454 = vadd.f32 %v453, %v439
    %v455 = vadd.f32 %v454, %v440
    %v456 = vadd.f32 %v455, %v441
    %v457 = vadd.f32 %v456, %v442
    %v458 = vadd.f32 %v457, %v443
    %v459 = vadd.f32 %v458, %v444
    %v460 = vadd.f32 %v459, %v445
    %v461 = vadd.f32 %v460, %v446
    %v462 = vadd.f32 %v461, %v447
    %v463 = vadd.f32 %v462, %v448
    %v464 = vadd.f32 %v463, %v449
    %v465 = vadd.f32 %v464, %v450
    %v466 = vadd.f32 %v465, %v451
    %v467 = vadd.f32 %v466, %v452
    %v468 = vrot.slane %v467, 4
    %v469 = vadd.f32 %v467, %v468
    %v470 = vrot.slane %v469, 2
    %v471 = vadd.f32 %v469, %v470
    %v472 = vrot.slane %v471, 1
    %v473 = vadd.f32 %v471, %v472
    %v474 = vmul.f32 %v436, 0.0078125
    %v475 = vmul.f32 %v473, 0.0078125
    %v476 = vmul.f32 %v474, %v474
    %v477 = vsub.f32 %v475, %v476
    %v478 = vmax.f32 %v477, 0.0
    %v479 = vld [vmem:[#allocation7] sm:$0x1]
    %v480 = vadd.f32 %v478, 1e-05
    %v481 = vrsqrt.pop %v480
    %v482 = vmul.f32 %v479, %v481
    %v483 = vld [vmem:[#allocation9] sm:$0x1]
    %v484 = vmul.f32 %v474, %v482
    %v485 = vsub.f32 %v483, %v484
    %v487 = vlaneseq
    %v488 = vshrl.u32 %v487, 7
    %v489 = vsub.s32 0, %v488
    %v490 = vrot.slane %v482, %v489
    %v492 = vmul.f32 %v354, %v490
    %v493 = vmul.f32 %v357, %v490
    %v494 = vmul.f32 %v362, %v490
    %v495 = vmul.f32 %v365, %v490
    %v496 = vmul.f32 %v370, %v490
    %v497 = vmul.f32 %v373, %v490
    %v498 = vmul.f32 %v378, %v490
    %v499 = vmul.f32 %v381, %v490
    %v500 = vmul.f32 %v386, %v490
    %v501 = vmul.f32 %v389, %v490
    %v502 = vmul.f32 %v394, %v490
    %v503 = vmul.f32 %v397, %v490
    %v504 = vmul.f32 %v402, %v490
    %v505 = vmul.f32 %v405, %v490
    %v506 = vmul.f32 %v410, %v490
    %v507 = vmul.f32 %v413, %v490
    %v509 = vlaneseq
    %v510 = vshrl.u32 %v509, 7
    %v511 = vsub.s32 0, %v510
    %v512 = vrot.slane %v485, %v511
    %v514 = vadd.f32 %v492, %v512
    %v515 = vadd.f32 %v493, %v512
    %v516 = vadd.f32 %v494, %v512
    %v517 = vadd.f32 %v495, %v512
    %v518 = vadd.f32 %v496, %v512
    %v519 = vadd.f32 %v497, %v512
    %v520 = vadd.f32 %v498, %v512
    %v521 = vadd.f32 %v499, %v512
    %v522 = vadd.f32 %v500, %v512
    %v523 = vadd.f32 %v501, %v512
    %v524 = vadd.f32 %v502, %v512
    %v525 = vadd.f32 %v503, %v512
    %v526 = vadd.f32 %v504, %v512
    %v527 = vadd.f32 %v505, %v512
    %v528 = vadd.f32 %v506, %v512
    %v529 = vadd.f32 %v507, %v512
    %v530 = vmax.f32 %v514, 0.0
    %v531 = vmax.f32 %v515, 0.0
    %v532 = vmax.f32 %v516, 0.0
    %v533 = vmax.f32 %v517, 0.0
    %v534 = vmax.f32 %v518, 0.0
    %v535 = vmax.f32 %v519, 0.0
    %v536 = vmax.f32 %v520, 0.0
    %v537 = vmax.f32 %v521, 0.0
    %v538 = vmax.f32 %v522, 0.0
    %v539 = vmax.f32 %v523, 0.0
    %v540 = vmax.f32 %v524, 0.0
    %v541 = vmax.f32 %v525, 0.0
    %v542 = vmax.f32 %v526, 0.0
    %v543 = vmax.f32 %v527, 0.0
    %v544 = vmax.f32 %v528, 0.0
    %v545 = vmax.f32 %v529, 0.0
    %v546 = vpack.c.bf16 %v531, %v530
    %v547 = vpack.c.bf16 %v533, %v532
    %v548 = vpack.c.bf16 %v535, %v534
    %v549 = vpack.c.bf16 %v537, %v536
    %v550 = vpack.c.bf16 %v539, %v538
    %v551 = vpack.c.bf16 %v541, %v540
    %v552 = vpack.c.bf16 %v543, %v542
    %v553 = vpack.c.bf16 %v545, %v544
    %v554 = vld [vmem:[#allocation10] sm:$0xff]
    %v555 = vld [vmem:[#allocation10 + $0x8] sm:$0xff]
    %v556 = vld [vmem:[#allocation10 + $0x10] sm:$0xff]
    %v557 = vld [vmem:[#allocation10 + $0x18] sm:$0xff]
    %v558 = vld [vmem:[#allocation10 + $0x20] sm:$0xff]
    %v559 = vld [vmem:[#allocation10 + $0x28] sm:$0xff]
    %v560 = vld [vmem:[#allocation10 + $0x30] sm:$0xff]
    %v561 = vld [vmem:[#allocation10 + $0x38] sm:$0xff]
    %v562 = vld [vmem:[#allocation10 + $0x40] sm:$0xff]
    %v563 = vld [vmem:[#allocation10 + $0x48] sm:$0xff]
    %v564 = vld [vmem:[#allocation10 + $0x50] sm:$0xff]
    %v565 = vld [vmem:[#allocation10 + $0x58] sm:$0xff]
    %v566 = vld [vmem:[#allocation10 + $0x60] sm:$0xff]
    %v567 = vld [vmem:[#allocation10 + $0x68] sm:$0xff]
    %v568 = vld [vmem:[#allocation10 + $0x70] sm:$0xff]
    %v569 = vld [vmem:[#allocation10 + $0x78] sm:$0xff]
    %v586 = vunpack.c.l.b16 %v554
    %v587 = vunpack.c.h.b16 %v554
    %v588 = vunpack.c.l.b16 %v555
    %v589 = vunpack.c.h.b16 %v555
    %v590 = vunpack.c.l.b16 %v556
    %v591 = vunpack.c.h.b16 %v556
    %v592 = vunpack.c.l.b16 %v557
    %v593 = vunpack.c.h.b16 %v557
    %v594 = vunpack.c.l.b16 %v558
    %v595 = vunpack.c.h.b16 %v558
    %v596 = vunpack.c.l.b16 %v559
    %v597 = vunpack.c.h.b16 %v559
    %v598 = vunpack.c.l.b16 %v560
    %v599 = vunpack.c.h.b16 %v560
    %v600 = vunpack.c.l.b16 %v561
    %v601 = vunpack.c.h.b16 %v561
    %v602 = vunpack.c.l.b16 %v562
    %v603 = vunpack.c.h.b16 %v562
    %v604 = vunpack.c.l.b16 %v563
    %v605 = vunpack.c.h.b16 %v563
    %v606 = vunpack.c.l.b16 %v564
    %v607 = vunpack.c.h.b16 %v564
    %v608 = vunpack.c.l.b16 %v565
    %v609 = vunpack.c.h.b16 %v565
    %v610 = vunpack.c.l.b16 %v566
    %v611 = vunpack.c.h.b16 %v566
    %v612 = vunpack.c.l.b16 %v567
    %v613 = vunpack.c.h.b16 %v567
    %v614 = vunpack.c.l.b16 %v568
    %v615 = vunpack.c.h.b16 %v568
    %v616 = vunpack.c.l.b16 %v569
    %v617 = vunpack.c.h.b16 %v569
    %v618 = vpack.c.b16 %v588, %v586
    %v619 = vpack.c.b16 %v589, %v587
    %v620 = vpack.c.b16 %v592, %v590
    %v621 = vpack.c.b16 %v593, %v591
    %v622 = vpack.c.b16 %v596, %v594
    %v623 = vpack.c.b16 %v597, %v595
    %v624 = vpack.c.b16 %v600, %v598
    %v625 = vpack.c.b16 %v601, %v599
    %v626 = vpack.c.b16 %v604, %v602
    %v627 = vpack.c.b16 %v605, %v603
    %v628 = vpack.c.b16 %v608, %v606
    %v629 = vpack.c.b16 %v609, %v607
    %v630 = vpack.c.b16 %v612, %v610
    %v631 = vpack.c.b16 %v613, %v611
    %v632 = vpack.c.b16 %v616, %v614
    %v633 = vpack.c.b16 %v617, %v615
    %650 = vmatprep.subr.bf16.mxu0 %v619
    %651 = vmatpush1.bf16.msra.mxu0 %v618
    %652 = vmatprep.subr.bf16.mxu0 %v621
    %653 = vmatpush1.bf16.msra.mxu0 %v620
    %654 = vmatprep.subr.bf16.mxu0 %v623
    %655 = vmatpush1.bf16.msra.mxu0 %v622
    %656 = vmatprep.subr.bf16.mxu0 %v625
    %657 = vmatpush1.bf16.msra.mxu0 %v624
    %658 = vmatprep.subr.bf16.mxu0 %v627
    %659 = vmatpush1.bf16.msra.mxu0 %v626
    %660 = vmatprep.subr.bf16.mxu0 %v629
    %661 = vmatpush1.bf16.msra.mxu0 %v628
    %662 = vmatprep.subr.bf16.mxu0 %v631
    %663 = vmatpush1.bf16.msra.mxu0 %v630
    %664 = vmatprep.subr.bf16.mxu0 %v633
    %665 = vmatpush1.bf16.msra.mxu0 %v632
    %666 = vmatprep.subr.bf16.mxu0 0
    %667 = vmatpush1.bf16.msra.mxu0 0
    %668 = vmatprep.subr.bf16.mxu0 0
    %669 = vmatpush1.bf16.msra.mxu0 0
    %670 = vmatprep.subr.bf16.mxu0 0
    %671 = vmatpush1.bf16.msra.mxu0 0
    %672 = vmatprep.subr.bf16.mxu0 0
    %673 = vmatpush1.bf16.msra.mxu0 0
    %674 = vmatprep.subr.bf16.mxu0 0
    %675 = vmatpush1.bf16.msra.mxu0 0
    %676 = vmatprep.subr.bf16.mxu0 0
    %677 = vmatpush1.bf16.msra.mxu0 0
    %678 = vmatprep.subr.bf16.mxu0 0
    %679 = vmatpush1.bf16.msra.mxu0 0
    %680 = vmatprep.subr.bf16.mxu0 0
    %681 = vmatpush1.bf16.msra.mxu0 0
    %682 = vmatprep.mubr.bf16.mxu0 0
    %683 = vmatmul.mubr.bf16.gmra.mrb[0].mxu0 %v546
    %v684 = vpop.f32.mrb[0].mxu0
    %v685 = vadd.f32 0.0, %v684
    %v686 = vpop.f32.mrb[0].mxu0
    %v687 = vadd.f32 0.0, %v686
    %v688 = vpop.f32.mrb[0].mxu0
    %v689 = vadd.f32 0.0, %v688
    %v690 = vpop.f32.mrb[0].mxu0
    %v691 = vadd.f32 0.0, %v690
    %692 = vmatprep.mubr.bf16.mxu0 0
    %693 = vmatmul.mubr.bf16.gmra.mrb[0].mxu0 %v547
    %v694 = vpop.f32.mrb[0].mxu0
    %v695 = vadd.f32 0.0, %v694
    %v696 = vpop.f32.mrb[0].mxu0
    %v697 = vadd.f32 0.0, %v696
    %v698 = vpop.f32.mrb[0].mxu0
    %v699 = vadd.f32 0.0, %v698
    %v700 = vpop.f32.mrb[0].mxu0
    %v701 = vadd.f32 0.0, %v700
    %702 = vmatprep.mubr.bf16.mxu0 0
    %703 = vmatmul.mubr.bf16.gmra.mrb[0].mxu0 %v548
    %v704 = vpop.f32.mrb[0].mxu0
    %v705 = vadd.f32 0.0, %v704
    %v706 = vpop.f32.mrb[0].mxu0
    %v707 = vadd.f32 0.0, %v706
    %v708 = vpop.f32.mrb[0].mxu0
    %v709 = vadd.f32 0.0, %v708
    %v710 = vpop.f32.mrb[0].mxu0
    %v711 = vadd.f32 0.0, %v710
    %712 = vmatprep.mubr.bf16.mxu0 0
    %713 = vmatmul.mubr.bf16.gmra.mrb[0].mxu0 %v549
    %v714 = vpop.f32.mrb[0].mxu0
    %v715 = vadd.f32 0.0, %v714
    %v716 = vpop.f32.mrb[0].mxu0
    %v717 = vadd.f32 0.0, %v716
    %v718 = vpop.f32.mrb[0].mxu0
    %v719 = vadd.f32 0.0, %v718
    %v720 = vpop.f32.mrb[0].mxu0
    %v721 = vadd.f32 0.0, %v720
    %722 = vmatprep.mubr.bf16.mxu0 0
    %723 = vmatmul.mubr.bf16.gmra.mrb[0].mxu0 %v550
    %v724 = vpop.f32.mrb[0].mxu0
    %v725 = vadd.f32 0.0, %v724
    %v726 = vpop.f32.mrb[0].mxu0
    %v727 = vadd.f32 0.0, %v726
    %v728 = vpop.f32.mrb[0].mxu0
    %v729 = vadd.f32 0.0, %v728
    %v730 = vpop.f32.mrb[0].mxu0
    %v731 = vadd.f32 0.0, %v730
    %732 = vmatprep.mubr.bf16.mxu0 0
    %733 = vmatmul.mubr.bf16.gmra.mrb[0].mxu0 %v551
    %v734 = vpop.f32.mrb[0].mxu0
    %v735 = vadd.f32 0.0, %v734
    %v736 = vpop.f32.mrb[0].mxu0
    %v737 = vadd.f32 0.0, %v736
    %v738 = vpop.f32.mrb[0].mxu0
    %v739 = vadd.f32 0.0, %v738
    %v740 = vpop.f32.mrb[0].mxu0
    %v741 = vadd.f32 0.0, %v740
    %742 = vmatprep.mubr.bf16.mxu0 0
    %743 = vmatmul.mubr.bf16.gmra.mrb[0].mxu0 %v552
    %v744 = vpop.f32.mrb[0].mxu0
    %v745 = vadd.f32 0.0, %v744
    %v746 = vpop.f32.mrb[0].mxu0
    %v747 = vadd.f32 0.0, %v746
    %v748 = vpop.f32.mrb[0].mxu0
    %v749 = vadd.f32 0.0, %v748
    %v750 = vpop.f32.mrb[0].mxu0
    %v751 = vadd.f32 0.0, %v750
    %752 = vmatprep.mubr.bf16.mxu0 0
    %753 = vmatmul.mubr.bf16.gmra.mrb[0].mxu0 %v553
    %v754 = vpop.f32.mrb[0].mxu0
    %v755 = vadd.f32 0.0, %v754
    %v756 = vpop.f32.mrb[0].mxu0
    %v757 = vadd.f32 0.0, %v756
    %v758 = vpop.f32.mrb[0].mxu0
    %v759 = vadd.f32 0.0, %v758
    %v760 = vpop.f32.mrb[0].mxu0
    %v761 = vadd.f32 0.0, %v760
    %762 = vdwg.mxu0
    %v763 = vadd.f32 %v685, %v689
    %v764 = vadd.f32 %v763, %v695
    %v765 = vadd.f32 %v764, %v699
    %v766 = vadd.f32 %v765, %v705
    %v767 = vadd.f32 %v766, %v709
    %v768 = vadd.f32 %v767, %v715
    %v769 = vadd.f32 %v768, %v719
    %v770 = vadd.f32 %v769, %v725
    %v771 = vadd.f32 %v770, %v729
    %v772 = vadd.f32 %v771, %v735
    %v773 = vadd.f32 %v772, %v739
    %v774 = vadd.f32 %v773, %v745
    %v775 = vadd.f32 %v774, %v749
    %v776 = vadd.f32 %v775, %v755
    %v777 = vadd.f32 %v776, %v759
    %v778 = vrot.slane %v777, 4
    %v779 = vadd.f32 %v777, %v778
    %v780 = vrot.slane %v779, 2
    %v781 = vadd.f32 %v779, %v780
    %v782 = vrot.slane %v781, 1
    %v783 = vadd.f32 %v781, %v782
    %v784 = vadd.f32 %v687, %v691
    %v785 = vadd.f32 %v784, %v697
    %v786 = vadd.f32 %v785, %v701
    %v787 = vadd.f32 %v786, %v707
    %v788 = vadd.f32 %v787, %v711
    %v789 = vadd.f32 %v788, %v717
    %v790 = vadd.f32 %v789, %v721
    %v791 = vadd.f32 %v790, %v727
    %v792 = vadd.f32 %v791, %v731
    %v793 = vadd.f32 %v792, %v737
    %v794 = vadd.f32 %v793, %v741
    %v795 = vadd.f32 %v794, %v747
    %v796 = vadd.f32 %v795, %v751
    %v797 = vadd.f32 %v796, %v757
    %v798 = vadd.f32 %v797, %v761
    %v799 = vrot.slane %v798, 4
    %v800 = vadd.f32 %v798, %v799
    %v801 = vrot.slane %v800, 2
    %v802 = vadd.f32 %v800, %v801
    %v803 = vrot.slane %v802, 1
    %v804 = vadd.f32 %v802, %v803
    %v805 = vmul.f32 %v685, %v685
    %v806 = vmul.f32 %v687, %v687
    %v807 = vmul.f32 %v689, %v689
    %v808 = vmul.f32 %v691, %v691
    %v809 = vmul.f32 %v695, %v695
    %v810 = vmul.f32 %v697, %v697
    %v811 = vmul.f32 %v699, %v699
    %v812 = vmul.f32 %v701, %v701
    %v813 = vmul.f32 %v705, %v705
    %v814 = vmul.f32 %v707, %v707
    %v815 = vmul.f32 %v709, %v709
    %v816 = vmul.f32 %v711, %v711
    %v817 = vmul.f32 %v715, %v715
    %v818 = vmul.f32 %v717, %v717
    %v819 = vmul.f32 %v719, %v719
    %v820 = vmul.f32 %v721, %v721
    %v821 = vmul.f32 %v725, %v725
    %v822 = vmul.f32 %v727, %v727
    %v823 = vmul.f32 %v729, %v729
    %v824 = vmul.f32 %v731, %v731
    %v825 = vmul.f32 %v735, %v735
    %v826 = vmul.f32 %v737, %v737
    %v827 = vmul.f32 %v739, %v739
    %v828 = vmul.f32 %v741, %v741
    %v829 = vmul.f32 %v745, %v745
    %v830 = vmul.f32 %v747, %v747
    %v831 = vmul.f32 %v749, %v749
    %v832 = vmul.f32 %v751, %v751
    %v833 = vmul.f32 %v755, %v755
    %v834 = vmul.f32 %v757, %v757
    %v835 = vmul.f32 %v759, %v759
    %v836 = vmul.f32 %v761, %v761
    %v837 = vadd.f32 %v805, %v807
    %v838 = vadd.f32 %v837, %v809
    %v839 = vadd.f32 %v838, %v811
    %v840 = vadd.f32 %v839, %v813
    %v841 = vadd.f32 %v840, %v815
    %v842 = vadd.f32 %v841, %v817
    %v843 = vadd.f32 %v842, %v819
    %v844 = vadd.f32 %v843, %v821
    %v845 = vadd.f32 %v844, %v823
    %v846 = vadd.f32 %v845, %v825
    %v847 = vadd.f32 %v846, %v827
    %v848 = vadd.f32 %v847, %v829
    %v849 = vadd.f32 %v848, %v831
    %v850 = vadd.f32 %v849, %v833
    %v851 = vadd.f32 %v850, %v835
    %v852 = vrot.slane %v851, 4
    %v853 = vadd.f32 %v851, %v852
    %v854 = vrot.slane %v853, 2
    %v855 = vadd.f32 %v853, %v854
    %v856 = vrot.slane %v855, 1
    %v857 = vadd.f32 %v855, %v856
    %v858 = vadd.f32 %v806, %v808
    %v859 = vadd.f32 %v858, %v810
    %v860 = vadd.f32 %v859, %v812
    %v861 = vadd.f32 %v860, %v814
    %v862 = vadd.f32 %v861, %v816
    %v863 = vadd.f32 %v862, %v818
    %v864 = vadd.f32 %v863, %v820
    %v865 = vadd.f32 %v864, %v822
    %v866 = vadd.f32 %v865, %v824
    %v867 = vadd.f32 %v866, %v826
    %v868 = vadd.f32 %v867, %v828
    %v869 = vadd.f32 %v868, %v830
    %v870 = vadd.f32 %v869, %v832
    %v871 = vadd.f32 %v870, %v834
    %v872 = vadd.f32 %v871, %v836
    %v873 = vrot.slane %v872, 4
    %v874 = vadd.f32 %v872, %v873
    %v875 = vrot.slane %v874, 2
    %v876 = vadd.f32 %v874, %v875
    %v877 = vrot.slane %v876, 1
    %v878 = vadd.f32 %v876, %v877
    %v879 = vmul.f32 %v783, 0.0078125
    %v880 = vmul.f32 %v804, 0.0078125
    %v881 = vmul.f32 %v857, 0.0078125
    %v882 = vmul.f32 %v878, 0.0078125
    %v883 = vmul.f32 %v879, %v879
    %v884 = vmul.f32 %v880, %v880
    %v885 = vsub.f32 %v881, %v883
    %v886 = vsub.f32 %v882, %v884
    %v887 = vmax.f32 %v885, 0.0
    %v888 = vmax.f32 %v886, 0.0
    %v889 = vld [vmem:[#allocation12] sm:$0x3]
    %v890 = vadd.f32 %v887, 1e-05
    %v891 = vadd.f32 %v888, 1e-05
    %v892 = vrsqrt.pop %v890
    %v893 = vrsqrt.pop %v891
    %v896 = vcombine.low %v892, %v893
    %v898 = vunpack.c.l.s4 1966171168
    %v899 = vunpack.c.0.s8 %v898
    %v900 = vlaneseq
    %v901 = vshrl.u32 %v900, 7
    %v902 = vsub.s32 %v899, %v901
    %v903 = vrot.slane %v896, %v902
    %v905 = vunpack.c.l.s4 1966171168
    %v906 = vunpack.c.0.s8 %v905
    %v907 = vlaneseq
    %v908 = vshrl.u32 %v907, 7
    %v909 = vsub.s32 %v906, %v908
    %v910 = vrot.slane %v903, %v909
    %v912 = vmul.f32 %v889, %v910
    %v913 = vld [vmem:[#allocation13] sm:$0x3]
    %v915 = vlaneseq
    %v916 = vshrl.u32 %v915, 7
    %v917 = vsub.s32 0, %v916
    %v918 = vrot.slane %v912, %v917
    %v919 = vlaneseq
    %v920 = vshrl.u32 %v919, 7
    %v921 = vsub.s32 1, %v920
    %v922 = vrot.slane %v912, %v921
    %v925 = vmul.f32 %v879, %v918
    %v926 = vmul.f32 %v880, %v922
    %v929 = vcombine.low %v925, %v926
    %v931 = vunpack.c.l.s4 1966171168
    %v932 = vunpack.c.0.s8 %v931
    %v933 = vlaneseq
    %v934 = vshrl.u32 %v933, 7
    %v935 = vsub.s32 %v932, %v934
    %v936 = vrot.slane %v929, %v935
    %v938 = vunpack.c.l.s4 1966171168
    %v939 = vunpack.c.0.s8 %v938
    %v940 = vlaneseq
    %v941 = vshrl.u32 %v940, 7
    %v942 = vsub.s32 %v939, %v941
    %v943 = vrot.slane %v936, %v942
    %v945 = vsub.f32 %v913, %v943
    %v946 = vmul.f32 %v685, %v918
    %v947 = vmul.f32 %v687, %v922
    %v948 = vmul.f32 %v689, %v918
    %v949 = vmul.f32 %v691, %v922
    %v950 = vmul.f32 %v695, %v918
    %v951 = vmul.f32 %v697, %v922
    %v952 = vmul.f32 %v699, %v918
    %v953 = vmul.f32 %v701, %v922
    %v954 = vmul.f32 %v705, %v918
    %v955 = vmul.f32 %v707, %v922
    %v956 = vmul.f32 %v709, %v918
    %v957 = vmul.f32 %v711, %v922
    %v958 = vmul.f32 %v715, %v918
    %v959 = vmul.f32 %v717, %v922
    %v960 = vmul.f32 %v719, %v918
    %v961 = vmul.f32 %v721, %v922
    %v962 = vmul.f32 %v725, %v918
    %v963 = vmul.f32 %v727, %v922
    %v964 = vmul.f32 %v729, %v918
    %v965 = vmul.f32 %v731, %v922
    %v966 = vmul.f32 %v735, %v918
    %v967 = vmul.f32 %v737, %v922
    %v968 = vmul.f32 %v739, %v918
    %v969 = vmul.f32 %v741, %v922
    %v970 = vmul.f32 %v745, %v918
    %v971 = vmul.f32 %v747, %v922
    %v972 = vmul.f32 %v749, %v918
    %v973 = vmul.f32 %v751, %v922
    %v974 = vmul.f32 %v755, %v918
    %v975 = vmul.f32 %v757, %v922
    %v976 = vmul.f32 %v759, %v918
    %v977 = vmul.f32 %v761, %v922
    %v979 = vlaneseq
    %v980 = vshrl.u32 %v979, 7
    %v981 = vsub.s32 0, %v980
    %v982 = vrot.slane %v945, %v981
    %v983 = vlaneseq
    %v984 = vshrl.u32 %v983, 7
    %v985 = vsub.s32 1, %v984
    %v986 = vrot.slane %v945, %v985
    %v989 = vadd.f32 %v946, %v982
    %v990 = vadd.f32 %v947, %v986
    %v991 = vadd.f32 %v948, %v982
    %v992 = vadd.f32 %v949, %v986
    %v993 = vadd.f32 %v950, %v982
    %v994 = vadd.f32 %v951, %v986
    %v995 = vadd.f32 %v952, %v982
    %v996 = vadd.f32 %v953, %v986
    %v997 = vadd.f32 %v954, %v982
    %v998 = vadd.f32 %v955, %v986
    %v999 = vadd.f32 %v956, %v982
    %v1000 = vadd.f32 %v957, %v986
    %v1001 = vadd.f32 %v958, %v982
    %v1002 = vadd.f32 %v959, %v986
    %v1003 = vadd.f32 %v960, %v982
    %v1004 = vadd.f32 %v961, %v986
    %v1005 = vadd.f32 %v962, %v982
    %v1006 = vadd.f32 %v963, %v986
    %v1007 = vadd.f32 %v964, %v982
    %v1008 = vadd.f32 %v965, %v986
    %v1009 = vadd.f32 %v966, %v982
    %v1010 = vadd.f32 %v967, %v986
    %v1011 = vadd.f32 %v968, %v982
    %v1012 = vadd.f32 %v969, %v986
    %v1013 = vadd.f32 %v970, %v982
    %v1014 = vadd.f32 %v971, %v986
    %v1015 = vadd.f32 %v972, %v982
    %v1016 = vadd.f32 %v973, %v986
    %v1017 = vadd.f32 %v974, %v982
    %v1018 = vadd.f32 %v975, %v986
    %v1019 = vadd.f32 %v976, %v982
    %v1020 = vadd.f32 %v977, %v986
    %v1021 = vmax.f32 %v989, 0.0
    %v1022 = vmax.f32 %v990, 0.0
    %v1023 = vmax.f32 %v991, 0.0
    %v1024 = vmax.f32 %v992, 0.0
    %v1025 = vmax.f32 %v993, 0.0
    %v1026 = vmax.f32 %v994, 0.0
    %v1027 = vmax.f32 %v995, 0.0
    %v1028 = vmax.f32 %v996, 0.0
    %v1029 = vmax.f32 %v997, 0.0
    %v1030 = vmax.f32 %v998, 0.0
    %v1031 = vmax.f32 %v999, 0.0
    %v1032 = vmax.f32 %v1000, 0.0
    %v1033 = vmax.f32 %v1001, 0.0
    %v1034 = vmax.f32 %v1002, 0.0
    %v1035 = vmax.f32 %v1003, 0.0
    %v1036 = vmax.f32 %v1004, 0.0
    %v1037 = vmax.f32 %v1005, 0.0
    %v1038 = vmax.f32 %v1006, 0.0
    %v1039 = vmax.f32 %v1007, 0.0
    %v1040 = vmax.f32 %v1008, 0.0
    %v1041 = vmax.f32 %v1009, 0.0
    %v1042 = vmax.f32 %v1010, 0.0
    %v1043 = vmax.f32 %v1011, 0.0
    %v1044 = vmax.f32 %v1012, 0.0
    %v1045 = vmax.f32 %v1013, 0.0
    %v1046 = vmax.f32 %v1014, 0.0
    %v1047 = vmax.f32 %v1015, 0.0
    %v1048 = vmax.f32 %v1016, 0.0
    %v1049 = vmax.f32 %v1017, 0.0
    %v1050 = vmax.f32 %v1018, 0.0
    %v1051 = vmax.f32 %v1019, 0.0
    %v1052 = vmax.f32 %v1020, 0.0
    %v1053 = vpack.c.bf16 %v1023, %v1021
    %v1054 = vpack.c.bf16 %v1024, %v1022
    %v1055 = vpack.c.bf16 %v1027, %v1025
    %v1056 = vpack.c.bf16 %v1028, %v1026
    %v1057 = vpack.c.bf16 %v1031, %v1029
    %v1058 = vpack.c.bf16 %v1032, %v1030
    %v1059 = vpack.c.bf16 %v1035, %v1033
    %v1060 = vpack.c.bf16 %v1036, %v1034
    %v1061 = vpack.c.bf16 %v1039, %v1037
    %v1062 = vpack.c.bf16 %v1040, %v1038
    %v1063 = vpack.c.bf16 %v1043, %v1041
    %v1064 = vpack.c.bf16 %v1044, %v1042
    %v1065 = vpack.c.bf16 %v1047, %v1045
    %v1066 = vpack.c.bf16 %v1048, %v1046
    %v1067 = vpack.c.bf16 %v1051, %v1049
    %v1068 = vpack.c.bf16 %v1052, %v1050
    %v1069 = vld [vmem:[#allocation15] sm:$0xff]
    %v1070 = vld [vmem:[#allocation15 + $0x8] sm:$0xff]
    %v1071 = vld [vmem:[#allocation15 + $0x10] sm:$0xff]
    %v1072 = vld [vmem:[#allocation15 + $0x18] sm:$0xff]
    %v1073 = vld [vmem:[#allocation15 + $0x20] sm:$0xff]
    %v1074 = vld [vmem:[#allocation15 + $0x28] sm:$0xff]
    %v1075 = vld [vmem:[#allocation15 + $0x30] sm:$0xff]
    %v1076 = vld [vmem:[#allocation15 + $0x38] sm:$0xff]
    %v1077 = vld [vmem:[#allocation15 + $0x40] sm:$0xff]
    %v1078 = vld [vmem:[#allocation15 + $0x48] sm:$0xff]
    %v1079 = vld [vmem:[#allocation15 + $0x50] sm:$0xff]
    %v1080 = vld [vmem:[#allocation15 + $0x58] sm:$0xff]
    %v1081 = vld [vmem:[#allocation15 + $0x60] sm:$0xff]
    %v1082 = vld [vmem:[#allocation15 + $0x68] sm:$0xff]
    %v1083 = vld [vmem:[#allocation15 + $0x70] sm:$0xff]
    %v1084 = vld [vmem:[#allocation15 + $0x78] sm:$0xff]
    %v1085 = vld [vmem:[#allocation15 + $0x80] sm:$0xff]
    %v1086 = vld [vmem:[#allocation15 + $0x88] sm:$0xff]
    %v1087 = vld [vmem:[#allocation15 + $0x90] sm:$0xff]
    %v1088 = vld [vmem:[#allocation15 + $0x98] sm:$0xff]
    %v1089 = vld [vmem:[#allocation15 + $0xa0] sm:$0xff]
    %v1090 = vld [vmem:[#allocation15 + $0xa8] sm:$0xff]
    %v1091 = vld [vmem:[#allocation15 + $0xb0] sm:$0xff]
    %v1092 = vld [vmem:[#allocation15 + $0xb8] sm:$0xff]
    %v1093 = vld [vmem:[#allocation15 + $0xc0] sm:$0xff]
    %v1094 = vld [vmem:[#allocation15 + $0xc8] sm:$0xff]
    %v1095 = vld [vmem:[#allocation15 + $0xd0] sm:$0xff]
    %v1096 = vld [vmem:[#allocation15 + $0xd8] sm:$0xff]
    %v1097 = vld [vmem:[#allocation15 + $0xe0] sm:$0xff]
    %v1098 = vld [vmem:[#allocation15 + $0xe8] sm:$0xff]
    %v1099 = vld [vmem:[#allocation15 + $0xf0] sm:$0xff]
    %v1100 = vld [vmem:[#allocation15 + $0xf8] sm:$0xff]
    %v1101 = vld [vmem:[#allocation15 + $0x100] sm:$0xff]
    %v1102 = vld [vmem:[#allocation15 + $0x108] sm:$0xff]
    %v1103 = vld [vmem:[#allocation15 + $0x110] sm:$0xff]
    %v1104 = vld [vmem:[#allocation15 + $0x118] sm:$0xff]
    %v1105 = vld [vmem:[#allocation15 + $0x120] sm:$0xff]
    %v1106 = vld [vmem:[#allocation15 + $0x128] sm:$0xff]
    %v1107 = vld [vmem:[#allocation15 + $0x130] sm:$0xff]
    %v1108 = vld [vmem:[#allocation15 + $0x138] sm:$0xff]
    %v1109 = vld [vmem:[#allocation15 + $0x140] sm:$0xff]
    %v1110 = vld [vmem:[#allocation15 + $0x148] sm:$0xff]
    %v1111 = vld [vmem:[#allocation15 + $0x150] sm:$0xff]
    %v1112 = vld [vmem:[#allocation15 + $0x158] sm:$0xff]
    %v1113 = vld [vmem:[#allocation15 + $0x160] sm:$0xff]
    %v1114 = vld [vmem:[#allocation15 + $0x168] sm:$0xff]
    %v1115 = vld [vmem:[#allocation15 + $0x170] sm:$0xff]
    %v1116 = vld [vmem:[#allocation15 + $0x178] sm:$0xff]
    %v1117 = vld [vmem:[#allocation15 + $0x180] sm:$0xff]
    %v1118 = vld [vmem:[#allocation15 + $0x188] sm:$0xff]
    %v1119 = vld [vmem:[#allocation15 + $0x190] sm:$0xff]
    %v1120 = vld [vmem:[#allocation15 + $0x198] sm:$0xff]
    %v1121 = vld [vmem:[#allocation15 + $0x1a0] sm:$0xff]
    %v1122 = vld [vmem:[#allocation15 + $0x1a8] sm:$0xff]
    %v1123 = vld [vmem:[#allocation15 + $0x1b0] sm:$0xff]
    %v1124 = vld [vmem:[#allocation15 + $0x1b8] sm:$0xff]
    %v1125 = vld [vmem:[#allocation15 + $0x1c0] sm:$0xff]
    %v1126 = vld [vmem:[#allocation15 + $0x1c8] sm:$0xff]
    %v1127 = vld [vmem:[#allocation15 + $0x1d0] sm:$0xff]
    %v1128 = vld [vmem:[#allocation15 + $0x1d8] sm:$0xff]
    %v1129 = vld [vmem:[#allocation15 + $0x1e0] sm:$0xff]
    %v1130 = vld [vmem:[#allocation15 + $0x1e8] sm:$0xff]
    %v1131 = vld [vmem:[#allocation15 + $0x1f0] sm:$0xff]
    %v1132 = vld [vmem:[#allocation15 + $0x1f8] sm:$0xff]
    %v1197 = vunpack.c.l.b16 %v1069
    %v1198 = vunpack.c.h.b16 %v1069
    %v1199 = vunpack.c.l.b16 %v1070
    %v1200 = vunpack.c.h.b16 %v1070
    %v1201 = vunpack.c.l.b16 %v1071
    %v1202 = vunpack.c.h.b16 %v1071
    %v1203 = vunpack.c.l.b16 %v1072
    %v1204 = vunpack.c.h.b16 %v1072
    %v1205 = vunpack.c.l.b16 %v1073
    %v1206 = vunpack.c.h.b16 %v1073
    %v1207 = vunpack.c.l.b16 %v1074
    %v1208 = vunpack.c.h.b16 %v1074
    %v1209 = vunpack.c.l.b16 %v1075
    %v1210 = vunpack.c.h.b16 %v1075
    %v1211 = vunpack.c.l.b16 %v1076
    %v1212 = vunpack.c.h.b16 %v1076
    %v1213 = vunpack.c.l.b16 %v1077
    %v1214 = vunpack.c.h.b16 %v1077
    %v1215 = vunpack.c.l.b16 %v1078
    %v1216 = vunpack.c.h.b16 %v1078
    %v1217 = vunpack.c.l.b16 %v1079
    %v1218 = vunpack.c.h.b16 %v1079
    %v1219 = vunpack.c.l.b16 %v1080
    %v1220 = vunpack.c.h.b16 %v1080
    %v1221 = vunpack.c.l.b16 %v1081
    %v1222 = vunpack.c.h.b16 %v1081
    %v1223 = vunpack.c.l.b16 %v1082
    %v1224 = vunpack.c.h.b16 %v1082
    %v1225 = vunpack.c.l.b16 %v1083
    %v1226 = vunpack.c.h.b16 %v1083
    %v1227 = vunpack.c.l.b16 %v1084
    %v1228 = vunpack.c.h.b16 %v1084
    %v1229 = vunpack.c.l.b16 %v1085
    %v1230 = vunpack.c.h.b16 %v1085
    %v1231 = vunpack.c.l.b16 %v1086
    %v1232 = vunpack.c.h.b16 %v1086
    %v1233 = vunpack.c.l.b16 %v1087
    %v1234 = vunpack.c.h.b16 %v1087
    %v1235 = vunpack.c.l.b16 %v1088
    %v1236 = vunpack.c.h.b16 %v1088
    %v1237 = vunpack.c.l.b16 %v1089
    %v1238 = vunpack.c.h.b16 %v1089
    %v1239 = vunpack.c.l.b16 %v1090
    %v1240 = vunpack.c.h.b16 %v1090
    %v1241 = vunpack.c.l.b16 %v1091
    %v1242 = vunpack.c.h.b16 %v1091
    %v1243 = vunpack.c.l.b16 %v1092
    %v1244 = vunpack.c.h.b16 %v1092
    %v1245 = vunpack.c.l.b16 %v1093
    %v1246 = vunpack.c.h.b16 %v1093
    %v1247 = vunpack.c.l.b16 %v1094
    %v1248 = vunpack.c.h.b16 %v1094
    %v1249 = vunpack.c.l.b16 %v1095
    %v1250 = vunpack.c.h.b16 %v1095
    %v1251 = vunpack.c.l.b16 %v1096
    %v1252 = vunpack.c.h.b16 %v1096
    %v1253 = vunpack.c.l.b16 %v1097
    %v1254 = vunpack.c.h.b16 %v1097
    %v1255 = vunpack.c.l.b16 %v1098
    %v1256 = vunpack.c.h.b16 %v1098
    %v1257 = vunpack.c.l.b16 %v1099
    %v1258 = vunpack.c.h.b16 %v1099
    %v1259 = vunpack.c.l.b16 %v1100
    %v1260 = vunpack.c.h.b16 %v1100
    %v1261 = vunpack.c.l.b16 %v1101
    %v1262 = vunpack.c.h.b16 %v1101
    %v1263 = vunpack.c.l.b16 %v1102
    %v1264 = vunpack.c.h.b16 %v1102
    %v1265 = vunpack.c.l.b16 %v1103
    %v1266 = vunpack.c.h.b16 %v1103
    %v1267 = vunpack.c.l.b16 %v1104
    %v1268 = vunpack.c.h.b16 %v1104
    %v1269 = vunpack.c.l.b16 %v1105
    %v1270 = vunpack.c.h.b16 %v1105
    %v1271 = vunpack.c.l.b16 %v1106
    %v1272 = vunpack.c.h.b16 %v1106
    %v1273 = vunpack.c.l.b16 %v1107
    %v1274 = vunpack.c.h.b16 %v1107
    %v1275 = vunpack.c.l.b16 %v1108
    %v1276 = vunpack.c.h.b16 %v1108
    %v1277 = vunpack.c.l.b16 %v1109
    %v1278 = vunpack.c.h.b16 %v1109
    %v1279 = vunpack.c.l.b16 %v1110
    %v1280 = vunpack.c.h.b16 %v1110
    %v1281 = vunpack.c.l.b16 %v1111
    %v1282 = vunpack.c.h.b16 %v1111
    %v1283 = vunpack.c.l.b16 %v1112
    %v1284 = vunpack.c.h.b16 %v1112
    %v1285 = vunpack.c.l.b16 %v1113
    %v1286 = vunpack.c.h.b16 %v1113
    %v1287 = vunpack.c.l.b16 %v1114
    %v1288 = vunpack.c.h.b16 %v1114
    %v1289 = vunpack.c.l.b16 %v1115
    %v1290 = vunpack.c.h.b16 %v1115
    %v1291 = vunpack.c.l.b16 %v1116
    %v1292 = vunpack.c.h.b16 %v1116
    %v1293 = vunpack.c.l.b16 %v1117
    %v1294 = vunpack.c.h.b16 %v1117
    %v1295 = vunpack.c.l.b16 %v1118
    %v1296 = vunpack.c.h.b16 %v1118
    %v1297 = vunpack.c.l.b16 %v1119
    %v1298 = vunpack.c.h.b16 %v1119
    %v1299 = vunpack.c.l.b16 %v1120
    %v1300 = vunpack.c.h.b16 %v1120
    %v1301 = vunpack.c.l.b16 %v1121
    %v1302 = vunpack.c.h.b16 %v1121
    %v1303 = vunpack.c.l.b16 %v1122
    %v1304 = vunpack.c.h.b16 %v1122
    %v1305 = vunpack.c.l.b16 %v1123
    %v1306 = vunpack.c.h.b16 %v1123
    %v1307 = vunpack.c.l.b16 %v1124
    %v1308 = vunpack.c.h.b16 %v1124
    %v1309 = vunpack.c.l.b16 %v1125
    %v1310 = vunpack.c.h.b16 %v1125
    %v1311 = vunpack.c.l.b16 %v1126
    %v1312 = vunpack.c.h.b16 %v1126
    %v1313 = vunpack.c.l.b16 %v1127
    %v1314 = vunpack.c.h.b16 %v1127
    %v1315 = vunpack.c.l.b16 %v1128
    %v1316 = vunpack.c.h.b16 %v1128
    %v1317 = vunpack.c.l.b16 %v1129
    %v1318 = vunpack.c.h.b16 %v1129
    %v1319 = vunpack.c.l.b16 %v1130
    %v1320 = vunpack.c.h.b16 %v1130
    %v1321 = vunpack.c.l.b16 %v1131
    %v1322 = vunpack.c.h.b16 %v1131
    %v1323 = vunpack.c.l.b16 %v1132
    %v1324 = vunpack.c.h.b16 %v1132
    %v1325 = vpack.c.b16 %v1201, %v1197
    %v1326 = vpack.c.b16 %v1202, %v1198
    %v1327 = vpack.c.b16 %v1203, %v1199
    %v1328 = vpack.c.b16 %v1204, %v1200
    %v1329 = vpack.c.b16 %v1209, %v1205
    %v1330 = vpack.c.b16 %v1210, %v1206
    %v1331 = vpack.c.b16 %v1211, %v1207
    %v1332 = vpack.c.b16 %v1212, %v1208
    %v1333 = vpack.c.b16 %v1217, %v1213
    %v1334 = vpack.c.b16 %v1218, %v1214
    %v1335 = vpack.c.b16 %v1219, %v1215
    %v1336 = vpack.c.b16 %v1220, %v1216
    %v1337 = vpack.c.b16 %v1225, %v1221
    %v1338 = vpack.c.b16 %v1226, %v1222
    %v1339 = vpack.c.b16 %v1227, %v1223
    %v1340 = vpack.c.b16 %v1228, %v1224
    %v1341 = vpack.c.b16 %v1233, %v1229
    %v1342 = vpack.c.b16 %v1234, %v1230
    %v1343 = vpack.c.b16 %v1235, %v1231
    %v1344 = vpack.c.b16 %v1236, %v1232
    %v1345 = vpack.c.b16 %v1241, %v1237
    %v1346 = vpack.c.b16 %v1242, %v1238
    %v1347 = vpack.c.b16 %v1243, %v1239
    %v1348 = vpack.c.b16 %v1244, %v1240
    %v1349 = vpack.c.b16 %v1249, %v1245
    %v1350 = vpack.c.b16 %v1250, %v1246
    %v1351 = vpack.c.b16 %v1251, %v1247
    %v1352 = vpack.c.b16 %v1252, %v1248
    %v1353 = vpack.c.b16 %v1257, %v1253
    %v1354 = vpack.c.b16 %v1258, %v1254
    %v1355 = vpack.c.b16 %v1259, %v1255
    %v1356 = vpack.c.b16 %v1260, %v1256
    %v1357 = vpack.c.b16 %v1265, %v1261
    %v1358 = vpack.c.b16 %v1266, %v1262
    %v1359 = vpack.c.b16 %v1267, %v1263
    %v1360 = vpack.c.b16 %v1268, %v1264
    %v1361 = vpack.c.b16 %v1273, %v1269
    %v1362 = vpack.c.b16 %v1274, %v1270
    %v1363 = vpack.c.b16 %v1275, %v1271
    %v1364 = vpack.c.b16 %v1276, %v1272
    %v1365 = vpack.c.b16 %v1281, %v1277
    %v1366 = vpack.c.b16 %v1282, %v1278
    %v1367 = vpack.c.b16 %v1283, %v1279
    %v1368 = vpack.c.b16 %v1284, %v1280
    %v1369 = vpack.c.b16 %v1289, %v1285
    %v1370 = vpack.c.b16 %v1290, %v1286
    %v1371 = vpack.c.b16 %v1291, %v1287
    %v1372 = vpack.c.b16 %v1292, %v1288
    %v1373 = vpack.c.b16 %v1297, %v1293
    %v1374 = vpack.c.b16 %v1298, %v1294
    %v1375 = vpack.c.b16 %v1299, %v1295
    %v1376 = vpack.c.b16 %v1300, %v1296
    %v1377 = vpack.c.b16 %v1305, %v1301
    %v1378 = vpack.c.b16 %v1306, %v1302
    %v1379 = vpack.c.b16 %v1307, %v1303
    %v1380 = vpack.c.b16 %v1308, %v1304
    %v1381 = vpack.c.b16 %v1313, %v1309
    %v1382 = vpack.c.b16 %v1314, %v1310
    %v1383 = vpack.c.b16 %v1315, %v1311
    %v1384 = vpack.c.b16 %v1316, %v1312
    %v1385 = vpack.c.b16 %v1321, %v1317
    %v1386 = vpack.c.b16 %v1322, %v1318
    %v1387 = vpack.c.b16 %v1323, %v1319
    %v1388 = vpack.c.b16 %v1324, %v1320
    %1453 = vmatprep.subr.bf16.mxu0 %v1326
    %1454 = vmatpush1.bf16.msra.mxu0 %v1325
    %1455 = vmatprep.subr.bf16.mxu0 %v1330
    %1456 = vmatpush1.bf16.msra.mxu0 %v1329
    %1457 = vmatprep.subr.bf16.mxu0 %v1334
    %1458 = vmatpush1.bf16.msra.mxu0 %v1333
    %1459 = vmatprep.subr.bf16.mxu0 %v1338
    %1460 = vmatpush1.bf16.msra.mxu0 %v1337
    %1461 = vmatprep.subr.bf16.mxu0 %v1342
    %1462 = vmatpush1.bf16.msra.mxu0 %v1341
    %1463 = vmatprep.subr.bf16.mxu0 %v1346
    %1464 = vmatpush1.bf16.msra.mxu0 %v1345
    %1465 = vmatprep.subr.bf16.mxu0 %v1350
    %1466 = vmatpush1.bf16.msra.mxu0 %v1349
    %1467 = vmatprep.subr.bf16.mxu0 %v1354
    %1468 = vmatpush1.bf16.msra.mxu0 %v1353
    %1469 = vmatprep.subr.bf16.mxu0 %v1358
    %1470 = vmatpush1.bf16.msra.mxu0 %v1357
    %1471 = vmatprep.subr.bf16.mxu0 %v1362
    %1472 = vmatpush1.bf16.msra.mxu0 %v1361
    %1473 = vmatprep.subr.bf16.mxu0 %v1366
    %1474 = vmatpush1.bf16.msra.mxu0 %v1365
    %1475 = vmatprep.subr.bf16.mxu0 %v1370
    %1476 = vmatpush1.bf16.msra.mxu0 %v1369
    %1477 = vmatprep.subr.bf16.mxu0 %v1374
    %1478 = vmatpush1.bf16.msra.mxu0 %v1373
    %1479 = vmatprep.subr.bf16.mxu0 %v1378
    %1480 = vmatpush1.bf16.msra.mxu0 %v1377
    %1481 = vmatprep.subr.bf16.mxu0 %v1382
    %1482 = vmatpush1.bf16.msra.mxu0 %v1381
    %1483 = vmatprep.subr.bf16.mxu0 %v1386
    %1484 = vmatpush1.bf16.msra.mxu0 %v1385
    %1485 = vmatprep.mubr.bf16.mxu0 %v1054
    %1486 = vmatmul.mubr.bf16.gmra.mrb[0].mxu0 %v1053
    %v1487 = vpop.f32.mrb[0].mxu0
    %v1488 = vadd.f32 0.0, %v1487
    %v1489 = vpop.f32.mrb[0].mxu0
    %v1490 = vadd.f32 0.0, %v1489
    %v1491 = vpop.f32.mrb[0].mxu0
    %v1492 = vadd.f32 0.0, %v1491
    %v1493 = vpop.f32.mrb[0].mxu0
    %v1494 = vadd.f32 0.0, %v1493
    %1495 = vmatprep.mubr.bf16.mxu0 %v1056
    %1496 = vmatmul.mubr.bf16.gmra.mrb[0].mxu0 %v1055
    %v1497 = vpop.f32.mrb[0].mxu0
    %v1498 = vadd.f32 0.0, %v1497
    %v1499 = vpop.f32.mrb[0].mxu0
    %v1500 = vadd.f32 0.0, %v1499
    %v1501 = vpop.f32.mrb[0].mxu0
    %v1502 = vadd.f32 0.0, %v1501
    %v1503 = vpop.f32.mrb[0].mxu0
    %v1504 = vadd.f32 0.0, %v1503
    %1505 = vmatprep.mubr.bf16.mxu0 %v1058
    %1506 = vmatmul.mubr.bf16.gmra.mrb[0].mxu0 %v1057
    %v1507 = vpop.f32.mrb[0].mxu0
    %v1508 = vadd.f32 0.0, %v1507
    %v1509 = vpop.f32.mrb[0].mxu0
    %v1510 = vadd.f32 0.0, %v1509
    %v1511 = vpop.f32.mrb[0].mxu0
    %v1512 = vadd.f32 0.0, %v1511
    %v1513 = vpop.f32.mrb[0].mxu0
    %v1514 = vadd.f32 0.0, %v1513
    %1515 = vmatprep.mubr.bf16.mxu0 %v1060
    %1516 = vmatmul.mubr.bf16.gmra.mrb[0].mxu0 %v1059
    %v1517 = vpop.f32.mrb[0].mxu0
    %v1518 = vadd.f32 0.0, %v1517
    %v1519 = vpop.f32.mrb[0].mxu0
    %v1520 = vadd.f32 0.0, %v1519
    %v1521 = vpop.f32.mrb[0].mxu0
    %v1522 = vadd.f32 0.0, %v1521
    %v1523 = vpop.f32.mrb[0].mxu0
    %v1524 = vadd.f32 0.0, %v1523
    %1525 = vmatprep.mubr.bf16.mxu0 %v1062
    %1526 = vmatmul.mubr.bf16.gmra.mrb[0].mxu0 %v1061
    %v1527 = vpop.f32.mrb[0].mxu0
    %v1528 = vadd.f32 0.0, %v1527
    %v1529 = vpop.f32.mrb[0].mxu0
    %v1530 = vadd.f32 0.0, %v1529
    %v1531 = vpop.f32.mrb[0].mxu0
    %v1532 = vadd.f32 0.0, %v1531
    %v1533 = vpop.f32.mrb[0].mxu0
    %v1534 = vadd.f32 0.0, %v1533
    %1535 = vmatprep.mubr.bf16.mxu0 %v1064
    %1536 = vmatmul.mubr.bf16.gmra.mrb[0].mxu0 %v1063
    %v1537 = vpop.f32.mrb[0].mxu0
    %v1538 = vadd.f32 0.0, %v1537
    %v1539 = vpop.f32.mrb[0].mxu0
    %v1540 = vadd.f32 0.0, %v1539
    %v1541 = vpop.f32.mrb[0].mxu0
    %v1542 = vadd.f32 0.0, %v1541
    %v1543 = vpop.f32.mrb[0].mxu0
    %v1544 = vadd.f32 0.0, %v1543
    %1545 = vmatprep.mubr.bf16.mxu0 %v1066
    %1546 = vmatmul.mubr.bf16.gmra.mrb[0].mxu0 %v1065
    %v1547 = vpop.f32.mrb[0].mxu0
    %v1548 = vadd.f32 0.0, %v1547
    %v1549 = vpop.f32.mrb[0].mxu0
    %v1550 = vadd.f32 0.0, %v1549
    %v1551 = vpop.f32.mrb[0].mxu0
    %v1552 = vadd.f32 0.0, %v1551
    %v1553 = vpop.f32.mrb[0].mxu0
    %v1554 = vadd.f32 0.0, %v1553
    %1555 = vmatprep.mubr.bf16.mxu0 %v1068
    %1556 = vmatmul.mubr.bf16.gmra.mrb[0].mxu0 %v1067
    %v1557 = vpop.f32.mrb[0].mxu0
    %v1558 = vadd.f32 0.0, %v1557
    %v1559 = vpop.f32.mrb[0].mxu0
    %v1560 = vadd.f32 0.0, %v1559
    %v1561 = vpop.f32.mrb[0].mxu0
    %v1562 = vadd.f32 0.0, %v1561
    %v1563 = vpop.f32.mrb[0].mxu0
    %v1564 = vadd.f32 0.0, %v1563
    %1565 = vdwg.mxu0
    %1566 = vmatprep.subr.bf16.mxu0 %v1328
    %1567 = vmatpush1.bf16.msra.mxu0 %v1327
    %1568 = vmatprep.subr.bf16.mxu0 %v1332
    %1569 = vmatpush1.bf16.msra.mxu0 %v1331
    %1570 = vmatprep.subr.bf16.mxu0 %v1336
    %1571 = vmatpush1.bf16.msra.mxu0 %v1335
    %1572 = vmatprep.subr.bf16.mxu0 %v1340
    %1573 = vmatpush1.bf16.msra.mxu0 %v1339
    %1574 = vmatprep.subr.bf16.mxu0 %v1344
    %1575 = vmatpush1.bf16.msra.mxu0 %v1343
    %1576 = vmatprep.subr.bf16.mxu0 %v1348
    %1577 = vmatpush1.bf16.msra.mxu0 %v1347
    %1578 = vmatprep.subr.bf16.mxu0 %v1352
    %1579 = vmatpush1.bf16.msra.mxu0 %v1351
    %1580 = vmatprep.subr.bf16.mxu0 %v1356
    %1581 = vmatpush1.bf16.msra.mxu0 %v1355
    %1582 = vmatprep.subr.bf16.mxu0 %v1360
    %1583 = vmatpush1.bf16.msra.mxu0 %v1359
    %1584 = vmatprep.subr.bf16.mxu0 %v1364
    %1585 = vmatpush1.bf16.msra.mxu0 %v1363
    %1586 = vmatprep.subr.bf16.mxu0 %v1368
    %1587 = vmatpush1.bf16.msra.mxu0 %v1367
    %1588 = vmatprep.subr.bf16.mxu0 %v1372
    %1589 = vmatpush1.bf16.msra.mxu0 %v1371
    %1590 = vmatprep.subr.bf16.mxu0 %v1376
    %1591 = vmatpush1.bf16.msra.mxu0 %v1375
    %1592 = vmatprep.subr.bf16.mxu0 %v1380
    %1593 = vmatpush1.bf16.msra.mxu0 %v1379
    %1594 = vmatprep.subr.bf16.mxu0 %v1384
    %1595 = vmatpush1.bf16.msra.mxu0 %v1383
    %1596 = vmatprep.subr.bf16.mxu0 %v1388
    %1597 = vmatpush1.bf16.msra.mxu0 %v1387
    %1598 = vmatprep.mubr.bf16.mxu0 %v1054
    %1599 = vmatmul.mubr.bf16.gmra.mrb[0].mxu0 %v1053
    %v1600 = vpop.f32.mrb[0].mxu0
    %v1601 = vadd.f32 0.0, %v1600
    %v1602 = vpop.f32.mrb[0].mxu0
    %v1603 = vadd.f32 0.0, %v1602
    %v1604 = vpop.f32.mrb[0].mxu0
    %v1605 = vadd.f32 0.0, %v1604
    %v1606 = vpop.f32.mrb[0].mxu0
    %v1607 = vadd.f32 0.0, %v1606
    %1608 = vmatprep.mubr.bf16.mxu0 %v1056
    %1609 = vmatmul.mubr.bf16.gmra.mrb[0].mxu0 %v1055
    %v1610 = vpop.f32.mrb[0].mxu0
    %v1611 = vadd.f32 0.0, %v1610
    %v1612 = vpop.f32.mrb[0].mxu0
    %v1613 = vadd.f32 0.0, %v1612
    %v1614 = vpop.f32.mrb[0].mxu0
    %v1615 = vadd.f32 0.0, %v1614
    %v1616 = vpop.f32.mrb[0].mxu0
    %v1617 = vadd.f32 0.0, %v1616
    %1618 = vmatprep.mubr.bf16.mxu0 %v1058
    %1619 = vmatmul.mubr.bf16.gmra.mrb[0].mxu0 %v1057
    %v1620 = vpop.f32.mrb[0].mxu0
    %v1621 = vadd.f32 0.0, %v1620
    %v1622 = vpop.f32.mrb[0].mxu0
    %v1623 = vadd.f32 0.0, %v1622
    %v1624 = vpop.f32.mrb[0].mxu0
    %v1625 = vadd.f32 0.0, %v1624
    %v1626 = vpop.f32.mrb[0].mxu0
    %v1627 = vadd.f32 0.0, %v1626
    %1628 = vmatprep.mubr.bf16.mxu0 %v1060
    %1629 = vmatmul.mubr.bf16.gmra.mrb[0].mxu0 %v1059
    %v1630 = vpop.f32.mrb[0].mxu0
    %v1631 = vadd.f32 0.0, %v1630
    %v1632 = vpop.f32.mrb[0].mxu0
    %v1633 = vadd.f32 0.0, %v1632
    %v1634 = vpop.f32.mrb[0].mxu0
    %v1635 = vadd.f32 0.0, %v1634
    %v1636 = vpop.f32.mrb[0].mxu0
    %v1637 = vadd.f32 0.0, %v1636
    %1638 = vmatprep.mubr.bf16.mxu0 %v1062
    %1639 = vmatmul.mubr.bf16.gmra.mrb[0].mxu0 %v1061
    %v1640 = vpop.f32.mrb[0].mxu0
    %v1641 = vadd.f32 0.0, %v1640
    %v1642 = vpop.f32.mrb[0].mxu0
    %v1643 = vadd.f32 0.0, %v1642
    %v1644 = vpop.f32.mrb[0].mxu0
    %v1645 = vadd.f32 0.0, %v1644
    %v1646 = vpop.f32.mrb[0].mxu0
    %v1647 = vadd.f32 0.0, %v1646
    %1648 = vmatprep.mubr.bf16.mxu0 %v1064
    %1649 = vmatmul.mubr.bf16.gmra.mrb[0].mxu0 %v1063
    %v1650 = vpop.f32.mrb[0].mxu0
    %v1651 = vadd.f32 0.0, %v1650
    %v1652 = vpop.f32.mrb[0].mxu0
    %v1653 = vadd.f32 0.0, %v1652
    %v1654 = vpop.f32.mrb[0].mxu0
    %v1655 = vadd.f32 0.0, %v1654
    %v1656 = vpop.f32.mrb[0].mxu0
    %v1657 = vadd.f32 0.0, %v1656
    %1658 = vmatprep.mubr.bf16.mxu0 %v1066
    %1659 = vmatmul.mubr.bf16.gmra.mrb[0].mxu0 %v1065
    %v1660 = vpop.f32.mrb[0].mxu0
    %v1661 = vadd.f32 0.0, %v1660
    %v1662 = vpop.f32.mrb[0].mxu0
    %v1663 = vadd.f32 0.0, %v1662
    %v1664 = vpop.f32.mrb[0].mxu0
    %v1665 = vadd.f32 0.0, %v1664
    %v1666 = vpop.f32.mrb[0].mxu0
    %v1667 = vadd.f32 0.0, %v1666
    %1668 = vmatprep.mubr.bf16.mxu0 %v1068
    %1669 = vmatmul.mubr.bf16.gmra.mrb[0].mxu0 %v1067
    %v1670 = vpop.f32.mrb[0].mxu0
    %v1671 = vadd.f32 0.0, %v1670
    %v1672 = vpop.f32.mrb[0].mxu0
    %v1673 = vadd.f32 0.0, %v1672
    %v1674 = vpop.f32.mrb[0].mxu0
    %v1675 = vadd.f32 0.0, %v1674
    %v1676 = vpop.f32.mrb[0].mxu0
    %v1677 = vadd.f32 0.0, %v1676
    %1678 = vdwg.mxu0
    %v1679 = vadd.f32 %v1488, %v1492
    %v1680 = vadd.f32 %v1679, %v1498
    %v1681 = vadd.f32 %v1680, %v1502
    %v1682 = vadd.f32 %v1681, %v1508
    %v1683 = vadd.f32 %v1682, %v1512
    %v1684 = vadd.f32 %v1683, %v1518
    %v1685 = vadd.f32 %v1684, %v1522
    %v1686 = vadd.f32 %v1685, %v1528
    %v1687 = vadd.f32 %v1686, %v1532
    %v1688 = vadd.f32 %v1687, %v1538
    %v1689 = vadd.f32 %v1688, %v1542
    %v1690 = vadd.f32 %v1689, %v1548
    %v1691 = vadd.f32 %v1690, %v1552
    %v1692 = vadd.f32 %v1691, %v1558
    %v1693 = vadd.f32 %v1692, %v1562
    %v1694 = vrot.slane %v1693, 4
    %v1695 = vadd.f32 %v1693, %v1694
    %v1696 = vrot.slane %v1695, 2
    %v1697 = vadd.f32 %v1695, %v1696
    %v1698 = vrot.slane %v1697, 1
    %v1699 = vadd.f32 %v1697, %v1698
    %v1700 = vadd.f32 %v1490, %v1494
    %v1701 = vadd.f32 %v1700, %v1500
    %v1702 = vadd.f32 %v1701, %v1504
    %v1703 = vadd.f32 %v1702, %v1510
    %v1704 = vadd.f32 %v1703, %v1514
    %v1705 = vadd.f32 %v1704, %v1520
    %v1706 = vadd.f32 %v1705, %v1524
    %v1707 = vadd.f32 %v1706, %v1530
    %v1708 = vadd.f32 %v1707, %v1534
    %v1709 = vadd.f32 %v1708, %v1540
    %v1710 = vadd.f32 %v1709, %v1544
    %v1711 = vadd.f32 %v1710, %v1550
    %v1712 = vadd.f32 %v1711, %v1554
    %v1713 = vadd.f32 %v1712, %v1560
    %v1714 = vadd.f32 %v1713, %v1564
    %v1715 = vrot.slane %v1714, 4
    %v1716 = vadd.f32 %v1714, %v1715
    %v1717 = vrot.slane %v1716, 2
    %v1718 = vadd.f32 %v1716, %v1717
    %v1719 = vrot.slane %v1718, 1
    %v1720 = vadd.f32 %v1718, %v1719
    %v1721 = vadd.f32 %v1601, %v1605
    %v1722 = vadd.f32 %v1721, %v1611
    %v1723 = vadd.f32 %v1722, %v1615
    %v1724 = vadd.f32 %v1723, %v1621
    %v1725 = vadd.f32 %v1724, %v1625
    %v1726 = vadd.f32 %v1725, %v1631
    %v1727 = vadd.f32 %v1726, %v1635
    %v1728 = vadd.f32 %v1727, %v1641
    %v1729 = vadd.f32 %v1728, %v1645
    %v1730 = vadd.f32 %v1729, %v1651
    %v1731 = vadd.f32 %v1730, %v1655
    %v1732 = vadd.f32 %v1731, %v1661
    %v1733 = vadd.f32 %v1732, %v1665
    %v1734 = vadd.f32 %v1733, %v1671
    %v1735 = vadd.f32 %v1734, %v1675
    %v1736 = vrot.slane %v1735, 4
    %v1737 = vadd.f32 %v1735, %v1736
    %v1738 = vrot.slane %v1737, 2
    %v1739 = vadd.f32 %v1737, %v1738
    %v1740 = vrot.slane %v1739, 1
    %v1741 = vadd.f32 %v1739, %v1740
    %v1742 = vadd.f32 %v1603, %v1607
    %v1743 = vadd.f32 %v1742, %v1613
    %v1744 = vadd.f32 %v1743, %v1617
    %v1745 = vadd.f32 %v1744, %v1623
    %v1746 = vadd.f32 %v1745, %v1627
    %v1747 = vadd.f32 %v1746, %v1633
    %v1748 = vadd.f32 %v1747, %v1637
    %v1749 = vadd.f32 %v1748, %v1643
    %v1750 = vadd.f32 %v1749, %v1647
    %v1751 = vadd.f32 %v1750, %v1653
    %v1752 = vadd.f32 %v1751, %v1657
    %v1753 = vadd.f32 %v1752, %v1663
    %v1754 = vadd.f32 %v1753, %v1667
    %v1755 = vadd.f32 %v1754, %v1673
    %v1756 = vadd.f32 %v1755, %v1677
    %v1757 = vrot.slane %v1756, 4
    %v1758 = vadd.f32 %v1756, %v1757
    %v1759 = vrot.slane %v1758, 2
    %v1760 = vadd.f32 %v1758, %v1759
    %v1761 = vrot.slane %v1760, 1
    %v1762 = vadd.f32 %v1760, %v1761
    %v1763 = vmul.f32 %v1488, %v1488
    %v1764 = vmul.f32 %v1490, %v1490
    %v1765 = vmul.f32 %v1601, %v1601
    %v1766 = vmul.f32 %v1603, %v1603
    %v1767 = vmul.f32 %v1492, %v1492
    %v1768 = vmul.f32 %v1494, %v1494
    %v1769 = vmul.f32 %v1605, %v1605
    %v1770 = vmul.f32 %v1607, %v1607
    %v1771 = vmul.f32 %v1498, %v1498
    %v1772 = vmul.f32 %v1500, %v1500
    %v1773 = vmul.f32 %v1611, %v1611
    %v1774 = vmul.f32 %v1613, %v1613
    %v1775 = vmul.f32 %v1502, %v1502
    %v1776 = vmul.f32 %v1504, %v1504
    %v1777 = vmul.f32 %v1615, %v1615
    %v1778 = vmul.f32 %v1617, %v1617
    %v1779 = vmul.f32 %v1508, %v1508
    %v1780 = vmul.f32 %v1510, %v1510
    %v1781 = vmul.f32 %v1621, %v1621
    %v1782 = vmul.f32 %v1623, %v1623
    %v1783 = vmul.f32 %v1512, %v1512
    %v1784 = vmul.f32 %v1514, %v1514
    %v1785 = vmul.f32 %v1625, %v1625
    %v1786 = vmul.f32 %v1627, %v1627
    %v1787 = vmul.f32 %v1518, %v1518
    %v1788 = vmul.f32 %v1520, %v1520
    %v1789 = vmul.f32 %v1631, %v1631
    %v1790 = vmul.f32 %v1633, %v1633
    %v1791 = vmul.f32 %v1522, %v1522
    %v1792 = vmul.f32 %v1524, %v1524
    %v1793 = vmul.f32 %v1635, %v1635
    %v1794 = vmul.f32 %v1637, %v1637
    %v1795 = vmul.f32 %v1528, %v1528
    %v1796 = vmul.f32 %v1530, %v1530
    %v1797 = vmul.f32 %v1641, %v1641
    %v1798 = vmul.f32 %v1643, %v1643
    %v1799 = vmul.f32 %v1532, %v1532
    %v1800 = vmul.f32 %v1534, %v1534
    %v1801 = vmul.f32 %v1645, %v1645
    %v1802 = vmul.f32 %v1647, %v1647
    %v1803 = vmul.f32 %v1538, %v1538
    %v1804 = vmul.f32 %v1540, %v1540
    %v1805 = vmul.f32 %v1651, %v1651
    %v1806 = vmul.f32 %v1653, %v1653
    %v1807 = vmul.f32 %v1542, %v1542
    %v1808 = vmul.f32 %v1544, %v1544
    %v1809 = vmul.f32 %v1655, %v1655
    %v1810 = vmul.f32 %v1657, %v1657
    %v1811 = vmul.f32 %v1548, %v1548
    %v1812 = vmul.f32 %v1550, %v1550
    %v1813 = vmul.f32 %v1661, %v1661
    %v1814 = vmul.f32 %v1663, %v1663
    %v1815 = vmul.f32 %v1552, %v1552
    %v1816 = vmul.f32 %v1554, %v1554
    %v1817 = vmul.f32 %v1665, %v1665
    %v1818 = vmul.f32 %v1667, %v1667
    %v1819 = vmul.f32 %v1558, %v1558
    %v1820 = vmul.f32 %v1560, %v1560
    %v1821 = vmul.f32 %v1671, %v1671
    %v1822 = vmul.f32 %v1673, %v1673
    %v1823 = vmul.f32 %v1562, %v1562
    %v1824 = vmul.f32 %v1564, %v1564
    %v1825 = vmul.f32 %v1675, %v1675
    %v1826 = vmul.f32 %v1677, %v1677
    %v1827 = vadd.f32 %v1763, %v1767
    %v1828 = vadd.f32 %v1827, %v1771
    %v1829 = vadd.f32 %v1828, %v1775
    %v1830 = vadd.f32 %v1829, %v1779
    %v1831 = vadd.f32 %v1830, %v1783
    %v1832 = vadd.f32 %v1831, %v1787
    %v1833 = vadd.f32 %v1832, %v1791
    %v1834 = vadd.f32 %v1833, %v1795
    %v1835 = vadd.f32 %v1834, %v1799
    %v1836 = vadd.f32 %v1835, %v1803
    %v1837 = vadd.f32 %v1836, %v1807
    %v1838 = vadd.f32 %v1837, %v1811
    %v1839 = vadd.f32 %v1838, %v1815
    %v1840 = vadd.f32 %v1839, %v1819
    %v1841 = vadd.f32 %v1840, %v1823
    %v1842 = vrot.slane %v1841, 4
    %v1843 = vadd.f32 %v1841, %v1842
    %v1844 = vrot.slane %v1843, 2
    %v1845 = vadd.f32 %v1843, %v1844
    %v1846 = vrot.slane %v1845, 1
    %v1847 = vadd.f32 %v1845, %v1846
    %v1848 = vadd.f32 %v1764, %v1768
    %v1849 = vadd.f32 %v1848, %v1772
    %v1850 = vadd.f32 %v1849, %v1776
    %v1851 = vadd.f32 %v1850, %v1780
    %v1852 = vadd.f32 %v1851, %v1784
    %v1853 = vadd.f32 %v1852, %v1788
    %v1854 = vadd.f32 %v1853, %v1792
    %v1855 = vadd.f32 %v1854, %v1796
    %v1856 = vadd.f32 %v1855, %v1800
    %v1857 = vadd.f32 %v1856, %v1804
    %v1858 = vadd.f32 %v1857, %v1808
    %v1859 = vadd.f32 %v1858, %v1812
    %v1860 = vadd.f32 %v1859, %v1816
    %v1861 = vadd.f32 %v1860, %v1820
    %v1862 = vadd.f32 %v1861, %v1824
    %v1863 = vrot.slane %v1862, 4
    %v1864 = vadd.f32 %v1862, %v1863
    %v1865 = vrot.slane %v1864, 2
    %v1866 = vadd.f32 %v1864, %v1865
    %v1867 = vrot.slane %v1866, 1
    %v1868 = vadd.f32 %v1866, %v1867
    %v1869 = vadd.f32 %v1765, %v1769
    %v1870 = vadd.f32 %v1869, %v1773
    %v1871 = vadd.f32 %v1870, %v1777
    %v1872 = vadd.f32 %v1871, %v1781
    %v1873 = vadd.f32 %v1872, %v1785
    %v1874 = vadd.f32 %v1873, %v1789
    %v1875 = vadd.f32 %v1874, %v1793
    %v1876 = vadd.f32 %v1875, %v1797
    %v1877 = vadd.f32 %v1876, %v1801
    %v1878 = vadd.f32 %v1877, %v1805
    %v1879 = vadd.f32 %v1878, %v1809
    %v1880 = vadd.f32 %v1879, %v1813
    %v1881 = vadd.f32 %v1880, %v1817
    %v1882 = vadd.f32 %v1881, %v1821
    %v1883 = vadd.f32 %v1882, %v1825
    %v1884 = vrot.slane %v1883, 4
    %v1885 = vadd.f32 %v1883, %v1884
    %v1886 = vrot.slane %v1885, 2
    %v1887 = vadd.f32 %v1885, %v1886
    %v1888 = vrot.slane %v1887, 1
    %v1889 = vadd.f32 %v1887, %v1888
    %v1890 = vadd.f32 %v1766, %v1770
    %v1891 = vadd.f32 %v1890, %v1774
    %v1892 = vadd.f32 %v1891, %v1778
    %v1893 = vadd.f32 %v1892, %v1782
    %v1894 = vadd.f32 %v1893, %v1786
    %v1895 = vadd.f32 %v1894, %v1790
    %v1896 = vadd.f32 %v1895, %v1794
    %v1897 = vadd.f32 %v1896, %v1798
    %v1898 = vadd.f32 %v1897, %v1802
    %v1899 = vadd.f32 %v1898, %v1806
    %v1900 = vadd.f32 %v1899, %v1810
    %v1901 = vadd.f32 %v1900, %v1814
    %v1902 = vadd.f32 %v1901, %v1818
    %v1903 = vadd.f32 %v1902, %v1822
    %v1904 = vadd.f32 %v1903, %v1826
    %v1905 = vrot.slane %v1904, 4
    %v1906 = vadd.f32 %v1904, %v1905
    %v1907 = vrot.slane %v1906, 2
    %v1908 = vadd.f32 %v1906, %v1907
    %v1909 = vrot.slane %v1908, 1
    %v1910 = vadd.f32 %v1908, %v1909
    %v1911 = vmul.f32 %v1699, 0.0078125
    %v1912 = vmul.f32 %v1720, 0.0078125
    %v1913 = vmul.f32 %v1741, 0.0078125
    %v1914 = vmul.f32 %v1762, 0.0078125
    %v1915 = vmul.f32 %v1847, 0.0078125
    %v1916 = vmul.f32 %v1868, 0.0078125
    %v1917 = vmul.f32 %v1889, 0.0078125
    %v1918 = vmul.f32 %v1910, 0.0078125
    %v1919 = vmul.f32 %v1911, %v1911
    %v1920 = vmul.f32 %v1912, %v1912
    %v1921 = vmul.f32 %v1913, %v1913
    %v1922 = vmul.f32 %v1914, %v1914
    %v1923 = vsub.f32 %v1915, %v1919
    %v1924 = vsub.f32 %v1916, %v1920
    %v1925 = vsub.f32 %v1917, %v1921
    %v1926 = vsub.f32 %v1918, %v1922
    %v1927 = vmax.f32 %v1923, 0.0
    %v1928 = vmax.f32 %v1924, 0.0
    %v1929 = vmax.f32 %v1925, 0.0
    %v1930 = vmax.f32 %v1926, 0.0
    %v1931 = vld [vmem:[#allocation16] sm:$0xf]
    %v1932 = vadd.f32 %v1927, 1e-05
    %v1933 = vadd.f32 %v1928, 1e-05
    %v1934 = vadd.f32 %v1929, 1e-05
    %v1935 = vadd.f32 %v1930, 1e-05
    %v1936 = vrsqrt.pop %v1932
    %v1937 = vrsqrt.pop %v1933
    %v1938 = vrsqrt.pop %v1934
    %v1939 = vrsqrt.pop %v1935
    %v1944 = vcombine.low %v1936, %v1937
    %v1945 = vcombine.low %v1938, %v1939
    %v1947 = vunpack.c.l.s4 1966171168
    %v1948 = vunpack.c.0.s8 %v1947
    %v1949 = vlaneseq
    %v1950 = vshrl.u32 %v1949, 7
    %v1951 = vsub.s32 %v1948, %v1950
    %v1952 = vrot.slane %v1944, %v1951
    %v1954 = vunpack.c.l.s4 1966171168
    %v1955 = vunpack.c.0.s8 %v1954
    %v1956 = vlaneseq
    %v1957 = vshrl.u32 %v1956, 7
    %v1958 = vsub.s32 %v1955, %v1957
    %v1959 = vrot.slane %v1945, %v1958
    %v1960 = vcombine.low %v1952, %v1959
    %v1962 = vunpack.c.l.s4 1966171168
    %v1963 = vunpack.c.0.s8 %v1962
    %v1964 = vlaneseq
    %v1965 = vshrl.u32 %v1964, 7
    %v1966 = vsub.s32 %v1963, %v1965
    %v1967 = vrot.slane %v1960, %v1966
    %v1969 = vmul.f32 %v1931, %v1967
    %v1970 = vld [vmem:[#allocation18] sm:$0xf]
    %v1972 = vlaneseq
    %v1973 = vshrl.u32 %v1972, 7
    %v1974 = vsub.s32 0, %v1973
    %v1975 = vrot.slane %v1969, %v1974
    %v1976 = vlaneseq
    %v1977 = vshrl.u32 %v1976, 7
    %v1978 = vsub.s32 1, %v1977
    %v1979 = vrot.slane %v1969, %v1978
    %v1980 = vlaneseq
    %v1981 = vshrl.u32 %v1980, 7
    %v1982 = vsub.s32 2, %v1981
    %v1983 = vrot.slane %v1969, %v1982
    %v1984 = vlaneseq
    %v1985 = vshrl.u32 %v1984, 7
    %v1986 = vsub.s32 3, %v1985
    %v1987 = vrot.slane %v1969, %v1986
    %v1992 = vmul.f32 %v1911, %v1975
    %v1993 = vmul.f32 %v1912, %v1979
    %v1994 = vmul.f32 %v1913, %v1983
    %v1995 = vmul.f32 %v1914, %v1987
    %v2000 = vcombine.low %v1992, %v1993
    %v2001 = vcombine.low %v1994, %v1995
    %v2003 = vunpack.c.l.s4 1966171168
    %v2004 = vunpack.c.0.s8 %v2003
    %v2005 = vlaneseq
    %v2006 = vshrl.u32 %v2005, 7
    %v2007 = vsub.s32 %v2004, %v2006
    %v2008 = vrot.slane %v2000, %v2007
    %v2010 = vunpack.c.l.s4 1966171168
    %v2011 = vunpack.c.0.s8 %v2010
    %v2012 = vlaneseq
    %v2013 = vshrl.u32 %v2012, 7
    %v2014 = vsub.s32 %v2011, %v2013
    %v2015 = vrot.slane %v2001, %v2014
    %v2016 = vcombine.low %v2008, %v2015
    %v2018 = vunpack.c.l.s4 1966171168
    %v2019 = vunpack.c.0.s8 %v2018
    %v2020 = vlaneseq
    %v2021 = vshrl.u32 %v2020, 7
    %v2022 = vsub.s32 %v2019, %v2021
    %v2023 = vrot.slane %v2016, %v2022
    %v2025 = vsub.f32 %v1970, %v2023
    %v2026 = vmul.f32 %v1488, %v1975
    %v2027 = vmul.f32 %v1490, %v1979
    %v2028 = vmul.f32 %v1601, %v1983
    %v2029 = vmul.f32 %v1603, %v1987
    %v2030 = vmul.f32 %v1492, %v1975
    %v2031 = vmul.f32 %v1494, %v1979
    %v2032 = vmul.f32 %v1605, %v1983
    %v2033 = vmul.f32 %v1607, %v1987
    %v2034 = vmul.f32 %v1498, %v1975
    %v2035 = vmul.f32 %v1500, %v1979
    %v2036 = vmul.f32 %v1611, %v1983
    %v2037 = vmul.f32 %v1613, %v1987
    %v2038 = vmul.f32 %v1502, %v1975
    %v2039 = vmul.f32 %v1504, %v1979
    %v2040 = vmul.f32 %v1615, %v1983
    %v2041 = vmul.f32 %v1617, %v1987
    %v2042 = vmul.f32 %v1508, %v1975
    %v2043 = vmul.f32 %v1510, %v1979
    %v2044 = vmul.f32 %v1621, %v1983
    %v2045 = vmul.f32 %v1623, %v1987
    %v2046 = vmul.f32 %v1512, %v1975
    %v2047 = vmul.f32 %v1514, %v1979
    %v2048 = vmul.f32 %v1625, %v1983
    %v2049 = vmul.f32 %v1627, %v1987
    %v2050 = vmul.f32 %v1518, %v1975
    %v2051 = vmul.f32 %v1520, %v1979
    %v2052 = vmul.f32 %v1631, %v1983
    %v2053 = vmul.f32 %v1633, %v1987
    %v2054 = vmul.f32 %v1522, %v1975
    %v2055 = vmul.f32 %v1524, %v1979
    %v2056 = vmul.f32 %v1635, %v1983
    %v2057 = vmul.f32 %v1637, %v1987
    %v2058 = vmul.f32 %v1528, %v1975
    %v2059 = vmul.f32 %v1530, %v1979
    %v2060 = vmul.f32 %v1641, %v1983
    %v2061 = vmul.f32 %v1643, %v1987
    %v2062 = vmul.f32 %v1532, %v1975
    %v2063 = vmul.f32 %v1534, %v1979
    %v2064 = vmul.f32 %v1645, %v1983
    %v2065 = vmul.f32 %v1647, %v1987
    %v2066 = vmul.f32 %v1538, %v1975
    %v2067 = vmul.f32 %v1540, %v1979
    %v2068 = vmul.f32 %v1651, %v1983
    %v2069 = vmul.f32 %v1653, %v1987
    %v2070 = vmul.f32 %v1542, %v1975
    %v2071 = vmul.f32 %v1544, %v1979
    %v2072 = vmul.f32 %v1655, %v1983
    %v2073 = vmul.f32 %v1657, %v1987
    %v2074 = vmul.f32 %v1548, %v1975
    %v2075 = vmul.f32 %v1550, %v1979
    %v2076 = vmul.f32 %v1661, %v1983
    %v2077 = vmul.f32 %v1663, %v1987
    %v2078 = vmul.f32 %v1552, %v1975
    %v2079 = vmul.f32 %v1554, %v1979
    %v2080 = vmul.f32 %v1665, %v1983
    %v2081 = vmul.f32 %v1667, %v1987
    %v2082 = vmul.f32 %v1558, %v1975
    %v2083 = vmul.f32 %v1560, %v1979
    %v2084 = vmul.f32 %v1671, %v1983
    %v2085 = vmul.f32 %v1673, %v1987
    %v2086 = vmul.f32 %v1562, %v1975
    %v2087 = vmul.f32 %v1564, %v1979
    %v2088 = vmul.f32 %v1675, %v1983
    %v2089 = vmul.f32 %v1677, %v1987
    %v2091 = vlaneseq
    %v2092 = vshrl.u32 %v2091, 7
    %v2093 = vsub.s32 0, %v2092
    %v2094 = vrot.slane %v2025, %v2093
    %v2095 = vlaneseq
    %v2096 = vshrl.u32 %v2095, 7
    %v2097 = vsub.s32 1, %v2096
    %v2098 = vrot.slane %v2025, %v2097
    %v2099 = vlaneseq
    %v2100 = vshrl.u32 %v2099, 7
    %v2101 = vsub.s32 2, %v2100
    %v2102 = vrot.slane %v2025, %v2101
    %v2103 = vlaneseq
    %v2104 = vshrl.u32 %v2103, 7
    %v2105 = vsub.s32 3, %v2104
    %v2106 = vrot.slane %v2025, %v2105
    %v2111 = vadd.f32 %v2026, %v2094
    %v2112 = vadd.f32 %v2027, %v2098
    %v2113 = vadd.f32 %v2028, %v2102
    %v2114 = vadd.f32 %v2029, %v2106
    %v2115 = vadd.f32 %v2030, %v2094
    %v2116 = vadd.f32 %v2031, %v2098
    %v2117 = vadd.f32 %v2032, %v2102
    %v2118 = vadd.f32 %v2033, %v2106
    %v2119 = vadd.f32 %v2034, %v2094
    %v2120 = vadd.f32 %v2035, %v2098
    %v2121 = vadd.f32 %v2036, %v2102
    %v2122 = vadd.f32 %v2037, %v2106
    %v2123 = vadd.f32 %v2038, %v2094
    %v2124 = vadd.f32 %v2039, %v2098
    %v2125 = vadd.f32 %v2040, %v2102
    %v2126 = vadd.f32 %v2041, %v2106
    %v2127 = vadd.f32 %v2042, %v2094
    %v2128 = vadd.f32 %v2043, %v2098
    %v2129 = vadd.f32 %v2044, %v2102
    %v2130 = vadd.f32 %v2045, %v2106
    %v2131 = vadd.f32 %v2046, %v2094
    %v2132 = vadd.f32 %v2047, %v2098
    %v2133 = vadd.f32 %v2048, %v2102
    %v2134 = vadd.f32 %v2049, %v2106
    %v2135 = vadd.f32 %v2050, %v2094
    %v2136 = vadd.f32 %v2051, %v2098
    %v2137 = vadd.f32 %v2052, %v2102
    %v2138 = vadd.f32 %v2053, %v2106
    %v2139 = vadd.f32 %v2054, %v2094
    %v2140 = vadd.f32 %v2055, %v2098
    %v2141 = vadd.f32 %v2056, %v2102
    %v2142 = vadd.f32 %v2057, %v2106
    %v2143 = vadd.f32 %v2058, %v2094
    %v2144 = vadd.f32 %v2059, %v2098
    %v2145 = vadd.f32 %v2060, %v2102
    %v2146 = vadd.f32 %v2061, %v2106
    %v2147 = vadd.f32 %v2062, %v2094
    %v2148 = vadd.f32 %v2063, %v2098
    %v2149 = vadd.f32 %v2064, %v2102
    %v2150 = vadd.f32 %v2065, %v2106
    %v2151 = vadd.f32 %v2066, %v2094
    %v2152 = vadd.f32 %v2067, %v2098
    %v2153 = vadd.f32 %v2068, %v2102
    %v2154 = vadd.f32 %v2069, %v2106
    %v2155 = vadd.f32 %v2070, %v2094
    %v2156 = vadd.f32 %v2071, %v2098
    %v2157 = vadd.f32 %v2072, %v2102
    %v2158 = vadd.f32 %v2073, %v2106
    %v2159 = vadd.f32 %v2074, %v2094
    %v2160 = vadd.f32 %v2075, %v2098
    %v2161 = vadd.f32 %v2076, %v2102
    %v2162 = vadd.f32 %v2077, %v2106
    %v2163 = vadd.f32 %v2078, %v2094
    %v2164 = vadd.f32 %v2079, %v2098
    %v2165 = vadd.f32 %v2080, %v2102
    %v2166 = vadd.f32 %v2081, %v2106
    %v2167 = vadd.f32 %v2082, %v2094
    %v2168 = vadd.f32 %v2083, %v2098
    %v2169 = vadd.f32 %v2084, %v2102
    %v2170 = vadd.f32 %v2085, %v2106
    %v2171 = vadd.f32 %v2086, %v2094
    %v2172 = vadd.f32 %v2087, %v2098
    %v2173 = vadd.f32 %v2088, %v2102
    %v2174 = vadd.f32 %v2089, %v2106
    %v2175 = vmax.f32 %v2111, 0.0
    %v2176 = vmax.f32 %v2112, 0.0
    %v2177 = vmax.f32 %v2113, 0.0
    %v2178 = vmax.f32 %v2114, 0.0
    %v2179 = vmax.f32 %v2115, 0.0
    %v2180 = vmax.f32 %v2116, 0.0
    %v2181 = vmax.f32 %v2117, 0.0
    %v2182 = vmax.f32 %v2118, 0.0
    %v2183 = vmax.f32 %v2119, 0.0
    %v2184 = vmax.f32 %v2120, 0.0
    %v2185 = vmax.f32 %v2121, 0.0
    %v2186 = vmax.f32 %v2122, 0.0
    %v2187 = vmax.f32 %v2123, 0.0
    %v2188 = vmax.f32 %v2124, 0.0
    %v2189 = vmax.f32 %v2125, 0.0
    %v2190 = vmax.f32 %v2126, 0.0
    %v2191 = vmax.f32 %v2127, 0.0
    %v2192 = vmax.f32 %v2128, 0.0
    %v2193 = vmax.f32 %v2129, 0.0
    %v2194 = vmax.f32 %v2130, 0.0
    %v2195 = vmax.f32 %v2131, 0.0
    %v2196 = vmax.f32 %v2132, 0.0
    %v2197 = vmax.f32 %v2133, 0.0
    %v2198 = vmax.f32 %v2134, 0.0
    %v2199 = vmax.f32 %v2135, 0.0
    %v2200 = vmax.f32 %v2136, 0.0
    %v2201 = vmax.f32 %v2137, 0.0
    %v2202 = vmax.f32 %v2138, 0.0
    %v2203 = vmax.f32 %v2139, 0.0
    %v2204 = vmax.f32 %v2140, 0.0
    %v2205 = vmax.f32 %v2141, 0.0
    %v2206 = vmax.f32 %v2142, 0.0
    %v2207 = vmax.f32 %v2143, 0.0
    %v2208 = vmax.f32 %v2144, 0.0
    %v2209 = vmax.f32 %v2145, 0.0
    %v2210 = vmax.f32 %v2146, 0.0
    %v2211 = vmax.f32 %v2147, 0.0
    %v2212 = vmax.f32 %v2148, 0.0
    %v2213 = vmax.f32 %v2149, 0.0
    %v2214 = vmax.f32 %v2150, 0.0
    %v2215 = vmax.f32 %v2151, 0.0
    %v2216 = vmax.f32 %v2152, 0.0
    %v2217 = vmax.f32 %v2153, 0.0
    %v2218 = vmax.f32 %v2154, 0.0
    %v2219 = vmax.f32 %v2155, 0.0
    %v2220 = vmax.f32 %v2156, 0.0
    %v2221 = vmax.f32 %v2157, 0.0
    %v2222 = vmax.f32 %v2158, 0.0
    %v2223 = vmax.f32 %v2159, 0.0
    %v2224 = vmax.f32 %v2160, 0.0
    %v2225 = vmax.f32 %v2161, 0.0
    %v2226 = vmax.f32 %v2162, 0.0
    %v2227 = vmax.f32 %v2163, 0.0
    %v2228 = vmax.f32 %v2164, 0.0
    %v2229 = vmax.f32 %v2165, 0.0
    %v2230 = vmax.f32 %v2166, 0.0
    %v2231 = vmax.f32 %v2167, 0.0
    %v2232 = vmax.f32 %v2168, 0.0
    %v2233 = vmax.f32 %v2169, 0.0
    %v2234 = vmax.f32 %v2170, 0.0
    %v2235 = vmax.f32 %v2171, 0.0
    %v2236 = vmax.f32 %v2172, 0.0
    %v2237 = vmax.f32 %v2173, 0.0
    %v2238 = vmax.f32 %v2174, 0.0
    %v2239 = vpack.c.bf16 %v2179, %v2175
    %v2240 = vpack.c.bf16 %v2180, %v2176
    %v2241 = vpack.c.bf16 %v2181, %v2177
    %v2242 = vpack.c.bf16 %v2182, %v2178
    %v2243 = vpack.c.bf16 %v2187, %v2183
    %v2244 = vpack.c.bf16 %v2188, %v2184
    %v2245 = vpack.c.bf16 %v2189, %v2185
    %v2246 = vpack.c.bf16 %v2190, %v2186
    %v2247 = vpack.c.bf16 %v2195, %v2191
    %v2248 = vpack.c.bf16 %v2196, %v2192
    %v2249 = vpack.c.bf16 %v2197, %v2193
    %v2250 = vpack.c.bf16 %v2198, %v2194
    %v2251 = vpack.c.bf16 %v2203, %v2199
    %v2252 = vpack.c.bf16 %v2204, %v2200
    %v2253 = vpack.c.bf16 %v2205, %v2201
    %v2254 = vpack.c.bf16 %v2206, %v2202
    %v2255 = vpack.c.bf16 %v2211, %v2207
    %v2256 = vpack.c.bf16 %v2212, %v2208
    %v2257 = vpack.c.bf16 %v2213, %v2209
    %v2258 = vpack.c.bf16 %v2214, %v2210
    %v2259 = vpack.c.bf16 %v2219, %v2215
    %v2260 = vpack.c.bf16 %v2220, %v2216
    %v2261 = vpack.c.bf16 %v2221, %v2217
    %v2262 = vpack.c.bf16 %v2222, %v2218
    %v2263 = vpack.c.bf16 %v2227, %v2223
    %v2264 = vpack.c.bf16 %v2228, %v2224
    %v2265 = vpack.c.bf16 %v2229, %v2225
    %v2266 = vpack.c.bf16 %v2230, %v2226
    %v2267 = vpack.c.bf16 %v2235, %v2231
    %v2268 = vpack.c.bf16 %v2236, %v2232
    %v2269 = vpack.c.bf16 %v2237, %v2233
    %v2270 = vpack.c.bf16 %v2238, %v2234
    %s2271 = smul.u32 4, 64
    %s2272 = smul.u32 %s2271, 8
    %s2273 = sshll.u32 %s2272, 4
    %2274 = dma.done [#allocation4], %s2273
    %v2275 = vld [vmem:[#allocation2] sm:$0xff]
    %v2276 = vld [vmem:[#allocation2 + $0x8] sm:$0xff]
    %v2277 = vld [vmem:[#allocation2 + $0x10] sm:$0xff]
    %v2278 = vld [vmem:[#allocation2 + $0x18] sm:$0xff]
    %v2279 = vld [vmem:[#allocation2 + $0x20] sm:$0xff]
    %v2280 = vld [vmem:[#allocation2 + $0x28] sm:$0xff]
    %v2281 = vld [vmem:[#allocation2 + $0x30] sm:$0xff]
    %v2282 = vld [vmem:[#allocation2 + $0x38] sm:$0xff]
    %v2283 = vld [vmem:[#allocation2 + $0x40] sm:$0xff]
    %v2284 = vld [vmem:[#allocation2 + $0x48] sm:$0xff]
    %v2285 = vld [vmem:[#allocation2 + $0x50] sm:$0xff]
    %v2286 = vld [vmem:[#allocation2 + $0x58] sm:$0xff]
    %v2287 = vld [vmem:[#allocation2 + $0x60] sm:$0xff]
    %v2288 = vld [vmem:[#allocation2 + $0x68] sm:$0xff]
    %v2289 = vld [vmem:[#allocation2 + $0x70] sm:$0xff]
    %v2290 = vld [vmem:[#allocation2 + $0x78] sm:$0xff]
    %v2291 = vld [vmem:[#allocation2 + $0x80] sm:$0xff]
    %v2292 = vld [vmem:[#allocation2 + $0x88] sm:$0xff]
    %v2293 = vld [vmem:[#allocation2 + $0x90] sm:$0xff]
    %v2294 = vld [vmem:[#allocation2 + $0x98] sm:$0xff]
    %v2295 = vld [vmem:[#allocation2 + $0xa0] sm:$0xff]
    %v2296 = vld [vmem:[#allocation2 + $0xa8] sm:$0xff]
    %v2297 = vld [vmem:[#allocation2 + $0xb0] sm:$0xff]
    %v2298 = vld [vmem:[#allocation2 + $0xb8] sm:$0xff]
    %v2299 = vld [vmem:[#allocation2 + $0xc0] sm:$0xff]
    %v2300 = vld [vmem:[#allocation2 + $0xc8] sm:$0xff]
    %v2301 = vld [vmem:[#allocation2 + $0xd0] sm:$0xff]
    %v2302 = vld [vmem:[#allocation2 + $0xd8] sm:$0xff]
    %v2303 = vld [vmem:[#allocation2 + $0xe0] sm:$0xff]
    %v2304 = vld [vmem:[#allocation2 + $0xe8] sm:$0xff]
    %v2305 = vld [vmem:[#allocation2 + $0xf0] sm:$0xff]
    %v2306 = vld [vmem:[#allocation2 + $0xf8] sm:$0xff]
    %v2307 = vld [vmem:[#allocation2 + $0x100] sm:$0xff]
    %v2308 = vld [vmem:[#allocation2 + $0x108] sm:$0xff]
    %v2309 = vld [vmem:[#allocation2 + $0x110] sm:$0xff]
    %v2310 = vld [vmem:[#allocation2 + $0x118] sm:$0xff]
    %v2311 = vld [vmem:[#allocation2 + $0x120] sm:$0xff]
    %v2312 = vld [vmem:[#allocation2 + $0x128] sm:$0xff]
    %v2313 = vld [vmem:[#allocation2 + $0x130] sm:$0xff]
    %v2314 = vld [vmem:[#allocation2 + $0x138] sm:$0xff]
    %v2315 = vld [vmem:[#allocation2 + $0x140] sm:$0xff]
    %v2316 = vld [vmem:[#allocation2 + $0x148] sm:$0xff]
    %v2317 = vld [vmem:[#allocation2 + $0x150] sm:$0xff]
    %v2318 = vld [vmem:[#allocation2 + $0x158] sm:$0xff]
    %v2319 = vld [vmem:[#allocation2 + $0x160] sm:$0xff]
    %v2320 = vld [vmem:[#allocation2 + $0x168] sm:$0xff]
    %v2321 = vld [vmem:[#allocation2 + $0x170] sm:$0xff]
    %v2322 = vld [vmem:[#allocation2 + $0x178] sm:$0xff]
    %v2323 = vld [vmem:[#allocation2 + $0x180] sm:$0xff]
    %v2324 = vld [vmem:[#allocation2 + $0x188] sm:$0xff]
    %v2325 = vld [vmem:[#allocation2 + $0x190] sm:$0xff]
    %v2326 = vld [vmem:[#allocation2 + $0x198] sm:$0xff]
    %v2327 = vld [vmem:[#allocation2 + $0x1a0] sm:$0xff]
    %v2328 = vld [vmem:[#allocation2 + $0x1a8] sm:$0xff]
    %v2329 = vld [vmem:[#allocation2 + $0x1b0] sm:$0xff]
    %v2330 = vld [vmem:[#allocation2 + $0x1b8] sm:$0xff]
    %v2331 = vld [vmem:[#allocation2 + $0x1c0] sm:$0xff]
    %v2332 = vld [vmem:[#allocation2 + $0x1c8] sm:$0xff]
    %v2333 = vld [vmem:[#allocation2 + $0x1d0] sm:$0xff]
    %v2334 = vld [vmem:[#allocation2 + $0x1d8] sm:$0xff]
    %v2335 = vld [vmem:[#allocation2 + $0x1e0] sm:$0xff]
    %v2336 = vld [vmem:[#allocation2 + $0x1e8] sm:$0xff]
    %v2337 = vld [vmem:[#allocation2 + $0x1f0] sm:$0xff]
    %v2338 = vld [vmem:[#allocation2 + $0x1f8] sm:$0xff]
    %v2339 = vld [vmem:[#allocation2 + $0x200] sm:$0xff]
    %v2340 = vld [vmem:[#allocation2 + $0x208] sm:$0xff]
    %v2341 = vld [vmem:[#allocation2 + $0x210] sm:$0xff]
    %v2342 = vld [vmem:[#allocation2 + $0x218] sm:$0xff]
    %v2343 = vld [vmem:[#allocation2 + $0x220] sm:$0xff]
    %v2344 = vld [vmem:[#allocation2 + $0x228] sm:$0xff]
    %v2345 = vld [vmem:[#allocation2 + $0x230] sm:$0xff]
    %v2346 = vld [vmem:[#allocation2 + $0x238] sm:$0xff]
    %v2347 = vld [vmem:[#allocation2 + $0x240] sm:$0xff]
    %v2348 = vld [vmem:[#allocation2 + $0x248] sm:$0xff]
    %v2349 = vld [vmem:[#allocation2 + $0x250] sm:$0xff]
    %v2350 = vld [vmem:[#allocation2 + $0x258] sm:$0xff]
    %v2351 = vld [vmem:[#allocation2 + $0x260] sm:$0xff]
    %v2352 = vld [vmem:[#allocation2 + $0x268] sm:$0xff]
    %v2353 = vld [vmem:[#allocation2 + $0x270] sm:$0xff]
    %v2354 = vld [vmem:[#allocation2 + $0x278] sm:$0xff]
    %v2355 = vld [vmem:[#allocation2 + $0x280] sm:$0xff]
    %v2356 = vld [vmem:[#allocation2 + $0x288] sm:$0xff]
    %v2357 = vld [vmem:[#allocation2 + $0x290] sm:$0xff]
    %v2358 = vld [vmem:[#allocation2 + $0x298] sm:$0xff]
    %v2359 = vld [vmem:[#allocation2 + $0x2a0] sm:$0xff]
    %v2360 = vld [vmem:[#allocation2 + $0x2a8] sm:$0xff]
    %v2361 = vld [vmem:[#allocation2 + $0x2b0] sm:$0xff]
    %v2362 = vld [vmem:[#allocation2 + $0x2b8] sm:$0xff]
    %v2363 = vld [vmem:[#allocation2 + $0x2c0] sm:$0xff]
    %v2364 = vld [vmem:[#allocation2 + $0x2c8] sm:$0xff]
    %v2365 = vld [vmem:[#allocation2 + $0x2d0] sm:$0xff]
    %v2366 = vld [vmem:[#allocation2 + $0x2d8] sm:$0xff]
    %v2367 = vld [vmem:[#allocation2 + $0x2e0] sm:$0xff]
    %v2368 = vld [vmem:[#allocation2 + $0x2e8] sm:$0xff]
    %v2369 = vld [vmem:[#allocation2 + $0x2f0] sm:$0xff]
    %v2370 = vld [vmem:[#allocation2 + $0x2f8] sm:$0xff]
    %v2371 = vld [vmem:[#allocation2 + $0x300] sm:$0xff]
    %v2372 = vld [vmem:[#allocation2 + $0x308] sm:$0xff]
    %v2373 = vld [vmem:[#allocation2 + $0x310] sm:$0xff]
    %v2374 = vld [vmem:[#allocation2 + $0x318] sm:$0xff]
    %v2375 = vld [vmem:[#allocation2 + $0x320] sm:$0xff]
    %v2376 = vld [vmem:[#allocation2 + $0x328] sm:$0xff]
    %v2377 = vld [vmem:[#allocation2 + $0x330] sm:$0xff]
    %v2378 = vld [vmem:[#allocation2 + $0x338] sm:$0xff]
    %v2379 = vld [vmem:[#allocation2 + $0x340] sm:$0xff]
    %v2380 = vld [vmem:[#allocation2 + $0x348] sm:$0xff]
    %v2381 = vld [vmem:[#allocation2 + $0x350] sm:$0xff]
    %v2382 = vld [vmem:[#allocation2 + $0x358] sm:$0xff]
    %v2383 = vld [vmem:[#allocation2 + $0x360] sm:$0xff]
    %v2384 = vld [vmem:[#allocation2 + $0x368] sm:$0xff]
    %v2385 = vld [vmem:[#allocation2 + $0x370] sm:$0xff]
    %v2386 = vld [vmem:[#allocation2 + $0x378] sm:$0xff]
    %v2387 = vld [vmem:[#allocation2 + $0x380] sm:$0xff]
    %v2388 = vld [vmem:[#allocation2 + $0x388] sm:$0xff]
    %v2389 = vld [vmem:[#allocation2 + $0x390] sm:$0xff]
    %v2390 = vld [vmem:[#allocation2 + $0x398] sm:$0xff]
    %v2391 = vld [vmem:[#allocation2 + $0x3a0] sm:$0xff]
    %v2392 = vld [vmem:[#allocation2 + $0x3a8] sm:$0xff]
    %v2393 = vld [vmem:[#allocation2 + $0x3b0] sm:$0xff]
    %v2394 = vld [vmem:[#allocation2 + $0x3b8] sm:$0xff]
    %v2395 = vld [vmem:[#allocation2 + $0x3c0] sm:$0xff]
    %v2396 = vld [vmem:[#allocation2 + $0x3c8] sm:$0xff]
    %v2397 = vld [vmem:[#allocation2 + $0x3d0] sm:$0xff]
    %v2398 = vld [vmem:[#allocation2 + $0x3d8] sm:$0xff]
    %v2399 = vld [vmem:[#allocation2 + $0x3e0] sm:$0xff]
    %v2400 = vld [vmem:[#allocation2 + $0x3e8] sm:$0xff]
    %v2401 = vld [vmem:[#allocation2 + $0x3f0] sm:$0xff]
    %v2402 = vld [vmem:[#allocation2 + $0x3f8] sm:$0xff]
    %v2403 = vld [vmem:[#allocation2 + $0x400] sm:$0xff]
    %v2404 = vld [vmem:[#allocation2 + $0x408] sm:$0xff]
    %v2405 = vld [vmem:[#allocation2 + $0x410] sm:$0xff]
    %v2406 = vld [vmem:[#allocation2 + $0x418] sm:$0xff]
    %v2407 = vld [vmem:[#allocation2 + $0x420] sm:$0xff]
    %v2408 = vld [vmem:[#allocation2 + $0x428] sm:$0xff]
    %v2409 = vld [vmem:[#allocation2 + $0x430] sm:$0xff]
    %v2410 = vld [vmem:[#allocation2 + $0x438] sm:$0xff]
    %v2411 = vld [vmem:[#allocation2 + $0x440] sm:$0xff]
    %v2412 = vld [vmem:[#allocation2 + $0x448] sm:$0xff]
    %v2413 = vld [vmem:[#allocation2 + $0x450] sm:$0xff]
    %v2414 = vld [vmem:[#allocation2 + $0x458] sm:$0xff]
    %v2415 = vld [vmem:[#allocation2 + $0x460] sm:$0xff]
    %v2416 = vld [vmem:[#allocation2 + $0x468] sm:$0xff]
    %v2417 = vld [vmem:[#allocation2 + $0x470] sm:$0xff]
    %v2418 = vld [vmem:[#allocation2 + $0x478] sm:$0xff]
    %v2419 = vld [vmem:[#allocation2 + $0x480] sm:$0xff]
    %v2420 = vld [vmem:[#allocation2 + $0x488] sm:$0xff]
    %v2421 = vld [vmem:[#allocation2 + $0x490] sm:$0xff]
    %v2422 = vld [vmem:[#allocation2 + $0x498] sm:$0xff]
    %v2423 = vld [vmem:[#allocation2 + $0x4a0] sm:$0xff]
    %v2424 = vld [vmem:[#allocation2 + $0x4a8] sm:$0xff]
    %v2425 = vld [vmem:[#allocation2 + $0x4b0] sm:$0xff]
    %v2426 = vld [vmem:[#allocation2 + $0x4b8] sm:$0xff]
    %v2427 = vld [vmem:[#allocation2 + $0x4c0] sm:$0xff]
    %v2428 = vld [vmem:[#allocation2 + $0x4c8] sm:$0xff]
    %v2429 = vld [vmem:[#allocation2 + $0x4d0] sm:$0xff]
    %v2430 = vld [vmem:[#allocation2 + $0x4d8] sm:$0xff]
    %v2431 = vld [vmem:[#allocation2 + $0x4e0] sm:$0xff]
    %v2432 = vld [vmem:[#allocation2 + $0x4e8] sm:$0xff]
    %v2433 = vld [vmem:[#allocation2 + $0x4f0] sm:$0xff]
    %v2434 = vld [vmem:[#allocation2 + $0x4f8] sm:$0xff]
    %v2435 = vld [vmem:[#allocation2 + $0x500] sm:$0xff]
    %v2436 = vld [vmem:[#allocation2 + $0x508] sm:$0xff]
    %v2437 = vld [vmem:[#allocation2 + $0x510] sm:$0xff]
    %v2438 = vld [vmem:[#allocation2 + $0x518] sm:$0xff]
    %v2439 = vld [vmem:[#allocation2 + $0x520] sm:$0xff]
    %v2440 = vld [vmem:[#allocation2 + $0x528] sm:$0xff]
    %v2441 = vld [vmem:[#allocation2 + $0x530] sm:$0xff]
    %v2442 = vld [vmem:[#allocation2 + $0x538] sm:$0xff]
    %v2443 = vld [vmem:[#allocation2 + $0x540] sm:$0xff]
    %v2444 = vld [vmem:[#allocation2 + $0x548] sm:$0xff]
    %v2445 = vld [vmem:[#allocation2 + $0x550] sm:$0xff]
    %v2446 = vld [vmem:[#allocation2 + $0x558] sm:$0xff]
    %v2447 = vld [vmem:[#allocation2 + $0x560] sm:$0xff]
    %v2448 = vld [vmem:[#allocation2 + $0x568] sm:$0xff]
    %v2449 = vld [vmem:[#allocation2 + $0x570] sm:$0xff]
    %v2450 = vld [vmem:[#allocation2 + $0x578] sm:$0xff]
    %v2451 = vld [vmem:[#allocation2 + $0x580] sm:$0xff]
    %v2452 = vld [vmem:[#allocation2 + $0x588] sm:$0xff]
    %v2453 = vld [vmem:[#allocation2 + $0x590] sm:$0xff]
    %v2454 = vld [vmem:[#allocation2 + $0x598] sm:$0xff]
    %v2455 = vld [vmem:[#allocation2 + $0x5a0] sm:$0xff]
    %v2456 = vld [vmem:[#allocation2 + $0x5a8] sm:$0xff]
    %v2457 = vld [vmem:[#allocation2 + $0x5b0] sm:$0xff]
    %v2458 = vld [vmem:[#allocation2 + $0x5b8] sm:$0xff]
    %v2459 = vld [vmem:[#allocation2 + $0x5c0] sm:$0xff]
    %v2460 = vld [vmem:[#allocation2 + $0x5c8] sm:$0xff]
    %v2461 = vld [vmem:[#allocation2 + $0x5d0] sm:$0xff]
    %v2462 = vld [vmem:[#allocation2 + $0x5d8] sm:$0xff]
    %v2463 = vld [vmem:[#allocation2 + $0x5e0] sm:$0xff]
    %v2464 = vld [vmem:[#allocation2 + $0x5e8] sm:$0xff]
    %v2465 = vld [vmem:[#allocation2 + $0x5f0] sm:$0xff]
    %v2466 = vld [vmem:[#allocation2 + $0x5f8] sm:$0xff]
    %v2467 = vld [vmem:[#allocation2 + $0x600] sm:$0xff]
    %v2468 = vld [vmem:[#allocation2 + $0x608] sm:$0xff]
    %v2469 = vld [vmem:[#allocation2 + $0x610] sm:$0xff]
    %v2470 = vld [vmem:[#allocation2 + $0x618] sm:$0xff]
    %v2471 = vld [vmem:[#allocation2 + $0x620] sm:$0xff]
    %v2472 = vld [vmem:[#allocation2 + $0x628] sm:$0xff]
    %v2473 = vld [vmem:[#allocation2 + $0x630] sm:$0xff]
    %v2474 = vld [vmem:[#allocation2 + $0x638] sm:$0xff]
    %v2475 = vld [vmem:[#allocation2 + $0x640] sm:$0xff]
    %v2476 = vld [vmem:[#allocation2 + $0x648] sm:$0xff]
    %v2477 = vld [vmem:[#allocation2 + $0x650] sm:$0xff]
    %v2478 = vld [vmem:[#allocation2 + $0x658] sm:$0xff]
    %v2479 = vld [vmem:[#allocation2 + $0x660] sm:$0xff]
    %v2480 = vld [vmem:[#allocation2 + $0x668] sm:$0xff]
    %v2481 = vld [vmem:[#allocation2 + $0x670] sm:$0xff]
    %v2482 = vld [vmem:[#allocation2 + $0x678] sm:$0xff]
    %v2483 = vld [vmem:[#allocation2 + $0x680] sm:$0xff]
    %v2484 = vld [vmem:[#allocation2 + $0x688] sm:$0xff]
    %v2485 = vld [vmem:[#allocation2 + $0x690] sm:$0xff]
    %v2486 = vld [vmem:[#allocation2 + $0x698] sm:$0xff]
    %v2487 = vld [vmem:[#allocation2 + $0x6a0] sm:$0xff]
    %v2488 = vld [vmem:[#allocation2 + $0x6a8] sm:$0xff]
    %v2489 = vld [vmem:[#allocation2 + $0x6b0] sm:$0xff]
    %v2490 = vld [vmem:[#allocation2 + $0x6b8] sm:$0xff]
    %v2491 = vld [vmem:[#allocation2 + $0x6c0] sm:$0xff]
    %v2492 = vld [vmem:[#allocation2 + $0x6c8] sm:$0xff]
    %v2493 = vld [vmem:[#allocation2 + $0x6d0] sm:$0xff]
    %v2494 = vld [vmem:[#allocation2 + $0x6d8] sm:$0xff]
    %v2495 = vld [vmem:[#allocation2 + $0x6e0] sm:$0xff]
    %v2496 = vld [vmem:[#allocation2 + $0x6e8] sm:$0xff]
    %v2497 = vld [vmem:[#allocation2 + $0x6f0] sm:$0xff]
    %v2498 = vld [vmem:[#allocation2 + $0x6f8] sm:$0xff]
    %v2499 = vld [vmem:[#allocation2 + $0x700] sm:$0xff]
    %v2500 = vld [vmem:[#allocation2 + $0x708] sm:$0xff]
    %v2501 = vld [vmem:[#allocation2 + $0x710] sm:$0xff]
    %v2502 = vld [vmem:[#allocation2 + $0x718] sm:$0xff]
    %v2503 = vld [vmem:[#allocation2 + $0x720] sm:$0xff]
    %v2504 = vld [vmem:[#allocation2 + $0x728] sm:$0xff]
    %v2505 = vld [vmem:[#allocation2 + $0x730] sm:$0xff]
    %v2506 = vld [vmem:[#allocation2 + $0x738] sm:$0xff]
    %v2507 = vld [vmem:[#allocation2 + $0x740] sm:$0xff]
    %v2508 = vld [vmem:[#allocation2 + $0x748] sm:$0xff]
    %v2509 = vld [vmem:[#allocation2 + $0x750] sm:$0xff]
    %v2510 = vld [vmem:[#allocation2 + $0x758] sm:$0xff]
    %v2511 = vld [vmem:[#allocation2 + $0x760] sm:$0xff]
    %v2512 = vld [vmem:[#allocation2 + $0x768] sm:$0xff]
    %v2513 = vld [vmem:[#allocation2 + $0x770] sm:$0xff]
    %v2514 = vld [vmem:[#allocation2 + $0x778] sm:$0xff]
    %v2515 = vld [vmem:[#allocation2 + $0x780] sm:$0xff]
    %v2516 = vld [vmem:[#allocation2 + $0x788] sm:$0xff]
    %v2517 = vld [vmem:[#allocation2 + $0x790] sm:$0xff]
    %v2518 = vld [vmem:[#allocation2 + $0x798] sm:$0xff]
    %v2519 = vld [vmem:[#allocation2 + $0x7a0] sm:$0xff]
    %v2520 = vld [vmem:[#allocation2 + $0x7a8] sm:$0xff]
    %v2521 = vld [vmem:[#allocation2 + $0x7b0] sm:$0xff]
    %v2522 = vld [vmem:[#allocation2 + $0x7b8] sm:$0xff]
    %v2523 = vld [vmem:[#allocation2 + $0x7c0] sm:$0xff]
    %v2524 = vld [vmem:[#allocation2 + $0x7c8] sm:$0xff]
    %v2525 = vld [vmem:[#allocation2 + $0x7d0] sm:$0xff]
    %v2526 = vld [vmem:[#allocation2 + $0x7d8] sm:$0xff]
    %v2527 = vld [vmem:[#allocation2 + $0x7e0] sm:$0xff]
    %v2528 = vld [vmem:[#allocation2 + $0x7e8] sm:$0xff]
    %v2529 = vld [vmem:[#allocation2 + $0x7f0] sm:$0xff]
    %v2530 = vld [vmem:[#allocation2 + $0x7f8] sm:$0xff]
    %2531 = vmatprep.subr.bf16.mxu0 %v2276
    %2532 = vmatpush1.bf16.msra.mxu0 %v2275
    %2533 = vmatprep.subr.bf16.mxu0 %v2284
    %2534 = vmatpush1.bf16.msra.mxu0 %v2283
    %2535 = vmatprep.subr.bf16.mxu0 %v2292
    %2536 = vmatpush1.bf16.msra.mxu0 %v2291
    %2537 = vmatprep.subr.bf16.mxu0 %v2300
    %2538 = vmatpush1.bf16.msra.mxu0 %v2299
    %2539 = vmatprep.subr.bf16.mxu0 %v2308
    %2540 = vmatpush1.bf16.msra.mxu0 %v2307
    %2541 = vmatprep.subr.bf16.mxu0 %v2316
    %2542 = vmatpush1.bf16.msra.mxu0 %v2315
    %2543 = vmatprep.subr.bf16.mxu0 %v2324
    %2544 = vmatpush1.bf16.msra.mxu0 %v2323
    %2545 = vmatprep.subr.bf16.mxu0 %v2332
    %2546 = vmatpush1.bf16.msra.mxu0 %v2331
    %2547 = vmatprep.subr.bf16.mxu0 %v2340
    %2548 = vmatpush1.bf16.msra.mxu0 %v2339
    %2549 = vmatprep.subr.bf16.mxu0 %v2348
    %2550 = vmatpush1.bf16.msra.mxu0 %v2347
    %2551 = vmatprep.subr.bf16.mxu0 %v2356
    %2552 = vmatpush1.bf16.msra.mxu0 %v2355
    %2553 = vmatprep.subr.bf16.mxu0 %v2364
    %2554 = vmatpush1.bf16.msra.mxu0 %v2363
    %2555 = vmatprep.subr.bf16.mxu0 %v2372
    %2556 = vmatpush1.bf16.msra.mxu0 %v2371
    %2557 = vmatprep.subr.bf16.mxu0 %v2380
    %2558 = vmatpush1.bf16.msra.mxu0 %v2379
    %2559 = vmatprep.subr.bf16.mxu0 %v2388
    %2560 = vmatpush1.bf16.msra.mxu0 %v2387
    %2561 = vmatprep.subr.bf16.mxu0 %v2396
    %2562 = vmatpush1.bf16.msra.mxu0 %v2395
    %2563 = vmatprep.mubr.bf16.mxu0 %v2240
    %2564 = vmatmul.mubr.bf16.gmra.mrb[0].mxu0 %v2239
    %v2565 = vpop.f32.mrb[0].mxu0
    %v2566 = vadd.f32 0.0, %v2565
    %v2567 = vpop.f32.mrb[0].mxu0
    %v2568 = vadd.f32 0.0, %v2567
    %v2569 = vpop.f32.mrb[0].mxu0
    %v2570 = vadd.f32 0.0, %v2569
    %v2571 = vpop.f32.mrb[0].mxu0
    %v2572 = vadd.f32 0.0, %v2571
    %2573 = vmatprep.mubr.bf16.mxu0 %v2244
    %2574 = vmatmul.mubr.bf16.gmra.mrb[0].mxu0 %v2243
    %v2575 = vpop.f32.mrb[0].mxu0
    %v2576 = vadd.f32 0.0, %v2575
    %v2577 = vpop.f32.mrb[0].mxu0
    %v2578 = vadd.f32 0.0, %v2577
    %v2579 = vpop.f32.mrb[0].mxu0
    %v2580 = vadd.f32 0.0, %v2579
    %v2581 = vpop.f32.mrb[0].mxu0
    %v2582 = vadd.f32 0.0, %v2581
    %2583 = vmatprep.mubr.bf16.mxu0 %v2248
    %2584 = vmatmul.mubr.bf16.gmra.mrb[0].mxu0 %v2247
    %v2585 = vpop.f32.mrb[0].mxu0
    %v2586 = vadd.f32 0.0, %v2585
    %v2587 = vpop.f32.mrb[0].mxu0
    %v2588 = vadd.f32 0.0, %v2587
    %v2589 = vpop.f32.mrb[0].mxu0
    %v2590 = vadd.f32 0.0, %v2589
    %v2591 = vpop.f32.mrb[0].mxu0
    %v2592 = vadd.f32 0.0, %v2591
    %2593 = vmatprep.mubr.bf16.mxu0 %v2252
    %2594 = vmatmul.mubr.bf16.gmra.mrb[0].mxu0 %v2251
    %v2595 = vpop.f32.mrb[0].mxu0
    %v2596 = vadd.f32 0.0, %v2595
    %v2597 = vpop.f32.mrb[0].mxu0
    %v2598 = vadd.f32 0.0, %v2597
    %v2599 = vpop.f32.mrb[0].mxu0
    %v2600 = vadd.f32 0.0, %v2599
    %v2601 = vpop.f32.mrb[0].mxu0
    %v2602 = vadd.f32 0.0, %v2601
    %2603 = vmatprep.mubr.bf16.mxu0 %v2256
    %2604 = vmatmul.mubr.bf16.gmra.mrb[0].mxu0 %v2255
    %v2605 = vpop.f32.mrb[0].mxu0
    %v2606 = vadd.f32 0.0, %v2605
    %v2607 = vpop.f32.mrb[0].mxu0
    %v2608 = vadd.f32 0.0, %v2607
    %v2609 = vpop.f32.mrb[0].mxu0
    %v2610 = vadd.f32 0.0, %v2609
    %v2611 = vpop.f32.mrb[0].mxu0
    %v2612 = vadd.f32 0.0, %v2611
    %2613 = vmatprep.mubr.bf16.mxu0 %v2260
    %2614 = vmatmul.mubr.bf16.gmra.mrb[0].mxu0 %v2259
    %v2615 = vpop.f32.mrb[0].mxu0
    %v2616 = vadd.f32 0.0, %v2615
    %v2617 = vpop.f32.mrb[0].mxu0
    %v2618 = vadd.f32 0.0, %v2617
    %v2619 = vpop.f32.mrb[0].mxu0
    %v2620 = vadd.f32 0.0, %v2619
    %v2621 = vpop.f32.mrb[0].mxu0
    %v2622 = vadd.f32 0.0, %v2621
    %2623 = vmatprep.mubr.bf16.mxu0 %v2264
    %2624 = vmatmul.mubr.bf16.gmra.mrb[0].mxu0 %v2263
    %v2625 = vpop.f32.mrb[0].mxu0
    %v2626 = vadd.f32 0.0, %v2625
    %v2627 = vpop.f32.mrb[0].mxu0
    %v2628 = vadd.f32 0.0, %v2627
    %v2629 = vpop.f32.mrb[0].mxu0
    %v2630 = vadd.f32 0.0, %v2629
    %v2631 = vpop.f32.mrb[0].mxu0
    %v2632 = vadd.f32 0.0, %v2631
    %2633 = vmatprep.mubr.bf16.mxu0 %v2268
    %2634 = vmatmul.mubr.bf16.gmra.mrb[0].mxu0 %v2267
    %v2635 = vpop.f32.mrb[0].mxu0
    %v2636 = vadd.f32 0.0, %v2635
    %v2637 = vpop.f32.mrb[0].mxu0
    %v2638 = vadd.f32 0.0, %v2637
    %v2639 = vpop.f32.mrb[0].mxu0
    %v2640 = vadd.f32 0.0, %v2639
    %v2641 = vpop.f32.mrb[0].mxu0
    %v2642 = vadd.f32 0.0, %v2641
    %2643 = vdwg.mxu0
    %2644 = vmatprep.subr.bf16.mxu0 %v2404
    %2645 = vmatpush1.bf16.msra.mxu0 %v2403
    %2646 = vmatprep.subr.bf16.mxu0 %v2412
    %2647 = vmatpush1.bf16.msra.mxu0 %v2411
    %2648 = vmatprep.subr.bf16.mxu0 %v2420
    %2649 = vmatpush1.bf16.msra.mxu0 %v2419
    %2650 = vmatprep.subr.bf16.mxu0 %v2428
    %2651 = vmatpush1.bf16.msra.mxu0 %v2427
    %2652 = vmatprep.subr.bf16.mxu0 %v2436
    %2653 = vmatpush1.bf16.msra.mxu0 %v2435
    %2654 = vmatprep.subr.bf16.mxu0 %v2444
    %2655 = vmatpush1.bf16.msra.mxu0 %v2443
    %2656 = vmatprep.subr.bf16.mxu0 %v2452
    %2657 = vmatpush1.bf16.msra.mxu0 %v2451
    %2658 = vmatprep.subr.bf16.mxu0 %v2460
    %2659 = vmatpush1.bf16.msra.mxu0 %v2459
    %2660 = vmatprep.subr.bf16.mxu0 %v2468
    %2661 = vmatpush1.bf16.msra.mxu0 %v2467
    %2662 = vmatprep.subr.bf16.mxu0 %v2476
    %2663 = vmatpush1.bf16.msra.mxu0 %v2475
    %2664 = vmatprep.subr.bf16.mxu0 %v2484
    %2665 = vmatpush1.bf16.msra.mxu0 %v2483
    %2666 = vmatprep.subr.bf16.mxu0 %v2492
    %2667 = vmatpush1.bf16.msra.mxu0 %v2491
    %2668 = vmatprep.subr.bf16.mxu0 %v2500
    %2669 = vmatpush1.bf16.msra.mxu0 %v2499
    %2670 = vmatprep.subr.bf16.mxu0 %v2508
    %2671 = vmatpush1.bf16.msra.mxu0 %v2507
    %2672 = vmatprep.subr.bf16.mxu0 %v2516
    %2673 = vmatpush1.bf16.msra.mxu0 %v2515
    %2674 = vmatprep.subr.bf16.mxu0 %v2524
    %2675 = vmatpush1.bf16.msra.mxu0 %v2523
    %2676 = vmatprep.mubr.bf16.mxu0 %v2242
    %2677 = vmatmul.mubr.bf16.gmra.mrb[0].mxu0 %v2241
    %v2678 = vpop.f32.mrb[0].mxu0
    %v2679 = vadd.f32 %v2566, %v2678
    %v2680 = vpop.f32.mrb[0].mxu0
    %v2681 = vadd.f32 %v2568, %v2680
    %v2682 = vpop.f32.mrb[0].mxu0
    %v2683 = vadd.f32 %v2570, %v2682
    %v2684 = vpop.f32.mrb[0].mxu0
    %v2685 = vadd.f32 %v2572, %v2684
    %2686 = vmatprep.mubr.bf16.mxu0 %v2246
    %2687 = vmatmul.mubr.bf16.gmra.mrb[0].mxu0 %v2245
    %v2688 = vpop.f32.mrb[0].mxu0
    %v2689 = vadd.f32 %v2576, %v2688
    %v2690 = vpop.f32.mrb[0].mxu0
    %v2691 = vadd.f32 %v2578, %v2690
    %v2692 = vpop.f32.mrb[0].mxu0
    %v2693 = vadd.f32 %v2580, %v2692
    %v2694 = vpop.f32.mrb[0].mxu0
    %v2695 = vadd.f32 %v2582, %v2694
    %2696 = vmatprep.mubr.bf16.mxu0 %v2250
    %2697 = vmatmul.mubr.bf16.gmra.mrb[0].mxu0 %v2249
    %v2698 = vpop.f32.mrb[0].mxu0
    %v2699 = vadd.f32 %v2586, %v2698
    %v2700 = vpop.f32.mrb[0].mxu0
    %v2701 = vadd.f32 %v2588, %v2700
    %v2702 = vpop.f32.mrb[0].mxu0
    %v2703 = vadd.f32 %v2590, %v2702
    %v2704 = vpop.f32.mrb[0].mxu0
    %v2705 = vadd.f32 %v2592, %v2704
    %2706 = vmatprep.mubr.bf16.mxu0 %v2254
    %2707 = vmatmul.mubr.bf16.gmra.mrb[0].mxu0 %v2253
    %v2708 = vpop.f32.mrb[0].mxu0
    %v2709 = vadd.f32 %v2596, %v2708
    %v2710 = vpop.f32.mrb[0].mxu0
    %v2711 = vadd.f32 %v2598, %v2710
    %v2712 = vpop.f32.mrb[0].mxu0
    %v2713 = vadd.f32 %v2600, %v2712
    %v2714 = vpop.f32.mrb[0].mxu0
    %v2715 = vadd.f32 %v2602, %v2714
    %2716 = vmatprep.mubr.bf16.mxu0 %v2258
    %2717 = vmatmul.mubr.bf16.gmra.mrb[0].mxu0 %v2257
    %v2718 = vpop.f32.mrb[0].mxu0
    %v2719 = vadd.f32 %v2606, %v2718
    %v2720 = vpop.f32.mrb[0].mxu0
    %v2721 = vadd.f32 %v2608, %v2720
    %v2722 = vpop.f32.mrb[0].mxu0
    %v2723 = vadd.f32 %v2610, %v2722
    %v2724 = vpop.f32.mrb[0].mxu0
    %v2725 = vadd.f32 %v2612, %v2724
    %2726 = vmatprep.mubr.bf16.mxu0 %v2262
    %2727 = vmatmul.mubr.bf16.gmra.mrb[0].mxu0 %v2261
    %v2728 = vpop.f32.mrb[0].mxu0
    %v2729 = vadd.f32 %v2616, %v2728
    %v2730 = vpop.f32.mrb[0].mxu0
    %v2731 = vadd.f32 %v2618, %v2730
    %v2732 = vpop.f32.mrb[0].mxu0
    %v2733 = vadd.f32 %v2620, %v2732
    %v2734 = vpop.f32.mrb[0].mxu0
    %v2735 = vadd.f32 %v2622, %v2734
    %2736 = vmatprep.mubr.bf16.mxu0 %v2266
    %2737 = vmatmul.mubr.bf16.gmra.mrb[0].mxu0 %v2265
    %v2738 = vpop.f32.mrb[0].mxu0
    %v2739 = vadd.f32 %v2626, %v2738
    %v2740 = vpop.f32.mrb[0].mxu0
    %v2741 = vadd.f32 %v2628, %v2740
    %v2742 = vpop.f32.mrb[0].mxu0
    %v2743 = vadd.f32 %v2630, %v2742
    %v2744 = vpop.f32.mrb[0].mxu0
    %v2745 = vadd.f32 %v2632, %v2744
    %2746 = vmatprep.mubr.bf16.mxu0 %v2270
    %2747 = vmatmul.mubr.bf16.gmra.mrb[0].mxu0 %v2269
    %v2748 = vpop.f32.mrb[0].mxu0
    %v2749 = vadd.f32 %v2636, %v2748
    %v2750 = vpop.f32.mrb[0].mxu0
    %v2751 = vadd.f32 %v2638, %v2750
    %v2752 = vpop.f32.mrb[0].mxu0
    %v2753 = vadd.f32 %v2640, %v2752
    %v2754 = vpop.f32.mrb[0].mxu0
    %v2755 = vadd.f32 %v2642, %v2754
    %2756 = vdwg.mxu0
    %2757 = vmatprep.subr.bf16.mxu0 %v2278
    %2758 = vmatpush1.bf16.msra.mxu0 %v2277
    %2759 = vmatprep.subr.bf16.mxu0 %v2286
    %2760 = vmatpush1.bf16.msra.mxu0 %v2285
    %2761 = vmatprep.subr.bf16.mxu0 %v2294
    %2762 = vmatpush1.bf16.msra.mxu0 %v2293
    %2763 = vmatprep.subr.bf16.mxu0 %v2302
    %2764 = vmatpush1.bf16.msra.mxu0 %v2301
    %2765 = vmatprep.subr.bf16.mxu0 %v2310
    %2766 = vmatpush1.bf16.msra.mxu0 %v2309
    %2767 = vmatprep.subr.bf16.mxu0 %v2318
    %2768 = vmatpush1.bf16.msra.mxu0 %v2317
    %2769 = vmatprep.subr.bf16.mxu0 %v2326
    %2770 = vmatpush1.bf16.msra.mxu0 %v2325
    %2771 = vmatprep.subr.bf16.mxu0 %v2334
    %2772 = vmatpush1.bf16.msra.mxu0 %v2333
    %2773 = vmatprep.subr.bf16.mxu0 %v2342
    %2774 = vmatpush1.bf16.msra.mxu0 %v2341
    %2775 = vmatprep.subr.bf16.mxu0 %v2350
    %2776 = vmatpush1.bf16.msra.mxu0 %v2349
    %2777 = vmatprep.subr.bf16.mxu0 %v2358
    %2778 = vmatpush1.bf16.msra.mxu0 %v2357
    %2779 = vmatprep.subr.bf16.mxu0 %v2366
    %2780 = vmatpush1.bf16.msra.mxu0 %v2365
    %2781 = vmatprep.subr.bf16.mxu0 %v2374
    %2782 = vmatpush1.bf16.msra.mxu0 %v2373
    %2783 = vmatprep.subr.bf16.mxu0 %v2382
    %2784 = vmatpush1.bf16.msra.mxu0 %v2381
    %2785 = vmatprep.subr.bf16.mxu0 %v2390
    %2786 = vmatpush1.bf16.msra.mxu0 %v2389
    %2787 = vmatprep.subr.bf16.mxu0 %v2398
    %2788 = vmatpush1.bf16.msra.mxu0 %v2397
    %2789 = vmatprep.mubr.bf16.mxu0 %v2240
    %2790 = vmatmul.mubr.bf16.gmra.mrb[0].mxu0 %v2239
    %v2791 = vpop.f32.mrb[0].mxu0
    %v2792 = vadd.f32 0.0, %v2791
    %v2793 = vpop.f32.mrb[0].mxu0
    %v2794 = vadd.f32 0.0, %v2793
    %v2795 = vpop.f32.mrb[0].mxu0
    %v2796 = vadd.f32 0.0, %v2795
    %v2797 = vpop.f32.mrb[0].mxu0
    %v2798 = vadd.f32 0.0, %v2797
    %2799 = vmatprep.mubr.bf16.mxu0 %v2244
    %2800 = vmatmul.mubr.bf16.gmra.mrb[0].mxu0 %v2243
    %v2801 = vpop.f32.mrb[0].mxu0
    %v2802 = vadd.f32 0.0, %v2801
    %v2803 = vpop.f32.mrb[0].mxu0
    %v2804 = vadd.f32 0.0, %v2803
    %v2805 = vpop.f32.mrb[0].mxu0
    %v2806 = vadd.f32 0.0, %v2805
    %v2807 = vpop.f32.mrb[0].mxu0
    %v2808 = vadd.f32 0.0, %v2807
    %2809 = vmatprep.mubr.bf16.mxu0 %v2248
    %2810 = vmatmul.mubr.bf16.gmra.mrb[0].mxu0 %v2247
    %v2811 = vpop.f32.mrb[0].mxu0
    %v2812 = vadd.f32 0.0, %v2811
    %v2813 = vpop.f32.mrb[0].mxu0
    %v2814 = vadd.f32 0.0, %v2813
    %v2815 = vpop.f32.mrb[0].mxu0
    %v2816 = vadd.f32 0.0, %v2815
    %v2817 = vpop.f32.mrb[0].mxu0
    %v2818 = vadd.f32 0.0, %v2817
    %2819 = vmatprep.mubr.bf16.mxu0 %v2252
    %2820 = vmatmul.mubr.bf16.gmra.mrb[0].mxu0 %v2251
    %v2821 = vpop.f32.mrb[0].mxu0
    %v2822 = vadd.f32 0.0, %v2821
    %v2823 = vpop.f32.mrb[0].mxu0
    %v2824 = vadd.f32 0.0, %v2823
    %v2825 = vpop.f32.mrb[0].mxu0
    %v2826 = vadd.f32 0.0, %v2825
    %v2827 = vpop.f32.mrb[0].mxu0
    %v2828 = vadd.f32 0.0, %v2827
    %2829 = vmatprep.mubr.bf16.mxu0 %v2256
    %2830 = vmatmul.mubr.bf16.gmra.mrb[0].mxu0 %v2255
    %v2831 = vpop.f32.mrb[0].mxu0
    %v2832 = vadd.f32 0.0, %v2831
    %v2833 = vpop.f32.mrb[0].mxu0
    %v2834 = vadd.f32 0.0, %v2833
    %v2835 = vpop.f32.mrb[0].mxu0
    %v2836 = vadd.f32 0.0, %v2835
    %v2837 = vpop.f32.mrb[0].mxu0
    %v2838 = vadd.f32 0.0, %v2837
    %2839 = vmatprep.mubr.bf16.mxu0 %v2260
    %2840 = vmatmul.mubr.bf16.gmra.mrb[0].mxu0 %v2259
    %v2841 = vpop.f32.mrb[0].mxu0
    %v2842 = vadd.f32 0.0, %v2841
    %v2843 = vpop.f32.mrb[0].mxu0
    %v2844 = vadd.f32 0.0, %v2843
    %v2845 = vpop.f32.mrb[0].mxu0
    %v2846 = vadd.f32 0.0, %v2845
    %v2847 = vpop.f32.mrb[0].mxu0
    %v2848 = vadd.f32 0.0, %v2847
    %2849 = vmatprep.mubr.bf16.mxu0 %v2264
    %2850 = vmatmul.mubr.bf16.gmra.mrb[0].mxu0 %v2263
    %v2851 = vpop.f32.mrb[0].mxu0
    %v2852 = vadd.f32 0.0, %v2851
    %v2853 = vpop.f32.mrb[0].mxu0
    %v2854 = vadd.f32 0.0, %v2853
    %v2855 = vpop.f32.mrb[0].mxu0
    %v2856 = vadd.f32 0.0, %v2855
    %v2857 = vpop.f32.mrb[0].mxu0
    %v2858 = vadd.f32 0.0, %v2857
    %2859 = vmatprep.mubr.bf16.mxu0 %v2268
    %2860 = vmatmul.mubr.bf16.gmra.mrb[0].mxu0 %v2267
    %v2861 = vpop.f32.mrb[0].mxu0
    %v2862 = vadd.f32 0.0, %v2861
    %v2863 = vpop.f32.mrb[0].mxu0
    %v2864 = vadd.f32 0.0, %v2863
    %v2865 = vpop.f32.mrb[0].mxu0
    %v2866 = vadd.f32 0.0, %v2865
    %v2867 = vpop.f32.mrb[0].mxu0
    %v2868 = vadd.f32 0.0, %v2867
    %2869 = vdwg.mxu0
    %2870 = vmatprep.subr.bf16.mxu0 %v2406
    %2871 = vmatpush1.bf16.msra.mxu0 %v2405
    %2872 = vmatprep.subr.bf16.mxu0 %v2414
    %2873 = vmatpush1.bf16.msra.mxu0 %v2413
    %2874 = vmatprep.subr.bf16.mxu0 %v2422
    %2875 = vmatpush1.bf16.msra.mxu0 %v2421
    %2876 = vmatprep.subr.bf16.mxu0 %v2430
    %2877 = vmatpush1.bf16.msra.mxu0 %v2429
    %2878 = vmatprep.subr.bf16.mxu0 %v2438
    %2879 = vmatpush1.bf16.msra.mxu0 %v2437
    %2880 = vmatprep.subr.bf16.mxu0 %v2446
    %2881 = vmatpush1.bf16.msra.mxu0 %v2445
    %2882 = vmatprep.subr.bf16.mxu0 %v2454
    %2883 = vmatpush1.bf16.msra.mxu0 %v2453
    %2884 = vmatprep.subr.bf16.mxu0 %v2462
    %2885 = vmatpush1.bf16.msra.mxu0 %v2461
    %2886 = vmatprep.subr.bf16.mxu0 %v2470
    %2887 = vmatpush1.bf16.msra.mxu0 %v2469
    %2888 = vmatprep.subr.bf16.mxu0 %v2478
    %2889 = vmatpush1.bf16.msra.mxu0 %v2477
    %2890 = vmatprep.subr.bf16.mxu0 %v2486
    %2891 = vmatpush1.bf16.msra.mxu0 %v2485
    %2892 = vmatprep.subr.bf16.mxu0 %v2494
    %2893 = vmatpush1.bf16.msra.mxu0 %v2493
    %2894 = vmatprep.subr.bf16.mxu0 %v2502
    %2895 = vmatpush1.bf16.msra.mxu0 %v2501
    %2896 = vmatprep.subr.bf16.mxu0 %v2510
    %2897 = vmatpush1.bf16.msra.mxu0 %v2509
    %2898 = vmatprep.subr.bf16.mxu0 %v2518
    %2899 = vmatpush1.bf16.msra.mxu0 %v2517
    %2900 = vmatprep.subr.bf16.mxu0 %v2526
    %2901 = vmatpush1.bf16.msra.mxu0 %v2525
    %2902 = vmatprep.mubr.bf16.mxu0 %v2242
    %2903 = vmatmul.mubr.bf16.gmra.mrb[0].mxu0 %v2241
    %v2904 = vpop.f32.mrb[0].mxu0
    %v2905 = vadd.f32 %v2792, %v2904
    %v2906 = vpop.f32.mrb[0].mxu0
    %v2907 = vadd.f32 %v2794, %v2906
    %v2908 = vpop.f32.mrb[0].mxu0
    %v2909 = vadd.f32 %v2796, %v2908
    %v2910 = vpop.f32.mrb[0].mxu0
    %v2911 = vadd.f32 %v2798, %v2910
    %2912 = vmatprep.mubr.bf16.mxu0 %v2246
    %2913 = vmatmul.mubr.bf16.gmra.mrb[0].mxu0 %v2245
    %v2914 = vpop.f32.mrb[0].mxu0
    %v2915 = vadd.f32 %v2802, %v2914
    %v2916 = vpop.f32.mrb[0].mxu0
    %v2917 = vadd.f32 %v2804, %v2916
    %v2918 = vpop.f32.mrb[0].mxu0
    %v2919 = vadd.f32 %v2806, %v2918
    %v2920 = vpop.f32.mrb[0].mxu0
    %v2921 = vadd.f32 %v2808, %v2920
    %2922 = vmatprep.mubr.bf16.mxu0 %v2250
    %2923 = vmatmul.mubr.bf16.gmra.mrb[0].mxu0 %v2249
    %v2924 = vpop.f32.mrb[0].mxu0
    %v2925 = vadd.f32 %v2812, %v2924
    %v2926 = vpop.f32.mrb[0].mxu0
    %v2927 = vadd.f32 %v2814, %v2926
    %v2928 = vpop.f32.mrb[0].mxu0
    %v2929 = vadd.f32 %v2816, %v2928
    %v2930 = vpop.f32.mrb[0].mxu0
    %v2931 = vadd.f32 %v2818, %v2930
    %2932 = vmatprep.mubr.bf16.mxu0 %v2254
    %2933 = vmatmul.mubr.bf16.gmra.mrb[0].mxu0 %v2253
    %v2934 = vpop.f32.mrb[0].mxu0
    %v2935 = vadd.f32 %v2822, %v2934
    %v2936 = vpop.f32.mrb[0].mxu0
    %v2937 = vadd.f32 %v2824, %v2936
    %v2938 = vpop.f32.mrb[0].mxu0
    %v2939 = vadd.f32 %v2826, %v2938
    %v2940 = vpop.f32.mrb[0].mxu0
    %v2941 = vadd.f32 %v2828, %v2940
    %2942 = vmatprep.mubr.bf16.mxu0 %v2258
    %2943 = vmatmul.mubr.bf16.gmra.mrb[0].mxu0 %v2257
    %v2944 = vpop.f32.mrb[0].mxu0
    %v2945 = vadd.f32 %v2832, %v2944
    %v2946 = vpop.f32.mrb[0].mxu0
    %v2947 = vadd.f32 %v2834, %v2946
    %v2948 = vpop.f32.mrb[0].mxu0
    %v2949 = vadd.f32 %v2836, %v2948
    %v2950 = vpop.f32.mrb[0].mxu0
    %v2951 = vadd.f32 %v2838, %v2950
    %2952 = vmatprep.mubr.bf16.mxu0 %v2262
    %2953 = vmatmul.mubr.bf16.gmra.mrb[0].mxu0 %v2261
    %v2954 = vpop.f32.mrb[0].mxu0
    %v2955 = vadd.f32 %v2842, %v2954
    %v2956 = vpop.f32.mrb[0].mxu0
    %v2957 = vadd.f32 %v2844, %v2956
    %v2958 = vpop.f32.mrb[0].mxu0
    %v2959 = vadd.f32 %v2846, %v2958
    %v2960 = vpop.f32.mrb[0].mxu0
    %v2961 = vadd.f32 %v2848, %v2960
    %2962 = vmatprep.mubr.bf16.mxu0 %v2266
    %2963 = vmatmul.mubr.bf16.gmra.mrb[0].mxu0 %v2265
    %v2964 = vpop.f32.mrb[0].mxu0
    %v2965 = vadd.f32 %v2852, %v2964
    %v2966 = vpop.f32.mrb[0].mxu0
    %v2967 = vadd.f32 %v2854, %v2966
    %v2968 = vpop.f32.mrb[0].mxu0
    %v2969 = vadd.f32 %v2856, %v2968
    %v2970 = vpop.f32.mrb[0].mxu0
    %v2971 = vadd.f32 %v2858, %v2970
    %2972 = vmatprep.mubr.bf16.mxu0 %v2270
    %2973 = vmatmul.mubr.bf16.gmra.mrb[0].mxu0 %v2269
    %v2974 = vpop.f32.mrb[0].mxu0
    %v2975 = vadd.f32 %v2862, %v2974
    %v2976 = vpop.f32.mrb[0].mxu0
    %v2977 = vadd.f32 %v2864, %v2976
    %v2978 = vpop.f32.mrb[0].mxu0
    %v2979 = vadd.f32 %v2866, %v2978
    %v2980 = vpop.f32.mrb[0].mxu0
    %v2981 = vadd.f32 %v2868, %v2980
    %2982 = vdwg.mxu0
    %2983 = vmatprep.subr.bf16.mxu0 %v2280
    %2984 = vmatpush1.bf16.msra.mxu0 %v2279
    %2985 = vmatprep.subr.bf16.mxu0 %v2288
    %2986 = vmatpush1.bf16.msra.mxu0 %v2287
    %2987 = vmatprep.subr.bf16.mxu0 %v2296
    %2988 = vmatpush1.bf16.msra.mxu0 %v2295
    %2989 = vmatprep.subr.bf16.mxu0 %v2304
    %2990 = vmatpush1.bf16.msra.mxu0 %v2303
    %2991 = vmatprep.subr.bf16.mxu0 %v2312
    %2992 = vmatpush1.bf16.msra.mxu0 %v2311
    %2993 = vmatprep.subr.bf16.mxu0 %v2320
    %2994 = vmatpush1.bf16.msra.mxu0 %v2319
    %2995 = vmatprep.subr.bf16.mxu0 %v2328
    %2996 = vmatpush1.bf16.msra.mxu0 %v2327
    %2997 = vmatprep.subr.bf16.mxu0 %v2336
    %2998 = vmatpush1.bf16.msra.mxu0 %v2335
    %2999 = vmatprep.subr.bf16.mxu0 %v2344
    %3000 = vmatpush1.bf16.msra.mxu0 %v2343
    %3001 = vmatprep.subr.bf16.mxu0 %v2352
    %3002 = vmatpush1.bf16.msra.mxu0 %v2351
    %3003 = vmatprep.subr.bf16.mxu0 %v2360
    %3004 = vmatpush1.bf16.msra.mxu0 %v2359
    %3005 = vmatprep.subr.bf16.mxu0 %v2368
    %3006 = vmatpush1.bf16.msra.mxu0 %v2367
    %3007 = vmatprep.subr.bf16.mxu0 %v2376
    %3008 = vmatpush1.bf16.msra.mxu0 %v2375
    %3009 = vmatprep.subr.bf16.mxu0 %v2384
    %3010 = vmatpush1.bf16.msra.mxu0 %v2383
    %3011 = vmatprep.subr.bf16.mxu0 %v2392
    %3012 = vmatpush1.bf16.msra.mxu0 %v2391
    %3013 = vmatprep.subr.bf16.mxu0 %v2400
    %3014 = vmatpush1.bf16.msra.mxu0 %v2399
    %3015 = vmatprep.mubr.bf16.mxu0 %v2240
    %3016 = vmatmul.mubr.bf16.gmra.mrb[0].mxu0 %v2239
    %v3017 = vpop.f32.mrb[0].mxu0
    %v3018 = vadd.f32 0.0, %v3017
    %v3019 = vpop.f32.mrb[0].mxu0
    %v3020 = vadd.f32 0.0, %v3019
    %v3021 = vpop.f32.mrb[0].mxu0
    %v3022 = vadd.f32 0.0, %v3021
    %v3023 = vpop.f32.mrb[0].mxu0
    %v3024 = vadd.f32 0.0, %v3023
    %3025 = vmatprep.mubr.bf16.mxu0 %v2244
    %3026 = vmatmul.mubr.bf16.gmra.mrb[0].mxu0 %v2243
    %v3027 = vpop.f32.mrb[0].mxu0
    %v3028 = vadd.f32 0.0, %v3027
    %v3029 = vpop.f32.mrb[0].mxu0
    %v3030 = vadd.f32 0.0, %v3029
    %v3031 = vpop.f32.mrb[0].mxu0
    %v3032 = vadd.f32 0.0, %v3031
    %v3033 = vpop.f32.mrb[0].mxu0
    %v3034 = vadd.f32 0.0, %v3033
    %3035 = vmatprep.mubr.bf16.mxu0 %v2248
    %3036 = vmatmul.mubr.bf16.gmra.mrb[0].mxu0 %v2247
    %v3037 = vpop.f32.mrb[0].mxu0
    %v3038 = vadd.f32 0.0, %v3037
    %v3039 = vpop.f32.mrb[0].mxu0
    %v3040 = vadd.f32 0.0, %v3039
    %v3041 = vpop.f32.mrb[0].mxu0
    %v3042 = vadd.f32 0.0, %v3041
    %v3043 = vpop.f32.mrb[0].mxu0
    %v3044 = vadd.f32 0.0, %v3043
    %3045 = vmatprep.mubr.bf16.mxu0 %v2252
    %3046 = vmatmul.mubr.bf16.gmra.mrb[0].mxu0 %v2251
    %v3047 = vpop.f32.mrb[0].mxu0
    %v3048 = vadd.f32 0.0, %v3047
    %v3049 = vpop.f32.mrb[0].mxu0
    %v3050 = vadd.f32 0.0, %v3049
    %v3051 = vpop.f32.mrb[0].mxu0
    %v3052 = vadd.f32 0.0, %v3051
    %v3053 = vpop.f32.mrb[0].mxu0
    %v3054 = vadd.f32 0.0, %v3053
    %3055 = vmatprep.mubr.bf16.mxu0 %v2256
    %3056 = vmatmul.mubr.bf16.gmra.mrb[0].mxu0 %v2255
    %v3057 = vpop.f32.mrb[0].mxu0
    %v3058 = vadd.f32 0.0, %v3057
    %v3059 = vpop.f32.mrb[0].mxu0
    %v3060 = vadd.f32 0.0, %v3059
    %v3061 = vpop.f32.mrb[0].mxu0
    %v3062 = vadd.f32 0.0, %v3061
    %v3063 = vpop.f32.mrb[0].mxu0
    %v3064 = vadd.f32 0.0, %v3063
    %3065 = vmatprep.mubr.bf16.mxu0 %v2260
    %3066 = vmatmul.mubr.bf16.gmra.mrb[0].mxu0 %v2259
    %v3067 = vpop.f32.mrb[0].mxu0
    %v3068 = vadd.f32 0.0, %v3067
    %v3069 = vpop.f32.mrb[0].mxu0
    %v3070 = vadd.f32 0.0, %v3069
    %v3071 = vpop.f32.mrb[0].mxu0
    %v3072 = vadd.f32 0.0, %v3071
    %v3073 = vpop.f32.mrb[0].mxu0
    %v3074 = vadd.f32 0.0, %v3073
    %3075 = vmatprep.mubr.bf16.mxu0 %v2264
    %3076 = vmatmul.mubr.bf16.gmra.mrb[0].mxu0 %v2263
    %v3077 = vpop.f32.mrb[0].mxu0
    %v3078 = vadd.f32 0.0, %v3077
    %v3079 = vpop.f32.mrb[0].mxu0
    %v3080 = vadd.f32 0.0, %v3079
    %v3081 = vpop.f32.mrb[0].mxu0
    %v3082 = vadd.f32 0.0, %v3081
    %v3083 = vpop.f32.mrb[0].mxu0
    %v3084 = vadd.f32 0.0, %v3083
    %3085 = vmatprep.mubr.bf16.mxu0 %v2268
    %3086 = vmatmul.mubr.bf16.gmra.mrb[0].mxu0 %v2267
    %v3087 = vpop.f32.mrb[0].mxu0
    %v3088 = vadd.f32 0.0, %v3087
    %v3089 = vpop.f32.mrb[0].mxu0
    %v3090 = vadd.f32 0.0, %v3089
    %v3091 = vpop.f32.mrb[0].mxu0
    %v3092 = vadd.f32 0.0, %v3091
    %v3093 = vpop.f32.mrb[0].mxu0
    %v3094 = vadd.f32 0.0, %v3093
    %3095 = vdwg.mxu0
    %3096 = vmatprep.subr.bf16.mxu0 %v2408
    %3097 = vmatpush1.bf16.msra.mxu0 %v2407
    %3098 = vmatprep.subr.bf16.mxu0 %v2416
    %3099 = vmatpush1.bf16.msra.mxu0 %v2415
    %3100 = vmatprep.subr.bf16.mxu0 %v2424
    %3101 = vmatpush1.bf16.msra.mxu0 %v2423
    %3102 = vmatprep.subr.bf16.mxu0 %v2432
    %3103 = vmatpush1.bf16.msra.mxu0 %v2431
    %3104 = vmatprep.subr.bf16.mxu0 %v2440
    %3105 = vmatpush1.bf16.msra.mxu0 %v2439
    %3106 = vmatprep.subr.bf16.mxu0 %v2448
    %3107 = vmatpush1.bf16.msra.mxu0 %v2447
    %3108 = vmatprep.subr.bf16.mxu0 %v2456
    %3109 = vmatpush1.bf16.msra.mxu0 %v2455
    %3110 = vmatprep.subr.bf16.mxu0 %v2464
    %3111 = vmatpush1.bf16.msra.mxu0 %v2463
    %3112 = vmatprep.subr.bf16.mxu0 %v2472
    %3113 = vmatpush1.bf16.msra.mxu0 %v2471
    %3114 = vmatprep.subr.bf16.mxu0 %v2480
    %3115 = vmatpush1.bf16.msra.mxu0 %v2479
    %3116 = vmatprep.subr.bf16.mxu0 %v2488
    %3117 = vmatpush1.bf16.msra.mxu0 %v2487
    %3118 = vmatprep.subr.bf16.mxu0 %v2496
    %3119 = vmatpush1.bf16.msra.mxu0 %v2495
    %3120 = vmatprep.subr.bf16.mxu0 %v2504
    %3121 = vmatpush1.bf16.msra.mxu0 %v2503
    %3122 = vmatprep.subr.bf16.mxu0 %v2512
    %3123 = vmatpush1.bf16.msra.mxu0 %v2511
    %3124 = vmatprep.subr.bf16.mxu0 %v2520
    %3125 = vmatpush1.bf16.msra.mxu0 %v2519
    %3126 = vmatprep.subr.bf16.mxu0 %v2528
    %3127 = vmatpush1.bf16.msra.mxu0 %v2527
    %3128 = vmatprep.mubr.bf16.mxu0 %v2242
    %3129 = vmatmul.mubr.bf16.gmra.mrb[0].mxu0 %v2241
    %v3130 = vpop.f32.mrb[0].mxu0
    %v3131 = vadd.f32 %v3018, %v3130
    %v3132 = vpop.f32.mrb[0].mxu0
    %v3133 = vadd.f32 %v3020, %v3132
    %v3134 = vpop.f32.mrb[0].mxu0
    %v3135 = vadd.f32 %v3022, %v3134
    %v3136 = vpop.f32.mrb[0].mxu0
    %v3137 = vadd.f32 %v3024, %v3136
    %3138 = vmatprep.mubr.bf16.mxu0 %v2246
    %3139 = vmatmul.mubr.bf16.gmra.mrb[0].mxu0 %v2245
    %v3140 = vpop.f32.mrb[0].mxu0
    %v3141 = vadd.f32 %v3028, %v3140
    %v3142 = vpop.f32.mrb[0].mxu0
    %v3143 = vadd.f32 %v3030, %v3142
    %v3144 = vpop.f32.mrb[0].mxu0
    %v3145 = vadd.f32 %v3032, %v3144
    %v3146 = vpop.f32.mrb[0].mxu0
    %v3147 = vadd.f32 %v3034, %v3146
    %3148 = vmatprep.mubr.bf16.mxu0 %v2250
    %3149 = vmatmul.mubr.bf16.gmra.mrb[0].mxu0 %v2249
    %v3150 = vpop.f32.mrb[0].mxu0
    %v3151 = vadd.f32 %v3038, %v3150
    %v3152 = vpop.f32.mrb[0].mxu0
    %v3153 = vadd.f32 %v3040, %v3152
    %v3154 = vpop.f32.mrb[0].mxu0
    %v3155 = vadd.f32 %v3042, %v3154
    %v3156 = vpop.f32.mrb[0].mxu0
    %v3157 = vadd.f32 %v3044, %v3156
    %3158 = vmatprep.mubr.bf16.mxu0 %v2254
    %3159 = vmatmul.mubr.bf16.gmra.mrb[0].mxu0 %v2253
    %v3160 = vpop.f32.mrb[0].mxu0
    %v3161 = vadd.f32 %v3048, %v3160
    %v3162 = vpop.f32.mrb[0].mxu0
    %v3163 = vadd.f32 %v3050, %v3162
    %v3164 = vpop.f32.mrb[0].mxu0
    %v3165 = vadd.f32 %v3052, %v3164
    %v3166 = vpop.f32.mrb[0].mxu0
    %v3167 = vadd.f32 %v3054, %v3166
    %3168 = vmatprep.mubr.bf16.mxu0 %v2258
    %3169 = vmatmul.mubr.bf16.gmra.mrb[0].mxu0 %v2257
    %v3170 = vpop.f32.mrb[0].mxu0
    %v3171 = vadd.f32 %v3058, %v3170
    %v3172 = vpop.f32.mrb[0].mxu0
    %v3173 = vadd.f32 %v3060, %v3172
    %v3174 = vpop.f32.mrb[0].mxu0
    %v3175 = vadd.f32 %v3062, %v3174
    %v3176 = vpop.f32.mrb[0].mxu0
    %v3177 = vadd.f32 %v3064, %v3176
    %3178 = vmatprep.mubr.bf16.mxu0 %v2262
    %3179 = vmatmul.mubr.bf16.gmra.mrb[0].mxu0 %v2261
    %v3180 = vpop.f32.mrb[0].mxu0
    %v3181 = vadd.f32 %v3068, %v3180
    %v3182 = vpop.f32.mrb[0].mxu0
    %v3183 = vadd.f32 %v3070, %v3182
    %v3184 = vpop.f32.mrb[0].mxu0
    %v3185 = vadd.f32 %v3072, %v3184
    %v3186 = vpop.f32.mrb[0].mxu0
    %v3187 = vadd.f32 %v3074, %v3186
    %3188 = vmatprep.mubr.bf16.mxu0 %v2266
    %3189 = vmatmul.mubr.bf16.gmra.mrb[0].mxu0 %v2265
    %v3190 = vpop.f32.mrb[0].mxu0
    %v3191 = vadd.f32 %v3078, %v3190
    %v3192 = vpop.f32.mrb[0].mxu0
    %v3193 = vadd.f32 %v3080, %v3192
    %v3194 = vpop.f32.mrb[0].mxu0
    %v3195 = vadd.f32 %v3082, %v3194
    %v3196 = vpop.f32.mrb[0].mxu0
    %v3197 = vadd.f32 %v3084, %v3196
    %3198 = vmatprep.mubr.bf16.mxu0 %v2270
    %3199 = vmatmul.mubr.bf16.gmra.mrb[0].mxu0 %v2269
    %v3200 = vpop.f32.mrb[0].mxu0
    %v3201 = vadd.f32 %v3088, %v3200
    %v3202 = vpop.f32.mrb[0].mxu0
    %v3203 = vadd.f32 %v3090, %v3202
    %v3204 = vpop.f32.mrb[0].mxu0
    %v3205 = vadd.f32 %v3092, %v3204
    %v3206 = vpop.f32.mrb[0].mxu0
    %v3207 = vadd.f32 %v3094, %v3206
    %3208 = vdwg.mxu0
    %3209 = vmatprep.subr.bf16.mxu0 %v2282
    %3210 = vmatpush1.bf16.msra.mxu0 %v2281
    %3211 = vmatprep.subr.bf16.mxu0 %v2290
    %3212 = vmatpush1.bf16.msra.mxu0 %v2289
    %3213 = vmatprep.subr.bf16.mxu0 %v2298
    %3214 = vmatpush1.bf16.msra.mxu0 %v2297
    %3215 = vmatprep.subr.bf16.mxu0 %v2306
    %3216 = vmatpush1.bf16.msra.mxu0 %v2305
    %3217 = vmatprep.subr.bf16.mxu0 %v2314
    %3218 = vmatpush1.bf16.msra.mxu0 %v2313
    %3219 = vmatprep.subr.bf16.mxu0 %v2322
    %3220 = vmatpush1.bf16.msra.mxu0 %v2321
    %3221 = vmatprep.subr.bf16.mxu0 %v2330
    %3222 = vmatpush1.bf16.msra.mxu0 %v2329
    %3223 = vmatprep.subr.bf16.mxu0 %v2338
    %3224 = vmatpush1.bf16.msra.mxu0 %v2337
    %3225 = vmatprep.subr.bf16.mxu0 %v2346
    %3226 = vmatpush1.bf16.msra.mxu0 %v2345
    %3227 = vmatprep.subr.bf16.mxu0 %v2354
    %3228 = vmatpush1.bf16.msra.mxu0 %v2353
    %3229 = vmatprep.subr.bf16.mxu0 %v2362
    %3230 = vmatpush1.bf16.msra.mxu0 %v2361
    %3231 = vmatprep.subr.bf16.mxu0 %v2370
    %3232 = vmatpush1.bf16.msra.mxu0 %v2369
    %3233 = vmatprep.subr.bf16.mxu0 %v2378
    %3234 = vmatpush1.bf16.msra.mxu0 %v2377
    %3235 = vmatprep.subr.bf16.mxu0 %v2386
    %3236 = vmatpush1.bf16.msra.mxu0 %v2385
    %3237 = vmatprep.subr.bf16.mxu0 %v2394
    %3238 = vmatpush1.bf16.msra.mxu0 %v2393
    %3239 = vmatprep.subr.bf16.mxu0 %v2402
    %3240 = vmatpush1.bf16.msra.mxu0 %v2401
    %3241 = vmatprep.mubr.bf16.mxu0 %v2240
    %3242 = vmatmul.mubr.bf16.gmra.mrb[0].mxu0 %v2239
    %v3243 = vpop.f32.mrb[0].mxu0
    %v3244 = vadd.f32 0.0, %v3243
    %v3245 = vpop.f32.mrb[0].mxu0
    %v3246 = vadd.f32 0.0, %v3245
    %v3247 = vpop.f32.mrb[0].mxu0
    %v3248 = vadd.f32 0.0, %v3247
    %v3249 = vpop.f32.mrb[0].mxu0
    %v3250 = vadd.f32 0.0, %v3249
    %3251 = vmatprep.mubr.bf16.mxu0 %v2244
    %3252 = vmatmul.mubr.bf16.gmra.mrb[0].mxu0 %v2243
    %v3253 = vpop.f32.mrb[0].mxu0
    %v3254 = vadd.f32 0.0, %v3253
    %v3255 = vpop.f32.mrb[0].mxu0
    %v3256 = vadd.f32 0.0, %v3255
    %v3257 = vpop.f32.mrb[0].mxu0
    %v3258 = vadd.f32 0.0, %v3257
    %v3259 = vpop.f32.mrb[0].mxu0
    %v3260 = vadd.f32 0.0, %v3259
    %3261 = vmatprep.mubr.bf16.mxu0 %v2248
    %3262 = vmatmul.mubr.bf16.gmra.mrb[0].mxu0 %v2247
    %v3263 = vpop.f32.mrb[0].mxu0
    %v3264 = vadd.f32 0.0, %v3263
    %v3265 = vpop.f32.mrb[0].mxu0
    %v3266 = vadd.f32 0.0, %v3265
    %v3267 = vpop.f32.mrb[0].mxu0
    %v3268 = vadd.f32 0.0, %v3267
    %v3269 = vpop.f32.mrb[0].mxu0
    %v3270 = vadd.f32 0.0, %v3269
    %3271 = vmatprep.mubr.bf16.mxu0 %v2252
    %3272 = vmatmul.mubr.bf16.gmra.mrb[0].mxu0 %v2251
    %v3273 = vpop.f32.mrb[0].mxu0
    %v3274 = vadd.f32 0.0, %v3273
    %v3275 = vpop.f32.mrb[0].mxu0
    %v3276 = vadd.f32 0.0, %v3275
    %v3277 = vpop.f32.mrb[0].mxu0
    %v3278 = vadd.f32 0.0, %v3277
    %v3279 = vpop.f32.mrb[0].mxu0
    %v3280 = vadd.f32 0.0, %v3279
    %3281 = vmatprep.mubr.bf16.mxu0 %v2256
    %3282 = vmatmul.mubr.bf16.gmra.mrb[0].mxu0 %v2255
    %v3283 = vpop.f32.mrb[0].mxu0
    %v3284 = vadd.f32 0.0, %v3283
    %v3285 = vpop.f32.mrb[0].mxu0
    %v3286 = vadd.f32 0.0, %v3285
    %v3287 = vpop.f32.mrb[0].mxu0
    %v3288 = vadd.f32 0.0, %v3287
    %v3289 = vpop.f32.mrb[0].mxu0
    %v3290 = vadd.f32 0.0, %v3289
    %3291 = vmatprep.mubr.bf16.mxu0 %v2260
    %3292 = vmatmul.mubr.bf16.gmra.mrb[0].mxu0 %v2259
    %v3293 = vpop.f32.mrb[0].mxu0
    %v3294 = vadd.f32 0.0, %v3293
    %v3295 = vpop.f32.mrb[0].mxu0
    %v3296 = vadd.f32 0.0, %v3295
    %v3297 = vpop.f32.mrb[0].mxu0
    %v3298 = vadd.f32 0.0, %v3297
    %v3299 = vpop.f32.mrb[0].mxu0
    %v3300 = vadd.f32 0.0, %v3299
    %3301 = vmatprep.mubr.bf16.mxu0 %v2264
    %3302 = vmatmul.mubr.bf16.gmra.mrb[0].mxu0 %v2263
    %v3303 = vpop.f32.mrb[0].mxu0
    %v3304 = vadd.f32 0.0, %v3303
    %v3305 = vpop.f32.mrb[0].mxu0
    %v3306 = vadd.f32 0.0, %v3305
    %v3307 = vpop.f32.mrb[0].mxu0
    %v3308 = vadd.f32 0.0, %v3307
    %v3309 = vpop.f32.mrb[0].mxu0
    %v3310 = vadd.f32 0.0, %v3309
    %3311 = vmatprep.mubr.bf16.mxu0 %v2268
    %3312 = vmatmul.mubr.bf16.gmra.mrb[0].mxu0 %v2267
    %v3313 = vpop.f32.mrb[0].mxu0
    %v3314 = vadd.f32 0.0, %v3313
    %v3315 = vpop.f32.mrb[0].mxu0
    %v3316 = vadd.f32 0.0, %v3315
    %v3317 = vpop.f32.mrb[0].mxu0
    %v3318 = vadd.f32 0.0, %v3317
    %v3319 = vpop.f32.mrb[0].mxu0
    %v3320 = vadd.f32 0.0, %v3319
    %3321 = vdwg.mxu0
    %3322 = vmatprep.subr.bf16.mxu0 %v2410
    %3323 = vmatpush1.bf16.msra.mxu0 %v2409
    %3324 = vmatprep.subr.bf16.mxu0 %v2418
    %3325 = vmatpush1.bf16.msra.mxu0 %v2417
    %3326 = vmatprep.subr.bf16.mxu0 %v2426
    %3327 = vmatpush1.bf16.msra.mxu0 %v2425
    %3328 = vmatprep.subr.bf16.mxu0 %v2434
    %3329 = vmatpush1.bf16.msra.mxu0 %v2433
    %3330 = vmatprep.subr.bf16.mxu0 %v2442
    %3331 = vmatpush1.bf16.msra.mxu0 %v2441
    %3332 = vmatprep.subr.bf16.mxu0 %v2450
    %3333 = vmatpush1.bf16.msra.mxu0 %v2449
    %3334 = vmatprep.subr.bf16.mxu0 %v2458
    %3335 = vmatpush1.bf16.msra.mxu0 %v2457
    %3336 = vmatprep.subr.bf16.mxu0 %v2466
    %3337 = vmatpush1.bf16.msra.mxu0 %v2465
    %3338 = vmatprep.subr.bf16.mxu0 %v2474
    %3339 = vmatpush1.bf16.msra.mxu0 %v2473
    %3340 = vmatprep.subr.bf16.mxu0 %v2482
    %3341 = vmatpush1.bf16.msra.mxu0 %v2481
    %3342 = vmatprep.subr.bf16.mxu0 %v2490
    %3343 = vmatpush1.bf16.msra.mxu0 %v2489
    %3344 = vmatprep.subr.bf16.mxu0 %v2498
    %3345 = vmatpush1.bf16.msra.mxu0 %v2497
    %3346 = vmatprep.subr.bf16.mxu0 %v2506
    %3347 = vmatpush1.bf16.msra.mxu0 %v2505
    %3348 = vmatprep.subr.bf16.mxu0 %v2514
    %3349 = vmatpush1.bf16.msra.mxu0 %v2513
    %3350 = vmatprep.subr.bf16.mxu0 %v2522
    %3351 = vmatpush1.bf16.msra.mxu0 %v2521
    %3352 = vmatprep.subr.bf16.mxu0 %v2530
    %3353 = vmatpush1.bf16.msra.mxu0 %v2529
    %3354 = vmatprep.mubr.bf16.mxu0 %v2242
    %3355 = vmatmul.mubr.bf16.gmra.mrb[0].mxu0 %v2241
    %v3356 = vpop.f32.mrb[0].mxu0
    %v3357 = vadd.f32 %v3244, %v3356
    %v3358 = vpop.f32.mrb[0].mxu0
    %v3359 = vadd.f32 %v3246, %v3358
    %v3360 = vpop.f32.mrb[0].mxu0
    %v3361 = vadd.f32 %v3248, %v3360
    %v3362 = vpop.f32.mrb[0].mxu0
    %v3363 = vadd.f32 %v3250, %v3362
    %3364 = vmatprep.mubr.bf16.mxu0 %v2246
    %3365 = vmatmul.mubr.bf16.gmra.mrb[0].mxu0 %v2245
    %v3366 = vpop.f32.mrb[0].mxu0
    %v3367 = vadd.f32 %v3254, %v3366
    %v3368 = vpop.f32.mrb[0].mxu0
    %v3369 = vadd.f32 %v3256, %v3368
    %v3370 = vpop.f32.mrb[0].mxu0
    %v3371 = vadd.f32 %v3258, %v3370
    %v3372 = vpop.f32.mrb[0].mxu0
    %v3373 = vadd.f32 %v3260, %v3372
    %3374 = vmatprep.mubr.bf16.mxu0 %v2250
    %3375 = vmatmul.mubr.bf16.gmra.mrb[0].mxu0 %v2249
    %v3376 = vpop.f32.mrb[0].mxu0
    %v3377 = vadd.f32 %v3264, %v3376
    %v3378 = vpop.f32.mrb[0].mxu0
    %v3379 = vadd.f32 %v3266, %v3378
    %v3380 = vpop.f32.mrb[0].mxu0
    %v3381 = vadd.f32 %v3268, %v3380
    %v3382 = vpop.f32.mrb[0].mxu0
    %v3383 = vadd.f32 %v3270, %v3382
    %3384 = vmatprep.mubr.bf16.mxu0 %v2254
    %3385 = vmatmul.mubr.bf16.gmra.mrb[0].mxu0 %v2253
    %v3386 = vpop.f32.mrb[0].mxu0
    %v3387 = vadd.f32 %v3274, %v3386
    %v3388 = vpop.f32.mrb[0].mxu0
    %v3389 = vadd.f32 %v3276, %v3388
    %v3390 = vpop.f32.mrb[0].mxu0
    %v3391 = vadd.f32 %v3278, %v3390
    %v3392 = vpop.f32.mrb[0].mxu0
    %v3393 = vadd.f32 %v3280, %v3392
    %3394 = vmatprep.mubr.bf16.mxu0 %v2258
    %3395 = vmatmul.mubr.bf16.gmra.mrb[0].mxu0 %v2257
    %v3396 = vpop.f32.mrb[0].mxu0
    %v3397 = vadd.f32 %v3284, %v3396
    %v3398 = vpop.f32.mrb[0].mxu0
    %v3399 = vadd.f32 %v3286, %v3398
    %v3400 = vpop.f32.mrb[0].mxu0
    %v3401 = vadd.f32 %v3288, %v3400
    %v3402 = vpop.f32.mrb[0].mxu0
    %v3403 = vadd.f32 %v3290, %v3402
    %3404 = vmatprep.mubr.bf16.mxu0 %v2262
    %3405 = vmatmul.mubr.bf16.gmra.mrb[0].mxu0 %v2261
    %v3406 = vpop.f32.mrb[0].mxu0
    %v3407 = vadd.f32 %v3294, %v3406
    %v3408 = vpop.f32.mrb[0].mxu0
    %v3409 = vadd.f32 %v3296, %v3408
    %v3410 = vpop.f32.mrb[0].mxu0
    %v3411 = vadd.f32 %v3298, %v3410
    %v3412 = vpop.f32.mrb[0].mxu0
    %v3413 = vadd.f32 %v3300, %v3412
    %3414 = vmatprep.mubr.bf16.mxu0 %v2266
    %3415 = vmatmul.mubr.bf16.gmra.mrb[0].mxu0 %v2265
    %v3416 = vpop.f32.mrb[0].mxu0
    %v3417 = vadd.f32 %v3304, %v3416
    %v3418 = vpop.f32.mrb[0].mxu0
    %v3419 = vadd.f32 %v3306, %v3418
    %v3420 = vpop.f32.mrb[0].mxu0
    %v3421 = vadd.f32 %v3308, %v3420
    %v3422 = vpop.f32.mrb[0].mxu0
    %v3423 = vadd.f32 %v3310, %v3422
    %3424 = vmatprep.mubr.bf16.mxu0 %v2270
    %3425 = vmatmul.mubr.bf16.gmra.mrb[0].mxu0 %v2269
    %v3426 = vpop.f32.mrb[0].mxu0
    %v3427 = vadd.f32 %v3314, %v3426
    %v3428 = vpop.f32.mrb[0].mxu0
    %v3429 = vadd.f32 %v3316, %v3428
    %v3430 = vpop.f32.mrb[0].mxu0
    %v3431 = vadd.f32 %v3318, %v3430
    %v3432 = vpop.f32.mrb[0].mxu0
    %v3433 = vadd.f32 %v3320, %v3432
    %3434 = vdwg.mxu0
    %v3435 = vadd.f32 %v2679, %v2683
    %v3436 = vadd.f32 %v3435, %v2689
    %v3437 = vadd.f32 %v3436, %v2693
    %v3438 = vadd.f32 %v3437, %v2699
    %v3439 = vadd.f32 %v3438, %v2703
    %v3440 = vadd.f32 %v3439, %v2709
    %v3441 = vadd.f32 %v3440, %v2713
    %v3442 = vadd.f32 %v3441, %v2719
    %v3443 = vadd.f32 %v3442, %v2723
    %v3444 = vadd.f32 %v3443, %v2729
    %v3445 = vadd.f32 %v3444, %v2733
    %v3446 = vadd.f32 %v3445, %v2739
    %v3447 = vadd.f32 %v3446, %v2743
    %v3448 = vadd.f32 %v3447, %v2749
    %v3449 = vadd.f32 %v3448, %v2753
    %v3450 = vrot.slane %v3449, 4
    %v3451 = vadd.f32 %v3449, %v3450
    %v3452 = vrot.slane %v3451, 2
    %v3453 = vadd.f32 %v3451, %v3452
    %v3454 = vrot.slane %v3453, 1
    %v3455 = vadd.f32 %v3453, %v3454
    %v3456 = vadd.f32 %v2681, %v2685
    %v3457 = vadd.f32 %v3456, %v2691
    %v3458 = vadd.f32 %v3457, %v2695
    %v3459 = vadd.f32 %v3458, %v2701
    %v3460 = vadd.f32 %v3459, %v2705
    %v3461 = vadd.f32 %v3460, %v2711
    %v3462 = vadd.f32 %v3461, %v2715
    %v3463 = vadd.f32 %v3462, %v2721
    %v3464 = vadd.f32 %v3463, %v2725
    %v3465 = vadd.f32 %v3464, %v2731
    %v3466 = vadd.f32 %v3465, %v2735
    %v3467 = vadd.f32 %v3466, %v2741
    %v3468 = vadd.f32 %v3467, %v2745
    %v3469 = vadd.f32 %v3468, %v2751
    %v3470 = vadd.f32 %v3469, %v2755
    %v3471 = vrot.slane %v3470, 4
    %v3472 = vadd.f32 %v3470, %v3471
    %v3473 = vrot.slane %v3472, 2
    %v3474 = vadd.f32 %v3472, %v3473
    %v3475 = vrot.slane %v3474, 1
    %v3476 = vadd.f32 %v3474, %v3475
    %v3477 = vadd.f32 %v2905, %v2909
    %v3478 = vadd.f32 %v3477, %v2915
    %v3479 = vadd.f32 %v3478, %v2919
    %v3480 = vadd.f32 %v3479, %v2925
    %v3481 = vadd.f32 %v3480, %v2929
    %v3482 = vadd.f32 %v3481, %v2935
    %v3483 = vadd.f32 %v3482, %v2939
    %v3484 = vadd.f32 %v3483, %v2945
    %v3485 = vadd.f32 %v3484, %v2949
    %v3486 = vadd.f32 %v3485, %v2955
    %v3487 = vadd.f32 %v3486, %v2959
    %v3488 = vadd.f32 %v3487, %v2965
    %v3489 = vadd.f32 %v3488, %v2969
    %v3490 = vadd.f32 %v3489, %v2975
    %v3491 = vadd.f32 %v3490, %v2979
    %v3492 = vrot.slane %v3491, 4
    %v3493 = vadd.f32 %v3491, %v3492
    %v3494 = vrot.slane %v3493, 2
    %v3495 = vadd.f32 %v3493, %v3494
    %v3496 = vrot.slane %v3495, 1
    %v3497 = vadd.f32 %v3495, %v3496
    %v3498 = vadd.f32 %v2907, %v2911
    %v3499 = vadd.f32 %v3498, %v2917
    %v3500 = vadd.f32 %v3499, %v2921
    %v3501 = vadd.f32 %v3500, %v2927
    %v3502 = vadd.f32 %v3501, %v2931
    %v3503 = vadd.f32 %v3502, %v2937
    %v3504 = vadd.f32 %v3503, %v2941
    %v3505 = vadd.f32 %v3504, %v2947
    %v3506 = vadd.f32 %v3505, %v2951
    %v3507 = vadd.f32 %v3506, %v2957
    %v3508 = vadd.f32 %v3507, %v2961
    %v3509 = vadd.f32 %v3508, %v2967
    %v3510 = vadd.f32 %v3509, %v2971
    %v3511 = vadd.f32 %v3510, %v2977
    %v3512 = vadd.f32 %v3511, %v2981
    %v3513 = vrot.slane %v3512, 4
    %v3514 = vadd.f32 %v3512, %v3513
    %v3515 = vrot.slane %v3514, 2
    %v3516 = vadd.f32 %v3514, %v3515
    %v3517 = vrot.slane %v3516, 1
    %v3518 = vadd.f32 %v3516, %v3517
    %v3519 = vadd.f32 %v3131, %v3135
    %v3520 = vadd.f32 %v3519, %v3141
    %v3521 = vadd.f32 %v3520, %v3145
    %v3522 = vadd.f32 %v3521, %v3151
    %v3523 = vadd.f32 %v3522, %v3155
    %v3524 = vadd.f32 %v3523, %v3161
    %v3525 = vadd.f32 %v3524, %v3165
    %v3526 = vadd.f32 %v3525, %v3171
    %v3527 = vadd.f32 %v3526, %v3175
    %v3528 = vadd.f32 %v3527, %v3181
    %v3529 = vadd.f32 %v3528, %v3185
    %v3530 = vadd.f32 %v3529, %v3191
    %v3531 = vadd.f32 %v3530, %v3195
    %v3532 = vadd.f32 %v3531, %v3201
    %v3533 = vadd.f32 %v3532, %v3205
    %v3534 = vrot.slane %v3533, 4
    %v3535 = vadd.f32 %v3533, %v3534
    %v3536 = vrot.slane %v3535, 2
    %v3537 = vadd.f32 %v3535, %v3536
    %v3538 = vrot.slane %v3537, 1
    %v3539 = vadd.f32 %v3537, %v3538
    %v3540 = vadd.f32 %v3133, %v3137
    %v3541 = vadd.f32 %v3540, %v3143
    %v3542 = vadd.f32 %v3541, %v3147
    %v3543 = vadd.f32 %v3542, %v3153
    %v3544 = vadd.f32 %v3543, %v3157
    %v3545 = vadd.f32 %v3544, %v3163
    %v3546 = vadd.f32 %v3545, %v3167
    %v3547 = vadd.f32 %v3546, %v3173
    %v3548 = vadd.f32 %v3547, %v3177
    %v3549 = vadd.f32 %v3548, %v3183
    %v3550 = vadd.f32 %v3549, %v3187
    %v3551 = vadd.f32 %v3550, %v3193
    %v3552 = vadd.f32 %v3551, %v3197
    %v3553 = vadd.f32 %v3552, %v3203
    %v3554 = vadd.f32 %v3553, %v3207
    %v3555 = vrot.slane %v3554, 4
    %v3556 = vadd.f32 %v3554, %v3555
    %v3557 = vrot.slane %v3556, 2
    %v3558 = vadd.f32 %v3556, %v3557
    %v3559 = vrot.slane %v3558, 1
    %v3560 = vadd.f32 %v3558, %v3559
    %v3561 = vadd.f32 %v3357, %v3361
    %v3562 = vadd.f32 %v3561, %v3367
    %v3563 = vadd.f32 %v3562, %v3371
    %v3564 = vadd.f32 %v3563, %v3377
    %v3565 = vadd.f32 %v3564, %v3381
    %v3566 = vadd.f32 %v3565, %v3387
    %v3567 = vadd.f32 %v3566, %v3391
    %v3568 = vadd.f32 %v3567, %v3397
    %v3569 = vadd.f32 %v3568, %v3401
    %v3570 = vadd.f32 %v3569, %v3407
    %v3571 = vadd.f32 %v3570, %v3411
    %v3572 = vadd.f32 %v3571, %v3417
    %v3573 = vadd.f32 %v3572, %v3421
    %v3574 = vadd.f32 %v3573, %v3427
    %v3575 = vadd.f32 %v3574, %v3431
    %v3576 = vrot.slane %v3575, 4
    %v3577 = vadd.f32 %v3575, %v3576
    %v3578 = vrot.slane %v3577, 2
    %v3579 = vadd.f32 %v3577, %v3578
    %v3580 = vrot.slane %v3579, 1
    %v3581 = vadd.f32 %v3579, %v3580
    %v3582 = vadd.f32 %v3359, %v3363
    %v3583 = vadd.f32 %v3582, %v3369
    %v3584 = vadd.f32 %v3583, %v3373
    %v3585 = vadd.f32 %v3584, %v3379
    %v3586 = vadd.f32 %v3585, %v3383
    %v3587 = vadd.f32 %v3586, %v3389
    %v3588 = vadd.f32 %v3587, %v3393
    %v3589 = vadd.f32 %v3588, %v3399
    %v3590 = vadd.f32 %v3589, %v3403
    %v3591 = vadd.f32 %v3590, %v3409
    %v3592 = vadd.f32 %v3591, %v3413
    %v3593 = vadd.f32 %v3592, %v3419
    %v3594 = vadd.f32 %v3593, %v3423
    %v3595 = vadd.f32 %v3594, %v3429
    %v3596 = vadd.f32 %v3595, %v3433
    %v3597 = vrot.slane %v3596, 4
    %v3598 = vadd.f32 %v3596, %v3597
    %v3599 = vrot.slane %v3598, 2
    %v3600 = vadd.f32 %v3598, %v3599
    %v3601 = vrot.slane %v3600, 1
    %v3602 = vadd.f32 %v3600, %v3601
    %v3603 = vmul.f32 %v2679, %v2679
    %v3604 = vmul.f32 %v2681, %v2681
    %v3605 = vmul.f32 %v2905, %v2905
    %v3606 = vmul.f32 %v2907, %v2907
    %v3607 = vmul.f32 %v3131, %v3131
    %v3608 = vmul.f32 %v3133, %v3133
    %v3609 = vmul.f32 %v3357, %v3357
    %v3610 = vmul.f32 %v3359, %v3359
    %v3611 = vmul.f32 %v2683, %v2683
    %v3612 = vmul.f32 %v2685, %v2685
    %v3613 = vmul.f32 %v2909, %v2909
    %v3614 = vmul.f32 %v2911, %v2911
    %v3615 = vmul.f32 %v3135, %v3135
    %v3616 = vmul.f32 %v3137, %v3137
    %v3617 = vmul.f32 %v3361, %v3361
    %v3618 = vmul.f32 %v3363, %v3363
    %v3619 = vmul.f32 %v2689, %v2689
    %v3620 = vmul.f32 %v2691, %v2691
    %v3621 = vmul.f32 %v2915, %v2915
    %v3622 = vmul.f32 %v2917, %v2917
    %v3623 = vmul.f32 %v3141, %v3141
    %v3624 = vmul.f32 %v3143, %v3143
    %v3625 = vmul.f32 %v3367, %v3367
    %v3626 = vmul.f32 %v3369, %v3369
    %v3627 = vmul.f32 %v2693, %v2693
    %v3628 = vmul.f32 %v2695, %v2695
    %v3629 = vmul.f32 %v2919, %v2919
    %v3630 = vmul.f32 %v2921, %v2921
    %v3631 = vmul.f32 %v3145, %v3145
    %v3632 = vmul.f32 %v3147, %v3147
    %v3633 = vmul.f32 %v3371, %v3371
    %v3634 = vmul.f32 %v3373, %v3373
    %v3635 = vmul.f32 %v2699, %v2699
    %v3636 = vmul.f32 %v2701, %v2701
    %v3637 = vmul.f32 %v2925, %v2925
    %v3638 = vmul.f32 %v2927, %v2927
    %v3639 = vmul.f32 %v3151, %v3151
    %v3640 = vmul.f32 %v3153, %v3153
    %v3641 = vmul.f32 %v3377, %v3377
    %v3642 = vmul.f32 %v3379, %v3379
    %v3643 = vmul.f32 %v2703, %v2703
    %v3644 = vmul.f32 %v2705, %v2705
    %v3645 = vmul.f32 %v2929, %v2929
    %v3646 = vmul.f32 %v2931, %v2931
    %v3647 = vmul.f32 %v3155, %v3155
    %v3648 = vmul.f32 %v3157, %v3157
    %v3649 = vmul.f32 %v3381, %v3381
    %v3650 = vmul.f32 %v3383, %v3383
    %v3651 = vmul.f32 %v2709, %v2709
    %v3652 = vmul.f32 %v2711, %v2711
    %v3653 = vmul.f32 %v2935, %v2935
    %v3654 = vmul.f32 %v2937, %v2937
    %v3655 = vmul.f32 %v3161, %v3161
    %v3656 = vmul.f32 %v3163, %v3163
    %v3657 = vmul.f32 %v3387, %v3387
    %v3658 = vmul.f32 %v3389, %v3389
    %v3659 = vmul.f32 %v2713, %v2713
    %v3660 = vmul.f32 %v2715, %v2715
    %v3661 = vmul.f32 %v2939, %v2939
    %v3662 = vmul.f32 %v2941, %v2941
    %v3663 = vmul.f32 %v3165, %v3165
    %v3664 = vmul.f32 %v3167, %v3167
    %v3665 = vmul.f32 %v3391, %v3391
    %v3666 = vmul.f32 %v3393, %v3393
    %v3667 = vmul.f32 %v2719, %v2719
    %v3668 = vmul.f32 %v2721, %v2721
    %v3669 = vmul.f32 %v2945, %v2945
    %v3670 = vmul.f32 %v2947, %v2947
    %v3671 = vmul.f32 %v3171, %v3171
    %v3672 = vmul.f32 %v3173, %v3173
    %v3673 = vmul.f32 %v3397, %v3397
    %v3674 = vmul.f32 %v3399, %v3399
    %v3675 = vmul.f32 %v2723, %v2723
    %v3676 = vmul.f32 %v2725, %v2725
    %v3677 = vmul.f32 %v2949, %v2949
    %v3678 = vmul.f32 %v2951, %v2951
    %v3679 = vmul.f32 %v3175, %v3175
    %v3680 = vmul.f32 %v3177, %v3177
    %v3681 = vmul.f32 %v3401, %v3401
    %v3682 = vmul.f32 %v3403, %v3403
    %v3683 = vmul.f32 %v2729, %v2729
    %v3684 = vmul.f32 %v2731, %v2731
    %v3685 = vmul.f32 %v2955, %v2955
    %v3686 = vmul.f32 %v2957, %v2957
    %v3687 = vmul.f32 %v3181, %v3181
    %v3688 = vmul.f32 %v3183, %v3183
    %v3689 = vmul.f32 %v3407, %v3407
    %v3690 = vmul.f32 %v3409, %v3409
    %v3691 = vmul.f32 %v2733, %v2733
    %v3692 = vmul.f32 %v2735, %v2735
    %v3693 = vmul.f32 %v2959, %v2959
    %v3694 = vmul.f32 %v2961, %v2961
    %v3695 = vmul.f32 %v3185, %v3185
    %v3696 = vmul.f32 %v3187, %v3187
    %v3697 = vmul.f32 %v3411, %v3411
    %v3698 = vmul.f32 %v3413, %v3413
    %v3699 = vmul.f32 %v2739, %v2739
    %v3700 = vmul.f32 %v2741, %v2741
    %v3701 = vmul.f32 %v2965, %v2965
    %v3702 = vmul.f32 %v2967, %v2967
    %v3703 = vmul.f32 %v3191, %v3191
    %v3704 = vmul.f32 %v3193, %v3193
    %v3705 = vmul.f32 %v3417, %v3417
    %v3706 = vmul.f32 %v3419, %v3419
    %v3707 = vmul.f32 %v2743, %v2743
    %v3708 = vmul.f32 %v2745, %v2745
    %v3709 = vmul.f32 %v2969, %v2969
    %v3710 = vmul.f32 %v2971, %v2971
    %v3711 = vmul.f32 %v3195, %v3195
    %v3712 = vmul.f32 %v3197, %v3197
    %v3713 = vmul.f32 %v3421, %v3421
    %v3714 = vmul.f32 %v3423, %v3423
    %v3715 = vmul.f32 %v2749, %v2749
    %v3716 = vmul.f32 %v2751, %v2751
    %v3717 = vmul.f32 %v2975, %v2975
    %v3718 = vmul.f32 %v2977, %v2977
    %v3719 = vmul.f32 %v3201, %v3201
    %v3720 = vmul.f32 %v3203, %v3203
    %v3721 = vmul.f32 %v3427, %v3427
    %v3722 = vmul.f32 %v3429, %v3429
    %v3723 = vmul.f32 %v2753, %v2753
    %v3724 = vmul.f32 %v2755, %v2755
    %v3725 = vmul.f32 %v2979, %v2979
    %v3726 = vmul.f32 %v2981, %v2981
    %v3727 = vmul.f32 %v3205, %v3205
    %v3728 = vmul.f32 %v3207, %v3207
    %v3729 = vmul.f32 %v3431, %v3431
    %v3730 = vmul.f32 %v3433, %v3433
    %v3731 = vadd.f32 %v3603, %v3611
    %v3732 = vadd.f32 %v3731, %v3619
    %v3733 = vadd.f32 %v3732, %v3627
    %v3734 = vadd.f32 %v3733, %v3635
    %v3735 = vadd.f32 %v3734, %v3643
    %v3736 = vadd.f32 %v3735, %v3651
    %v3737 = vadd.f32 %v3736, %v3659
    %v3738 = vadd.f32 %v3737, %v3667
    %v3739 = vadd.f32 %v3738, %v3675
    %v3740 = vadd.f32 %v3739, %v3683
    %v3741 = vadd.f32 %v3740, %v3691
    %v3742 = vadd.f32 %v3741, %v3699
    %v3743 = vadd.f32 %v3742, %v3707
    %v3744 = vadd.f32 %v3743, %v3715
    %v3745 = vadd.f32 %v3744, %v3723
    %v3746 = vrot.slane %v3745, 4
    %v3747 = vadd.f32 %v3745, %v3746
    %v3748 = vrot.slane %v3747, 2
    %v3749 = vadd.f32 %v3747, %v3748
    %v3750 = vrot.slane %v3749, 1
    %v3751 = vadd.f32 %v3749, %v3750
    %v3752 = vadd.f32 %v3604, %v3612
    %v3753 = vadd.f32 %v3752, %v3620
    %v3754 = vadd.f32 %v3753, %v3628
    %v3755 = vadd.f32 %v3754, %v3636
    %v3756 = vadd.f32 %v3755, %v3644
    %v3757 = vadd.f32 %v3756, %v3652
    %v3758 = vadd.f32 %v3757, %v3660
    %v3759 = vadd.f32 %v3758, %v3668
    %v3760 = vadd.f32 %v3759, %v3676
    %v3761 = vadd.f32 %v3760, %v3684
    %v3762 = vadd.f32 %v3761, %v3692
    %v3763 = vadd.f32 %v3762, %v3700
    %v3764 = vadd.f32 %v3763, %v3708
    %v3765 = vadd.f32 %v3764, %v3716
    %v3766 = vadd.f32 %v3765, %v3724
    %v3767 = vrot.slane %v3766, 4
    %v3768 = vadd.f32 %v3766, %v3767
    %v3769 = vrot.slane %v3768, 2
    %v3770 = vadd.f32 %v3768, %v3769
    %v3771 = vrot.slane %v3770, 1
    %v3772 = vadd.f32 %v3770, %v3771
    %v3773 = vadd.f32 %v3605, %v3613
    %v3774 = vadd.f32 %v3773, %v3621
    %v3775 = vadd.f32 %v3774, %v3629
    %v3776 = vadd.f32 %v3775, %v3637
    %v3777 = vadd.f32 %v3776, %v3645
    %v3778 = vadd.f32 %v3777, %v3653
    %v3779 = vadd.f32 %v3778, %v3661
    %v3780 = vadd.f32 %v3779, %v3669
    %v3781 = vadd.f32 %v3780, %v3677
    %v3782 = vadd.f32 %v3781, %v3685
    %v3783 = vadd.f32 %v3782, %v3693
    %v3784 = vadd.f32 %v3783, %v3701
    %v3785 = vadd.f32 %v3784, %v3709
    %v3786 = vadd.f32 %v3785, %v3717
    %v3787 = vadd.f32 %v3786, %v3725
    %v3788 = vrot.slane %v3787, 4
    %v3789 = vadd.f32 %v3787, %v3788
    %v3790 = vrot.slane %v3789, 2
    %v3791 = vadd.f32 %v3789, %v3790
    %v3792 = vrot.slane %v3791, 1
    %v3793 = vadd.f32 %v3791, %v3792
    %v3794 = vadd.f32 %v3606, %v3614
    %v3795 = vadd.f32 %v3794, %v3622
    %v3796 = vadd.f32 %v3795, %v3630
    %v3797 = vadd.f32 %v3796, %v3638
    %v3798 = vadd.f32 %v3797, %v3646
    %v3799 = vadd.f32 %v3798, %v3654
    %v3800 = vadd.f32 %v3799, %v3662
    %v3801 = vadd.f32 %v3800, %v3670
    %v3802 = vadd.f32 %v3801, %v3678
    %v3803 = vadd.f32 %v3802, %v3686
    %v3804 = vadd.f32 %v3803, %v3694
    %v3805 = vadd.f32 %v3804, %v3702
    %v3806 = vadd.f32 %v3805, %v3710
    %v3807 = vadd.f32 %v3806, %v3718
    %v3808 = vadd.f32 %v3807, %v3726
    %v3809 = vrot.slane %v3808, 4
    %v3810 = vadd.f32 %v3808, %v3809
    %v3811 = vrot.slane %v3810, 2
    %v3812 = vadd.f32 %v3810, %v3811
    %v3813 = vrot.slane %v3812, 1
    %v3814 = vadd.f32 %v3812, %v3813
    %v3815 = vadd.f32 %v3607, %v3615
    %v3816 = vadd.f32 %v3815, %v3623
    %v3817 = vadd.f32 %v3816, %v3631
    %v3818 = vadd.f32 %v3817, %v3639
    %v3819 = vadd.f32 %v3818, %v3647
    %v3820 = vadd.f32 %v3819, %v3655
    %v3821 = vadd.f32 %v3820, %v3663
    %v3822 = vadd.f32 %v3821, %v3671
    %v3823 = vadd.f32 %v3822, %v3679
    %v3824 = vadd.f32 %v3823, %v3687
    %v3825 = vadd.f32 %v3824, %v3695
    %v3826 = vadd.f32 %v3825, %v3703
    %v3827 = vadd.f32 %v3826, %v3711
    %v3828 = vadd.f32 %v3827, %v3719
    %v3829 = vadd.f32 %v3828, %v3727
    %v3830 = vrot.slane %v3829, 4
    %v3831 = vadd.f32 %v3829, %v3830
    %v3832 = vrot.slane %v3831, 2
    %v3833 = vadd.f32 %v3831, %v3832
    %v3834 = vrot.slane %v3833, 1
    %v3835 = vadd.f32 %v3833, %v3834
    %v3836 = vadd.f32 %v3608, %v3616
    %v3837 = vadd.f32 %v3836, %v3624
    %v3838 = vadd.f32 %v3837, %v3632
    %v3839 = vadd.f32 %v3838, %v3640
    %v3840 = vadd.f32 %v3839, %v3648
    %v3841 = vadd.f32 %v3840, %v3656
    %v3842 = vadd.f32 %v3841, %v3664
    %v3843 = vadd.f32 %v3842, %v3672
    %v3844 = vadd.f32 %v3843, %v3680
    %v3845 = vadd.f32 %v3844, %v3688
    %v3846 = vadd.f32 %v3845, %v3696
    %v3847 = vadd.f32 %v3846, %v3704
    %v3848 = vadd.f32 %v3847, %v3712
    %v3849 = vadd.f32 %v3848, %v3720
    %v3850 = vadd.f32 %v3849, %v3728
    %v3851 = vrot.slane %v3850, 4
    %v3852 = vadd.f32 %v3850, %v3851
    %v3853 = vrot.slane %v3852, 2
    %v3854 = vadd.f32 %v3852, %v3853
    %v3855 = vrot.slane %v3854, 1
    %v3856 = vadd.f32 %v3854, %v3855
    %v3857 = vadd.f32 %v3609, %v3617
    %v3858 = vadd.f32 %v3857, %v3625
    %v3859 = vadd.f32 %v3858, %v3633
    %v3860 = vadd.f32 %v3859, %v3641
    %v3861 = vadd.f32 %v3860, %v3649
    %v3862 = vadd.f32 %v3861, %v3657
    %v3863 = vadd.f32 %v3862, %v3665
    %v3864 = vadd.f32 %v3863, %v3673
    %v3865 = vadd.f32 %v3864, %v3681
    %v3866 = vadd.f32 %v3865, %v3689
    %v3867 = vadd.f32 %v3866, %v3697
    %v3868 = vadd.f32 %v3867, %v3705
    %v3869 = vadd.f32 %v3868, %v3713
    %v3870 = vadd.f32 %v3869, %v3721
    %v3871 = vadd.f32 %v3870, %v3729
    %v3872 = vrot.slane %v3871, 4
    %v3873 = vadd.f32 %v3871, %v3872
    %v3874 = vrot.slane %v3873, 2
    %v3875 = vadd.f32 %v3873, %v3874
    %v3876 = vrot.slane %v3875, 1
    %v3877 = vadd.f32 %v3875, %v3876
    %v3878 = vadd.f32 %v3610, %v3618
    %v3879 = vadd.f32 %v3878, %v3626
    %v3880 = vadd.f32 %v3879, %v3634
    %v3881 = vadd.f32 %v3880, %v3642
    %v3882 = vadd.f32 %v3881, %v3650
    %v3883 = vadd.f32 %v3882, %v3658
    %v3884 = vadd.f32 %v3883, %v3666
    %v3885 = vadd.f32 %v3884, %v3674
    %v3886 = vadd.f32 %v3885, %v3682
    %v3887 = vadd.f32 %v3886, %v3690
    %v3888 = vadd.f32 %v3887, %v3698
    %v3889 = vadd.f32 %v3888, %v3706
    %v3890 = vadd.f32 %v3889, %v3714
    %v3891 = vadd.f32 %v3890, %v3722
    %v3892 = vadd.f32 %v3891, %v3730
    %v3893 = vrot.slane %v3892, 4
    %v3894 = vadd.f32 %v3892, %v3893
    %v3895 = vrot.slane %v3894, 2
    %v3896 = vadd.f32 %v3894, %v3895
    %v3897 = vrot.slane %v3896, 1
    %v3898 = vadd.f32 %v3896, %v3897
    %v3899 = vmul.f32 %v3455, 0.0078125
    %v3900 = vmul.f32 %v3476, 0.0078125
    %v3901 = vmul.f32 %v3497, 0.0078125
    %v3902 = vmul.f32 %v3518, 0.0078125
    %v3903 = vmul.f32 %v3539, 0.0078125
    %v3904 = vmul.f32 %v3560, 0.0078125
    %v3905 = vmul.f32 %v3581, 0.0078125
    %v3906 = vmul.f32 %v3602, 0.0078125
    %v3907 = vmul.f32 %v3751, 0.0078125
    %v3908 = vmul.f32 %v3772, 0.0078125
    %v3909 = vmul.f32 %v3793, 0.0078125
    %v3910 = vmul.f32 %v3814, 0.0078125
    %v3911 = vmul.f32 %v3835, 0.0078125
    %v3912 = vmul.f32 %v3856, 0.0078125
    %v3913 = vmul.f32 %v3877, 0.0078125
    %v3914 = vmul.f32 %v3898, 0.0078125
    %v3915 = vmul.f32 %v3899, %v3899
    %v3916 = vmul.f32 %v3900, %v3900
    %v3917 = vmul.f32 %v3901, %v3901
    %v3918 = vmul.f32 %v3902, %v3902
    %v3919 = vmul.f32 %v3903, %v3903
    %v3920 = vmul.f32 %v3904, %v3904
    %v3921 = vmul.f32 %v3905, %v3905
    %v3922 = vmul.f32 %v3906, %v3906
    %v3923 = vsub.f32 %v3907, %v3915
    %v3924 = vsub.f32 %v3908, %v3916
    %v3925 = vsub.f32 %v3909, %v3917
    %v3926 = vsub.f32 %v3910, %v3918
    %v3927 = vsub.f32 %v3911, %v3919
    %v3928 = vsub.f32 %v3912, %v3920
    %v3929 = vsub.f32 %v3913, %v3921
    %v3930 = vsub.f32 %v3914, %v3922
    %v3931 = vmax.f32 %v3923, 0.0
    %v3932 = vmax.f32 %v3924, 0.0
    %v3933 = vmax.f32 %v3925, 0.0
    %v3934 = vmax.f32 %v3926, 0.0
    %v3935 = vmax.f32 %v3927, 0.0
    %v3936 = vmax.f32 %v3928, 0.0
    %v3937 = vmax.f32 %v3929, 0.0
    %v3938 = vmax.f32 %v3930, 0.0
    %v3939 = vld [vmem:[#allocation19] sm:$0xff]
    %v3940 = vadd.f32 %v3931, 1e-05
    %v3941 = vadd.f32 %v3932, 1e-05
    %v3942 = vadd.f32 %v3933, 1e-05
    %v3943 = vadd.f32 %v3934, 1e-05
    %v3944 = vadd.f32 %v3935, 1e-05
    %v3945 = vadd.f32 %v3936, 1e-05
    %v3946 = vadd.f32 %v3937, 1e-05
    %v3947 = vadd.f32 %v3938, 1e-05
    %v3948 = vrsqrt.pop %v3940
    %v3949 = vrsqrt.pop %v3941
    %v3950 = vrsqrt.pop %v3942
    %v3951 = vrsqrt.pop %v3943
    %v3952 = vrsqrt.pop %v3944
    %v3953 = vrsqrt.pop %v3945
    %v3954 = vrsqrt.pop %v3946
    %v3955 = vrsqrt.pop %v3947
    %v3964 = vcombine.low %v3948, %v3949
    %v3965 = vcombine.low %v3950, %v3951
    %v3966 = vcombine.low %v3952, %v3953
    %v3967 = vcombine.low %v3954, %v3955
    %v3969 = vunpack.c.l.s4 1966171168
    %v3970 = vunpack.c.0.s8 %v3969
    %v3971 = vlaneseq
    %v3972 = vshrl.u32 %v3971, 7
    %v3973 = vsub.s32 %v3970, %v3972
    %v3974 = vrot.slane %v3964, %v3973
    %v3976 = vunpack.c.l.s4 1966171168
    %v3977 = vunpack.c.0.s8 %v3976
    %v3978 = vlaneseq
    %v3979 = vshrl.u32 %v3978, 7
    %v3980 = vsub.s32 %v3977, %v3979
    %v3981 = vrot.slane %v3965, %v3980
    %v3983 = vunpack.c.l.s4 1966171168
    %v3984 = vunpack.c.0.s8 %v3983
    %v3985 = vlaneseq
    %v3986 = vshrl.u32 %v3985, 7
    %v3987 = vsub.s32 %v3984, %v3986
    %v3988 = vrot.slane %v3966, %v3987
    %v3990 = vunpack.c.l.s4 1966171168
    %v3991 = vunpack.c.0.s8 %v3990
    %v3992 = vlaneseq
    %v3993 = vshrl.u32 %v3992, 7
    %v3994 = vsub.s32 %v3991, %v3993
    %v3995 = vrot.slane %v3967, %v3994
    %v3996 = vcombine.low %v3974, %v3981
    %v3997 = vcombine.low %v3988, %v3995
    %v3999 = vunpack.c.l.s4 1966171168
    %v4000 = vunpack.c.0.s8 %v3999
    %v4001 = vlaneseq
    %v4002 = vshrl.u32 %v4001, 7
    %v4003 = vsub.s32 %v4000, %v4002
    %v4004 = vrot.slane %v3996, %v4003
    %v4006 = vunpack.c.l.s4 1966171168
    %v4007 = vunpack.c.0.s8 %v4006
    %v4008 = vlaneseq
    %v4009 = vshrl.u32 %v4008, 7
    %v4010 = vsub.s32 %v4007, %v4009
    %v4011 = vrot.slane %v3997, %v4010
    %v4012 = vcombine.low %v4004, %v4011
    %v4014 = vmul.f32 %v3939, %v4012
    %v4015 = vld [vmem:[#allocation21] sm:$0xff]
    %v4017 = vlaneseq
    %v4018 = vshrl.u32 %v4017, 7
    %v4019 = vsub.s32 0, %v4018
    %v4020 = vrot.slane %v4014, %v4019
    %v4021 = vlaneseq
    %v4022 = vshrl.u32 %v4021, 7
    %v4023 = vsub.s32 1, %v4022
    %v4024 = vrot.slane %v4014, %v4023
    %v4025 = vlaneseq
    %v4026 = vshrl.u32 %v4025, 7
    %v4027 = vsub.s32 2, %v4026
    %v4028 = vrot.slane %v4014, %v4027
    %v4029 = vlaneseq
    %v4030 = vshrl.u32 %v4029, 7
    %v4031 = vsub.s32 3, %v4030
    %v4032 = vrot.slane %v4014, %v4031
    %v4033 = vlaneseq
    %v4034 = vshrl.u32 %v4033, 7
    %v4035 = vsub.s32 4, %v4034
    %v4036 = vrot.slane %v4014, %v4035
    %v4037 = vlaneseq
    %v4038 = vshrl.u32 %v4037, 7
    %v4039 = vsub.s32 5, %v4038
    %v4040 = vrot.slane %v4014, %v4039
    %v4041 = vlaneseq
    %v4042 = vshrl.u32 %v4041, 7
    %v4043 = vsub.s32 6, %v4042
    %v4044 = vrot.slane %v4014, %v4043
    %v4045 = vlaneseq
    %v4046 = vshrl.u32 %v4045, 7
    %v4047 = vsub.s32 7, %v4046
    %v4048 = vrot.slane %v4014, %v4047
    %v4057 = vmul.f32 %v3899, %v4020
    %v4058 = vmul.f32 %v3900, %v4024
    %v4059 = vmul.f32 %v3901, %v4028
    %v4060 = vmul.f32 %v3902, %v4032
    %v4061 = vmul.f32 %v3903, %v4036
    %v4062 = vmul.f32 %v3904, %v4040
    %v4063 = vmul.f32 %v3905, %v4044
    %v4064 = vmul.f32 %v3906, %v4048
    %v4073 = vcombine.low %v4057, %v4058
    %v4074 = vcombine.low %v4059, %v4060
    %v4075 = vcombine.low %v4061, %v4062
    %v4076 = vcombine.low %v4063, %v4064
    %v4078 = vunpack.c.l.s4 1966171168
    %v4079 = vunpack.c.0.s8 %v4078
    %v4080 = vlaneseq
    %v4081 = vshrl.u32 %v4080, 7
    %v4082 = vsub.s32 %v4079, %v4081
    %v4083 = vrot.slane %v4073, %v4082
    %v4085 = vunpack.c.l.s4 1966171168
    %v4086 = vunpack.c.0.s8 %v4085
    %v4087 = vlaneseq
    %v4088 = vshrl.u32 %v4087, 7
    %v4089 = vsub.s32 %v4086, %v4088
    %v4090 = vrot.slane %v4074, %v4089
    %v4092 = vunpack.c.l.s4 1966171168
    %v4093 = vunpack.c.0.s8 %v4092
    %v4094 = vlaneseq
    %v4095 = vshrl.u32 %v4094, 7
    %v4096 = vsub.s32 %v4093, %v4095
    %v4097 = vrot.slane %v4075, %v4096
    %v4099 = vunpack.c.l.s4 1966171168
    %v4100 = vunpack.c.0.s8 %v4099
    %v4101 = vlaneseq
    %v4102 = vshrl.u32 %v4101, 7
    %v4103 = vsub.s32 %v4100, %v4102
    %v4104 = vrot.slane %v4076, %v4103
    %v4105 = vcombine.low %v4083, %v4090
    %v4106 = vcombine.low %v4097, %v4104
    %v4108 = vunpack.c.l.s4 1966171168
    %v4109 = vunpack.c.0.s8 %v4108
    %v4110 = vlaneseq
    %v4111 = vshrl.u32 %v4110, 7
    %v4112 = vsub.s32 %v4109, %v4111
    %v4113 = vrot.slane %v4105, %v4112
    %v4115 = vunpack.c.l.s4 1966171168
    %v4116 = vunpack.c.0.s8 %v4115
    %v4117 = vlaneseq
    %v4118 = vshrl.u32 %v4117, 7
    %v4119 = vsub.s32 %v4116, %v4118
    %v4120 = vrot.slane %v4106, %v4119
    %v4121 = vcombine.low %v4113, %v4120
    %v4123 = vsub.f32 %v4015, %v4121
    %v4124 = vmul.f32 %v2679, %v4020
    %v4125 = vmul.f32 %v2681, %v4024
    %v4126 = vmul.f32 %v2905, %v4028
    %v4127 = vmul.f32 %v2907, %v4032
    %v4128 = vmul.f32 %v3131, %v4036
    %v4129 = vmul.f32 %v3133, %v4040
    %v4130 = vmul.f32 %v3357, %v4044
    %v4131 = vmul.f32 %v3359, %v4048
    %v4132 = vmul.f32 %v2683, %v4020
    %v4133 = vmul.f32 %v2685, %v4024
    %v4134 = vmul.f32 %v2909, %v4028
    %v4135 = vmul.f32 %v2911, %v4032
    %v4136 = vmul.f32 %v3135, %v4036
    %v4137 = vmul.f32 %v3137, %v4040
    %v4138 = vmul.f32 %v3361, %v4044
    %v4139 = vmul.f32 %v3363, %v4048
    %v4140 = vmul.f32 %v2689, %v4020
    %v4141 = vmul.f32 %v2691, %v4024
    %v4142 = vmul.f32 %v2915, %v4028
    %v4143 = vmul.f32 %v2917, %v4032
    %v4144 = vmul.f32 %v3141, %v4036
    %v4145 = vmul.f32 %v3143, %v4040
    %v4146 = vmul.f32 %v3367, %v4044
    %v4147 = vmul.f32 %v3369, %v4048
    %v4148 = vmul.f32 %v2693, %v4020
    %v4149 = vmul.f32 %v2695, %v4024
    %v4150 = vmul.f32 %v2919, %v4028
    %v4151 = vmul.f32 %v2921, %v4032
    %v4152 = vmul.f32 %v3145, %v4036
    %v4153 = vmul.f32 %v3147, %v4040
    %v4154 = vmul.f32 %v3371, %v4044
    %v4155 = vmul.f32 %v3373, %v4048
    %v4156 = vmul.f32 %v2699, %v4020
    %v4157 = vmul.f32 %v2701, %v4024
    %v4158 = vmul.f32 %v2925, %v4028
    %v4159 = vmul.f32 %v2927, %v4032
    %v4160 = vmul.f32 %v3151, %v4036
    %v4161 = vmul.f32 %v3153, %v4040
    %v4162 = vmul.f32 %v3377, %v4044
    %v4163 = vmul.f32 %v3379, %v4048
    %v4164 = vmul.f32 %v2703, %v4020
    %v4165 = vmul.f32 %v2705, %v4024
    %v4166 = vmul.f32 %v2929, %v4028
    %v4167 = vmul.f32 %v2931, %v4032
    %v4168 = vmul.f32 %v3155, %v4036
    %v4169 = vmul.f32 %v3157, %v4040
    %v4170 = vmul.f32 %v3381, %v4044
    %v4171 = vmul.f32 %v3383, %v4048
    %v4172 = vmul.f32 %v2709, %v4020
    %v4173 = vmul.f32 %v2711, %v4024
    %v4174 = vmul.f32 %v2935, %v4028
    %v4175 = vmul.f32 %v2937, %v4032
    %v4176 = vmul.f32 %v3161, %v4036
    %v4177 = vmul.f32 %v3163, %v4040
    %v4178 = vmul.f32 %v3387, %v4044
    %v4179 = vmul.f32 %v3389, %v4048
    %v4180 = vmul.f32 %v2713, %v4020
    %v4181 = vmul.f32 %v2715, %v4024
    %v4182 = vmul.f32 %v2939, %v4028
    %v4183 = vmul.f32 %v2941, %v4032
    %v4184 = vmul.f32 %v3165, %v4036
    %v4185 = vmul.f32 %v3167, %v4040
    %v4186 = vmul.f32 %v3391, %v4044
    %v4187 = vmul.f32 %v3393, %v4048
    %v4188 = vmul.f32 %v2719, %v4020
    %v4189 = vmul.f32 %v2721, %v4024
    %v4190 = vmul.f32 %v2945, %v4028
    %v4191 = vmul.f32 %v2947, %v4032
    %v4192 = vmul.f32 %v3171, %v4036
    %v4193 = vmul.f32 %v3173, %v4040
    %v4194 = vmul.f32 %v3397, %v4044
    %v4195 = vmul.f32 %v3399, %v4048
    %v4196 = vmul.f32 %v2723, %v4020
    %v4197 = vmul.f32 %v2725, %v4024
    %v4198 = vmul.f32 %v2949, %v4028
    %v4199 = vmul.f32 %v2951, %v4032
    %v4200 = vmul.f32 %v3175, %v4036
    %v4201 = vmul.f32 %v3177, %v4040
    %v4202 = vmul.f32 %v3401, %v4044
    %v4203 = vmul.f32 %v3403, %v4048
    %v4204 = vmul.f32 %v2729, %v4020
    %v4205 = vmul.f32 %v2731, %v4024
    %v4206 = vmul.f32 %v2955, %v4028
    %v4207 = vmul.f32 %v2957, %v4032
    %v4208 = vmul.f32 %v3181, %v4036
    %v4209 = vmul.f32 %v3183, %v4040
    %v4210 = vmul.f32 %v3407, %v4044
    %v4211 = vmul.f32 %v3409, %v4048
    %v4212 = vmul.f32 %v2733, %v4020
    %v4213 = vmul.f32 %v2735, %v4024
    %v4214 = vmul.f32 %v2959, %v4028
    %v4215 = vmul.f32 %v2961, %v4032
    %v4216 = vmul.f32 %v3185, %v4036
    %v4217 = vmul.f32 %v3187, %v4040
    %v4218 = vmul.f32 %v3411, %v4044
    %v4219 = vmul.f32 %v3413, %v4048
    %v4220 = vmul.f32 %v2739, %v4020
    %v4221 = vmul.f32 %v2741, %v4024
    %v4222 = vmul.f32 %v2965, %v4028
    %v4223 = vmul.f32 %v2967, %v4032
    %v4224 = vmul.f32 %v3191, %v4036
    %v4225 = vmul.f32 %v3193, %v4040
    %v4226 = vmul.f32 %v3417, %v4044
    %v4227 = vmul.f32 %v3419, %v4048
    %v4228 = vmul.f32 %v2743, %v4020
    %v4229 = vmul.f32 %v2745, %v4024
    %v4230 = vmul.f32 %v2969, %v4028
    %v4231 = vmul.f32 %v2971, %v4032
    %v4232 = vmul.f32 %v3195, %v4036
    %v4233 = vmul.f32 %v3197, %v4040
    %v4234 = vmul.f32 %v3421, %v4044
    %v4235 = vmul.f32 %v3423, %v4048
    %v4236 = vmul.f32 %v2749, %v4020
    %v4237 = vmul.f32 %v2751, %v4024
    %v4238 = vmul.f32 %v2975, %v4028
    %v4239 = vmul.f32 %v2977, %v4032
    %v4240 = vmul.f32 %v3201, %v4036
    %v4241 = vmul.f32 %v3203, %v4040
    %v4242 = vmul.f32 %v3427, %v4044
    %v4243 = vmul.f32 %v3429, %v4048
    %v4244 = vmul.f32 %v2753, %v4020
    %v4245 = vmul.f32 %v2755, %v4024
    %v4246 = vmul.f32 %v2979, %v4028
    %v4247 = vmul.f32 %v2981, %v4032
    %v4248 = vmul.f32 %v3205, %v4036
    %v4249 = vmul.f32 %v3207, %v4040
    %v4250 = vmul.f32 %v3431, %v4044
    %v4251 = vmul.f32 %v3433, %v4048
    %v4253 = vlaneseq
    %v4254 = vshrl.u32 %v4253, 7
    %v4255 = vsub.s32 0, %v4254
    %v4256 = vrot.slane %v4123, %v4255
    %v4257 = vlaneseq
    %v4258 = vshrl.u32 %v4257, 7
    %v4259 = vsub.s32 1, %v4258
    %v4260 = vrot.slane %v4123, %v4259
    %v4261 = vlaneseq
    %v4262 = vshrl.u32 %v4261, 7
    %v4263 = vsub.s32 2, %v4262
    %v4264 = vrot.slane %v4123, %v4263
    %v4265 = vlaneseq
    %v4266 = vshrl.u32 %v4265, 7
    %v4267 = vsub.s32 3, %v4266
    %v4268 = vrot.slane %v4123, %v4267
    %v4269 = vlaneseq
    %v4270 = vshrl.u32 %v4269, 7
    %v4271 = vsub.s32 4, %v4270
    %v4272 = vrot.slane %v4123, %v4271
    %v4273 = vlaneseq
    %v4274 = vshrl.u32 %v4273, 7
    %v4275 = vsub.s32 5, %v4274
    %v4276 = vrot.slane %v4123, %v4275
    %v4277 = vlaneseq
    %v4278 = vshrl.u32 %v4277, 7
    %v4279 = vsub.s32 6, %v4278
    %v4280 = vrot.slane %v4123, %v4279
    %v4281 = vlaneseq
    %v4282 = vshrl.u32 %v4281, 7
    %v4283 = vsub.s32 7, %v4282
    %v4284 = vrot.slane %v4123, %v4283
    %v4293 = vadd.f32 %v4124, %v4256
    %v4294 = vadd.f32 %v4125, %v4260
    %v4295 = vadd.f32 %v4126, %v4264
    %v4296 = vadd.f32 %v4127, %v4268
    %v4297 = vadd.f32 %v4128, %v4272
    %v4298 = vadd.f32 %v4129, %v4276
    %v4299 = vadd.f32 %v4130, %v4280
    %v4300 = vadd.f32 %v4131, %v4284
    %v4301 = vadd.f32 %v4132, %v4256
    %v4302 = vadd.f32 %v4133, %v4260
    %v4303 = vadd.f32 %v4134, %v4264
    %v4304 = vadd.f32 %v4135, %v4268
    %v4305 = vadd.f32 %v4136, %v4272
    %v4306 = vadd.f32 %v4137, %v4276
    %v4307 = vadd.f32 %v4138, %v4280
    %v4308 = vadd.f32 %v4139, %v4284
    %v4309 = vadd.f32 %v4140, %v4256
    %v4310 = vadd.f32 %v4141, %v4260
    %v4311 = vadd.f32 %v4142, %v4264
    %v4312 = vadd.f32 %v4143, %v4268
    %v4313 = vadd.f32 %v4144, %v4272
    %v4314 = vadd.f32 %v4145, %v4276
    %v4315 = vadd.f32 %v4146, %v4280
    %v4316 = vadd.f32 %v4147, %v4284
    %v4317 = vadd.f32 %v4148, %v4256
    %v4318 = vadd.f32 %v4149, %v4260
    %v4319 = vadd.f32 %v4150, %v4264
    %v4320 = vadd.f32 %v4151, %v4268
    %v4321 = vadd.f32 %v4152, %v4272
    %v4322 = vadd.f32 %v4153, %v4276
    %v4323 = vadd.f32 %v4154, %v4280
    %v4324 = vadd.f32 %v4155, %v4284
    %v4325 = vadd.f32 %v4156, %v4256
    %v4326 = vadd.f32 %v4157, %v4260
    %v4327 = vadd.f32 %v4158, %v4264
    %v4328 = vadd.f32 %v4159, %v4268
    %v4329 = vadd.f32 %v4160, %v4272
    %v4330 = vadd.f32 %v4161, %v4276
    %v4331 = vadd.f32 %v4162, %v4280
    %v4332 = vadd.f32 %v4163, %v4284
    %v4333 = vadd.f32 %v4164, %v4256
    %v4334 = vadd.f32 %v4165, %v4260
    %v4335 = vadd.f32 %v4166, %v4264
    %v4336 = vadd.f32 %v4167, %v4268
    %v4337 = vadd.f32 %v4168, %v4272
    %v4338 = vadd.f32 %v4169, %v4276
    %v4339 = vadd.f32 %v4170, %v4280
    %v4340 = vadd.f32 %v4171, %v4284
    %v4341 = vadd.f32 %v4172, %v4256
    %v4342 = vadd.f32 %v4173, %v4260
    %v4343 = vadd.f32 %v4174, %v4264
    %v4344 = vadd.f32 %v4175, %v4268
    %v4345 = vadd.f32 %v4176, %v4272
    %v4346 = vadd.f32 %v4177, %v4276
    %v4347 = vadd.f32 %v4178, %v4280
    %v4348 = vadd.f32 %v4179, %v4284
    %v4349 = vadd.f32 %v4180, %v4256
    %v4350 = vadd.f32 %v4181, %v4260
    %v4351 = vadd.f32 %v4182, %v4264
    %v4352 = vadd.f32 %v4183, %v4268
    %v4353 = vadd.f32 %v4184, %v4272
    %v4354 = vadd.f32 %v4185, %v4276
    %v4355 = vadd.f32 %v4186, %v4280
    %v4356 = vadd.f32 %v4187, %v4284
    %v4357 = vadd.f32 %v4188, %v4256
    %v4358 = vadd.f32 %v4189, %v4260
    %v4359 = vadd.f32 %v4190, %v4264
    %v4360 = vadd.f32 %v4191, %v4268
    %v4361 = vadd.f32 %v4192, %v4272
    %v4362 = vadd.f32 %v4193, %v4276
    %v4363 = vadd.f32 %v4194, %v4280
    %v4364 = vadd.f32 %v4195, %v4284
    %v4365 = vadd.f32 %v4196, %v4256
    %v4366 = vadd.f32 %v4197, %v4260
    %v4367 = vadd.f32 %v4198, %v4264
    %v4368 = vadd.f32 %v4199, %v4268
    %v4369 = vadd.f32 %v4200, %v4272
    %v4370 = vadd.f32 %v4201, %v4276
    %v4371 = vadd.f32 %v4202, %v4280
    %v4372 = vadd.f32 %v4203, %v4284
    %v4373 = vadd.f32 %v4204, %v4256
    %v4374 = vadd.f32 %v4205, %v4260
    %v4375 = vadd.f32 %v4206, %v4264
    %v4376 = vadd.f32 %v4207, %v4268
    %v4377 = vadd.f32 %v4208, %v4272
    %v4378 = vadd.f32 %v4209, %v4276
    %v4379 = vadd.f32 %v4210, %v4280
    %v4380 = vadd.f32 %v4211, %v4284
    %v4381 = vadd.f32 %v4212, %v4256
    %v4382 = vadd.f32 %v4213, %v4260
    %v4383 = vadd.f32 %v4214, %v4264
    %v4384 = vadd.f32 %v4215, %v4268
    %v4385 = vadd.f32 %v4216, %v4272
    %v4386 = vadd.f32 %v4217, %v4276
    %v4387 = vadd.f32 %v4218, %v4280
    %v4388 = vadd.f32 %v4219, %v4284
    %v4389 = vadd.f32 %v4220, %v4256
    %v4390 = vadd.f32 %v4221, %v4260
    %v4391 = vadd.f32 %v4222, %v4264
    %v4392 = vadd.f32 %v4223, %v4268
    %v4393 = vadd.f32 %v4224, %v4272
    %v4394 = vadd.f32 %v4225, %v4276
    %v4395 = vadd.f32 %v4226, %v4280
    %v4396 = vadd.f32 %v4227, %v4284
    %v4397 = vadd.f32 %v4228, %v4256
    %v4398 = vadd.f32 %v4229, %v4260
    %v4399 = vadd.f32 %v4230, %v4264
    %v4400 = vadd.f32 %v4231, %v4268
    %v4401 = vadd.f32 %v4232, %v4272
    %v4402 = vadd.f32 %v4233, %v4276
    %v4403 = vadd.f32 %v4234, %v4280
    %v4404 = vadd.f32 %v4235, %v4284
    %v4405 = vadd.f32 %v4236, %v4256
    %v4406 = vadd.f32 %v4237, %v4260
    %v4407 = vadd.f32 %v4238, %v4264
    %v4408 = vadd.f32 %v4239, %v4268
    %v4409 = vadd.f32 %v4240, %v4272
    %v4410 = vadd.f32 %v4241, %v4276
    %v4411 = vadd.f32 %v4242, %v4280
    %v4412 = vadd.f32 %v4243, %v4284
    %v4413 = vadd.f32 %v4244, %v4256
    %v4414 = vadd.f32 %v4245, %v4260
    %v4415 = vadd.f32 %v4246, %v4264
    %v4416 = vadd.f32 %v4247, %v4268
    %v4417 = vadd.f32 %v4248, %v4272
    %v4418 = vadd.f32 %v4249, %v4276
    %v4419 = vadd.f32 %v4250, %v4280
    %v4420 = vadd.f32 %v4251, %v4284
    %v4421 = vmax.f32 %v4293, 0.0
    %v4422 = vmax.f32 %v4294, 0.0
    %v4423 = vmax.f32 %v4295, 0.0
    %v4424 = vmax.f32 %v4296, 0.0
    %v4425 = vmax.f32 %v4297, 0.0
    %v4426 = vmax.f32 %v4298, 0.0
    %v4427 = vmax.f32 %v4299, 0.0
    %v4428 = vmax.f32 %v4300, 0.0
    %v4429 = vmax.f32 %v4301, 0.0
    %v4430 = vmax.f32 %v4302, 0.0
    %v4431 = vmax.f32 %v4303, 0.0
    %v4432 = vmax.f32 %v4304, 0.0
    %v4433 = vmax.f32 %v4305, 0.0
    %v4434 = vmax.f32 %v4306, 0.0
    %v4435 = vmax.f32 %v4307, 0.0
    %v4436 = vmax.f32 %v4308, 0.0
    %v4437 = vmax.f32 %v4309, 0.0
    %v4438 = vmax.f32 %v4310, 0.0
    %v4439 = vmax.f32 %v4311, 0.0
    %v4440 = vmax.f32 %v4312, 0.0
    %v4441 = vmax.f32 %v4313, 0.0
    %v4442 = vmax.f32 %v4314, 0.0
    %v4443 = vmax.f32 %v4315, 0.0
    %v4444 = vmax.f32 %v4316, 0.0
    %v4445 = vmax.f32 %v4317, 0.0
    %v4446 = vmax.f32 %v4318, 0.0
    %v4447 = vmax.f32 %v4319, 0.0
    %v4448 = vmax.f32 %v4320, 0.0
    %v4449 = vmax.f32 %v4321, 0.0
    %v4450 = vmax.f32 %v4322, 0.0
    %v4451 = vmax.f32 %v4323, 0.0
    %v4452 = vmax.f32 %v4324, 0.0
    %v4453 = vmax.f32 %v4325, 0.0
    %v4454 = vmax.f32 %v4326, 0.0
    %v4455 = vmax.f32 %v4327, 0.0
    %v4456 = vmax.f32 %v4328, 0.0
    %v4457 = vmax.f32 %v4329, 0.0
    %v4458 = vmax.f32 %v4330, 0.0
    %v4459 = vmax.f32 %v4331, 0.0
    %v4460 = vmax.f32 %v4332, 0.0
    %v4461 = vmax.f32 %v4333, 0.0
    %v4462 = vmax.f32 %v4334, 0.0
    %v4463 = vmax.f32 %v4335, 0.0
    %v4464 = vmax.f32 %v4336, 0.0
    %v4465 = vmax.f32 %v4337, 0.0
    %v4466 = vmax.f32 %v4338, 0.0
    %v4467 = vmax.f32 %v4339, 0.0
    %v4468 = vmax.f32 %v4340, 0.0
    %v4469 = vmax.f32 %v4341, 0.0
    %v4470 = vmax.f32 %v4342, 0.0
    %v4471 = vmax.f32 %v4343, 0.0
    %v4472 = vmax.f32 %v4344, 0.0
    %v4473 = vmax.f32 %v4345, 0.0
    %v4474 = vmax.f32 %v4346, 0.0
    %v4475 = vmax.f32 %v4347, 0.0
    %v4476 = vmax.f32 %v4348, 0.0
    %v4477 = vmax.f32 %v4349, 0.0
    %v4478 = vmax.f32 %v4350, 0.0
    %v4479 = vmax.f32 %v4351, 0.0
    %v4480 = vmax.f32 %v4352, 0.0
    %v4481 = vmax.f32 %v4353, 0.0
    %v4482 = vmax.f32 %v4354, 0.0
    %v4483 = vmax.f32 %v4355, 0.0
    %v4484 = vmax.f32 %v4356, 0.0
    %v4485 = vmax.f32 %v4357, 0.0
    %v4486 = vmax.f32 %v4358, 0.0
    %v4487 = vmax.f32 %v4359, 0.0
    %v4488 = vmax.f32 %v4360, 0.0
    %v4489 = vmax.f32 %v4361, 0.0
    %v4490 = vmax.f32 %v4362, 0.0
    %v4491 = vmax.f32 %v4363, 0.0
    %v4492 = vmax.f32 %v4364, 0.0
    %v4493 = vmax.f32 %v4365, 0.0
    %v4494 = vmax.f32 %v4366, 0.0
    %v4495 = vmax.f32 %v4367, 0.0
    %v4496 = vmax.f32 %v4368, 0.0
    %v4497 = vmax.f32 %v4369, 0.0
    %v4498 = vmax.f32 %v4370, 0.0
    %v4499 = vmax.f32 %v4371, 0.0
    %v4500 = vmax.f32 %v4372, 0.0
    %v4501 = vmax.f32 %v4373, 0.0
    %v4502 = vmax.f32 %v4374, 0.0
    %v4503 = vmax.f32 %v4375, 0.0
    %v4504 = vmax.f32 %v4376, 0.0
    %v4505 = vmax.f32 %v4377, 0.0
    %v4506 = vmax.f32 %v4378, 0.0
    %v4507 = vmax.f32 %v4379, 0.0
    %v4508 = vmax.f32 %v4380, 0.0
    %v4509 = vmax.f32 %v4381, 0.0
    %v4510 = vmax.f32 %v4382, 0.0
    %v4511 = vmax.f32 %v4383, 0.0
    %v4512 = vmax.f32 %v4384, 0.0
    %v4513 = vmax.f32 %v4385, 0.0
    %v4514 = vmax.f32 %v4386, 0.0
    %v4515 = vmax.f32 %v4387, 0.0
    %v4516 = vmax.f32 %v4388, 0.0
    %v4517 = vmax.f32 %v4389, 0.0
    %v4518 = vmax.f32 %v4390, 0.0
    %v4519 = vmax.f32 %v4391, 0.0
    %v4520 = vmax.f32 %v4392, 0.0
    %v4521 = vmax.f32 %v4393, 0.0
    %v4522 = vmax.f32 %v4394, 0.0
    %v4523 = vmax.f32 %v4395, 0.0
    %v4524 = vmax.f32 %v4396, 0.0
    %v4525 = vmax.f32 %v4397, 0.0
    %v4526 = vmax.f32 %v4398, 0.0
    %v4527 = vmax.f32 %v4399, 0.0
    %v4528 = vmax.f32 %v4400, 0.0
    %v4529 = vmax.f32 %v4401, 0.0
    %v4530 = vmax.f32 %v4402, 0.0
    %v4531 = vmax.f32 %v4403, 0.0
    %v4532 = vmax.f32 %v4404, 0.0
    %v4533 = vmax.f32 %v4405, 0.0
    %v4534 = vmax.f32 %v4406, 0.0
    %v4535 = vmax.f32 %v4407, 0.0
    %v4536 = vmax.f32 %v4408, 0.0
    %v4537 = vmax.f32 %v4409, 0.0
    %v4538 = vmax.f32 %v4410, 0.0
    %v4539 = vmax.f32 %v4411, 0.0
    %v4540 = vmax.f32 %v4412, 0.0
    %v4541 = vmax.f32 %v4413, 0.0
    %v4542 = vmax.f32 %v4414, 0.0
    %v4543 = vmax.f32 %v4415, 0.0
    %v4544 = vmax.f32 %v4416, 0.0
    %v4545 = vmax.f32 %v4417, 0.0
    %v4546 = vmax.f32 %v4418, 0.0
    %v4547 = vmax.f32 %v4419, 0.0
    %v4548 = vmax.f32 %v4420, 0.0
    %v4549 = vpack.c.bf16 %v4429, %v4421
    %v4550 = vpack.c.bf16 %v4430, %v4422
    %v4551 = vpack.c.bf16 %v4431, %v4423
    %v4552 = vpack.c.bf16 %v4432, %v4424
    %v4553 = vpack.c.bf16 %v4433, %v4425
    %v4554 = vpack.c.bf16 %v4434, %v4426
    %v4555 = vpack.c.bf16 %v4435, %v4427
    %v4556 = vpack.c.bf16 %v4436, %v4428
    %v4557 = vpack.c.bf16 %v4445, %v4437
    %v4558 = vpack.c.bf16 %v4446, %v4438
    %v4559 = vpack.c.bf16 %v4447, %v4439
    %v4560 = vpack.c.bf16 %v4448, %v4440
    %v4561 = vpack.c.bf16 %v4449, %v4441
    %v4562 = vpack.c.bf16 %v4450, %v4442
    %v4563 = vpack.c.bf16 %v4451, %v4443
    %v4564 = vpack.c.bf16 %v4452, %v4444
    %v4565 = vpack.c.bf16 %v4461, %v4453
    %v4566 = vpack.c.bf16 %v4462, %v4454
    %v4567 = vpack.c.bf16 %v4463, %v4455
    %v4568 = vpack.c.bf16 %v4464, %v4456
    %v4569 = vpack.c.bf16 %v4465, %v4457
    %v4570 = vpack.c.bf16 %v4466, %v4458
    %v4571 = vpack.c.bf16 %v4467, %v4459
    %v4572 = vpack.c.bf16 %v4468, %v4460
    %v4573 = vpack.c.bf16 %v4477, %v4469
    %v4574 = vpack.c.bf16 %v4478, %v4470
    %v4575 = vpack.c.bf16 %v4479, %v4471
    %v4576 = vpack.c.bf16 %v4480, %v4472
    %v4577 = vpack.c.bf16 %v4481, %v4473
    %v4578 = vpack.c.bf16 %v4482, %v4474
    %v4579 = vpack.c.bf16 %v4483, %v4475
    %v4580 = vpack.c.bf16 %v4484, %v4476
    %v4581 = vpack.c.bf16 %v4493, %v4485
    %v4582 = vpack.c.bf16 %v4494, %v4486
    %v4583 = vpack.c.bf16 %v4495, %v4487
    %v4584 = vpack.c.bf16 %v4496, %v4488
    %v4585 = vpack.c.bf16 %v4497, %v4489
    %v4586 = vpack.c.bf16 %v4498, %v4490
    %v4587 = vpack.c.bf16 %v4499, %v4491
    %v4588 = vpack.c.bf16 %v4500, %v4492
    %v4589 = vpack.c.bf16 %v4509, %v4501
    %v4590 = vpack.c.bf16 %v4510, %v4502
    %v4591 = vpack.c.bf16 %v4511, %v4503
    %v4592 = vpack.c.bf16 %v4512, %v4504
    %v4593 = vpack.c.bf16 %v4513, %v4505
    %v4594 = vpack.c.bf16 %v4514, %v4506
    %v4595 = vpack.c.bf16 %v4515, %v4507
    %v4596 = vpack.c.bf16 %v4516, %v4508
    %v4597 = vpack.c.bf16 %v4525, %v4517
    %v4598 = vpack.c.bf16 %v4526, %v4518
    %v4599 = vpack.c.bf16 %v4527, %v4519
    %v4600 = vpack.c.bf16 %v4528, %v4520
    %v4601 = vpack.c.bf16 %v4529, %v4521
    %v4602 = vpack.c.bf16 %v4530, %v4522
    %v4603 = vpack.c.bf16 %v4531, %v4523
    %v4604 = vpack.c.bf16 %v4532, %v4524
    %v4605 = vpack.c.bf16 %v4541, %v4533
    %v4606 = vpack.c.bf16 %v4542, %v4534
    %v4607 = vpack.c.bf16 %v4543, %v4535
    %v4608 = vpack.c.bf16 %v4544, %v4536
    %v4609 = vpack.c.bf16 %v4545, %v4537
    %v4610 = vpack.c.bf16 %v4546, %v4538
    %v4611 = vpack.c.bf16 %v4547, %v4539
    %v4612 = vpack.c.bf16 %v4548, %v4540
    %s4613 = smul.u32 4, 128
    %s4614 = smul.u32 %s4613, 7
    %s4615 = sshll.u32 %s4614, 4
    %4616 = dma.done %s227, %s4615
    %v4617 = vld [vmem:[#allocation3] sm:$0xff]
    %v4618 = vld [vmem:[#allocation3 + $0x8] sm:$0xff]
    %v4619 = vld [vmem:[#allocation3 + $0x10] sm:$0xff]
    %v4620 = vld [vmem:[#allocation3 + $0x18] sm:$0xff]
    %v4621 = vld [vmem:[#allocation3 + $0x20] sm:$0xff]
    %v4622 = vld [vmem:[#allocation3 + $0x28] sm:$0xff]
    %v4623 = vld [vmem:[#allocation3 + $0x30] sm:$0xff]
    %v4624 = vld [vmem:[#allocation3 + $0x38] sm:$0xff]
    %v4625 = vld [vmem:[#allocation3 + $0x40] sm:$0xff]
    %v4626 = vld [vmem:[#allocation3 + $0x48] sm:$0xff]
    %v4627 = vld [vmem:[#allocation3 + $0x50] sm:$0xff]
    %v4628 = vld [vmem:[#allocation3 + $0x58] sm:$0xff]
    %v4629 = vld [vmem:[#allocation3 + $0x60] sm:$0xff]
    %v4630 = vld [vmem:[#allocation3 + $0x68] sm:$0xff]
    %v4631 = vld [vmem:[#allocation3 + $0x70] sm:$0xff]
    %v4632 = vld [vmem:[#allocation3 + $0x78] sm:$0xff]
    %v4633 = vld [vmem:[#allocation3 + $0x80] sm:$0xff]
    %v4634 = vld [vmem:[#allocation3 + $0x88] sm:$0xff]
    %v4635 = vld [vmem:[#allocation3 + $0x90] sm:$0xff]
    %v4636 = vld [vmem:[#allocation3 + $0x98] sm:$0xff]
    %v4637 = vld [vmem:[#allocation3 + $0xa0] sm:$0xff]
    %v4638 = vld [vmem:[#allocation3 + $0xa8] sm:$0xff]
    %v4639 = vld [vmem:[#allocation3 + $0xb0] sm:$0xff]
    %v4640 = vld [vmem:[#allocation3 + $0xb8] sm:$0xff]
    %v4641 = vld [vmem:[#allocation3 + $0xc0] sm:$0xff]
    %v4642 = vld [vmem:[#allocation3 + $0xc8] sm:$0xff]
    %v4643 = vld [vmem:[#allocation3 + $0xd0] sm:$0xff]
    %v4644 = vld [vmem:[#allocation3 + $0xd8] sm:$0xff]
    %v4645 = vld [vmem:[#allocation3 + $0xe0] sm:$0xff]
    %v4646 = vld [vmem:[#allocation3 + $0xe8] sm:$0xff]
    %v4647 = vld [vmem:[#allocation3 + $0xf0] sm:$0xff]
    %v4648 = vld [vmem:[#allocation3 + $0xf8] sm:$0xff]
    %v4649 = vld [vmem:[#allocation3 + $0x100] sm:$0xff]
    %v4650 = vld [vmem:[#allocation3 + $0x108] sm:$0xff]
    %v4651 = vld [vmem:[#allocation3 + $0x110] sm:$0xff]
    %v4652 = vld [vmem:[#allocation3 + $0x118] sm:$0xff]
    %v4653 = vld [vmem:[#allocation3 + $0x120] sm:$0xff]
    %v4654 = vld [vmem:[#allocation3 + $0x128] sm:$0xff]
    %v4655 = vld [vmem:[#allocation3 + $0x130] sm:$0xff]
    %v4656 = vld [vmem:[#allocation3 + $0x138] sm:$0xff]
    %v4657 = vld [vmem:[#allocation3 + $0x140] sm:$0xff]
    %v4658 = vld [vmem:[#allocation3 + $0x148] sm:$0xff]
    %v4659 = vld [vmem:[#allocation3 + $0x150] sm:$0xff]
    %v4660 = vld [vmem:[#allocation3 + $0x158] sm:$0xff]
    %v4661 = vld [vmem:[#allocation3 + $0x160] sm:$0xff]
    %v4662 = vld [vmem:[#allocation3 + $0x168] sm:$0xff]
    %v4663 = vld [vmem:[#allocation3 + $0x170] sm:$0xff]
    %v4664 = vld [vmem:[#allocation3 + $0x178] sm:$0xff]
    %v4665 = vld [vmem:[#allocation3 + $0x180] sm:$0xff]
    %v4666 = vld [vmem:[#allocation3 + $0x188] sm:$0xff]
    %v4667 = vld [vmem:[#allocation3 + $0x190] sm:$0xff]
    %v4668 = vld [vmem:[#allocation3 + $0x198] sm:$0xff]
    %v4669 = vld [vmem:[#allocation3 + $0x1a0] sm:$0xff]
    %v4670 = vld [vmem:[#allocation3 + $0x1a8] sm:$0xff]
    %v4671 = vld [vmem:[#allocation3 + $0x1b0] sm:$0xff]
    %v4672 = vld [vmem:[#allocation3 + $0x1b8] sm:$0xff]
    %v4673 = vld [vmem:[#allocation3 + $0x1c0] sm:$0xff]
    %v4674 = vld [vmem:[#allocation3 + $0x1c8] sm:$0xff]
    %v4675 = vld [vmem:[#allocation3 + $0x1d0] sm:$0xff]
    %v4676 = vld [vmem:[#allocation3 + $0x1d8] sm:$0xff]
    %v4677 = vld [vmem:[#allocation3 + $0x1e0] sm:$0xff]
    %v4678 = vld [vmem:[#allocation3 + $0x1e8] sm:$0xff]
    %v4679 = vld [vmem:[#allocation3 + $0x1f0] sm:$0xff]
    %v4680 = vld [vmem:[#allocation3 + $0x1f8] sm:$0xff]
    %v4681 = vld [vmem:[#allocation3 + $0x200] sm:$0xff]
    %v4682 = vld [vmem:[#allocation3 + $0x208] sm:$0xff]
    %v4683 = vld [vmem:[#allocation3 + $0x210] sm:$0xff]
    %v4684 = vld [vmem:[#allocation3 + $0x218] sm:$0xff]
    %v4685 = vld [vmem:[#allocation3 + $0x220] sm:$0xff]
    %v4686 = vld [vmem:[#allocation3 + $0x228] sm:$0xff]
    %v4687 = vld [vmem:[#allocation3 + $0x230] sm:$0xff]
    %v4688 = vld [vmem:[#allocation3 + $0x238] sm:$0xff]
    %v4689 = vld [vmem:[#allocation3 + $0x240] sm:$0xff]
    %v4690 = vld [vmem:[#allocation3 + $0x248] sm:$0xff]
    %v4691 = vld [vmem:[#allocation3 + $0x250] sm:$0xff]
    %v4692 = vld [vmem:[#allocation3 + $0x258] sm:$0xff]
    %v4693 = vld [vmem:[#allocation3 + $0x260] sm:$0xff]
    %v4694 = vld [vmem:[#allocation3 + $0x268] sm:$0xff]
    %v4695 = vld [vmem:[#allocation3 + $0x270] sm:$0xff]
    %v4696 = vld [vmem:[#allocation3 + $0x278] sm:$0xff]
    %v4697 = vld [vmem:[#allocation3 + $0x280] sm:$0xff]
    %v4698 = vld [vmem:[#allocation3 + $0x288] sm:$0xff]
    %v4699 = vld [vmem:[#allocation3 + $0x290] sm:$0xff]
    %v4700 = vld [vmem:[#allocation3 + $0x298] sm:$0xff]
    %v4701 = vld [vmem:[#allocation3 + $0x2a0] sm:$0xff]
    %v4702 = vld [vmem:[#allocation3 + $0x2a8] sm:$0xff]
    %v4703 = vld [vmem:[#allocation3 + $0x2b0] sm:$0xff]
    %v4704 = vld [vmem:[#allocation3 + $0x2b8] sm:$0xff]
    %v4705 = vld [vmem:[#allocation3 + $0x2c0] sm:$0xff]
    %v4706 = vld [vmem:[#allocation3 + $0x2c8] sm:$0xff]
    %v4707 = vld [vmem:[#allocation3 + $0x2d0] sm:$0xff]
    %v4708 = vld [vmem:[#allocation3 + $0x2d8] sm:$0xff]
    %v4709 = vld [vmem:[#allocation3 + $0x2e0] sm:$0xff]
    %v4710 = vld [vmem:[#allocation3 + $0x2e8] sm:$0xff]
    %v4711 = vld [vmem:[#allocation3 + $0x2f0] sm:$0xff]
    %v4712 = vld [vmem:[#allocation3 + $0x2f8] sm:$0xff]
    %v4713 = vld [vmem:[#allocation3 + $0x300] sm:$0xff]
    %v4714 = vld [vmem:[#allocation3 + $0x308] sm:$0xff]
    %v4715 = vld [vmem:[#allocation3 + $0x310] sm:$0xff]
    %v4716 = vld [vmem:[#allocation3 + $0x318] sm:$0xff]
    %v4717 = vld [vmem:[#allocation3 + $0x320] sm:$0xff]
    %v4718 = vld [vmem:[#allocation3 + $0x328] sm:$0xff]
    %v4719 = vld [vmem:[#allocation3 + $0x330] sm:$0xff]
    %v4720 = vld [vmem:[#allocation3 + $0x338] sm:$0xff]
    %v4721 = vld [vmem:[#allocation3 + $0x340] sm:$0xff]
    %v4722 = vld [vmem:[#allocation3 + $0x348] sm:$0xff]
    %v4723 = vld [vmem:[#allocation3 + $0x350] sm:$0xff]
    %v4724 = vld [vmem:[#allocation3 + $0x358] sm:$0xff]
    %v4725 = vld [vmem:[#allocation3 + $0x360] sm:$0xff]
    %v4726 = vld [vmem:[#allocation3 + $0x368] sm:$0xff]
    %v4727 = vld [vmem:[#allocation3 + $0x370] sm:$0xff]
    %v4728 = vld [vmem:[#allocation3 + $0x378] sm:$0xff]
    %v4729 = vld [vmem:[#allocation3 + $0x380] sm:$0xff]
    %v4730 = vld [vmem:[#allocation3 + $0x388] sm:$0xff]
    %v4731 = vld [vmem:[#allocation3 + $0x390] sm:$0xff]
    %v4732 = vld [vmem:[#allocation3 + $0x398] sm:$0xff]
    %v4733 = vld [vmem:[#allocation3 + $0x3a0] sm:$0xff]
    %v4734 = vld [vmem:[#allocation3 + $0x3a8] sm:$0xff]
    %v4735 = vld [vmem:[#allocation3 + $0x3b0] sm:$0xff]
    %v4736 = vld [vmem:[#allocation3 + $0x3b8] sm:$0xff]
    %v4737 = vld [vmem:[#allocation3 + $0x3c0] sm:$0xff]
    %v4738 = vld [vmem:[#allocation3 + $0x3c8] sm:$0xff]
    %v4739 = vld [vmem:[#allocation3 + $0x3d0] sm:$0xff]
    %v4740 = vld [vmem:[#allocation3 + $0x3d8] sm:$0xff]
    %v4741 = vld [vmem:[#allocation3 + $0x3e0] sm:$0xff]
    %v4742 = vld [vmem:[#allocation3 + $0x3e8] sm:$0xff]
    %v4743 = vld [vmem:[#allocation3 + $0x3f0] sm:$0xff]
    %v4744 = vld [vmem:[#allocation3 + $0x3f8] sm:$0xff]
    %v4745 = vld [vmem:[#allocation3 + $0x400] sm:$0xff]
    %v4746 = vld [vmem:[#allocation3 + $0x408] sm:$0xff]
    %v4747 = vld [vmem:[#allocation3 + $0x410] sm:$0xff]
    %v4748 = vld [vmem:[#allocation3 + $0x418] sm:$0xff]
    %v4749 = vld [vmem:[#allocation3 + $0x420] sm:$0xff]
    %v4750 = vld [vmem:[#allocation3 + $0x428] sm:$0xff]
    %v4751 = vld [vmem:[#allocation3 + $0x430] sm:$0xff]
    %v4752 = vld [vmem:[#allocation3 + $0x438] sm:$0xff]
    %v4753 = vld [vmem:[#allocation3 + $0x440] sm:$0xff]
    %v4754 = vld [vmem:[#allocation3 + $0x448] sm:$0xff]
    %v4755 = vld [vmem:[#allocation3 + $0x450] sm:$0xff]
    %v4756 = vld [vmem:[#allocation3 + $0x458] sm:$0xff]
    %v4757 = vld [vmem:[#allocation3 + $0x460] sm:$0xff]
    %v4758 = vld [vmem:[#allocation3 + $0x468] sm:$0xff]
    %v4759 = vld [vmem:[#allocation3 + $0x470] sm:$0xff]
    %v4760 = vld [vmem:[#allocation3 + $0x478] sm:$0xff]
    %v4761 = vld [vmem:[#allocation3 + $0x480] sm:$0xff]
    %v4762 = vld [vmem:[#allocation3 + $0x488] sm:$0xff]
    %v4763 = vld [vmem:[#allocation3 + $0x490] sm:$0xff]
    %v4764 = vld [vmem:[#allocation3 + $0x498] sm:$0xff]
    %v4765 = vld [vmem:[#allocation3 + $0x4a0] sm:$0xff]
    %v4766 = vld [vmem:[#allocation3 + $0x4a8] sm:$0xff]
    %v4767 = vld [vmem:[#allocation3 + $0x4b0] sm:$0xff]
    %v4768 = vld [vmem:[#allocation3 + $0x4b8] sm:$0xff]
    %v4769 = vld [vmem:[#allocation3 + $0x4c0] sm:$0xff]
    %v4770 = vld [vmem:[#allocation3 + $0x4c8] sm:$0xff]
    %v4771 = vld [vmem:[#allocation3 + $0x4d0] sm:$0xff]
    %v4772 = vld [vmem:[#allocation3 + $0x4d8] sm:$0xff]
    %v4773 = vld [vmem:[#allocation3 + $0x4e0] sm:$0xff]
    %v4774 = vld [vmem:[#allocation3 + $0x4e8] sm:$0xff]
    %v4775 = vld [vmem:[#allocation3 + $0x4f0] sm:$0xff]
    %v4776 = vld [vmem:[#allocation3 + $0x4f8] sm:$0xff]
    %v4777 = vld [vmem:[#allocation3 + $0x500] sm:$0xff]
    %v4778 = vld [vmem:[#allocation3 + $0x508] sm:$0xff]
    %v4779 = vld [vmem:[#allocation3 + $0x510] sm:$0xff]
    %v4780 = vld [vmem:[#allocation3 + $0x518] sm:$0xff]
    %v4781 = vld [vmem:[#allocation3 + $0x520] sm:$0xff]
    %v4782 = vld [vmem:[#allocation3 + $0x528] sm:$0xff]
    %v4783 = vld [vmem:[#allocation3 + $0x530] sm:$0xff]
    %v4784 = vld [vmem:[#allocation3 + $0x538] sm:$0xff]
    %v4785 = vld [vmem:[#allocation3 + $0x540] sm:$0xff]
    %v4786 = vld [vmem:[#allocation3 + $0x548] sm:$0xff]
    %v4787 = vld [vmem:[#allocation3 + $0x550] sm:$0xff]
    %v4788 = vld [vmem:[#allocation3 + $0x558] sm:$0xff]
    %v4789 = vld [vmem:[#allocation3 + $0x560] sm:$0xff]
    %v4790 = vld [vmem:[#allocation3 + $0x568] sm:$0xff]
    %v4791 = vld [vmem:[#allocation3 + $0x570] sm:$0xff]
    %v4792 = vld [vmem:[#allocation3 + $0x578] sm:$0xff]
    %v4793 = vld [vmem:[#allocation3 + $0x580] sm:$0xff]
    %v4794 = vld [vmem:[#allocation3 + $0x588] sm:$0xff]
    %v4795 = vld [vmem:[#allocation3 + $0x590] sm:$0xff]
    %v4796 = vld [vmem:[#allocation3 + $0x598] sm:$0xff]
    %v4797 = vld [vmem:[#allocation3 + $0x5a0] sm:$0xff]
    %v4798 = vld [vmem:[#allocation3 + $0x5a8] sm:$0xff]
    %v4799 = vld [vmem:[#allocation3 + $0x5b0] sm:$0xff]
    %v4800 = vld [vmem:[#allocation3 + $0x5b8] sm:$0xff]
    %v4801 = vld [vmem:[#allocation3 + $0x5c0] sm:$0xff]
    %v4802 = vld [vmem:[#allocation3 + $0x5c8] sm:$0xff]
    %v4803 = vld [vmem:[#allocation3 + $0x5d0] sm:$0xff]
    %v4804 = vld [vmem:[#allocation3 + $0x5d8] sm:$0xff]
    %v4805 = vld [vmem:[#allocation3 + $0x5e0] sm:$0xff]
    %v4806 = vld [vmem:[#allocation3 + $0x5e8] sm:$0xff]
    %v4807 = vld [vmem:[#allocation3 + $0x5f0] sm:$0xff]
    %v4808 = vld [vmem:[#allocation3 + $0x5f8] sm:$0xff]
    %v4809 = vld [vmem:[#allocation3 + $0x600] sm:$0xff]
    %v4810 = vld [vmem:[#allocation3 + $0x608] sm:$0xff]
    %v4811 = vld [vmem:[#allocation3 + $0x610] sm:$0xff]
    %v4812 = vld [vmem:[#allocation3 + $0x618] sm:$0xff]
    %v4813 = vld [vmem:[#allocation3 + $0x620] sm:$0xff]
    %v4814 = vld [vmem:[#allocation3 + $0x628] sm:$0xff]
    %v4815 = vld [vmem:[#allocation3 + $0x630] sm:$0xff]
    %v4816 = vld [vmem:[#allocation3 + $0x638] sm:$0xff]
    %v4817 = vld [vmem:[#allocation3 + $0x640] sm:$0xff]
    %v4818 = vld [vmem:[#allocation3 + $0x648] sm:$0xff]
    %v4819 = vld [vmem:[#allocation3 + $0x650] sm:$0xff]
    %v4820 = vld [vmem:[#allocation3 + $0x658] sm:$0xff]
    %v4821 = vld [vmem:[#allocation3 + $0x660] sm:$0xff]
    %v4822 = vld [vmem:[#allocation3 + $0x668] sm:$0xff]
    %v4823 = vld [vmem:[#allocation3 + $0x670] sm:$0xff]
    %v4824 = vld [vmem:[#allocation3 + $0x678] sm:$0xff]
    %v4825 = vld [vmem:[#allocation3 + $0x680] sm:$0xff]
    %v4826 = vld [vmem:[#allocation3 + $0x688] sm:$0xff]
    %v4827 = vld [vmem:[#allocation3 + $0x690] sm:$0xff]
    %v4828 = vld [vmem:[#allocation3 + $0x698] sm:$0xff]
    %v4829 = vld [vmem:[#allocation3 + $0x6a0] sm:$0xff]
    %v4830 = vld [vmem:[#allocation3 + $0x6a8] sm:$0xff]
    %v4831 = vld [vmem:[#allocation3 + $0x6b0] sm:$0xff]
    %v4832 = vld [vmem:[#allocation3 + $0x6b8] sm:$0xff]
    %v4833 = vld [vmem:[#allocation3 + $0x6c0] sm:$0xff]
    %v4834 = vld [vmem:[#allocation3 + $0x6c8] sm:$0xff]
    %v4835 = vld [vmem:[#allocation3 + $0x6d0] sm:$0xff]
    %v4836 = vld [vmem:[#allocation3 + $0x6d8] sm:$0xff]
    %v4837 = vld [vmem:[#allocation3 + $0x6e0] sm:$0xff]
    %v4838 = vld [vmem:[#allocation3 + $0x6e8] sm:$0xff]
    %v4839 = vld [vmem:[#allocation3 + $0x6f0] sm:$0xff]
    %v4840 = vld [vmem:[#allocation3 + $0x6f8] sm:$0xff]
    %v4841 = vld [vmem:[#allocation3 + $0x700] sm:$0xff]
    %v4842 = vld [vmem:[#allocation3 + $0x708] sm:$0xff]
    %v4843 = vld [vmem:[#allocation3 + $0x710] sm:$0xff]
    %v4844 = vld [vmem:[#allocation3 + $0x718] sm:$0xff]
    %v4845 = vld [vmem:[#allocation3 + $0x720] sm:$0xff]
    %v4846 = vld [vmem:[#allocation3 + $0x728] sm:$0xff]
    %v4847 = vld [vmem:[#allocation3 + $0x730] sm:$0xff]
    %v4848 = vld [vmem:[#allocation3 + $0x738] sm:$0xff]
    %v4849 = vld [vmem:[#allocation3 + $0x740] sm:$0xff]
    %v4850 = vld [vmem:[#allocation3 + $0x748] sm:$0xff]
    %v4851 = vld [vmem:[#allocation3 + $0x750] sm:$0xff]
    %v4852 = vld [vmem:[#allocation3 + $0x758] sm:$0xff]
    %v4853 = vld [vmem:[#allocation3 + $0x760] sm:$0xff]
    %v4854 = vld [vmem:[#allocation3 + $0x768] sm:$0xff]
    %v4855 = vld [vmem:[#allocation3 + $0x770] sm:$0xff]
    %v4856 = vld [vmem:[#allocation3 + $0x778] sm:$0xff]
    %v4857 = vld [vmem:[#allocation3 + $0x780] sm:$0xff]
    %v4858 = vld [vmem:[#allocation3 + $0x788] sm:$0xff]
    %v4859 = vld [vmem:[#allocation3 + $0x790] sm:$0xff]
    %v4860 = vld [vmem:[#allocation3 + $0x798] sm:$0xff]
    %v4861 = vld [vmem:[#allocation3 + $0x7a0] sm:$0xff]
    %v4862 = vld [vmem:[#allocation3 + $0x7a8] sm:$0xff]
    %v4863 = vld [vmem:[#allocation3 + $0x7b0] sm:$0xff]
    %v4864 = vld [vmem:[#allocation3 + $0x7b8] sm:$0xff]
    %v4865 = vld [vmem:[#allocation3 + $0x7c0] sm:$0xff]
    %v4866 = vld [vmem:[#allocation3 + $0x7c8] sm:$0xff]
    %v4867 = vld [vmem:[#allocation3 + $0x7d0] sm:$0xff]
    %v4868 = vld [vmem:[#allocation3 + $0x7d8] sm:$0xff]
    %v4869 = vld [vmem:[#allocation3 + $0x7e0] sm:$0xff]
    %v4870 = vld [vmem:[#allocation3 + $0x7e8] sm:$0xff]
    %v4871 = vld [vmem:[#allocation3 + $0x7f0] sm:$0xff]
    %v4872 = vld [vmem:[#allocation3 + $0x7f8] sm:$0xff]
    %v4873 = vld [vmem:[#allocation3 + $0x800] sm:$0xff]
    %v4874 = vld [vmem:[#allocation3 + $0x808] sm:$0xff]
    %v4875 = vld [vmem:[#allocation3 + $0x810] sm:$0xff]
    %v4876 = vld [vmem:[#allocation3 + $0x818] sm:$0xff]
    %v4877 = vld [vmem:[#allocation3 + $0x820] sm:$0xff]
    %v4878 = vld [vmem:[#allocation3 + $0x828] sm:$0xff]
    %v4879 = vld [vmem:[#allocation3 + $0x830] sm:$0xff]
    %v4880 = vld [vmem:[#allocation3 + $0x838] sm:$0xff]
    %v4881 = vld [vmem:[#allocation3 + $0x840] sm:$0xff]
    %v4882 = vld [vmem:[#allocation3 + $0x848] sm:$0xff]
    %v4883 = vld [vmem:[#allocation3 + $0x850] sm:$0xff]
    %v4884 = vld [vmem:[#allocation3 + $0x858] sm:$0xff]
    %v4885 = vld [vmem:[#allocation3 + $0x860] sm:$0xff]
    %v4886 = vld [vmem:[#allocation3 + $0x868] sm:$0xff]
    %v4887 = vld [vmem:[#allocation3 + $0x870] sm:$0xff]
    %v4888 = vld [vmem:[#allocation3 + $0x878] sm:$0xff]
    %v4889 = vld [vmem:[#allocation3 + $0x880] sm:$0xff]
    %v4890 = vld [vmem:[#allocation3 + $0x888] sm:$0xff]
    %v4891 = vld [vmem:[#allocation3 + $0x890] sm:$0xff]
    %v4892 = vld [vmem:[#allocation3 + $0x898] sm:$0xff]
    %v4893 = vld [vmem:[#allocation3 + $0x8a0] sm:$0xff]
    %v4894 = vld [vmem:[#allocation3 + $0x8a8] sm:$0xff]
    %v4895 = vld [vmem:[#allocation3 + $0x8b0] sm:$0xff]
    %v4896 = vld [vmem:[#allocation3 + $0x8b8] sm:$0xff]
    %v4897 = vld [vmem:[#allocation3 + $0x8c0] sm:$0xff]
    %v4898 = vld [vmem:[#allocation3 + $0x8c8] sm:$0xff]
    %v4899 = vld [vmem:[#allocation3 + $0x8d0] sm:$0xff]
    %v4900 = vld [vmem:[#allocation3 + $0x8d8] sm:$0xff]
    %v4901 = vld [vmem:[#allocation3 + $0x8e0] sm:$0xff]
    %v4902 = vld [vmem:[#allocation3 + $0x8e8] sm:$0xff]
    %v4903 = vld [vmem:[#allocation3 + $0x8f0] sm:$0xff]
    %v4904 = vld [vmem:[#allocation3 + $0x8f8] sm:$0xff]
    %v4905 = vld [vmem:[#allocation3 + $0x900] sm:$0xff]
    %v4906 = vld [vmem:[#allocation3 + $0x908] sm:$0xff]
    %v4907 = vld [vmem:[#allocation3 + $0x910] sm:$0xff]
    %v4908 = vld [vmem:[#allocation3 + $0x918] sm:$0xff]
    %v4909 = vld [vmem:[#allocation3 + $0x920] sm:$0xff]
    %v4910 = vld [vmem:[#allocation3 + $0x928] sm:$0xff]
    %v4911 = vld [vmem:[#allocation3 + $0x930] sm:$0xff]
    %v4912 = vld [vmem:[#allocation3 + $0x938] sm:$0xff]
    %v4913 = vld [vmem:[#allocation3 + $0x940] sm:$0xff]
    %v4914 = vld [vmem:[#allocation3 + $0x948] sm:$0xff]
    %v4915 = vld [vmem:[#allocation3 + $0x950] sm:$0xff]
    %v4916 = vld [vmem:[#allocation3 + $0x958] sm:$0xff]
    %v4917 = vld [vmem:[#allocation3 + $0x960] sm:$0xff]
    %v4918 = vld [vmem:[#allocation3 + $0x968] sm:$0xff]
    %v4919 = vld [vmem:[#allocation3 + $0x970] sm:$0xff]
    %v4920 = vld [vmem:[#allocation3 + $0x978] sm:$0xff]
    %v4921 = vld [vmem:[#allocation3 + $0x980] sm:$0xff]
    %v4922 = vld [vmem:[#allocation3 + $0x988] sm:$0xff]
    %v4923 = vld [vmem:[#allocation3 + $0x990] sm:$0xff]
    %v4924 = vld [vmem:[#allocation3 + $0x998] sm:$0xff]
    %v4925 = vld [vmem:[#allocation3 + $0x9a0] sm:$0xff]
    %v4926 = vld [vmem:[#allocation3 + $0x9a8] sm:$0xff]
    %v4927 = vld [vmem:[#allocation3 + $0x9b0] sm:$0xff]
    %v4928 = vld [vmem:[#allocation3 + $0x9b8] sm:$0xff]
    %v4929 = vld [vmem:[#allocation3 + $0x9c0] sm:$0xff]
    %v4930 = vld [vmem:[#allocation3 + $0x9c8] sm:$0xff]
    %v4931 = vld [vmem:[#allocation3 + $0x9d0] sm:$0xff]
    %v4932 = vld [vmem:[#allocation3 + $0x9d8] sm:$0xff]
    %v4933 = vld [vmem:[#allocation3 + $0x9e0] sm:$0xff]
    %v4934 = vld [vmem:[#allocation3 + $0x9e8] sm:$0xff]
    %v4935 = vld [vmem:[#allocation3 + $0x9f0] sm:$0xff]
    %v4936 = vld [vmem:[#allocation3 + $0x9f8] sm:$0xff]
    %v4937 = vld [vmem:[#allocation3 + $0xa00] sm:$0xff]
    %v4938 = vld [vmem:[#allocation3 + $0xa08] sm:$0xff]
    %v4939 = vld [vmem:[#allocation3 + $0xa10] sm:$0xff]
    %v4940 = vld [vmem:[#allocation3 + $0xa18] sm:$0xff]
    %v4941 = vld [vmem:[#allocation3 + $0xa20] sm:$0xff]
    %v4942 = vld [vmem:[#allocation3 + $0xa28] sm:$0xff]
    %v4943 = vld [vmem:[#allocation3 + $0xa30] sm:$0xff]
    %v4944 = vld [vmem:[#allocation3 + $0xa38] sm:$0xff]
    %v4945 = vld [vmem:[#allocation3 + $0xa40] sm:$0xff]
    %v4946 = vld [vmem:[#allocation3 + $0xa48] sm:$0xff]
    %v4947 = vld [vmem:[#allocation3 + $0xa50] sm:$0xff]
    %v4948 = vld [vmem:[#allocation3 + $0xa58] sm:$0xff]
    %v4949 = vld [vmem:[#allocation3 + $0xa60] sm:$0xff]
    %v4950 = vld [vmem:[#allocation3 + $0xa68] sm:$0xff]
    %v4951 = vld [vmem:[#allocation3 + $0xa70] sm:$0xff]
    %v4952 = vld [vmem:[#allocation3 + $0xa78] sm:$0xff]
    %v4953 = vld [vmem:[#allocation3 + $0xa80] sm:$0xff]
    %v4954 = vld [vmem:[#allocation3 + $0xa88] sm:$0xff]
    %v4955 = vld [vmem:[#allocation3 + $0xa90] sm:$0xff]
    %v4956 = vld [vmem:[#allocation3 + $0xa98] sm:$0xff]
    %v4957 = vld [vmem:[#allocation3 + $0xaa0] sm:$0xff]
    %v4958 = vld [vmem:[#allocation3 + $0xaa8] sm:$0xff]
    %v4959 = vld [vmem:[#allocation3 + $0xab0] sm:$0xff]
    %v4960 = vld [vmem:[#allocation3 + $0xab8] sm:$0xff]
    %v4961 = vld [vmem:[#allocation3 + $0xac0] sm:$0xff]
    %v4962 = vld [vmem:[#allocation3 + $0xac8] sm:$0xff]
    %v4963 = vld [vmem:[#allocation3 + $0xad0] sm:$0xff]
    %v4964 = vld [vmem:[#allocation3 + $0xad8] sm:$0xff]
    %v4965 = vld [vmem:[#allocation3 + $0xae0] sm:$0xff]
    %v4966 = vld [vmem:[#allocation3 + $0xae8] sm:$0xff]
    %v4967 = vld [vmem:[#allocation3 + $0xaf0] sm:$0xff]
    %v4968 = vld [vmem:[#allocation3 + $0xaf8] sm:$0xff]
    %v4969 = vld [vmem:[#allocation3 + $0xb00] sm:$0xff]
    %v4970 = vld [vmem:[#allocation3 + $0xb08] sm:$0xff]
    %v4971 = vld [vmem:[#allocation3 + $0xb10] sm:$0xff]
    %v4972 = vld [vmem:[#allocation3 + $0xb18] sm:$0xff]
    %v4973 = vld [vmem:[#allocation3 + $0xb20] sm:$0xff]
    %v4974 = vld [vmem:[#allocation3 + $0xb28] sm:$0xff]
    %v4975 = vld [vmem:[#allocation3 + $0xb30] sm:$0xff]
    %v4976 = vld [vmem:[#allocation3 + $0xb38] sm:$0xff]
    %v4977 = vld [vmem:[#allocation3 + $0xb40] sm:$0xff]
    %v4978 = vld [vmem:[#allocation3 + $0xb48] sm:$0xff]
    %v4979 = vld [vmem:[#allocation3 + $0xb50] sm:$0xff]
    %v4980 = vld [vmem:[#allocation3 + $0xb58] sm:$0xff]
    %v4981 = vld [vmem:[#allocation3 + $0xb60] sm:$0xff]
    %v4982 = vld [vmem:[#allocation3 + $0xb68] sm:$0xff]
    %v4983 = vld [vmem:[#allocation3 + $0xb70] sm:$0xff]
    %v4984 = vld [vmem:[#allocation3 + $0xb78] sm:$0xff]
    %v4985 = vld [vmem:[#allocation3 + $0xb80] sm:$0xff]
    %v4986 = vld [vmem:[#allocation3 + $0xb88] sm:$0xff]
    %v4987 = vld [vmem:[#allocation3 + $0xb90] sm:$0xff]
    %v4988 = vld [vmem:[#allocation3 + $0xb98] sm:$0xff]
    %v4989 = vld [vmem:[#allocation3 + $0xba0] sm:$0xff]
    %v4990 = vld [vmem:[#allocation3 + $0xba8] sm:$0xff]
    %v4991 = vld [vmem:[#allocation3 + $0xbb0] sm:$0xff]
    %v4992 = vld [vmem:[#allocation3 + $0xbb8] sm:$0xff]
    %v4993 = vld [vmem:[#allocation3 + $0xbc0] sm:$0xff]
    %v4994 = vld [vmem:[#allocation3 + $0xbc8] sm:$0xff]
    %v4995 = vld [vmem:[#allocation3 + $0xbd0] sm:$0xff]
    %v4996 = vld [vmem:[#allocation3 + $0xbd8] sm:$0xff]
    %v4997 = vld [vmem:[#allocation3 + $0xbe0] sm:$0xff]
    %v4998 = vld [vmem:[#allocation3 + $0xbe8] sm:$0xff]
    %v4999 = vld [vmem:[#allocation3 + $0xbf0] sm:$0xff]
    %v5000 = vld [vmem:[#allocation3 + $0xbf8] sm:$0xff]
    %v5001 = vld [vmem:[#allocation3 + $0xc00] sm:$0xff]
    %v5002 = vld [vmem:[#allocation3 + $0xc08] sm:$0xff]
    %v5003 = vld [vmem:[#allocation3 + $0xc10] sm:$0xff]
    %v5004 = vld [vmem:[#allocation3 + $0xc18] sm:$0xff]
    %v5005 = vld [vmem:[#allocation3 + $0xc20] sm:$0xff]
    %v5006 = vld [vmem:[#allocation3 + $0xc28] sm:$0xff]
    %v5007 = vld [vmem:[#allocation3 + $0xc30] sm:$0xff]
    %v5008 = vld [vmem:[#allocation3 + $0xc38] sm:$0xff]
    %v5009 = vld [vmem:[#allocation3 + $0xc40] sm:$0xff]
    %v5010 = vld [vmem:[#allocation3 + $0xc48] sm:$0xff]
    %v5011 = vld [vmem:[#allocation3 + $0xc50] sm:$0xff]
    %v5012 = vld [vmem:[#allocation3 + $0xc58] sm:$0xff]
    %v5013 = vld [vmem:[#allocation3 + $0xc60] sm:$0xff]
    %v5014 = vld [vmem:[#allocation3 + $0xc68] sm:$0xff]
    %v5015 = vld [vmem:[#allocation3 + $0xc70] sm:$0xff]
    %v5016 = vld [vmem:[#allocation3 + $0xc78] sm:$0xff]
    %v5017 = vld [vmem:[#allocation3 + $0xc80] sm:$0xff]
    %v5018 = vld [vmem:[#allocation3 + $0xc88] sm:$0xff]
    %v5019 = vld [vmem:[#allocation3 + $0xc90] sm:$0xff]
    %v5020 = vld [vmem:[#allocation3 + $0xc98] sm:$0xff]
    %v5021 = vld [vmem:[#allocation3 + $0xca0] sm:$0xff]
    %v5022 = vld [vmem:[#allocation3 + $0xca8] sm:$0xff]
    %v5023 = vld [vmem:[#allocation3 + $0xcb0] sm:$0xff]
    %v5024 = vld [vmem:[#allocation3 + $0xcb8] sm:$0xff]
    %v5025 = vld [vmem:[#allocation3 + $0xcc0] sm:$0xff]
    %v5026 = vld [vmem:[#allocation3 + $0xcc8] sm:$0xff]
    %v5027 = vld [vmem:[#allocation3 + $0xcd0] sm:$0xff]
    %v5028 = vld [vmem:[#allocation3 + $0xcd8] sm:$0xff]
    %v5029 = vld [vmem:[#allocation3 + $0xce0] sm:$0xff]
    %v5030 = vld [vmem:[#allocation3 + $0xce8] sm:$0xff]
    %v5031 = vld [vmem:[#allocation3 + $0xcf0] sm:$0xff]
    %v5032 = vld [vmem:[#allocation3 + $0xcf8] sm:$0xff]
    %v5033 = vld [vmem:[#allocation3 + $0xd00] sm:$0xff]
    %v5034 = vld [vmem:[#allocation3 + $0xd08] sm:$0xff]
    %v5035 = vld [vmem:[#allocation3 + $0xd10] sm:$0xff]
    %v5036 = vld [vmem:[#allocation3 + $0xd18] sm:$0xff]
    %v5037 = vld [vmem:[#allocation3 + $0xd20] sm:$0xff]
    %v5038 = vld [vmem:[#allocation3 + $0xd28] sm:$0xff]
    %v5039 = vld [vmem:[#allocation3 + $0xd30] sm:$0xff]
    %v5040 = vld [vmem:[#allocation3 + $0xd38] sm:$0xff]
    %v5041 = vld [vmem:[#allocation3 + $0xd40] sm:$0xff]
    %v5042 = vld [vmem:[#allocation3 + $0xd48] sm:$0xff]
    %v5043 = vld [vmem:[#allocation3 + $0xd50] sm:$0xff]
    %v5044 = vld [vmem:[#allocation3 + $0xd58] sm:$0xff]
    %v5045 = vld [vmem:[#allocation3 + $0xd60] sm:$0xff]
    %v5046 = vld [vmem:[#allocation3 + $0xd68] sm:$0xff]
    %v5047 = vld [vmem:[#allocation3 + $0xd70] sm:$0xff]
    %v5048 = vld [vmem:[#allocation3 + $0xd78] sm:$0xff]
    %v5049 = vld [vmem:[#allocation3 + $0xd80] sm:$0xff]
    %v5050 = vld [vmem:[#allocation3 + $0xd88] sm:$0xff]
    %v5051 = vld [vmem:[#allocation3 + $0xd90] sm:$0xff]
    %v5052 = vld [vmem:[#allocation3 + $0xd98] sm:$0xff]
    %v5053 = vld [vmem:[#allocation3 + $0xda0] sm:$0xff]
    %v5054 = vld [vmem:[#allocation3 + $0xda8] sm:$0xff]
    %v5055 = vld [vmem:[#allocation3 + $0xdb0] sm:$0xff]
    %v5056 = vld [vmem:[#allocation3 + $0xdb8] sm:$0xff]
    %v5057 = vld [vmem:[#allocation3 + $0xdc0] sm:$0xff]
    %v5058 = vld [vmem:[#allocation3 + $0xdc8] sm:$0xff]
    %v5059 = vld [vmem:[#allocation3 + $0xdd0] sm:$0xff]
    %v5060 = vld [vmem:[#allocation3 + $0xdd8] sm:$0xff]
    %v5061 = vld [vmem:[#allocation3 + $0xde0] sm:$0xff]
    %v5062 = vld [vmem:[#allocation3 + $0xde8] sm:$0xff]
    %v5063 = vld [vmem:[#allocation3 + $0xdf0] sm:$0xff]
    %v5064 = vld [vmem:[#allocation3 + $0xdf8] sm:$0xff]
    %v5065 = vld [vmem:[#allocation22] sm:$0xff]
    %v5067 = vlaneseq
    %v5068 = vshrl.u32 %v5067, 7
    %v5069 = vsub.s32 0, %v5068
    %v5070 = vrot.slane %v5065, %v5069
    %v5071 = vlaneseq
    %v5072 = vshrl.u32 %v5071, 7
    %v5073 = vsub.s32 1, %v5072
    %v5074 = vrot.slane %v5065, %v5073
    %v5075 = vlaneseq
    %v5076 = vshrl.u32 %v5075, 7
    %v5077 = vsub.s32 2, %v5076
    %v5078 = vrot.slane %v5065, %v5077
    %v5079 = vlaneseq
    %v5080 = vshrl.u32 %v5079, 7
    %v5081 = vsub.s32 3, %v5080
    %v5082 = vrot.slane %v5065, %v5081
    %v5083 = vlaneseq
    %v5084 = vshrl.u32 %v5083, 7
    %v5085 = vsub.s32 4, %v5084
    %v5086 = vrot.slane %v5065, %v5085
    %v5087 = vlaneseq
    %v5088 = vshrl.u32 %v5087, 7
    %v5089 = vsub.s32 5, %v5088
    %v5090 = vrot.slane %v5065, %v5089
    %v5091 = vlaneseq
    %v5092 = vshrl.u32 %v5091, 7
    %v5093 = vsub.s32 6, %v5092
    %v5094 = vrot.slane %v5065, %v5093
    %5102 = vmatprep.subr.bf16.mxu0 %v4618
    %5103 = vmatpush1.bf16.msra.mxu0 %v4617
    %5104 = vmatprep.subr.bf16.mxu0 %v4625
    %5105 = vmatpush1.bf16.msra.mxu0 %v4624
    %5106 = vmatprep.subr.bf16.mxu0 %v4632
    %5107 = vmatpush1.bf16.msra.mxu0 %v4631
    %5108 = vmatprep.subr.bf16.mxu0 %v4639
    %5109 = vmatpush1.bf16.msra.mxu0 %v4638
    %5110 = vmatprep.subr.bf16.mxu0 %v4646
    %5111 = vmatpush1.bf16.msra.mxu0 %v4645
    %5112 = vmatprep.subr.bf16.mxu0 %v4653
    %5113 = vmatpush1.bf16.msra.mxu0 %v4652
    %5114 = vmatprep.subr.bf16.mxu0 %v4660
    %5115 = vmatpush1.bf16.msra.mxu0 %v4659
    %5116 = vmatprep.subr.bf16.mxu0 %v4667
    %5117 = vmatpush1.bf16.msra.mxu0 %v4666
    %5118 = vmatprep.subr.bf16.mxu0 %v4674
    %5119 = vmatpush1.bf16.msra.mxu0 %v4673
    %5120 = vmatprep.subr.bf16.mxu0 %v4681
    %5121 = vmatpush1.bf16.msra.mxu0 %v4680
    %5122 = vmatprep.subr.bf16.mxu0 %v4688
    %5123 = vmatpush1.bf16.msra.mxu0 %v4687
    %5124 = vmatprep.subr.bf16.mxu0 %v4695
    %5125 = vmatpush1.bf16.msra.mxu0 %v4694
    %5126 = vmatprep.subr.bf16.mxu0 %v4702
    %5127 = vmatpush1.bf16.msra.mxu0 %v4701
    %5128 = vmatprep.subr.bf16.mxu0 %v4709
    %5129 = vmatpush1.bf16.msra.mxu0 %v4708
    %5130 = vmatprep.subr.bf16.mxu0 %v4716
    %5131 = vmatpush1.bf16.msra.mxu0 %v4715
    %5132 = vmatprep.subr.bf16.mxu0 %v4723
    %5133 = vmatpush1.bf16.msra.mxu0 %v4722
    %5134 = vmatprep.mubr.bf16.mxu0 %v4550
    %5135 = vmatmul.mubr.bf16.gmra.mrb[0].mxu0 %v4549
    %v5136 = vpop.f32.mrb[0].mxu0
    %v5137 = vadd.f32 %v5070, %v5136
    %v5138 = vpop.f32.mrb[0].mxu0
    %v5139 = vadd.f32 %v5074, %v5138
    %v5140 = vpop.f32.mrb[0].mxu0
    %v5141 = vadd.f32 %v5070, %v5140
    %v5142 = vpop.f32.mrb[0].mxu0
    %v5143 = vadd.f32 %v5074, %v5142
    %5144 = vmatprep.mubr.bf16.mxu0 %v4558
    %5145 = vmatmul.mubr.bf16.gmra.mrb[0].mxu0 %v4557
    %v5146 = vpop.f32.mrb[0].mxu0
    %v5147 = vadd.f32 %v5070, %v5146
    %v5148 = vpop.f32.mrb[0].mxu0
    %v5149 = vadd.f32 %v5074, %v5148
    %v5150 = vpop.f32.mrb[0].mxu0
    %v5151 = vadd.f32 %v5070, %v5150
    %v5152 = vpop.f32.mrb[0].mxu0
    %v5153 = vadd.f32 %v5074, %v5152
    %5154 = vmatprep.mubr.bf16.mxu0 %v4566
    %5155 = vmatmul.mubr.bf16.gmra.mrb[0].mxu0 %v4565
    %v5156 = vpop.f32.mrb[0].mxu0
    %v5157 = vadd.f32 %v5070, %v5156
    %v5158 = vpop.f32.mrb[0].mxu0
    %v5159 = vadd.f32 %v5074, %v5158
    %v5160 = vpop.f32.mrb[0].mxu0
    %v5161 = vadd.f32 %v5070, %v5160
    %v5162 = vpop.f32.mrb[0].mxu0
    %v5163 = vadd.f32 %v5074, %v5162
    %5164 = vmatprep.mubr.bf16.mxu0 %v4574
    %5165 = vmatmul.mubr.bf16.gmra.mrb[0].mxu0 %v4573
    %v5166 = vpop.f32.mrb[0].mxu0
    %v5167 = vadd.f32 %v5070, %v5166
    %v5168 = vpop.f32.mrb[0].mxu0
    %v5169 = vadd.f32 %v5074, %v5168
    %v5170 = vpop.f32.mrb[0].mxu0
    %v5171 = vadd.f32 %v5070, %v5170
    %v5172 = vpop.f32.mrb[0].mxu0
    %v5173 = vadd.f32 %v5074, %v5172
    %5174 = vmatprep.mubr.bf16.mxu0 %v4582
    %5175 = vmatmul.mubr.bf16.gmra.mrb[0].mxu0 %v4581
    %v5176 = vpop.f32.mrb[0].mxu0
    %v5177 = vadd.f32 %v5070, %v5176
    %v5178 = vpop.f32.mrb[0].mxu0
    %v5179 = vadd.f32 %v5074, %v5178
    %v5180 = vpop.f32.mrb[0].mxu0
    %v5181 = vadd.f32 %v5070, %v5180
    %v5182 = vpop.f32.mrb[0].mxu0
    %v5183 = vadd.f32 %v5074, %v5182
    %5184 = vmatprep.mubr.bf16.mxu0 %v4590
    %5185 = vmatmul.mubr.bf16.gmra.mrb[0].mxu0 %v4589
    %v5186 = vpop.f32.mrb[0].mxu0
    %v5187 = vadd.f32 %v5070, %v5186
    %v5188 = vpop.f32.mrb[0].mxu0
    %v5189 = vadd.f32 %v5074, %v5188
    %v5190 = vpop.f32.mrb[0].mxu0
    %v5191 = vadd.f32 %v5070, %v5190
    %v5192 = vpop.f32.mrb[0].mxu0
    %v5193 = vadd.f32 %v5074, %v5192
    %5194 = vmatprep.mubr.bf16.mxu0 %v4598
    %5195 = vmatmul.mubr.bf16.gmra.mrb[0].mxu0 %v4597
    %v5196 = vpop.f32.mrb[0].mxu0
    %v5197 = vadd.f32 %v5070, %v5196
    %v5198 = vpop.f32.mrb[0].mxu0
    %v5199 = vadd.f32 %v5074, %v5198
    %v5200 = vpop.f32.mrb[0].mxu0
    %v5201 = vadd.f32 %v5070, %v5200
    %v5202 = vpop.f32.mrb[0].mxu0
    %v5203 = vadd.f32 %v5074, %v5202
    %5204 = vmatprep.mubr.bf16.mxu0 %v4606
    %5205 = vmatmul.mubr.bf16.gmra.mrb[0].mxu0 %v4605
    %v5206 = vpop.f32.mrb[0].mxu0
    %v5207 = vadd.f32 %v5070, %v5206
    %v5208 = vpop.f32.mrb[0].mxu0
    %v5209 = vadd.f32 %v5074, %v5208
    %v5210 = vpop.f32.mrb[0].mxu0
    %v5211 = vadd.f32 %v5070, %v5210
    %v5212 = vpop.f32.mrb[0].mxu0
    %v5213 = vadd.f32 %v5074, %v5212
    %5214 = vdwg.mxu0
    %5215 = vmatprep.subr.bf16.mxu0 %v4730
    %5216 = vmatpush1.bf16.msra.mxu0 %v4729
    %5217 = vmatprep.subr.bf16.mxu0 %v4737
    %5218 = vmatpush1.bf16.msra.mxu0 %v4736
    %5219 = vmatprep.subr.bf16.mxu0 %v4744
    %5220 = vmatpush1.bf16.msra.mxu0 %v4743
    %5221 = vmatprep.subr.bf16.mxu0 %v4751
    %5222 = vmatpush1.bf16.msra.mxu0 %v4750
    %5223 = vmatprep.subr.bf16.mxu0 %v4758
    %5224 = vmatpush1.bf16.msra.mxu0 %v4757
    %5225 = vmatprep.subr.bf16.mxu0 %v4765
    %5226 = vmatpush1.bf16.msra.mxu0 %v4764
    %5227 = vmatprep.subr.bf16.mxu0 %v4772
    %5228 = vmatpush1.bf16.msra.mxu0 %v4771
    %5229 = vmatprep.subr.bf16.mxu0 %v4779
    %5230 = vmatpush1.bf16.msra.mxu0 %v4778
    %5231 = vmatprep.subr.bf16.mxu0 %v4786
    %5232 = vmatpush1.bf16.msra.mxu0 %v4785
    %5233 = vmatprep.subr.bf16.mxu0 %v4793
    %5234 = vmatpush1.bf16.msra.mxu0 %v4792
    %5235 = vmatprep.subr.bf16.mxu0 %v4800
    %5236 = vmatpush1.bf16.msra.mxu0 %v4799
    %5237 = vmatprep.subr.bf16.mxu0 %v4807
    %5238 = vmatpush1.bf16.msra.mxu0 %v4806
    %5239 = vmatprep.subr.bf16.mxu0 %v4814
    %5240 = vmatpush1.bf16.msra.mxu0 %v4813
    %5241 = vmatprep.subr.bf16.mxu0 %v4821
    %5242 = vmatpush1.bf16.msra.mxu0 %v4820
    %5243 = vmatprep.subr.bf16.mxu0 %v4828
    %5244 = vmatpush1.bf16.msra.mxu0 %v4827
    %5245 = vmatprep.subr.bf16.mxu0 %v4835
    %5246 = vmatpush1.bf16.msra.mxu0 %v4834
    %5247 = vmatprep.mubr.bf16.mxu0 %v4552
    %5248 = vmatmul.mubr.bf16.gmra.mrb[0].mxu0 %v4551
    %v5249 = vpop.f32.mrb[0].mxu0
    %v5250 = vadd.f32 %v5137, %v5249
    %v5251 = vpop.f32.mrb[0].mxu0
    %v5252 = vadd.f32 %v5139, %v5251
    %v5253 = vpop.f32.mrb[0].mxu0
    %v5254 = vadd.f32 %v5141, %v5253
    %v5255 = vpop.f32.mrb[0].mxu0
    %v5256 = vadd.f32 %v5143, %v5255
    %5257 = vmatprep.mubr.bf16.mxu0 %v4560
    %5258 = vmatmul.mubr.bf16.gmra.mrb[0].mxu0 %v4559
    %v5259 = vpop.f32.mrb[0].mxu0
    %v5260 = vadd.f32 %v5147, %v5259
    %v5261 = vpop.f32.mrb[0].mxu0
    %v5262 = vadd.f32 %v5149, %v5261
    %v5263 = vpop.f32.mrb[0].mxu0
    %v5264 = vadd.f32 %v5151, %v5263
    %v5265 = vpop.f32.mrb[0].mxu0
    %v5266 = vadd.f32 %v5153, %v5265
    %5267 = vmatprep.mubr.bf16.mxu0 %v4568
    %5268 = vmatmul.mubr.bf16.gmra.mrb[0].mxu0 %v4567
    %v5269 = vpop.f32.mrb[0].mxu0
    %v5270 = vadd.f32 %v5157, %v5269
    %v5271 = vpop.f32.mrb[0].mxu0
    %v5272 = vadd.f32 %v5159, %v5271
    %v5273 = vpop.f32.mrb[0].mxu0
    %v5274 = vadd.f32 %v5161, %v5273
    %v5275 = vpop.f32.mrb[0].mxu0
    %v5276 = vadd.f32 %v5163, %v5275
    %5277 = vmatprep.mubr.bf16.mxu0 %v4576
    %5278 = vmatmul.mubr.bf16.gmra.mrb[0].mxu0 %v4575
    %v5279 = vpop.f32.mrb[0].mxu0
    %v5280 = vadd.f32 %v5167, %v5279
    %v5281 = vpop.f32.mrb[0].mxu0
    %v5282 = vadd.f32 %v5169, %v5281
    %v5283 = vpop.f32.mrb[0].mxu0
    %v5284 = vadd.f32 %v5171, %v5283
    %v5285 = vpop.f32.mrb[0].mxu0
    %v5286 = vadd.f32 %v5173, %v5285
    %5287 = vmatprep.mubr.bf16.mxu0 %v4584
    %5288 = vmatmul.mubr.bf16.gmra.mrb[0].mxu0 %v4583
    %v5289 = vpop.f32.mrb[0].mxu0
    %v5290 = vadd.f32 %v5177, %v5289
    %v5291 = vpop.f32.mrb[0].mxu0
    %v5292 = vadd.f32 %v5179, %v5291
    %v5293 = vpop.f32.mrb[0].mxu0
    %v5294 = vadd.f32 %v5181, %v5293
    %v5295 = vpop.f32.mrb[0].mxu0
    %v5296 = vadd.f32 %v5183, %v5295
    %5297 = vmatprep.mubr.bf16.mxu0 %v4592
    %5298 = vmatmul.mubr.bf16.gmra.mrb[0].mxu0 %v4591
    %v5299 = vpop.f32.mrb[0].mxu0
    %v5300 = vadd.f32 %v5187, %v5299
    %v5301 = vpop.f32.mrb[0].mxu0
    %v5302 = vadd.f32 %v5189, %v5301
    %v5303 = vpop.f32.mrb[0].mxu0
    %v5304 = vadd.f32 %v5191, %v5303
    %v5305 = vpop.f32.mrb[0].mxu0
    %v5306 = vadd.f32 %v5193, %v5305
    %5307 = vmatprep.mubr.bf16.mxu0 %v4600
    %5308 = vmatmul.mubr.bf16.gmra.mrb[0].mxu0 %v4599
    %v5309 = vpop.f32.mrb[0].mxu0
    %v5310 = vadd.f32 %v5197, %v5309
    %v5311 = vpop.f32.mrb[0].mxu0
    %v5312 = vadd.f32 %v5199, %v5311
    %v5313 = vpop.f32.mrb[0].mxu0
    %v5314 = vadd.f32 %v5201, %v5313
    %v5315 = vpop.f32.mrb[0].mxu0
    %v5316 = vadd.f32 %v5203, %v5315
    %5317 = vmatprep.mubr.bf16.mxu0 %v4608
    %5318 = vmatmul.mubr.bf16.gmra.mrb[0].mxu0 %v4607
    %v5319 = vpop.f32.mrb[0].mxu0
    %v5320 = vadd.f32 %v5207, %v5319
    %v5321 = vpop.f32.mrb[0].mxu0
    %v5322 = vadd.f32 %v5209, %v5321
    %v5323 = vpop.f32.mrb[0].mxu0
    %v5324 = vadd.f32 %v5211, %v5323
    %v5325 = vpop.f32.mrb[0].mxu0
    %v5326 = vadd.f32 %v5213, %v5325
    %5327 = vdwg.mxu0
    %5328 = vmatprep.subr.bf16.mxu0 %v4842
    %5329 = vmatpush1.bf16.msra.mxu0 %v4841
    %5330 = vmatprep.subr.bf16.mxu0 %v4849
    %5331 = vmatpush1.bf16.msra.mxu0 %v4848
    %5332 = vmatprep.subr.bf16.mxu0 %v4856
    %5333 = vmatpush1.bf16.msra.mxu0 %v4855
    %5334 = vmatprep.subr.bf16.mxu0 %v4863
    %5335 = vmatpush1.bf16.msra.mxu0 %v4862
    %5336 = vmatprep.subr.bf16.mxu0 %v4870
    %5337 = vmatpush1.bf16.msra.mxu0 %v4869
    %5338 = vmatprep.subr.bf16.mxu0 %v4877
    %5339 = vmatpush1.bf16.msra.mxu0 %v4876
    %5340 = vmatprep.subr.bf16.mxu0 %v4884
    %5341 = vmatpush1.bf16.msra.mxu0 %v4883
    %5342 = vmatprep.subr.bf16.mxu0 %v4891
    %5343 = vmatpush1.bf16.msra.mxu0 %v4890
    %5344 = vmatprep.subr.bf16.mxu0 %v4898
    %5345 = vmatpush1.bf16.msra.mxu0 %v4897
    %5346 = vmatprep.subr.bf16.mxu0 %v4905
    %5347 = vmatpush1.bf16.msra.mxu0 %v4904
    %5348 = vmatprep.subr.bf16.mxu0 %v4912
    %5349 = vmatpush1.bf16.msra.mxu0 %v4911
    %5350 = vmatprep.subr.bf16.mxu0 %v4919
    %5351 = vmatpush1.bf16.msra.mxu0 %v4918
    %5352 = vmatprep.subr.bf16.mxu0 %v4926
    %5353 = vmatpush1.bf16.msra.mxu0 %v4925
    %5354 = vmatprep.subr.bf16.mxu0 %v4933
    %5355 = vmatpush1.bf16.msra.mxu0 %v4932
    %5356 = vmatprep.subr.bf16.mxu0 %v4940
    %5357 = vmatpush1.bf16.msra.mxu0 %v4939
    %5358 = vmatprep.subr.bf16.mxu0 %v4947
    %5359 = vmatpush1.bf16.msra.mxu0 %v4946
    %5360 = vmatprep.mubr.bf16.mxu0 %v4554
    %5361 = vmatmul.mubr.bf16.gmra.mrb[0].mxu0 %v4553
    %v5362 = vpop.f32.mrb[0].mxu0
    %v5363 = vadd.f32 %v5250, %v5362
    %v5364 = vpop.f32.mrb[0].mxu0
    %v5365 = vadd.f32 %v5252, %v5364
    %v5366 = vpop.f32.mrb[0].mxu0
    %v5367 = vadd.f32 %v5254, %v5366
    %v5368 = vpop.f32.mrb[0].mxu0
    %v5369 = vadd.f32 %v5256, %v5368
    %5370 = vmatprep.mubr.bf16.mxu0 %v4562
    %5371 = vmatmul.mubr.bf16.gmra.mrb[0].mxu0 %v4561
    %v5372 = vpop.f32.mrb[0].mxu0
    %v5373 = vadd.f32 %v5260, %v5372
    %v5374 = vpop.f32.mrb[0].mxu0
    %v5375 = vadd.f32 %v5262, %v5374
    %v5376 = vpop.f32.mrb[0].mxu0
    %v5377 = vadd.f32 %v5264, %v5376
    %v5378 = vpop.f32.mrb[0].mxu0
    %v5379 = vadd.f32 %v5266, %v5378
    %5380 = vmatprep.mubr.bf16.mxu0 %v4570
    %5381 = vmatmul.mubr.bf16.gmra.mrb[0].mxu0 %v4569
    %v5382 = vpop.f32.mrb[0].mxu0
    %v5383 = vadd.f32 %v5270, %v5382
    %v5384 = vpop.f32.mrb[0].mxu0
    %v5385 = vadd.f32 %v5272, %v5384
    %v5386 = vpop.f32.mrb[0].mxu0
    %v5387 = vadd.f32 %v5274, %v5386
    %v5388 = vpop.f32.mrb[0].mxu0
    %v5389 = vadd.f32 %v5276, %v5388
    %5390 = vmatprep.mubr.bf16.mxu0 %v4578
    %5391 = vmatmul.mubr.bf16.gmra.mrb[0].mxu0 %v4577
    %v5392 = vpop.f32.mrb[0].mxu0
    %v5393 = vadd.f32 %v5280, %v5392
    %v5394 = vpop.f32.mrb[0].mxu0
    %v5395 = vadd.f32 %v5282, %v5394
    %v5396 = vpop.f32.mrb[0].mxu0
    %v5397 = vadd.f32 %v5284, %v5396
    %v5398 = vpop.f32.mrb[0].mxu0
    %v5399 = vadd.f32 %v5286, %v5398
    %5400 = vmatprep.mubr.bf16.mxu0 %v4586
    %5401 = vmatmul.mubr.bf16.gmra.mrb[0].mxu0 %v4585
    %v5402 = vpop.f32.mrb[0].mxu0
    %v5403 = vadd.f32 %v5290, %v5402
    %v5404 = vpop.f32.mrb[0].mxu0
    %v5405 = vadd.f32 %v5292, %v5404
    %v5406 = vpop.f32.mrb[0].mxu0
    %v5407 = vadd.f32 %v5294, %v5406
    %v5408 = vpop.f32.mrb[0].mxu0
    %v5409 = vadd.f32 %v5296, %v5408
    %5410 = vmatprep.mubr.bf16.mxu0 %v4594
    %5411 = vmatmul.mubr.bf16.gmra.mrb[0].mxu0 %v4593
    %v5412 = vpop.f32.mrb[0].mxu0
    %v5413 = vadd.f32 %v5300, %v5412
    %v5414 = vpop.f32.mrb[0].mxu0
    %v5415 = vadd.f32 %v5302, %v5414
    %v5416 = vpop.f32.mrb[0].mxu0
    %v5417 = vadd.f32 %v5304, %v5416
    %v5418 = vpop.f32.mrb[0].mxu0
    %v5419 = vadd.f32 %v5306, %v5418
    %5420 = vmatprep.mubr.bf16.mxu0 %v4602
    %5421 = vmatmul.mubr.bf16.gmra.mrb[0].mxu0 %v4601
    %v5422 = vpop.f32.mrb[0].mxu0
    %v5423 = vadd.f32 %v5310, %v5422
    %v5424 = vpop.f32.mrb[0].mxu0
    %v5425 = vadd.f32 %v5312, %v5424
    %v5426 = vpop.f32.mrb[0].mxu0
    %v5427 = vadd.f32 %v5314, %v5426
    %v5428 = vpop.f32.mrb[0].mxu0
    %v5429 = vadd.f32 %v5316, %v5428
    %5430 = vmatprep.mubr.bf16.mxu0 %v4610
    %5431 = vmatmul.mubr.bf16.gmra.mrb[0].mxu0 %v4609
    %v5432 = vpop.f32.mrb[0].mxu0
    %v5433 = vadd.f32 %v5320, %v5432
    %v5434 = vpop.f32.mrb[0].mxu0
    %v5435 = vadd.f32 %v5322, %v5434
    %v5436 = vpop.f32.mrb[0].mxu0
    %v5437 = vadd.f32 %v5324, %v5436
    %v5438 = vpop.f32.mrb[0].mxu0
    %v5439 = vadd.f32 %v5326, %v5438
    %5440 = vdwg.mxu0
    %5441 = vmatprep.subr.bf16.mxu0 %v4954
    %5442 = vmatpush1.bf16.msra.mxu0 %v4953
    %5443 = vmatprep.subr.bf16.mxu0 %v4961
    %5444 = vmatpush1.bf16.msra.mxu0 %v4960
    %5445 = vmatprep.subr.bf16.mxu0 %v4968
    %5446 = vmatpush1.bf16.msra.mxu0 %v4967
    %5447 = vmatprep.subr.bf16.mxu0 %v4975
    %5448 = vmatpush1.bf16.msra.mxu0 %v4974
    %5449 = vmatprep.subr.bf16.mxu0 %v4982
    %5450 = vmatpush1.bf16.msra.mxu0 %v4981
    %5451 = vmatprep.subr.bf16.mxu0 %v4989
    %5452 = vmatpush1.bf16.msra.mxu0 %v4988
    %5453 = vmatprep.subr.bf16.mxu0 %v4996
    %5454 = vmatpush1.bf16.msra.mxu0 %v4995
    %5455 = vmatprep.subr.bf16.mxu0 %v5003
    %5456 = vmatpush1.bf16.msra.mxu0 %v5002
    %5457 = vmatprep.subr.bf16.mxu0 %v5010
    %5458 = vmatpush1.bf16.msra.mxu0 %v5009
    %5459 = vmatprep.subr.bf16.mxu0 %v5017
    %5460 = vmatpush1.bf16.msra.mxu0 %v5016
    %5461 = vmatprep.subr.bf16.mxu0 %v5024
    %5462 = vmatpush1.bf16.msra.mxu0 %v5023
    %5463 = vmatprep.subr.bf16.mxu0 %v5031
    %5464 = vmatpush1.bf16.msra.mxu0 %v5030
    %5465 = vmatprep.subr.bf16.mxu0 %v5038
    %5466 = vmatpush1.bf16.msra.mxu0 %v5037
    %5467 = vmatprep.subr.bf16.mxu0 %v5045
    %5468 = vmatpush1.bf16.msra.mxu0 %v5044
    %5469 = vmatprep.subr.bf16.mxu0 %v5052
    %5470 = vmatpush1.bf16.msra.mxu0 %v5051
    %5471 = vmatprep.subr.bf16.mxu0 %v5059
    %5472 = vmatpush1.bf16.msra.mxu0 %v5058
    %5473 = vmatprep.mubr.bf16.mxu0 %v4556
    %5474 = vmatmul.mubr.bf16.gmra.mrb[0].mxu0 %v4555
    %v5475 = vpop.f32.mrb[0].mxu0
    %v5476 = vadd.f32 %v5363, %v5475
    %v5477 = vpop.f32.mrb[0].mxu0
    %v5478 = vadd.f32 %v5365, %v5477
    %v5479 = vpop.f32.mrb[0].mxu0
    %v5480 = vadd.f32 %v5367, %v5479
    %v5481 = vpop.f32.mrb[0].mxu0
    %v5482 = vadd.f32 %v5369, %v5481
    %5483 = vmatprep.mubr.bf16.mxu0 %v4564
    %5484 = vmatmul.mubr.bf16.gmra.mrb[0].mxu0 %v4563
    %v5485 = vpop.f32.mrb[0].mxu0
    %v5486 = vadd.f32 %v5373, %v5485
    %v5487 = vpop.f32.mrb[0].mxu0
    %v5488 = vadd.f32 %v5375, %v5487
    %v5489 = vpop.f32.mrb[0].mxu0
    %v5490 = vadd.f32 %v5377, %v5489
    %v5491 = vpop.f32.mrb[0].mxu0
    %v5492 = vadd.f32 %v5379, %v5491
    %5493 = vmatprep.mubr.bf16.mxu0 %v4572
    %5494 = vmatmul.mubr.bf16.gmra.mrb[0].mxu0 %v4571
    %v5495 = vpop.f32.mrb[0].mxu0
    %v5496 = vadd.f32 %v5383, %v5495
    %v5497 = vpop.f32.mrb[0].mxu0
    %v5498 = vadd.f32 %v5385, %v5497
    %v5499 = vpop.f32.mrb[0].mxu0
    %v5500 = vadd.f32 %v5387, %v5499
    %v5501 = vpop.f32.mrb[0].mxu0
    %v5502 = vadd.f32 %v5389, %v5501
    %5503 = vmatprep.mubr.bf16.mxu0 %v4580
    %5504 = vmatmul.mubr.bf16.gmra.mrb[0].mxu0 %v4579
    %v5505 = vpop.f32.mrb[0].mxu0
    %v5506 = vadd.f32 %v5393, %v5505
    %v5507 = vpop.f32.mrb[0].mxu0
    %v5508 = vadd.f32 %v5395, %v5507
    %v5509 = vpop.f32.mrb[0].mxu0
    %v5510 = vadd.f32 %v5397, %v5509
    %v5511 = vpop.f32.mrb[0].mxu0
    %v5512 = vadd.f32 %v5399, %v5511
    %5513 = vmatprep.mubr.bf16.mxu0 %v4588
    %5514 = vmatmul.mubr.bf16.gmra.mrb[0].mxu0 %v4587
    %v5515 = vpop.f32.mrb[0].mxu0
    %v5516 = vadd.f32 %v5403, %v5515
    %v5517 = vpop.f32.mrb[0].mxu0
    %v5518 = vadd.f32 %v5405, %v5517
    %v5519 = vpop.f32.mrb[0].mxu0
    %v5520 = vadd.f32 %v5407, %v5519
    %v5521 = vpop.f32.mrb[0].mxu0
    %v5522 = vadd.f32 %v5409, %v5521
    %5523 = vmatprep.mubr.bf16.mxu0 %v4596
    %5524 = vmatmul.mubr.bf16.gmra.mrb[0].mxu0 %v4595
    %v5525 = vpop.f32.mrb[0].mxu0
    %v5526 = vadd.f32 %v5413, %v5525
    %v5527 = vpop.f32.mrb[0].mxu0
    %v5528 = vadd.f32 %v5415, %v5527
    %v5529 = vpop.f32.mrb[0].mxu0
    %v5530 = vadd.f32 %v5417, %v5529
    %v5531 = vpop.f32.mrb[0].mxu0
    %v5532 = vadd.f32 %v5419, %v5531
    %5533 = vmatprep.mubr.bf16.mxu0 %v4604
    %5534 = vmatmul.mubr.bf16.gmra.mrb[0].mxu0 %v4603
    %v5535 = vpop.f32.mrb[0].mxu0
    %v5536 = vadd.f32 %v5423, %v5535
    %v5537 = vpop.f32.mrb[0].mxu0
    %v5538 = vadd.f32 %v5425, %v5537
    %v5539 = vpop.f32.mrb[0].mxu0
    %v5540 = vadd.f32 %v5427, %v5539
    %v5541 = vpop.f32.mrb[0].mxu0
    %v5542 = vadd.f32 %v5429, %v5541
    %5543 = vmatprep.mubr.bf16.mxu0 %v4612
    %5544 = vmatmul.mubr.bf16.gmra.mrb[0].mxu0 %v4611
    %v5545 = vpop.f32.mrb[0].mxu0
    %v5546 = vadd.f32 %v5433, %v5545
    %v5547 = vpop.f32.mrb[0].mxu0
    %v5548 = vadd.f32 %v5435, %v5547
    %v5549 = vpop.f32.mrb[0].mxu0
    %v5550 = vadd.f32 %v5437, %v5549
    %v5551 = vpop.f32.mrb[0].mxu0
    %v5552 = vadd.f32 %v5439, %v5551
    %5553 = vdwg.mxu0
    %5554 = vmatprep.subr.bf16.mxu0 %v4620
    %5555 = vmatpush1.bf16.msra.mxu0 %v4619
    %5556 = vmatprep.subr.bf16.mxu0 %v4627
    %5557 = vmatpush1.bf16.msra.mxu0 %v4626
    %5558 = vmatprep.subr.bf16.mxu0 %v4634
    %5559 = vmatpush1.bf16.msra.mxu0 %v4633
    %5560 = vmatprep.subr.bf16.mxu0 %v4641
    %5561 = vmatpush1.bf16.msra.mxu0 %v4640
    %5562 = vmatprep.subr.bf16.mxu0 %v4648
    %5563 = vmatpush1.bf16.msra.mxu0 %v4647
    %5564 = vmatprep.subr.bf16.mxu0 %v4655
    %5565 = vmatpush1.bf16.msra.mxu0 %v4654
    %5566 = vmatprep.subr.bf16.mxu0 %v4662
    %5567 = vmatpush1.bf16.msra.mxu0 %v4661
    %5568 = vmatprep.subr.bf16.mxu0 %v4669
    %5569 = vmatpush1.bf16.msra.mxu0 %v4668
    %5570 = vmatprep.subr.bf16.mxu0 %v4676
    %5571 = vmatpush1.bf16.msra.mxu0 %v4675
    %5572 = vmatprep.subr.bf16.mxu0 %v4683
    %5573 = vmatpush1.bf16.msra.mxu0 %v4682
    %5574 = vmatprep.subr.bf16.mxu0 %v4690
    %5575 = vmatpush1.bf16.msra.mxu0 %v4689
    %5576 = vmatprep.subr.bf16.mxu0 %v4697
    %5577 = vmatpush1.bf16.msra.mxu0 %v4696
    %5578 = vmatprep.subr.bf16.mxu0 %v4704
    %5579 = vmatpush1.bf16.msra.mxu0 %v4703
    %5580 = vmatprep.subr.bf16.mxu0 %v4711
    %5581 = vmatpush1.bf16.msra.mxu0 %v4710
    %5582 = vmatprep.subr.bf16.mxu0 %v4718
    %5583 = vmatpush1.bf16.msra.mxu0 %v4717
    %5584 = vmatprep.subr.bf16.mxu0 %v4725
    %5585 = vmatpush1.bf16.msra.mxu0 %v4724
    %5586 = vmatprep.mubr.bf16.mxu0 %v4550
    %5587 = vmatmul.mubr.bf16.gmra.mrb[0].mxu0 %v4549
    %v5588 = vpop.f32.mrb[0].mxu0
    %v5589 = vadd.f32 %v5078, %v5588
    %v5590 = vpop.f32.mrb[0].mxu0
    %v5591 = vadd.f32 %v5082, %v5590
    %v5592 = vpop.f32.mrb[0].mxu0
    %v5593 = vadd.f32 %v5078, %v5592
    %v5594 = vpop.f32.mrb[0].mxu0
    %v5595 = vadd.f32 %v5082, %v5594
    %5596 = vmatprep.mubr.bf16.mxu0 %v4558
    %5597 = vmatmul.mubr.bf16.gmra.mrb[0].mxu0 %v4557
    %v5598 = vpop.f32.mrb[0].mxu0
    %v5599 = vadd.f32 %v5078, %v5598
    %v5600 = vpop.f32.mrb[0].mxu0
    %v5601 = vadd.f32 %v5082, %v5600
    %v5602 = vpop.f32.mrb[0].mxu0
    %v5603 = vadd.f32 %v5078, %v5602
    %v5604 = vpop.f32.mrb[0].mxu0
    %v5605 = vadd.f32 %v5082, %v5604
    %5606 = vmatprep.mubr.bf16.mxu0 %v4566
    %5607 = vmatmul.mubr.bf16.gmra.mrb[0].mxu0 %v4565
    %v5608 = vpop.f32.mrb[0].mxu0
    %v5609 = vadd.f32 %v5078, %v5608
    %v5610 = vpop.f32.mrb[0].mxu0
    %v5611 = vadd.f32 %v5082, %v5610
    %v5612 = vpop.f32.mrb[0].mxu0
    %v5613 = vadd.f32 %v5078, %v5612
    %v5614 = vpop.f32.mrb[0].mxu0
    %v5615 = vadd.f32 %v5082, %v5614
    %5616 = vmatprep.mubr.bf16.mxu0 %v4574
    %5617 = vmatmul.mubr.bf16.gmra.mrb[0].mxu0 %v4573
    %v5618 = vpop.f32.mrb[0].mxu0
    %v5619 = vadd.f32 %v5078, %v5618
    %v5620 = vpop.f32.mrb[0].mxu0
    %v5621 = vadd.f32 %v5082, %v5620
    %v5622 = vpop.f32.mrb[0].mxu0
    %v5623 = vadd.f32 %v5078, %v5622
    %v5624 = vpop.f32.mrb[0].mxu0
    %v5625 = vadd.f32 %v5082, %v5624
    %5626 = vmatprep.mubr.bf16.mxu0 %v4582
    %5627 = vmatmul.mubr.bf16.gmra.mrb[0].mxu0 %v4581
    %v5628 = vpop.f32.mrb[0].mxu0
    %v5629 = vadd.f32 %v5078, %v5628
    %v5630 = vpop.f32.mrb[0].mxu0
    %v5631 = vadd.f32 %v5082, %v5630
    %v5632 = vpop.f32.mrb[0].mxu0
    %v5633 = vadd.f32 %v5078, %v5632
    %v5634 = vpop.f32.mrb[0].mxu0
    %v5635 = vadd.f32 %v5082, %v5634
    %5636 = vmatprep.mubr.bf16.mxu0 %v4590
    %5637 = vmatmul.mubr.bf16.gmra.mrb[0].mxu0 %v4589
    %v5638 = vpop.f32.mrb[0].mxu0
    %v5639 = vadd.f32 %v5078, %v5638
    %v5640 = vpop.f32.mrb[0].mxu0
    %v5641 = vadd.f32 %v5082, %v5640
    %v5642 = vpop.f32.mrb[0].mxu0
    %v5643 = vadd.f32 %v5078, %v5642
    %v5644 = vpop.f32.mrb[0].mxu0
    %v5645 = vadd.f32 %v5082, %v5644
    %5646 = vmatprep.mubr.bf16.mxu0 %v4598
    %5647 = vmatmul.mubr.bf16.gmra.mrb[0].mxu0 %v4597
    %v5648 = vpop.f32.mrb[0].mxu0
    %v5649 = vadd.f32 %v5078, %v5648
    %v5650 = vpop.f32.mrb[0].mxu0
    %v5651 = vadd.f32 %v5082, %v5650
    %v5652 = vpop.f32.mrb[0].mxu0
    %v5653 = vadd.f32 %v5078, %v5652
    %v5654 = vpop.f32.mrb[0].mxu0
    %v5655 = vadd.f32 %v5082, %v5654
    %5656 = vmatprep.mubr.bf16.mxu0 %v4606
    %5657 = vmatmul.mubr.bf16.gmra.mrb[0].mxu0 %v4605
    %v5658 = vpop.f32.mrb[0].mxu0
    %v5659 = vadd.f32 %v5078, %v5658
    %v5660 = vpop.f32.mrb[0].mxu0
    %v5661 = vadd.f32 %v5082, %v5660
    %v5662 = vpop.f32.mrb[0].mxu0
    %v5663 = vadd.f32 %v5078, %v5662
    %v5664 = vpop.f32.mrb[0].mxu0
    %v5665 = vadd.f32 %v5082, %v5664
    %5666 = vdwg.mxu0
    %5667 = vmatprep.subr.bf16.mxu0 %v4732
    %5668 = vmatpush1.bf16.msra.mxu0 %v4731
    %5669 = vmatprep.subr.bf16.mxu0 %v4739
    %5670 = vmatpush1.bf16.msra.mxu0 %v4738
    %5671 = vmatprep.subr.bf16.mxu0 %v4746
    %5672 = vmatpush1.bf16.msra.mxu0 %v4745
    %5673 = vmatprep.subr.bf16.mxu0 %v4753
    %5674 = vmatpush1.bf16.msra.mxu0 %v4752
    %5675 = vmatprep.subr.bf16.mxu0 %v4760
    %5676 = vmatpush1.bf16.msra.mxu0 %v4759
    %5677 = vmatprep.subr.bf16.mxu0 %v4767
    %5678 = vmatpush1.bf16.msra.mxu0 %v4766
    %5679 = vmatprep.subr.bf16.mxu0 %v4774
    %5680 = vmatpush1.bf16.msra.mxu0 %v4773
    %5681 = vmatprep.subr.bf16.mxu0 %v4781
    %5682 = vmatpush1.bf16.msra.mxu0 %v4780
    %5683 = vmatprep.subr.bf16.mxu0 %v4788
    %5684 = vmatpush1.bf16.msra.mxu0 %v4787
    %5685 = vmatprep.subr.bf16.mxu0 %v4795
    %5686 = vmatpush1.bf16.msra.mxu0 %v4794
    %5687 = vmatprep.subr.bf16.mxu0 %v4802
    %5688 = vmatpush1.bf16.msra.mxu0 %v4801
    %5689 = vmatprep.subr.bf16.mxu0 %v4809
    %5690 = vmatpush1.bf16.msra.mxu0 %v4808
    %5691 = vmatprep.subr.bf16.mxu0 %v4816
    %5692 = vmatpush1.bf16.msra.mxu0 %v4815
    %5693 = vmatprep.subr.bf16.mxu0 %v4823
    %5694 = vmatpush1.bf16.msra.mxu0 %v4822
    %5695 = vmatprep.subr.bf16.mxu0 %v4830
    %5696 = vmatpush1.bf16.msra.mxu0 %v4829
    %5697 = vmatprep.subr.bf16.mxu0 %v4837
    %5698 = vmatpush1.bf16.msra.mxu0 %v4836
    %5699 = vmatprep.mubr.bf16.mxu0 %v4552
    %5700 = vmatmul.mubr.bf16.gmra.mrb[0].mxu0 %v4551
    %v5701 = vpop.f32.mrb[0].mxu0
    %v5702 = vadd.f32 %v5589, %v5701
    %v5703 = vpop.f32.mrb[0].mxu0
    %v5704 = vadd.f32 %v5591, %v5703
    %v5705 = vpop.f32.mrb[0].mxu0
    %v5706 = vadd.f32 %v5593, %v5705
    %v5707 = vpop.f32.mrb[0].mxu0
    %v5708 = vadd.f32 %v5595, %v5707
    %5709 = vmatprep.mubr.bf16.mxu0 %v4560
    %5710 = vmatmul.mubr.bf16.gmra.mrb[0].mxu0 %v4559
    %v5711 = vpop.f32.mrb[0].mxu0
    %v5712 = vadd.f32 %v5599, %v5711
    %v5713 = vpop.f32.mrb[0].mxu0
    %v5714 = vadd.f32 %v5601, %v5713
    %v5715 = vpop.f32.mrb[0].mxu0
    %v5716 = vadd.f32 %v5603, %v5715
    %v5717 = vpop.f32.mrb[0].mxu0
    %v5718 = vadd.f32 %v5605, %v5717
    %5719 = vmatprep.mubr.bf16.mxu0 %v4568
    %5720 = vmatmul.mubr.bf16.gmra.mrb[0].mxu0 %v4567
    %v5721 = vpop.f32.mrb[0].mxu0
    %v5722 = vadd.f32 %v5609, %v5721
    %v5723 = vpop.f32.mrb[0].mxu0
    %v5724 = vadd.f32 %v5611, %v5723
    %v5725 = vpop.f32.mrb[0].mxu0
    %v5726 = vadd.f32 %v5613, %v5725
    %v5727 = vpop.f32.mrb[0].mxu0
    %v5728 = vadd.f32 %v5615, %v5727
    %5729 = vmatprep.mubr.bf16.mxu0 %v4576
    %5730 = vmatmul.mubr.bf16.gmra.mrb[0].mxu0 %v4575
    %v5731 = vpop.f32.mrb[0].mxu0
    %v5732 = vadd.f32 %v5619, %v5731
    %v5733 = vpop.f32.mrb[0].mxu0
    %v5734 = vadd.f32 %v5621, %v5733
    %v5735 = vpop.f32.mrb[0].mxu0
    %v5736 = vadd.f32 %v5623, %v5735
    %v5737 = vpop.f32.mrb[0].mxu0
    %v5738 = vadd.f32 %v5625, %v5737
    %5739 = vmatprep.mubr.bf16.mxu0 %v4584
    %5740 = vmatmul.mubr.bf16.gmra.mrb[0].mxu0 %v4583
    %v5741 = vpop.f32.mrb[0].mxu0
    %v5742 = vadd.f32 %v5629, %v5741
    %v5743 = vpop.f32.mrb[0].mxu0
    %v5744 = vadd.f32 %v5631, %v5743
    %v5745 = vpop.f32.mrb[0].mxu0
    %v5746 = vadd.f32 %v5633, %v5745
    %v5747 = vpop.f32.mrb[0].mxu0
    %v5748 = vadd.f32 %v5635, %v5747
    %5749 = vmatprep.mubr.bf16.mxu0 %v4592
    %5750 = vmatmul.mubr.bf16.gmra.mrb[0].mxu0 %v4591
    %v5751 = vpop.f32.mrb[0].mxu0
    %v5752 = vadd.f32 %v5639, %v5751
    %v5753 = vpop.f32.mrb[0].mxu0
    %v5754 = vadd.f32 %v5641, %v5753
    %v5755 = vpop.f32.mrb[0].mxu0
    %v5756 = vadd.f32 %v5643, %v5755
    %v5757 = vpop.f32.mrb[0].mxu0
    %v5758 = vadd.f32 %v5645, %v5757
    %5759 = vmatprep.mubr.bf16.mxu0 %v4600
    %5760 = vmatmul.mubr.bf16.gmra.mrb[0].mxu0 %v4599
    %v5761 = vpop.f32.mrb[0].mxu0
    %v5762 = vadd.f32 %v5649, %v5761
    %v5763 = vpop.f32.mrb[0].mxu0
    %v5764 = vadd.f32 %v5651, %v5763
    %v5765 = vpop.f32.mrb[0].mxu0
    %v5766 = vadd.f32 %v5653, %v5765
    %v5767 = vpop.f32.mrb[0].mxu0
    %v5768 = vadd.f32 %v5655, %v5767
    %5769 = vmatprep.mubr.bf16.mxu0 %v4608
    %5770 = vmatmul.mubr.bf16.gmra.mrb[0].mxu0 %v4607
    %v5771 = vpop.f32.mrb[0].mxu0
    %v5772 = vadd.f32 %v5659, %v5771
    %v5773 = vpop.f32.mrb[0].mxu0
    %v5774 = vadd.f32 %v5661, %v5773
    %v5775 = vpop.f32.mrb[0].mxu0
    %v5776 = vadd.f32 %v5663, %v5775
    %v5777 = vpop.f32.mrb[0].mxu0
    %v5778 = vadd.f32 %v5665, %v5777
    %5779 = vdwg.mxu0
    %5780 = vmatprep.subr.bf16.mxu0 %v4844
    %5781 = vmatpush1.bf16.msra.mxu0 %v4843
    %5782 = vmatprep.subr.bf16.mxu0 %v4851
    %5783 = vmatpush1.bf16.msra.mxu0 %v4850
    %5784 = vmatprep.subr.bf16.mxu0 %v4858
    %5785 = vmatpush1.bf16.msra.mxu0 %v4857
    %5786 = vmatprep.subr.bf16.mxu0 %v4865
    %5787 = vmatpush1.bf16.msra.mxu0 %v4864
    %5788 = vmatprep.subr.bf16.mxu0 %v4872
    %5789 = vmatpush1.bf16.msra.mxu0 %v4871
    %5790 = vmatprep.subr.bf16.mxu0 %v4879
    %5791 = vmatpush1.bf16.msra.mxu0 %v4878
    %5792 = vmatprep.subr.bf16.mxu0 %v4886
    %5793 = vmatpush1.bf16.msra.mxu0 %v4885
    %5794 = vmatprep.subr.bf16.mxu0 %v4893
    %5795 = vmatpush1.bf16.msra.mxu0 %v4892
    %5796 = vmatprep.subr.bf16.mxu0 %v4900
    %5797 = vmatpush1.bf16.msra.mxu0 %v4899
    %5798 = vmatprep.subr.bf16.mxu0 %v4907
    %5799 = vmatpush1.bf16.msra.mxu0 %v4906
    %5800 = vmatprep.subr.bf16.mxu0 %v4914
    %5801 = vmatpush1.bf16.msra.mxu0 %v4913
    %5802 = vmatprep.subr.bf16.mxu0 %v4921
    %5803 = vmatpush1.bf16.msra.mxu0 %v4920
    %5804 = vmatprep.subr.bf16.mxu0 %v4928
    %5805 = vmatpush1.bf16.msra.mxu0 %v4927
    %5806 = vmatprep.subr.bf16.mxu0 %v4935
    %5807 = vmatpush1.bf16.msra.mxu0 %v4934
    %5808 = vmatprep.subr.bf16.mxu0 %v4942
    %5809 = vmatpush1.bf16.msra.mxu0 %v4941
    %5810 = vmatprep.subr.bf16.mxu0 %v4949
    %5811 = vmatpush1.bf16.msra.mxu0 %v4948
    %5812 = vmatprep.mubr.bf16.mxu0 %v4554
    %5813 = vmatmul.mubr.bf16.gmra.mrb[0].mxu0 %v4553
    %v5814 = vpop.f32.mrb[0].mxu0
    %v5815 = vadd.f32 %v5702, %v5814
    %v5816 = vpop.f32.mrb[0].mxu0
    %v5817 = vadd.f32 %v5704, %v5816
    %v5818 = vpop.f32.mrb[0].mxu0
    %v5819 = vadd.f32 %v5706, %v5818
    %v5820 = vpop.f32.mrb[0].mxu0
    %v5821 = vadd.f32 %v5708, %v5820
    %5822 = vmatprep.mubr.bf16.mxu0 %v4562
    %5823 = vmatmul.mubr.bf16.gmra.mrb[0].mxu0 %v4561
    %v5824 = vpop.f32.mrb[0].mxu0
    %v5825 = vadd.f32 %v5712, %v5824
    %v5826 = vpop.f32.mrb[0].mxu0
    %v5827 = vadd.f32 %v5714, %v5826
    %v5828 = vpop.f32.mrb[0].mxu0
    %v5829 = vadd.f32 %v5716, %v5828
    %v5830 = vpop.f32.mrb[0].mxu0
    %v5831 = vadd.f32 %v5718, %v5830
    %5832 = vmatprep.mubr.bf16.mxu0 %v4570
    %5833 = vmatmul.mubr.bf16.gmra.mrb[0].mxu0 %v4569
    %v5834 = vpop.f32.mrb[0].mxu0
    %v5835 = vadd.f32 %v5722, %v5834
    %v5836 = vpop.f32.mrb[0].mxu0
    %v5837 = vadd.f32 %v5724, %v5836
    %v5838 = vpop.f32.mrb[0].mxu0
    %v5839 = vadd.f32 %v5726, %v5838
    %v5840 = vpop.f32.mrb[0].mxu0
    %v5841 = vadd.f32 %v5728, %v5840
    %5842 = vmatprep.mubr.bf16.mxu0 %v4578
    %5843 = vmatmul.mubr.bf16.gmra.mrb[0].mxu0 %v4577
    %v5844 = vpop.f32.mrb[0].mxu0
    %v5845 = vadd.f32 %v5732, %v5844
    %v5846 = vpop.f32.mrb[0].mxu0
    %v5847 = vadd.f32 %v5734, %v5846
    %v5848 = vpop.f32.mrb[0].mxu0
    %v5849 = vadd.f32 %v5736, %v5848
    %v5850 = vpop.f32.mrb[0].mxu0
    %v5851 = vadd.f32 %v5738, %v5850
    %5852 = vmatprep.mubr.bf16.mxu0 %v4586
    %5853 = vmatmul.mubr.bf16.gmra.mrb[0].mxu0 %v4585
    %v5854 = vpop.f32.mrb[0].mxu0
    %v5855 = vadd.f32 %v5742, %v5854
    %v5856 = vpop.f32.mrb[0].mxu0
    %v5857 = vadd.f32 %v5744, %v5856
    %v5858 = vpop.f32.mrb[0].mxu0
    %v5859 = vadd.f32 %v5746, %v5858
    %v5860 = vpop.f32.mrb[0].mxu0
    %v5861 = vadd.f32 %v5748, %v5860
    %5862 = vmatprep.mubr.bf16.mxu0 %v4594
    %5863 = vmatmul.mubr.bf16.gmra.mrb[0].mxu0 %v4593
    %v5864 = vpop.f32.mrb[0].mxu0
    %v5865 = vadd.f32 %v5752, %v5864
    %v5866 = vpop.f32.mrb[0].mxu0
    %v5867 = vadd.f32 %v5754, %v5866
    %v5868 = vpop.f32.mrb[0].mxu0
    %v5869 = vadd.f32 %v5756, %v5868
    %v5870 = vpop.f32.mrb[0].mxu0
    %v5871 = vadd.f32 %v5758, %v5870
    %5872 = vmatprep.mubr.bf16.mxu0 %v4602
    %5873 = vmatmul.mubr.bf16.gmra.mrb[0].mxu0 %v4601
    %v5874 = vpop.f32.mrb[0].mxu0
    %v5875 = vadd.f32 %v5762, %v5874
    %v5876 = vpop.f32.mrb[0].mxu0
    %v5877 = vadd.f32 %v5764, %v5876
    %v5878 = vpop.f32.mrb[0].mxu0
    %v5879 = vadd.f32 %v5766, %v5878
    %v5880 = vpop.f32.mrb[0].mxu0
    %v5881 = vadd.f32 %v5768, %v5880
    %5882 = vmatprep.mubr.bf16.mxu0 %v4610
    %5883 = vmatmul.mubr.bf16.gmra.mrb[0].mxu0 %v4609
    %v5884 = vpop.f32.mrb[0].mxu0
    %v5885 = vadd.f32 %v5772, %v5884
    %v5886 = vpop.f32.mrb[0].mxu0
    %v5887 = vadd.f32 %v5774, %v5886
    %v5888 = vpop.f32.mrb[0].mxu0
    %v5889 = vadd.f32 %v5776, %v5888
    %v5890 = vpop.f32.mrb[0].mxu0
    %v5891 = vadd.f32 %v5778, %v5890
    %5892 = vdwg.mxu0
    %5893 = vmatprep.subr.bf16.mxu0 %v4956
    %5894 = vmatpush1.bf16.msra.mxu0 %v4955
    %5895 = vmatprep.subr.bf16.mxu0 %v4963
    %5896 = vmatpush1.bf16.msra.mxu0 %v4962
    %5897 = vmatprep.subr.bf16.mxu0 %v4970
    %5898 = vmatpush1.bf16.msra.mxu0 %v4969
    %5899 = vmatprep.subr.bf16.mxu0 %v4977
    %5900 = vmatpush1.bf16.msra.mxu0 %v4976
    %5901 = vmatprep.subr.bf16.mxu0 %v4984
    %5902 = vmatpush1.bf16.msra.mxu0 %v4983
    %5903 = vmatprep.subr.bf16.mxu0 %v4991
    %5904 = vmatpush1.bf16.msra.mxu0 %v4990
    %5905 = vmatprep.subr.bf16.mxu0 %v4998
    %5906 = vmatpush1.bf16.msra.mxu0 %v4997
    %5907 = vmatprep.subr.bf16.mxu0 %v5005
    %5908 = vmatpush1.bf16.msra.mxu0 %v5004
    %5909 = vmatprep.subr.bf16.mxu0 %v5012
    %5910 = vmatpush1.bf16.msra.mxu0 %v5011
    %5911 = vmatprep.subr.bf16.mxu0 %v5019
    %5912 = vmatpush1.bf16.msra.mxu0 %v5018
    %5913 = vmatprep.subr.bf16.mxu0 %v5026
    %5914 = vmatpush1.bf16.msra.mxu0 %v5025
    %5915 = vmatprep.subr.bf16.mxu0 %v5033
    %5916 = vmatpush1.bf16.msra.mxu0 %v5032
    %5917 = vmatprep.subr.bf16.mxu0 %v5040
    %5918 = vmatpush1.bf16.msra.mxu0 %v5039
    %5919 = vmatprep.subr.bf16.mxu0 %v5047
    %5920 = vmatpush1.bf16.msra.mxu0 %v5046
    %5921 = vmatprep.subr.bf16.mxu0 %v5054
    %5922 = vmatpush1.bf16.msra.mxu0 %v5053
    %5923 = vmatprep.subr.bf16.mxu0 %v5061
    %5924 = vmatpush1.bf16.msra.mxu0 %v5060
    %5925 = vmatprep.mubr.bf16.mxu0 %v4556
    %5926 = vmatmul.mubr.bf16.gmra.mrb[0].mxu0 %v4555
    %v5927 = vpop.f32.mrb[0].mxu0
    %v5928 = vadd.f32 %v5815, %v5927
    %v5929 = vpop.f32.mrb[0].mxu0
    %v5930 = vadd.f32 %v5817, %v5929
    %v5931 = vpop.f32.mrb[0].mxu0
    %v5932 = vadd.f32 %v5819, %v5931
    %v5933 = vpop.f32.mrb[0].mxu0
    %v5934 = vadd.f32 %v5821, %v5933
    %5935 = vmatprep.mubr.bf16.mxu0 %v4564
    %5936 = vmatmul.mubr.bf16.gmra.mrb[0].mxu0 %v4563
    %v5937 = vpop.f32.mrb[0].mxu0
    %v5938 = vadd.f32 %v5825, %v5937
    %v5939 = vpop.f32.mrb[0].mxu0
    %v5940 = vadd.f32 %v5827, %v5939
    %v5941 = vpop.f32.mrb[0].mxu0
    %v5942 = vadd.f32 %v5829, %v5941
    %v5943 = vpop.f32.mrb[0].mxu0
    %v5944 = vadd.f32 %v5831, %v5943
    %5945 = vmatprep.mubr.bf16.mxu0 %v4572
    %5946 = vmatmul.mubr.bf16.gmra.mrb[0].mxu0 %v4571
    %v5947 = vpop.f32.mrb[0].mxu0
    %v5948 = vadd.f32 %v5835, %v5947
    %v5949 = vpop.f32.mrb[0].mxu0
    %v5950 = vadd.f32 %v5837, %v5949
    %v5951 = vpop.f32.mrb[0].mxu0
    %v5952 = vadd.f32 %v5839, %v5951
    %v5953 = vpop.f32.mrb[0].mxu0
    %v5954 = vadd.f32 %v5841, %v5953
    %5955 = vmatprep.mubr.bf16.mxu0 %v4580
    %5956 = vmatmul.mubr.bf16.gmra.mrb[0].mxu0 %v4579
    %v5957 = vpop.f32.mrb[0].mxu0
    %v5958 = vadd.f32 %v5845, %v5957
    %v5959 = vpop.f32.mrb[0].mxu0
    %v5960 = vadd.f32 %v5847, %v5959
    %v5961 = vpop.f32.mrb[0].mxu0
    %v5962 = vadd.f32 %v5849, %v5961
    %v5963 = vpop.f32.mrb[0].mxu0
    %v5964 = vadd.f32 %v5851, %v5963
    %5965 = vmatprep.mubr.bf16.mxu0 %v4588
    %5966 = vmatmul.mubr.bf16.gmra.mrb[0].mxu0 %v4587
    %v5967 = vpop.f32.mrb[0].mxu0
    %v5968 = vadd.f32 %v5855, %v5967
    %v5969 = vpop.f32.mrb[0].mxu0
    %v5970 = vadd.f32 %v5857, %v5969
    %v5971 = vpop.f32.mrb[0].mxu0
    %v5972 = vadd.f32 %v5859, %v5971
    %v5973 = vpop.f32.mrb[0].mxu0
    %v5974 = vadd.f32 %v5861, %v5973
    %5975 = vmatprep.mubr.bf16.mxu0 %v4596
    %5976 = vmatmul.mubr.bf16.gmra.mrb[0].mxu0 %v4595
    %v5977 = vpop.f32.mrb[0].mxu0
    %v5978 = vadd.f32 %v5865, %v5977
    %v5979 = vpop.f32.mrb[0].mxu0
    %v5980 = vadd.f32 %v5867, %v5979
    %v5981 = vpop.f32.mrb[0].mxu0
    %v5982 = vadd.f32 %v5869, %v5981
    %v5983 = vpop.f32.mrb[0].mxu0
    %v5984 = vadd.f32 %v5871, %v5983
    %5985 = vmatprep.mubr.bf16.mxu0 %v4604
    %5986 = vmatmul.mubr.bf16.gmra.mrb[0].mxu0 %v4603
    %v5987 = vpop.f32.mrb[0].mxu0
    %v5988 = vadd.f32 %v5875, %v5987
    %v5989 = vpop.f32.mrb[0].mxu0
    %v5990 = vadd.f32 %v5877, %v5989
    %v5991 = vpop.f32.mrb[0].mxu0
    %v5992 = vadd.f32 %v5879, %v5991
    %v5993 = vpop.f32.mrb[0].mxu0
    %v5994 = vadd.f32 %v5881, %v5993
    %5995 = vmatprep.mubr.bf16.mxu0 %v4612
    %5996 = vmatmul.mubr.bf16.gmra.mrb[0].mxu0 %v4611
    %v5997 = vpop.f32.mrb[0].mxu0
    %v5998 = vadd.f32 %v5885, %v5997
    %v5999 = vpop.f32.mrb[0].mxu0
    %v6000 = vadd.f32 %v5887, %v5999
    %v6001 = vpop.f32.mrb[0].mxu0
    %v6002 = vadd.f32 %v5889, %v6001
    %v6003 = vpop.f32.mrb[0].mxu0
    %v6004 = vadd.f32 %v5891, %v6003
    %6005 = vdwg.mxu0
    %6006 = vmatprep.subr.bf16.mxu0 %v4622
    %6007 = vmatpush1.bf16.msra.mxu0 %v4621
    %6008 = vmatprep.subr.bf16.mxu0 %v4629
    %6009 = vmatpush1.bf16.msra.mxu0 %v4628
    %6010 = vmatprep.subr.bf16.mxu0 %v4636
    %6011 = vmatpush1.bf16.msra.mxu0 %v4635
    %6012 = vmatprep.subr.bf16.mxu0 %v4643
    %6013 = vmatpush1.bf16.msra.mxu0 %v4642
    %6014 = vmatprep.subr.bf16.mxu0 %v4650
    %6015 = vmatpush1.bf16.msra.mxu0 %v4649
    %6016 = vmatprep.subr.bf16.mxu0 %v4657
    %6017 = vmatpush1.bf16.msra.mxu0 %v4656
    %6018 = vmatprep.subr.bf16.mxu0 %v4664
    %6019 = vmatpush1.bf16.msra.mxu0 %v4663
    %6020 = vmatprep.subr.bf16.mxu0 %v4671
    %6021 = vmatpush1.bf16.msra.mxu0 %v4670
    %6022 = vmatprep.subr.bf16.mxu0 %v4678
    %6023 = vmatpush1.bf16.msra.mxu0 %v4677
    %6024 = vmatprep.subr.bf16.mxu0 %v4685
    %6025 = vmatpush1.bf16.msra.mxu0 %v4684
    %6026 = vmatprep.subr.bf16.mxu0 %v4692
    %6027 = vmatpush1.bf16.msra.mxu0 %v4691
    %6028 = vmatprep.subr.bf16.mxu0 %v4699
    %6029 = vmatpush1.bf16.msra.mxu0 %v4698
    %6030 = vmatprep.subr.bf16.mxu0 %v4706
    %6031 = vmatpush1.bf16.msra.mxu0 %v4705
    %6032 = vmatprep.subr.bf16.mxu0 %v4713
    %6033 = vmatpush1.bf16.msra.mxu0 %v4712
    %6034 = vmatprep.subr.bf16.mxu0 %v4720
    %6035 = vmatpush1.bf16.msra.mxu0 %v4719
    %6036 = vmatprep.subr.bf16.mxu0 %v4727
    %6037 = vmatpush1.bf16.msra.mxu0 %v4726
    %6038 = vmatprep.mubr.bf16.mxu0 %v4550
    %6039 = vmatmul.mubr.bf16.gmra.mrb[0].mxu0 %v4549
    %v6040 = vpop.f32.mrb[0].mxu0
    %v6041 = vadd.f32 %v5086, %v6040
    %v6042 = vpop.f32.mrb[0].mxu0
    %v6043 = vadd.f32 %v5090, %v6042
    %v6044 = vpop.f32.mrb[0].mxu0
    %v6045 = vadd.f32 %v5086, %v6044
    %v6046 = vpop.f32.mrb[0].mxu0
    %v6047 = vadd.f32 %v5090, %v6046
    %6048 = vmatprep.mubr.bf16.mxu0 %v4558
    %6049 = vmatmul.mubr.bf16.gmra.mrb[0].mxu0 %v4557
    %v6050 = vpop.f32.mrb[0].mxu0
    %v6051 = vadd.f32 %v5086, %v6050
    %v6052 = vpop.f32.mrb[0].mxu0
    %v6053 = vadd.f32 %v5090, %v6052
    %v6054 = vpop.f32.mrb[0].mxu0
    %v6055 = vadd.f32 %v5086, %v6054
    %v6056 = vpop.f32.mrb[0].mxu0
    %v6057 = vadd.f32 %v5090, %v6056
    %6058 = vmatprep.mubr.bf16.mxu0 %v4566
    %6059 = vmatmul.mubr.bf16.gmra.mrb[0].mxu0 %v4565
    %v6060 = vpop.f32.mrb[0].mxu0
    %v6061 = vadd.f32 %v5086, %v6060
    %v6062 = vpop.f32.mrb[0].mxu0
    %v6063 = vadd.f32 %v5090, %v6062
    %v6064 = vpop.f32.mrb[0].mxu0
    %v6065 = vadd.f32 %v5086, %v6064
    %v6066 = vpop.f32.mrb[0].mxu0
    %v6067 = vadd.f32 %v5090, %v6066
    %6068 = vmatprep.mubr.bf16.mxu0 %v4574
    %6069 = vmatmul.mubr.bf16.gmra.mrb[0].mxu0 %v4573
    %v6070 = vpop.f32.mrb[0].mxu0
    %v6071 = vadd.f32 %v5086, %v6070
    %v6072 = vpop.f32.mrb[0].mxu0
    %v6073 = vadd.f32 %v5090, %v6072
    %v6074 = vpop.f32.mrb[0].mxu0
    %v6075 = vadd.f32 %v5086, %v6074
    %v6076 = vpop.f32.mrb[0].mxu0
    %v6077 = vadd.f32 %v5090, %v6076
    %6078 = vmatprep.mubr.bf16.mxu0 %v4582
    %6079 = vmatmul.mubr.bf16.gmra.mrb[0].mxu0 %v4581
    %v6080 = vpop.f32.mrb[0].mxu0
    %v6081 = vadd.f32 %v5086, %v6080
    %v6082 = vpop.f32.mrb[0].mxu0
    %v6083 = vadd.f32 %v5090, %v6082
    %v6084 = vpop.f32.mrb[0].mxu0
    %v6085 = vadd.f32 %v5086, %v6084
    %v6086 = vpop.f32.mrb[0].mxu0
    %v6087 = vadd.f32 %v5090, %v6086
    %6088 = vmatprep.mubr.bf16.mxu0 %v4590
    %6089 = vmatmul.mubr.bf16.gmra.mrb[0].mxu0 %v4589
    %v6090 = vpop.f32.mrb[0].mxu0
    %v6091 = vadd.f32 %v5086, %v6090
    %v6092 = vpop.f32.mrb[0].mxu0
    %v6093 = vadd.f32 %v5090, %v6092
    %v6094 = vpop.f32.mrb[0].mxu0
    %v6095 = vadd.f32 %v5086, %v6094
    %v6096 = vpop.f32.mrb[0].mxu0
    %v6097 = vadd.f32 %v5090, %v6096
    %6098 = vmatprep.mubr.bf16.mxu0 %v4598
    %6099 = vmatmul.mubr.bf16.gmra.mrb[0].mxu0 %v4597
    %v6100 = vpop.f32.mrb[0].mxu0
    %v6101 = vadd.f32 %v5086, %v6100
    %v6102 = vpop.f32.mrb[0].mxu0
    %v6103 = vadd.f32 %v5090, %v6102
    %v6104 = vpop.f32.mrb[0].mxu0
    %v6105 = vadd.f32 %v5086, %v6104
    %v6106 = vpop.f32.mrb[0].mxu0
    %v6107 = vadd.f32 %v5090, %v6106
    %6108 = vmatprep.mubr.bf16.mxu0 %v4606
    %6109 = vmatmul.mubr.bf16.gmra.mrb[0].mxu0 %v4605
    %v6110 = vpop.f32.mrb[0].mxu0
    %v6111 = vadd.f32 %v5086, %v6110
    %v6112 = vpop.f32.mrb[0].mxu0
    %v6113 = vadd.f32 %v5090, %v6112
    %v6114 = vpop.f32.mrb[0].mxu0
    %v6115 = vadd.f32 %v5086, %v6114
    %v6116 = vpop.f32.mrb[0].mxu0
    %v6117 = vadd.f32 %v5090, %v6116
    %6118 = vdwg.mxu0
    %6119 = vmatprep.subr.bf16.mxu0 %v4734
    %6120 = vmatpush1.bf16.msra.mxu0 %v4733
    %6121 = vmatprep.subr.bf16.mxu0 %v4741
    %6122 = vmatpush1.bf16.msra.mxu0 %v4740
    %6123 = vmatprep.subr.bf16.mxu0 %v4748
    %6124 = vmatpush1.bf16.msra.mxu0 %v4747
    %6125 = vmatprep.subr.bf16.mxu0 %v4755
    %6126 = vmatpush1.bf16.msra.mxu0 %v4754
    %6127 = vmatprep.subr.bf16.mxu0 %v4762
    %6128 = vmatpush1.bf16.msra.mxu0 %v4761
    %6129 = vmatprep.subr.bf16.mxu0 %v4769
    %6130 = vmatpush1.bf16.msra.mxu0 %v4768
    %6131 = vmatprep.subr.bf16.mxu0 %v4776
    %6132 = vmatpush1.bf16.msra.mxu0 %v4775
    %6133 = vmatprep.subr.bf16.mxu0 %v4783
    %6134 = vmatpush1.bf16.msra.mxu0 %v4782
    %6135 = vmatprep.subr.bf16.mxu0 %v4790
    %6136 = vmatpush1.bf16.msra.mxu0 %v4789
    %6137 = vmatprep.subr.bf16.mxu0 %v4797
    %6138 = vmatpush1.bf16.msra.mxu0 %v4796
    %6139 = vmatprep.subr.bf16.mxu0 %v4804
    %6140 = vmatpush1.bf16.msra.mxu0 %v4803
    %6141 = vmatprep.subr.bf16.mxu0 %v4811
    %6142 = vmatpush1.bf16.msra.mxu0 %v4810
    %6143 = vmatprep.subr.bf16.mxu0 %v4818
    %6144 = vmatpush1.bf16.msra.mxu0 %v4817
    %6145 = vmatprep.subr.bf16.mxu0 %v4825
    %6146 = vmatpush1.bf16.msra.mxu0 %v4824
    %6147 = vmatprep.subr.bf16.mxu0 %v4832
    %6148 = vmatpush1.bf16.msra.mxu0 %v4831
    %6149 = vmatprep.subr.bf16.mxu0 %v4839
    %6150 = vmatpush1.bf16.msra.mxu0 %v4838
    %6151 = vmatprep.mubr.bf16.mxu0 %v4552
    %6152 = vmatmul.mubr.bf16.gmra.mrb[0].mxu0 %v4551
    %v6153 = vpop.f32.mrb[0].mxu0
    %v6154 = vadd.f32 %v6041, %v6153
    %v6155 = vpop.f32.mrb[0].mxu0
    %v6156 = vadd.f32 %v6043, %v6155
    %v6157 = vpop.f32.mrb[0].mxu0
    %v6158 = vadd.f32 %v6045, %v6157
    %v6159 = vpop.f32.mrb[0].mxu0
    %v6160 = vadd.f32 %v6047, %v6159
    %6161 = vmatprep.mubr.bf16.mxu0 %v4560
    %6162 = vmatmul.mubr.bf16.gmra.mrb[0].mxu0 %v4559
    %v6163 = vpop.f32.mrb[0].mxu0
    %v6164 = vadd.f32 %v6051, %v6163
    %v6165 = vpop.f32.mrb[0].mxu0
    %v6166 = vadd.f32 %v6053, %v6165
    %v6167 = vpop.f32.mrb[0].mxu0
    %v6168 = vadd.f32 %v6055, %v6167
    %v6169 = vpop.f32.mrb[0].mxu0
    %v6170 = vadd.f32 %v6057, %v6169
    %6171 = vmatprep.mubr.bf16.mxu0 %v4568
    %6172 = vmatmul.mubr.bf16.gmra.mrb[0].mxu0 %v4567
    %v6173 = vpop.f32.mrb[0].mxu0
    %v6174 = vadd.f32 %v6061, %v6173
    %v6175 = vpop.f32.mrb[0].mxu0
    %v6176 = vadd.f32 %v6063, %v6175
    %v6177 = vpop.f32.mrb[0].mxu0
    %v6178 = vadd.f32 %v6065, %v6177
    %v6179 = vpop.f32.mrb[0].mxu0
    %v6180 = vadd.f32 %v6067, %v6179
    %6181 = vmatprep.mubr.bf16.mxu0 %v4576
    %6182 = vmatmul.mubr.bf16.gmra.mrb[0].mxu0 %v4575
    %v6183 = vpop.f32.mrb[0].mxu0
    %v6184 = vadd.f32 %v6071, %v6183
    %v6185 = vpop.f32.mrb[0].mxu0
    %v6186 = vadd.f32 %v6073, %v6185
    %v6187 = vpop.f32.mrb[0].mxu0
    %v6188 = vadd.f32 %v6075, %v6187
    %v6189 = vpop.f32.mrb[0].mxu0
    %v6190 = vadd.f32 %v6077, %v6189
    %6191 = vmatprep.mubr.bf16.mxu0 %v4584
    %6192 = vmatmul.mubr.bf16.gmra.mrb[0].mxu0 %v4583
    %v6193 = vpop.f32.mrb[0].mxu0
    %v6194 = vadd.f32 %v6081, %v6193
    %v6195 = vpop.f32.mrb[0].mxu0
    %v6196 = vadd.f32 %v6083, %v6195
    %v6197 = vpop.f32.mrb[0].mxu0
    %v6198 = vadd.f32 %v6085, %v6197
    %v6199 = vpop.f32.mrb[0].mxu0
    %v6200 = vadd.f32 %v6087, %v6199
    %6201 = vmatprep.mubr.bf16.mxu0 %v4592
    %6202 = vmatmul.mubr.bf16.gmra.mrb[0].mxu0 %v4591
    %v6203 = vpop.f32.mrb[0].mxu0
    %v6204 = vadd.f32 %v6091, %v6203
    %v6205 = vpop.f32.mrb[0].mxu0
    %v6206 = vadd.f32 %v6093, %v6205
    %v6207 = vpop.f32.mrb[0].mxu0
    %v6208 = vadd.f32 %v6095, %v6207
    %v6209 = vpop.f32.mrb[0].mxu0
    %v6210 = vadd.f32 %v6097, %v6209
    %6211 = vmatprep.mubr.bf16.mxu0 %v4600
    %6212 = vmatmul.mubr.bf16.gmra.mrb[0].mxu0 %v4599
    %v6213 = vpop.f32.mrb[0].mxu0
    %v6214 = vadd.f32 %v6101, %v6213
    %v6215 = vpop.f32.mrb[0].mxu0
    %v6216 = vadd.f32 %v6103, %v6215
    %v6217 = vpop.f32.mrb[0].mxu0
    %v6218 = vadd.f32 %v6105, %v6217
    %v6219 = vpop.f32.mrb[0].mxu0
    %v6220 = vadd.f32 %v6107, %v6219
    %6221 = vmatprep.mubr.bf16.mxu0 %v4608
    %6222 = vmatmul.mubr.bf16.gmra.mrb[0].mxu0 %v4607
    %v6223 = vpop.f32.mrb[0].mxu0
    %v6224 = vadd.f32 %v6111, %v6223
    %v6225 = vpop.f32.mrb[0].mxu0
    %v6226 = vadd.f32 %v6113, %v6225
    %v6227 = vpop.f32.mrb[0].mxu0
    %v6228 = vadd.f32 %v6115, %v6227
    %v6229 = vpop.f32.mrb[0].mxu0
    %v6230 = vadd.f32 %v6117, %v6229
    %6231 = vdwg.mxu0
    %6232 = vmatprep.subr.bf16.mxu0 %v4846
    %6233 = vmatpush1.bf16.msra.mxu0 %v4845
    %6234 = vmatprep.subr.bf16.mxu0 %v4853
    %6235 = vmatpush1.bf16.msra.mxu0 %v4852
    %6236 = vmatprep.subr.bf16.mxu0 %v4860
    %6237 = vmatpush1.bf16.msra.mxu0 %v4859
    %6238 = vmatprep.subr.bf16.mxu0 %v4867
    %6239 = vmatpush1.bf16.msra.mxu0 %v4866
    %6240 = vmatprep.subr.bf16.mxu0 %v4874
    %6241 = vmatpush1.bf16.msra.mxu0 %v4873
    %6242 = vmatprep.subr.bf16.mxu0 %v4881
    %6243 = vmatpush1.bf16.msra.mxu0 %v4880
    %6244 = vmatprep.subr.bf16.mxu0 %v4888
    %6245 = vmatpush1.bf16.msra.mxu0 %v4887
    %6246 = vmatprep.subr.bf16.mxu0 %v4895
    %6247 = vmatpush1.bf16.msra.mxu0 %v4894
    %6248 = vmatprep.subr.bf16.mxu0 %v4902
    %6249 = vmatpush1.bf16.msra.mxu0 %v4901
    %6250 = vmatprep.subr.bf16.mxu0 %v4909
    %6251 = vmatpush1.bf16.msra.mxu0 %v4908
    %6252 = vmatprep.subr.bf16.mxu0 %v4916
    %6253 = vmatpush1.bf16.msra.mxu0 %v4915
    %6254 = vmatprep.subr.bf16.mxu0 %v4923
    %6255 = vmatpush1.bf16.msra.mxu0 %v4922
    %6256 = vmatprep.subr.bf16.mxu0 %v4930
    %6257 = vmatpush1.bf16.msra.mxu0 %v4929
    %6258 = vmatprep.subr.bf16.mxu0 %v4937
    %6259 = vmatpush1.bf16.msra.mxu0 %v4936
    %6260 = vmatprep.subr.bf16.mxu0 %v4944
    %6261 = vmatpush1.bf16.msra.mxu0 %v4943
    %6262 = vmatprep.subr.bf16.mxu0 %v4951
    %6263 = vmatpush1.bf16.msra.mxu0 %v4950
    %6264 = vmatprep.mubr.bf16.mxu0 %v4554
    %6265 = vmatmul.mubr.bf16.gmra.mrb[0].mxu0 %v4553
    %v6266 = vpop.f32.mrb[0].mxu0
    %v6267 = vadd.f32 %v6154, %v6266
    %v6268 = vpop.f32.mrb[0].mxu0
    %v6269 = vadd.f32 %v6156, %v6268
    %v6270 = vpop.f32.mrb[0].mxu0
    %v6271 = vadd.f32 %v6158, %v6270
    %v6272 = vpop.f32.mrb[0].mxu0
    %v6273 = vadd.f32 %v6160, %v6272
    %6274 = vmatprep.mubr.bf16.mxu0 %v4562
    %6275 = vmatmul.mubr.bf16.gmra.mrb[0].mxu0 %v4561
    %v6276 = vpop.f32.mrb[0].mxu0
    %v6277 = vadd.f32 %v6164, %v6276
    %v6278 = vpop.f32.mrb[0].mxu0
    %v6279 = vadd.f32 %v6166, %v6278
    %v6280 = vpop.f32.mrb[0].mxu0
    %v6281 = vadd.f32 %v6168, %v6280
    %v6282 = vpop.f32.mrb[0].mxu0
    %v6283 = vadd.f32 %v6170, %v6282
    %6284 = vmatprep.mubr.bf16.mxu0 %v4570
    %6285 = vmatmul.mubr.bf16.gmra.mrb[0].mxu0 %v4569
    %v6286 = vpop.f32.mrb[0].mxu0
    %v6287 = vadd.f32 %v6174, %v6286
    %v6288 = vpop.f32.mrb[0].mxu0
    %v6289 = vadd.f32 %v6176, %v6288
    %v6290 = vpop.f32.mrb[0].mxu0
    %v6291 = vadd.f32 %v6178, %v6290
    %v6292 = vpop.f32.mrb[0].mxu0
    %v6293 = vadd.f32 %v6180, %v6292
    %6294 = vmatprep.mubr.bf16.mxu0 %v4578
    %6295 = vmatmul.mubr.bf16.gmra.mrb[0].mxu0 %v4577
    %v6296 = vpop.f32.mrb[0].mxu0
    %v6297 = vadd.f32 %v6184, %v6296
    %v6298 = vpop.f32.mrb[0].mxu0
    %v6299 = vadd.f32 %v6186, %v6298
    %v6300 = vpop.f32.mrb[0].mxu0
    %v6301 = vadd.f32 %v6188, %v6300
    %v6302 = vpop.f32.mrb[0].mxu0
    %v6303 = vadd.f32 %v6190, %v6302
    %6304 = vmatprep.mubr.bf16.mxu0 %v4586
    %6305 = vmatmul.mubr.bf16.gmra.mrb[0].mxu0 %v4585
    %v6306 = vpop.f32.mrb[0].mxu0
    %v6307 = vadd.f32 %v6194, %v6306
    %v6308 = vpop.f32.mrb[0].mxu0
    %v6309 = vadd.f32 %v6196, %v6308
    %v6310 = vpop.f32.mrb[0].mxu0
    %v6311 = vadd.f32 %v6198, %v6310
    %v6312 = vpop.f32.mrb[0].mxu0
    %v6313 = vadd.f32 %v6200, %v6312
    %6314 = vmatprep.mubr.bf16.mxu0 %v4594
    %6315 = vmatmul.mubr.bf16.gmra.mrb[0].mxu0 %v4593
    %v6316 = vpop.f32.mrb[0].mxu0
    %v6317 = vadd.f32 %v6204, %v6316
    %v6318 = vpop.f32.mrb[0].mxu0
    %v6319 = vadd.f32 %v6206, %v6318
    %v6320 = vpop.f32.mrb[0].mxu0
    %v6321 = vadd.f32 %v6208, %v6320
    %v6322 = vpop.f32.mrb[0].mxu0
    %v6323 = vadd.f32 %v6210, %v6322
    %6324 = vmatprep.mubr.bf16.mxu0 %v4602
    %6325 = vmatmul.mubr.bf16.gmra.mrb[0].mxu0 %v4601
    %v6326 = vpop.f32.mrb[0].mxu0
    %v6327 = vadd.f32 %v6214, %v6326
    %v6328 = vpop.f32.mrb[0].mxu0
    %v6329 = vadd.f32 %v6216, %v6328
    %v6330 = vpop.f32.mrb[0].mxu0
    %v6331 = vadd.f32 %v6218, %v6330
    %v6332 = vpop.f32.mrb[0].mxu0
    %v6333 = vadd.f32 %v6220, %v6332
    %6334 = vmatprep.mubr.bf16.mxu0 %v4610
    %6335 = vmatmul.mubr.bf16.gmra.mrb[0].mxu0 %v4609
    %v6336 = vpop.f32.mrb[0].mxu0
    %v6337 = vadd.f32 %v6224, %v6336
    %v6338 = vpop.f32.mrb[0].mxu0
    %v6339 = vadd.f32 %v6226, %v6338
    %v6340 = vpop.f32.mrb[0].mxu0
    %v6341 = vadd.f32 %v6228, %v6340
    %v6342 = vpop.f32.mrb[0].mxu0
    %v6343 = vadd.f32 %v6230, %v6342
    %6344 = vdwg.mxu0
    %6345 = vmatprep.subr.bf16.mxu0 %v4958
    %6346 = vmatpush1.bf16.msra.mxu0 %v4957
    %6347 = vmatprep.subr.bf16.mxu0 %v4965
    %6348 = vmatpush1.bf16.msra.mxu0 %v4964
    %6349 = vmatprep.subr.bf16.mxu0 %v4972
    %6350 = vmatpush1.bf16.msra.mxu0 %v4971
    %6351 = vmatprep.subr.bf16.mxu0 %v4979
    %6352 = vmatpush1.bf16.msra.mxu0 %v4978
    %6353 = vmatprep.subr.bf16.mxu0 %v4986
    %6354 = vmatpush1.bf16.msra.mxu0 %v4985
    %6355 = vmatprep.subr.bf16.mxu0 %v4993
    %6356 = vmatpush1.bf16.msra.mxu0 %v4992
    %6357 = vmatprep.subr.bf16.mxu0 %v5000
    %6358 = vmatpush1.bf16.msra.mxu0 %v4999
    %6359 = vmatprep.subr.bf16.mxu0 %v5007
    %6360 = vmatpush1.bf16.msra.mxu0 %v5006
    %6361 = vmatprep.subr.bf16.mxu0 %v5014
    %6362 = vmatpush1.bf16.msra.mxu0 %v5013
    %6363 = vmatprep.subr.bf16.mxu0 %v5021
    %6364 = vmatpush1.bf16.msra.mxu0 %v5020
    %6365 = vmatprep.subr.bf16.mxu0 %v5028
    %6366 = vmatpush1.bf16.msra.mxu0 %v5027
    %6367 = vmatprep.subr.bf16.mxu0 %v5035
    %6368 = vmatpush1.bf16.msra.mxu0 %v5034
    %6369 = vmatprep.subr.bf16.mxu0 %v5042
    %6370 = vmatpush1.bf16.msra.mxu0 %v5041
    %6371 = vmatprep.subr.bf16.mxu0 %v5049
    %6372 = vmatpush1.bf16.msra.mxu0 %v5048
    %6373 = vmatprep.subr.bf16.mxu0 %v5056
    %6374 = vmatpush1.bf16.msra.mxu0 %v5055
    %6375 = vmatprep.subr.bf16.mxu0 %v5063
    %6376 = vmatpush1.bf16.msra.mxu0 %v5062
    %6377 = vmatprep.mubr.bf16.mxu0 %v4556
    %6378 = vmatmul.mubr.bf16.gmra.mrb[0].mxu0 %v4555
    %v6379 = vpop.f32.mrb[0].mxu0
    %v6380 = vadd.f32 %v6267, %v6379
    %v6381 = vpop.f32.mrb[0].mxu0
    %v6382 = vadd.f32 %v6269, %v6381
    %v6383 = vpop.f32.mrb[0].mxu0
    %v6384 = vadd.f32 %v6271, %v6383
    %v6385 = vpop.f32.mrb[0].mxu0
    %v6386 = vadd.f32 %v6273, %v6385
    %6387 = vmatprep.mubr.bf16.mxu0 %v4564
    %6388 = vmatmul.mubr.bf16.gmra.mrb[0].mxu0 %v4563
    %v6389 = vpop.f32.mrb[0].mxu0
    %v6390 = vadd.f32 %v6277, %v6389
    %v6391 = vpop.f32.mrb[0].mxu0
    %v6392 = vadd.f32 %v6279, %v6391
    %v6393 = vpop.f32.mrb[0].mxu0
    %v6394 = vadd.f32 %v6281, %v6393
    %v6395 = vpop.f32.mrb[0].mxu0
    %v6396 = vadd.f32 %v6283, %v6395
    %6397 = vmatprep.mubr.bf16.mxu0 %v4572
    %6398 = vmatmul.mubr.bf16.gmra.mrb[0].mxu0 %v4571
    %v6399 = vpop.f32.mrb[0].mxu0
    %v6400 = vadd.f32 %v6287, %v6399
    %v6401 = vpop.f32.mrb[0].mxu0
    %v6402 = vadd.f32 %v6289, %v6401
    %v6403 = vpop.f32.mrb[0].mxu0
    %v6404 = vadd.f32 %v6291, %v6403
    %v6405 = vpop.f32.mrb[0].mxu0
    %v6406 = vadd.f32 %v6293, %v6405
    %6407 = vmatprep.mubr.bf16.mxu0 %v4580
    %6408 = vmatmul.mubr.bf16.gmra.mrb[0].mxu0 %v4579
    %v6409 = vpop.f32.mrb[0].mxu0
    %v6410 = vadd.f32 %v6297, %v6409
    %v6411 = vpop.f32.mrb[0].mxu0
    %v6412 = vadd.f32 %v6299, %v6411
    %v6413 = vpop.f32.mrb[0].mxu0
    %v6414 = vadd.f32 %v6301, %v6413
    %v6415 = vpop.f32.mrb[0].mxu0
    %v6416 = vadd.f32 %v6303, %v6415
    %6417 = vmatprep.mubr.bf16.mxu0 %v4588
    %6418 = vmatmul.mubr.bf16.gmra.mrb[0].mxu0 %v4587
    %v6419 = vpop.f32.mrb[0].mxu0
    %v6420 = vadd.f32 %v6307, %v6419
    %v6421 = vpop.f32.mrb[0].mxu0
    %v6422 = vadd.f32 %v6309, %v6421
    %v6423 = vpop.f32.mrb[0].mxu0
    %v6424 = vadd.f32 %v6311, %v6423
    %v6425 = vpop.f32.mrb[0].mxu0
    %v6426 = vadd.f32 %v6313, %v6425
    %6427 = vmatprep.mubr.bf16.mxu0 %v4596
    %6428 = vmatmul.mubr.bf16.gmra.mrb[0].mxu0 %v4595
    %v6429 = vpop.f32.mrb[0].mxu0
    %v6430 = vadd.f32 %v6317, %v6429
    %v6431 = vpop.f32.mrb[0].mxu0
    %v6432 = vadd.f32 %v6319, %v6431
    %v6433 = vpop.f32.mrb[0].mxu0
    %v6434 = vadd.f32 %v6321, %v6433
    %v6435 = vpop.f32.mrb[0].mxu0
    %v6436 = vadd.f32 %v6323, %v6435
    %6437 = vmatprep.mubr.bf16.mxu0 %v4604
    %6438 = vmatmul.mubr.bf16.gmra.mrb[0].mxu0 %v4603
    %v6439 = vpop.f32.mrb[0].mxu0
    %v6440 = vadd.f32 %v6327, %v6439
    %v6441 = vpop.f32.mrb[0].mxu0
    %v6442 = vadd.f32 %v6329, %v6441
    %v6443 = vpop.f32.mrb[0].mxu0
    %v6444 = vadd.f32 %v6331, %v6443
    %v6445 = vpop.f32.mrb[0].mxu0
    %v6446 = vadd.f32 %v6333, %v6445
    %6447 = vmatprep.mubr.bf16.mxu0 %v4612
    %6448 = vmatmul.mubr.bf16.gmra.mrb[0].mxu0 %v4611
    %v6449 = vpop.f32.mrb[0].mxu0
    %v6450 = vadd.f32 %v6337, %v6449
    %v6451 = vpop.f32.mrb[0].mxu0
    %v6452 = vadd.f32 %v6339, %v6451
    %v6453 = vpop.f32.mrb[0].mxu0
    %v6454 = vadd.f32 %v6341, %v6453
    %v6455 = vpop.f32.mrb[0].mxu0
    %v6456 = vadd.f32 %v6343, %v6455
    %6457 = vdwg.mxu0
    %6458 = vmatprep.subr.bf16.mxu0 0
    %6459 = vmatpush1.bf16.msra.mxu0 %v4623
    %6460 = vmatprep.subr.bf16.mxu0 0
    %6461 = vmatpush1.bf16.msra.mxu0 %v4630
    %6462 = vmatprep.subr.bf16.mxu0 0
    %6463 = vmatpush1.bf16.msra.mxu0 %v4637
    %6464 = vmatprep.subr.bf16.mxu0 0
    %6465 = vmatpush1.bf16.msra.mxu0 %v4644
    %6466 = vmatprep.subr.bf16.mxu0 0
    %6467 = vmatpush1.bf16.msra.mxu0 %v4651
    %6468 = vmatprep.subr.bf16.mxu0 0
    %6469 = vmatpush1.bf16.msra.mxu0 %v4658
    %6470 = vmatprep.subr.bf16.mxu0 0
    %6471 = vmatpush1.bf16.msra.mxu0 %v4665
    %6472 = vmatprep.subr.bf16.mxu0 0
    %6473 = vmatpush1.bf16.msra.mxu0 %v4672
    %6474 = vmatprep.subr.bf16.mxu0 0
    %6475 = vmatpush1.bf16.msra.mxu0 %v4679
    %6476 = vmatprep.subr.bf16.mxu0 0
    %6477 = vmatpush1.bf16.msra.mxu0 %v4686
    %6478 = vmatprep.subr.bf16.mxu0 0
    %6479 = vmatpush1.bf16.msra.mxu0 %v4693
    %6480 = vmatprep.subr.bf16.mxu0 0
    %6481 = vmatpush1.bf16.msra.mxu0 %v4700
    %6482 = vmatprep.subr.bf16.mxu0 0
    %6483 = vmatpush1.bf16.msra.mxu0 %v4707
    %6484 = vmatprep.subr.bf16.mxu0 0
    %6485 = vmatpush1.bf16.msra.mxu0 %v4714
    %6486 = vmatprep.subr.bf16.mxu0 0
    %6487 = vmatpush1.bf16.msra.mxu0 %v4721
    %6488 = vmatprep.subr.bf16.mxu0 0
    %6489 = vmatpush1.bf16.msra.mxu0 %v4728
    %6490 = vmatprep.mubr.bf16.mxu0 %v4550
    %6491 = vmatmul.mubr.bf16.gmra.mrb[0].mxu0 %v4549
    %v6492 = vpop.f32.mrb[0].mxu0
    %v6493 = vadd.f32 %v5094, %v6492
    %v6494 = vpop.f32.mrb[0].mxu0
    %v6495 = vpop.f32.mrb[0].mxu0
    %v6496 = vadd.f32 %v5094, %v6495
    %v6497 = vpop.f32.mrb[0].mxu0
    %6498 = vmatprep.mubr.bf16.mxu0 %v4558
    %6499 = vmatmul.mubr.bf16.gmra.mrb[0].mxu0 %v4557
    %v6500 = vpop.f32.mrb[0].mxu0
    %v6501 = vadd.f32 %v5094, %v6500
    %v6502 = vpop.f32.mrb[0].mxu0
    %v6503 = vpop.f32.mrb[0].mxu0
    %v6504 = vadd.f32 %v5094, %v6503
    %v6505 = vpop.f32.mrb[0].mxu0
    %6506 = vmatprep.mubr.bf16.mxu0 %v4566
    %6507 = vmatmul.mubr.bf16.gmra.mrb[0].mxu0 %v4565
    %v6508 = vpop.f32.mrb[0].mxu0
    %v6509 = vadd.f32 %v5094, %v6508
    %v6510 = vpop.f32.mrb[0].mxu0
    %v6511 = vpop.f32.mrb[0].mxu0
    %v6512 = vadd.f32 %v5094, %v6511
    %v6513 = vpop.f32.mrb[0].mxu0
    %6514 = vmatprep.mubr.bf16.mxu0 %v4574
    %6515 = vmatmul.mubr.bf16.gmra.mrb[0].mxu0 %v4573
    %v6516 = vpop.f32.mrb[0].mxu0
    %v6517 = vadd.f32 %v5094, %v6516
    %v6518 = vpop.f32.mrb[0].mxu0
    %v6519 = vpop.f32.mrb[0].mxu0
    %v6520 = vadd.f32 %v5094, %v6519
    %v6521 = vpop.f32.mrb[0].mxu0
    %6522 = vmatprep.mubr.bf16.mxu0 %v4582
    %6523 = vmatmul.mubr.bf16.gmra.mrb[0].mxu0 %v4581
    %v6524 = vpop.f32.mrb[0].mxu0
    %v6525 = vadd.f32 %v5094, %v6524
    %v6526 = vpop.f32.mrb[0].mxu0
    %v6527 = vpop.f32.mrb[0].mxu0
    %v6528 = vadd.f32 %v5094, %v6527
    %v6529 = vpop.f32.mrb[0].mxu0
    %6530 = vmatprep.mubr.bf16.mxu0 %v4590
    %6531 = vmatmul.mubr.bf16.gmra.mrb[0].mxu0 %v4589
    %v6532 = vpop.f32.mrb[0].mxu0
    %v6533 = vadd.f32 %v5094, %v6532
    %v6534 = vpop.f32.mrb[0].mxu0
    %v6535 = vpop.f32.mrb[0].mxu0
    %v6536 = vadd.f32 %v5094, %v6535
    %v6537 = vpop.f32.mrb[0].mxu0
    %6538 = vmatprep.mubr.bf16.mxu0 %v4598
    %6539 = vmatmul.mubr.bf16.gmra.mrb[0].mxu0 %v4597
    %v6540 = vpop.f32.mrb[0].mxu0
    %v6541 = vadd.f32 %v5094, %v6540
    %v6542 = vpop.f32.mrb[0].mxu0
    %v6543 = vpop.f32.mrb[0].mxu0
    %v6544 = vadd.f32 %v5094, %v6543
    %v6545 = vpop.f32.mrb[0].mxu0
    %6546 = vmatprep.mubr.bf16.mxu0 %v4606
    %6547 = vmatmul.mubr.bf16.gmra.mrb[0].mxu0 %v4605
    %v6548 = vpop.f32.mrb[0].mxu0
    %v6549 = vadd.f32 %v5094, %v6548
    %v6550 = vpop.f32.mrb[0].mxu0
    %v6551 = vpop.f32.mrb[0].mxu0
    %v6552 = vadd.f32 %v5094, %v6551
    %v6553 = vpop.f32.mrb[0].mxu0
    %6554 = vdwg.mxu0
    %6555 = vmatprep.subr.bf16.mxu0 0
    %6556 = vmatpush1.bf16.msra.mxu0 %v4735
    %6557 = vmatprep.subr.bf16.mxu0 0
    %6558 = vmatpush1.bf16.msra.mxu0 %v4742
    %6559 = vmatprep.subr.bf16.mxu0 0
    %6560 = vmatpush1.bf16.msra.mxu0 %v4749
    %6561 = vmatprep.subr.bf16.mxu0 0
    %6562 = vmatpush1.bf16.msra.mxu0 %v4756
    %6563 = vmatprep.subr.bf16.mxu0 0
    %6564 = vmatpush1.bf16.msra.mxu0 %v4763
    %6565 = vmatprep.subr.bf16.mxu0 0
    %6566 = vmatpush1.bf16.msra.mxu0 %v4770
    %6567 = vmatprep.subr.bf16.mxu0 0
    %6568 = vmatpush1.bf16.msra.mxu0 %v4777
    %6569 = vmatprep.subr.bf16.mxu0 0
    %6570 = vmatpush1.bf16.msra.mxu0 %v4784
    %6571 = vmatprep.subr.bf16.mxu0 0
    %6572 = vmatpush1.bf16.msra.mxu0 %v4791
    %6573 = vmatprep.subr.bf16.mxu0 0
    %6574 = vmatpush1.bf16.msra.mxu0 %v4798
    %6575 = vmatprep.subr.bf16.mxu0 0
    %6576 = vmatpush1.bf16.msra.mxu0 %v4805
    %6577 = vmatprep.subr.bf16.mxu0 0
    %6578 = vmatpush1.bf16.msra.mxu0 %v4812
    %6579 = vmatprep.subr.bf16.mxu0 0
    %6580 = vmatpush1.bf16.msra.mxu0 %v4819
    %6581 = vmatprep.subr.bf16.mxu0 0
    %6582 = vmatpush1.bf16.msra.mxu0 %v4826
    %6583 = vmatprep.subr.bf16.mxu0 0
    %6584 = vmatpush1.bf16.msra.mxu0 %v4833
    %6585 = vmatprep.subr.bf16.mxu0 0
    %6586 = vmatpush1.bf16.msra.mxu0 %v4840
    %6587 = vmatprep.mubr.bf16.mxu0 %v4552
    %6588 = vmatmul.mubr.bf16.gmra.mrb[0].mxu0 %v4551
    %v6589 = vpop.f32.mrb[0].mxu0
    %v6590 = vadd.f32 %v6493, %v6589
    %v6591 = vpop.f32.mrb[0].mxu0
    %v6592 = vpop.f32.mrb[0].mxu0
    %v6593 = vadd.f32 %v6496, %v6592
    %v6594 = vpop.f32.mrb[0].mxu0
    %6595 = vmatprep.mubr.bf16.mxu0 %v4560
    %6596 = vmatmul.mubr.bf16.gmra.mrb[0].mxu0 %v4559
    %v6597 = vpop.f32.mrb[0].mxu0
    %v6598 = vadd.f32 %v6501, %v6597
    %v6599 = vpop.f32.mrb[0].mxu0
    %v6600 = vpop.f32.mrb[0].mxu0
    %v6601 = vadd.f32 %v6504, %v6600
    %v6602 = vpop.f32.mrb[0].mxu0
    %6603 = vmatprep.mubr.bf16.mxu0 %v4568
    %6604 = vmatmul.mubr.bf16.gmra.mrb[0].mxu0 %v4567
    %v6605 = vpop.f32.mrb[0].mxu0
    %v6606 = vadd.f32 %v6509, %v6605
    %v6607 = vpop.f32.mrb[0].mxu0
    %v6608 = vpop.f32.mrb[0].mxu0
    %v6609 = vadd.f32 %v6512, %v6608
    %v6610 = vpop.f32.mrb[0].mxu0
    %6611 = vmatprep.mubr.bf16.mxu0 %v4576
    %6612 = vmatmul.mubr.bf16.gmra.mrb[0].mxu0 %v4575
    %v6613 = vpop.f32.mrb[0].mxu0
    %v6614 = vadd.f32 %v6517, %v6613
    %v6615 = vpop.f32.mrb[0].mxu0
    %v6616 = vpop.f32.mrb[0].mxu0
    %v6617 = vadd.f32 %v6520, %v6616
    %v6618 = vpop.f32.mrb[0].mxu0
    %6619 = vmatprep.mubr.bf16.mxu0 %v4584
    %6620 = vmatmul.mubr.bf16.gmra.mrb[0].mxu0 %v4583
    %v6621 = vpop.f32.mrb[0].mxu0
    %v6622 = vadd.f32 %v6525, %v6621
    %v6623 = vpop.f32.mrb[0].mxu0
    %v6624 = vpop.f32.mrb[0].mxu0
    %v6625 = vadd.f32 %v6528, %v6624
    %v6626 = vpop.f32.mrb[0].mxu0
    %6627 = vmatprep.mubr.bf16.mxu0 %v4592
    %6628 = vmatmul.mubr.bf16.gmra.mrb[0].mxu0 %v4591
    %v6629 = vpop.f32.mrb[0].mxu0
    %v6630 = vadd.f32 %v6533, %v6629
    %v6631 = vpop.f32.mrb[0].mxu0
    %v6632 = vpop.f32.mrb[0].mxu0
    %v6633 = vadd.f32 %v6536, %v6632
    %v6634 = vpop.f32.mrb[0].mxu0
    %6635 = vmatprep.mubr.bf16.mxu0 %v4600
    %6636 = vmatmul.mubr.bf16.gmra.mrb[0].mxu0 %v4599
    %v6637 = vpop.f32.mrb[0].mxu0
    %v6638 = vadd.f32 %v6541, %v6637
    %v6639 = vpop.f32.mrb[0].mxu0
    %v6640 = vpop.f32.mrb[0].mxu0
    %v6641 = vadd.f32 %v6544, %v6640
    %v6642 = vpop.f32.mrb[0].mxu0
    %6643 = vmatprep.mubr.bf16.mxu0 %v4608
    %6644 = vmatmul.mubr.bf16.gmra.mrb[0].mxu0 %v4607
    %v6645 = vpop.f32.mrb[0].mxu0
    %v6646 = vadd.f32 %v6549, %v6645
    %v6647 = vpop.f32.mrb[0].mxu0
    %v6648 = vpop.f32.mrb[0].mxu0
    %v6649 = vadd.f32 %v6552, %v6648
    %v6650 = vpop.f32.mrb[0].mxu0
    %6651 = vdwg.mxu0
    %6652 = vmatprep.subr.bf16.mxu0 0
    %6653 = vmatpush1.bf16.msra.mxu0 %v4847
    %6654 = vmatprep.subr.bf16.mxu0 0
    %6655 = vmatpush1.bf16.msra.mxu0 %v4854
    %6656 = vmatprep.subr.bf16.mxu0 0
    %6657 = vmatpush1.bf16.msra.mxu0 %v4861
    %6658 = vmatprep.subr.bf16.mxu0 0
    %6659 = vmatpush1.bf16.msra.mxu0 %v4868
    %6660 = vmatprep.subr.bf16.mxu0 0
    %6661 = vmatpush1.bf16.msra.mxu0 %v4875
    %6662 = vmatprep.subr.bf16.mxu0 0
    %6663 = vmatpush1.bf16.msra.mxu0 %v4882
    %6664 = vmatprep.subr.bf16.mxu0 0
    %6665 = vmatpush1.bf16.msra.mxu0 %v4889
    %6666 = vmatprep.subr.bf16.mxu0 0
    %6667 = vmatpush1.bf16.msra.mxu0 %v4896
    %6668 = vmatprep.subr.bf16.mxu0 0
    %6669 = vmatpush1.bf16.msra.mxu0 %v4903
    %6670 = vmatprep.subr.bf16.mxu0 0
    %6671 = vmatpush1.bf16.msra.mxu0 %v4910
    %6672 = vmatprep.subr.bf16.mxu0 0
    %6673 = vmatpush1.bf16.msra.mxu0 %v4917
    %6674 = vmatprep.subr.bf16.mxu0 0
    %6675 = vmatpush1.bf16.msra.mxu0 %v4924
    %6676 = vmatprep.subr.bf16.mxu0 0
    %6677 = vmatpush1.bf16.msra.mxu0 %v4931
    %6678 = vmatprep.subr.bf16.mxu0 0
    %6679 = vmatpush1.bf16.msra.mxu0 %v4938
    %6680 = vmatprep.subr.bf16.mxu0 0
    %6681 = vmatpush1.bf16.msra.mxu0 %v4945
    %6682 = vmatprep.subr.bf16.mxu0 0
    %6683 = vmatpush1.bf16.msra.mxu0 %v4952
    %6684 = vmatprep.mubr.bf16.mxu0 %v4554
    %6685 = vmatmul.mubr.bf16.gmra.mrb[0].mxu0 %v4553
    %v6686 = vpop.f32.mrb[0].mxu0
    %v6687 = vadd.f32 %v6590, %v6686
    %v6688 = vpop.f32.mrb[0].mxu0
    %v6689 = vpop.f32.mrb[0].mxu0
    %v6690 = vadd.f32 %v6593, %v6689
    %v6691 = vpop.f32.mrb[0].mxu0
    %6692 = vmatprep.mubr.bf16.mxu0 %v4562
    %6693 = vmatmul.mubr.bf16.gmra.mrb[0].mxu0 %v4561
    %v6694 = vpop.f32.mrb[0].mxu0
    %v6695 = vadd.f32 %v6598, %v6694
    %v6696 = vpop.f32.mrb[0].mxu0
    %v6697 = vpop.f32.mrb[0].mxu0
    %v6698 = vadd.f32 %v6601, %v6697
    %v6699 = vpop.f32.mrb[0].mxu0
    %6700 = vmatprep.mubr.bf16.mxu0 %v4570
    %6701 = vmatmul.mubr.bf16.gmra.mrb[0].mxu0 %v4569
    %v6702 = vpop.f32.mrb[0].mxu0
    %v6703 = vadd.f32 %v6606, %v6702
    %v6704 = vpop.f32.mrb[0].mxu0
    %v6705 = vpop.f32.mrb[0].mxu0
    %v6706 = vadd.f32 %v6609, %v6705
    %v6707 = vpop.f32.mrb[0].mxu0
    %6708 = vmatprep.mubr.bf16.mxu0 %v4578
    %6709 = vmatmul.mubr.bf16.gmra.mrb[0].mxu0 %v4577
    %v6710 = vpop.f32.mrb[0].mxu0
    %v6711 = vadd.f32 %v6614, %v6710
    %v6712 = vpop.f32.mrb[0].mxu0
    %v6713 = vpop.f32.mrb[0].mxu0
    %v6714 = vadd.f32 %v6617, %v6713
    %v6715 = vpop.f32.mrb[0].mxu0
    %6716 = vmatprep.mubr.bf16.mxu0 %v4586
    %6717 = vmatmul.mubr.bf16.gmra.mrb[0].mxu0 %v4585
    %v6718 = vpop.f32.mrb[0].mxu0
    %v6719 = vadd.f32 %v6622, %v6718
    %v6720 = vpop.f32.mrb[0].mxu0
    %v6721 = vpop.f32.mrb[0].mxu0
    %v6722 = vadd.f32 %v6625, %v6721
    %v6723 = vpop.f32.mrb[0].mxu0
    %6724 = vmatprep.mubr.bf16.mxu0 %v4594
    %6725 = vmatmul.mubr.bf16.gmra.mrb[0].mxu0 %v4593
    %v6726 = vpop.f32.mrb[0].mxu0
    %v6727 = vadd.f32 %v6630, %v6726
    %v6728 = vpop.f32.mrb[0].mxu0
    %v6729 = vpop.f32.mrb[0].mxu0
    %v6730 = vadd.f32 %v6633, %v6729
    %v6731 = vpop.f32.mrb[0].mxu0
    %6732 = vmatprep.mubr.bf16.mxu0 %v4602
    %6733 = vmatmul.mubr.bf16.gmra.mrb[0].mxu0 %v4601
    %v6734 = vpop.f32.mrb[0].mxu0
    %v6735 = vadd.f32 %v6638, %v6734
    %v6736 = vpop.f32.mrb[0].mxu0
    %v6737 = vpop.f32.mrb[0].mxu0
    %v6738 = vadd.f32 %v6641, %v6737
    %v6739 = vpop.f32.mrb[0].mxu0
    %6740 = vmatprep.mubr.bf16.mxu0 %v4610
    %6741 = vmatmul.mubr.bf16.gmra.mrb[0].mxu0 %v4609
    %v6742 = vpop.f32.mrb[0].mxu0
    %v6743 = vadd.f32 %v6646, %v6742
    %v6744 = vpop.f32.mrb[0].mxu0
    %v6745 = vpop.f32.mrb[0].mxu0
    %v6746 = vadd.f32 %v6649, %v6745
    %v6747 = vpop.f32.mrb[0].mxu0
    %6748 = vdwg.mxu0
    %6749 = vmatprep.subr.bf16.mxu0 0
    %6750 = vmatpush1.bf16.msra.mxu0 %v4959
    %6751 = vmatprep.subr.bf16.mxu0 0
    %6752 = vmatpush1.bf16.msra.mxu0 %v4966
    %6753 = vmatprep.subr.bf16.mxu0 0
    %6754 = vmatpush1.bf16.msra.mxu0 %v4973
    %6755 = vmatprep.subr.bf16.mxu0 0
    %6756 = vmatpush1.bf16.msra.mxu0 %v4980
    %6757 = vmatprep.subr.bf16.mxu0 0
    %6758 = vmatpush1.bf16.msra.mxu0 %v4987
    %6759 = vmatprep.subr.bf16.mxu0 0
    %6760 = vmatpush1.bf16.msra.mxu0 %v4994
    %6761 = vmatprep.subr.bf16.mxu0 0
    %6762 = vmatpush1.bf16.msra.mxu0 %v5001
    %6763 = vmatprep.subr.bf16.mxu0 0
    %6764 = vmatpush1.bf16.msra.mxu0 %v5008
    %6765 = vmatprep.subr.bf16.mxu0 0
    %6766 = vmatpush1.bf16.msra.mxu0 %v5015
    %6767 = vmatprep.subr.bf16.mxu0 0
    %6768 = vmatpush1.bf16.msra.mxu0 %v5022
    %6769 = vmatprep.subr.bf16.mxu0 0
    %6770 = vmatpush1.bf16.msra.mxu0 %v5029
    %6771 = vmatprep.subr.bf16.mxu0 0
    %6772 = vmatpush1.bf16.msra.mxu0 %v5036
    %6773 = vmatprep.subr.bf16.mxu0 0
    %6774 = vmatpush1.bf16.msra.mxu0 %v5043
    %6775 = vmatprep.subr.bf16.mxu0 0
    %6776 = vmatpush1.bf16.msra.mxu0 %v5050
    %6777 = vmatprep.subr.bf16.mxu0 0
    %6778 = vmatpush1.bf16.msra.mxu0 %v5057
    %6779 = vmatprep.subr.bf16.mxu0 0
    %6780 = vmatpush1.bf16.msra.mxu0 %v5064
    %6781 = vmatprep.mubr.bf16.mxu0 %v4556
    %6782 = vmatmul.mubr.bf16.gmra.mrb[0].mxu0 %v4555
    %v6783 = vpop.f32.mrb[0].mxu0
    %v6784 = vadd.f32 %v6687, %v6783
    %v6785 = vpop.f32.mrb[0].mxu0
    %v6786 = vpop.f32.mrb[0].mxu0
    %v6787 = vadd.f32 %v6690, %v6786
    %v6788 = vpop.f32.mrb[0].mxu0
    %6789 = vmatprep.mubr.bf16.mxu0 %v4564
    %6790 = vmatmul.mubr.bf16.gmra.mrb[0].mxu0 %v4563
    %v6791 = vpop.f32.mrb[0].mxu0
    %v6792 = vadd.f32 %v6695, %v6791
    %v6793 = vpop.f32.mrb[0].mxu0
    %v6794 = vpop.f32.mrb[0].mxu0
    %v6795 = vadd.f32 %v6698, %v6794
    %v6796 = vpop.f32.mrb[0].mxu0
    %6797 = vmatprep.mubr.bf16.mxu0 %v4572
    %6798 = vmatmul.mubr.bf16.gmra.mrb[0].mxu0 %v4571
    %v6799 = vpop.f32.mrb[0].mxu0
    %v6800 = vadd.f32 %v6703, %v6799
    %v6801 = vpop.f32.mrb[0].mxu0
    %v6802 = vpop.f32.mrb[0].mxu0
    %v6803 = vadd.f32 %v6706, %v6802
    %v6804 = vpop.f32.mrb[0].mxu0
    %6805 = vmatprep.mubr.bf16.mxu0 %v4580
    %6806 = vmatmul.mubr.bf16.gmra.mrb[0].mxu0 %v4579
    %v6807 = vpop.f32.mrb[0].mxu0
    %v6808 = vadd.f32 %v6711, %v6807
    %v6809 = vpop.f32.mrb[0].mxu0
    %v6810 = vpop.f32.mrb[0].mxu0
    %v6811 = vadd.f32 %v6714, %v6810
    %v6812 = vpop.f32.mrb[0].mxu0
    %6813 = vmatprep.mubr.bf16.mxu0 %v4588
    %6814 = vmatmul.mubr.bf16.gmra.mrb[0].mxu0 %v4587
    %v6815 = vpop.f32.mrb[0].mxu0
    %v6816 = vadd.f32 %v6719, %v6815
    %v6817 = vpop.f32.mrb[0].mxu0
    %v6818 = vpop.f32.mrb[0].mxu0
    %v6819 = vadd.f32 %v6722, %v6818
    %v6820 = vpop.f32.mrb[0].mxu0
    %6821 = vmatprep.mubr.bf16.mxu0 %v4596
    %6822 = vmatmul.mubr.bf16.gmra.mrb[0].mxu0 %v4595
    %v6823 = vpop.f32.mrb[0].mxu0
    %v6824 = vadd.f32 %v6727, %v6823
    %v6825 = vpop.f32.mrb[0].mxu0
    %v6826 = vpop.f32.mrb[0].mxu0
    %v6827 = vadd.f32 %v6730, %v6826
    %v6828 = vpop.f32.mrb[0].mxu0
    %6829 = vmatprep.mubr.bf16.mxu0 %v4604
    %6830 = vmatmul.mubr.bf16.gmra.mrb[0].mxu0 %v4603
    %v6831 = vpop.f32.mrb[0].mxu0
    %v6832 = vadd.f32 %v6735, %v6831
    %v6833 = vpop.f32.mrb[0].mxu0
    %v6834 = vpop.f32.mrb[0].mxu0
    %v6835 = vadd.f32 %v6738, %v6834
    %v6836 = vpop.f32.mrb[0].mxu0
    %6837 = vmatprep.mubr.bf16.mxu0 %v4612
    %6838 = vmatmul.mubr.bf16.gmra.mrb[0].mxu0 %v4611
    %v6839 = vpop.f32.mrb[0].mxu0
    %v6840 = vadd.f32 %v6743, %v6839
    %v6841 = vpop.f32.mrb[0].mxu0
    %v6842 = vpop.f32.mrb[0].mxu0
    %v6843 = vadd.f32 %v6746, %v6842
    %v6844 = vpop.f32.mrb[0].mxu0
    %6845 = vdwg.mxu0
    %v6846 = vxor.u32 %v5476, 2147483648
    %v6847 = vxor.u32 %v5478, 2147483648
    %v6848 = vxor.u32 %v5928, 2147483648
    %v6849 = vxor.u32 %v5930, 2147483648
    %v6850 = vxor.u32 %v6380, 2147483648
    %v6851 = vxor.u32 %v6382, 2147483648
    %v6852 = vxor.u32 %v6784, 2147483648
    %v6853 = vxor.u32 %v5480, 2147483648
    %v6854 = vxor.u32 %v5482, 2147483648
    %v6855 = vxor.u32 %v5932, 2147483648
    %v6856 = vxor.u32 %v5934, 2147483648
    %v6857 = vxor.u32 %v6384, 2147483648
    %v6858 = vxor.u32 %v6386, 2147483648
    %v6859 = vxor.u32 %v6787, 2147483648
    %v6860 = vxor.u32 %v5486, 2147483648
    %v6861 = vxor.u32 %v5488, 2147483648
    %v6862 = vxor.u32 %v5938, 2147483648
    %v6863 = vxor.u32 %v5940, 2147483648
    %v6864 = vxor.u32 %v6390, 2147483648
    %v6865 = vxor.u32 %v6392, 2147483648
    %v6866 = vxor.u32 %v6792, 2147483648
    %v6867 = vxor.u32 %v5490, 2147483648
    %v6868 = vxor.u32 %v5492, 2147483648
    %v6869 = vxor.u32 %v5942, 2147483648
    %v6870 = vxor.u32 %v5944, 2147483648
    %v6871 = vxor.u32 %v6394, 2147483648
    %v6872 = vxor.u32 %v6396, 2147483648
    %v6873 = vxor.u32 %v6795, 2147483648
    %v6874 = vxor.u32 %v5496, 2147483648
    %v6875 = vxor.u32 %v5498, 2147483648
    %v6876 = vxor.u32 %v5948, 2147483648
    %v6877 = vxor.u32 %v5950, 2147483648
    %v6878 = vxor.u32 %v6400, 2147483648
    %v6879 = vxor.u32 %v6402, 2147483648
    %v6880 = vxor.u32 %v6800, 2147483648
    %v6881 = vxor.u32 %v5500, 2147483648
    %v6882 = vxor.u32 %v5502, 2147483648
    %v6883 = vxor.u32 %v5952, 2147483648
    %v6884 = vxor.u32 %v5954, 2147483648
    %v6885 = vxor.u32 %v6404, 2147483648
    %v6886 = vxor.u32 %v6406, 2147483648
    %v6887 = vxor.u32 %v6803, 2147483648
    %v6888 = vxor.u32 %v5506, 2147483648
    %v6889 = vxor.u32 %v5508, 2147483648
    %v6890 = vxor.u32 %v5958, 2147483648
    %v6891 = vxor.u32 %v5960, 2147483648
    %v6892 = vxor.u32 %v6410, 2147483648
    %v6893 = vxor.u32 %v6412, 2147483648
    %v6894 = vxor.u32 %v6808, 2147483648
    %v6895 = vxor.u32 %v5510, 2147483648
    %v6896 = vxor.u32 %v5512, 2147483648
    %v6897 = vxor.u32 %v5962, 2147483648
    %v6898 = vxor.u32 %v5964, 2147483648
    %v6899 = vxor.u32 %v6414, 2147483648
    %v6900 = vxor.u32 %v6416, 2147483648
    %v6901 = vxor.u32 %v6811, 2147483648
    %v6902 = vxor.u32 %v5516, 2147483648
    %v6903 = vxor.u32 %v5518, 2147483648
    %v6904 = vxor.u32 %v5968, 2147483648
    %v6905 = vxor.u32 %v5970, 2147483648
    %v6906 = vxor.u32 %v6420, 2147483648
    %v6907 = vxor.u32 %v6422, 2147483648
    %v6908 = vxor.u32 %v6816, 2147483648
    %v6909 = vxor.u32 %v5520, 2147483648
    %v6910 = vxor.u32 %v5522, 2147483648
    %v6911 = vxor.u32 %v5972, 2147483648
    %v6912 = vxor.u32 %v5974, 2147483648
    %v6913 = vxor.u32 %v6424, 2147483648
    %v6914 = vxor.u32 %v6426, 2147483648
    %v6915 = vxor.u32 %v6819, 2147483648
    %v6916 = vxor.u32 %v5526, 2147483648
    %v6917 = vxor.u32 %v5528, 2147483648
    %v6918 = vxor.u32 %v5978, 2147483648
    %v6919 = vxor.u32 %v5980, 2147483648
    %v6920 = vxor.u32 %v6430, 2147483648
    %v6921 = vxor.u32 %v6432, 2147483648
    %v6922 = vxor.u32 %v6824, 2147483648
    %v6923 = vxor.u32 %v5530, 2147483648
    %v6924 = vxor.u32 %v5532, 2147483648
    %v6925 = vxor.u32 %v5982, 2147483648
    %v6926 = vxor.u32 %v5984, 2147483648
    %v6927 = vxor.u32 %v6434, 2147483648
    %v6928 = vxor.u32 %v6436, 2147483648
    %v6929 = vxor.u32 %v6827, 2147483648
    %v6930 = vxor.u32 %v5536, 2147483648
    %v6931 = vxor.u32 %v5538, 2147483648
    %v6932 = vxor.u32 %v5988, 2147483648
    %v6933 = vxor.u32 %v5990, 2147483648
    %v6934 = vxor.u32 %v6440, 2147483648
    %v6935 = vxor.u32 %v6442, 2147483648
    %v6936 = vxor.u32 %v6832, 2147483648
    %v6937 = vxor.u32 %v5540, 2147483648
    %v6938 = vxor.u32 %v5542, 2147483648
    %v6939 = vxor.u32 %v5992, 2147483648
    %v6940 = vxor.u32 %v5994, 2147483648
    %v6941 = vxor.u32 %v6444, 2147483648
    %v6942 = vxor.u32 %v6446, 2147483648
    %v6943 = vxor.u32 %v6835, 2147483648
    %v6944 = vxor.u32 %v5546, 2147483648
    %v6945 = vxor.u32 %v5548, 2147483648
    %v6946 = vxor.u32 %v5998, 2147483648
    %v6947 = vxor.u32 %v6000, 2147483648
    %v6948 = vxor.u32 %v6450, 2147483648
    %v6949 = vxor.u32 %v6452, 2147483648
    %v6950 = vxor.u32 %v6840, 2147483648
    %v6951 = vxor.u32 %v5550, 2147483648
    %v6952 = vxor.u32 %v5552, 2147483648
    %v6953 = vxor.u32 %v6002, 2147483648
    %v6954 = vxor.u32 %v6004, 2147483648
    %v6955 = vxor.u32 %v6454, 2147483648
    %v6956 = vxor.u32 %v6456, 2147483648
    %v6957 = vxor.u32 %v6843, 2147483648
    %v6958 = vmul.f32 %v6846, 1.442695
    %v6959 = vpow.pop %v6958
    %v6960 = vmul.f32 %v6847, 1.442695
    %v6961 = vpow.pop %v6960
    %v6962 = vmul.f32 %v6848, 1.442695
    %v6963 = vpow.pop %v6962
    %v6964 = vmul.f32 %v6849, 1.442695
    %v6965 = vpow.pop %v6964
    %v6966 = vmul.f32 %v6850, 1.442695
    %v6967 = vpow.pop %v6966
    %v6968 = vmul.f32 %v6851, 1.442695
    %v6969 = vpow.pop %v6968
    %v6970 = vmul.f32 %v6852, 1.442695
    %v6971 = vpow.pop %v6970
    %v6972 = vmul.f32 %v6853, 1.442695
    %v6973 = vpow.pop %v6972
    %v6974 = vmul.f32 %v6854, 1.442695
    %v6975 = vpow.pop %v6974
    %v6976 = vmul.f32 %v6855, 1.442695
    %v6977 = vpow.pop %v6976
    %v6978 = vmul.f32 %v6856, 1.442695
    %v6979 = vpow.pop %v6978
    %v6980 = vmul.f32 %v6857, 1.442695
    %v6981 = vpow.pop %v6980
    %v6982 = vmul.f32 %v6858, 1.442695
    %v6983 = vpow.pop %v6982
    %v6984 = vmul.f32 %v6859, 1.442695
    %v6985 = vpow.pop %v6984
    %v6986 = vmul.f32 %v6860, 1.442695
    %v6987 = vpow.pop %v6986
    %v6988 = vmul.f32 %v6861, 1.442695
    %v6989 = vpow.pop %v6988
    %v6990 = vmul.f32 %v6862, 1.442695
    %v6991 = vpow.pop %v6990
    %v6992 = vmul.f32 %v6863, 1.442695
    %v6993 = vpow.pop %v6992
    %v6994 = vmul.f32 %v6864, 1.442695
    %v6995 = vpow.pop %v6994
    %v6996 = vmul.f32 %v6865, 1.442695
    %v6997 = vpow.pop %v6996
    %v6998 = vmul.f32 %v6866, 1.442695
    %v6999 = vpow.pop %v6998
    %v7000 = vmul.f32 %v6867, 1.442695
    %v7001 = vpow.pop %v7000
    %v7002 = vmul.f32 %v6868, 1.442695
    %v7003 = vpow.pop %v7002
    %v7004 = vmul.f32 %v6869, 1.442695
    %v7005 = vpow.pop %v7004
    %v7006 = vmul.f32 %v6870, 1.442695
    %v7007 = vpow.pop %v7006
    %v7008 = vmul.f32 %v6871, 1.442695
    %v7009 = vpow.pop %v7008
    %v7010 = vmul.f32 %v6872, 1.442695
    %v7011 = vpow.pop %v7010
    %v7012 = vmul.f32 %v6873, 1.442695
    %v7013 = vpow.pop %v7012
    %v7014 = vmul.f32 %v6874, 1.442695
    %v7015 = vpow.pop %v7014
    %v7016 = vmul.f32 %v6875, 1.442695
    %v7017 = vpow.pop %v7016
    %v7018 = vmul.f32 %v6876, 1.442695
    %v7019 = vpow.pop %v7018
    %v7020 = vmul.f32 %v6877, 1.442695
    %v7021 = vpow.pop %v7020
    %v7022 = vmul.f32 %v6878, 1.442695
    %v7023 = vpow.pop %v7022
    %v7024 = vmul.f32 %v6879, 1.442695
    %v7025 = vpow.pop %v7024
    %v7026 = vmul.f32 %v6880, 1.442695
    %v7027 = vpow.pop %v7026
    %v7028 = vmul.f32 %v6881, 1.442695
    %v7029 = vpow.pop %v7028
    %v7030 = vmul.f32 %v6882, 1.442695
    %v7031 = vpow.pop %v7030
    %v7032 = vmul.f32 %v6883, 1.442695
    %v7033 = vpow.pop %v7032
    %v7034 = vmul.f32 %v6884, 1.442695
    %v7035 = vpow.pop %v7034
    %v7036 = vmul.f32 %v6885, 1.442695
    %v7037 = vpow.pop %v7036
    %v7038 = vmul.f32 %v6886, 1.442695
    %v7039 = vpow.pop %v7038
    %v7040 = vmul.f32 %v6887, 1.442695
    %v7041 = vpow.pop %v7040
    %v7042 = vmul.f32 %v6888, 1.442695
    %v7043 = vpow.pop %v7042
    %v7044 = vmul.f32 %v6889, 1.442695
    %v7045 = vpow.pop %v7044
    %v7046 = vmul.f32 %v6890, 1.442695
    %v7047 = vpow.pop %v7046
    %v7048 = vmul.f32 %v6891, 1.442695
    %v7049 = vpow.pop %v7048
    %v7050 = vmul.f32 %v6892, 1.442695
    %v7051 = vpow.pop %v7050
    %v7052 = vmul.f32 %v6893, 1.442695
    %v7053 = vpow.pop %v7052
    %v7054 = vmul.f32 %v6894, 1.442695
    %v7055 = vpow.pop %v7054
    %v7056 = vmul.f32 %v6895, 1.442695
    %v7057 = vpow.pop %v7056
    %v7058 = vmul.f32 %v6896, 1.442695
    %v7059 = vpow.pop %v7058
    %v7060 = vmul.f32 %v6897, 1.442695
    %v7061 = vpow.pop %v7060
    %v7062 = vmul.f32 %v6898, 1.442695
    %v7063 = vpow.pop %v7062
    %v7064 = vmul.f32 %v6899, 1.442695
    %v7065 = vpow.pop %v7064
    %v7066 = vmul.f32 %v6900, 1.442695
    %v7067 = vpow.pop %v7066
    %v7068 = vmul.f32 %v6901, 1.442695
    %v7069 = vpow.pop %v7068
    %v7070 = vmul.f32 %v6902, 1.442695
    %v7071 = vpow.pop %v7070
    %v7072 = vmul.f32 %v6903, 1.442695
    %v7073 = vpow.pop %v7072
    %v7074 = vmul.f32 %v6904, 1.442695
    %v7075 = vpow.pop %v7074
    %v7076 = vmul.f32 %v6905, 1.442695
    %v7077 = vpow.pop %v7076
    %v7078 = vmul.f32 %v6906, 1.442695
    %v7079 = vpow.pop %v7078
    %v7080 = vmul.f32 %v6907, 1.442695
    %v7081 = vpow.pop %v7080
    %v7082 = vmul.f32 %v6908, 1.442695
    %v7083 = vpow.pop %v7082
    %v7084 = vmul.f32 %v6909, 1.442695
    %v7085 = vpow.pop %v7084
    %v7086 = vmul.f32 %v6910, 1.442695
    %v7087 = vpow.pop %v7086
    %v7088 = vmul.f32 %v6911, 1.442695
    %v7089 = vpow.pop %v7088
    %v7090 = vmul.f32 %v6912, 1.442695
    %v7091 = vpow.pop %v7090
    %v7092 = vmul.f32 %v6913, 1.442695
    %v7093 = vpow.pop %v7092
    %v7094 = vmul.f32 %v6914, 1.442695
    %v7095 = vpow.pop %v7094
    %v7096 = vmul.f32 %v6915, 1.442695
    %v7097 = vpow.pop %v7096
    %v7098 = vmul.f32 %v6916, 1.442695
    %v7099 = vpow.pop %v7098
    %v7100 = vmul.f32 %v6917, 1.442695
    %v7101 = vpow.pop %v7100
    %v7102 = vmul.f32 %v6918, 1.442695
    %v7103 = vpow.pop %v7102
    %v7104 = vmul.f32 %v6919, 1.442695
    %v7105 = vpow.pop %v7104
    %v7106 = vmul.f32 %v6920, 1.442695
    %v7107 = vpow.pop %v7106
    %v7108 = vmul.f32 %v6921, 1.442695
    %v7109 = vpow.pop %v7108
    %v7110 = vmul.f32 %v6922, 1.442695
    %v7111 = vpow.pop %v7110
    %v7112 = vmul.f32 %v6923, 1.442695
    %v7113 = vpow.pop %v7112
    %v7114 = vmul.f32 %v6924, 1.442695
    %v7115 = vpow.pop %v7114
    %v7116 = vmul.f32 %v6925, 1.442695
    %v7117 = vpow.pop %v7116
    %v7118 = vmul.f32 %v6926, 1.442695
    %v7119 = vpow.pop %v7118
    %v7120 = vmul.f32 %v6927, 1.442695
    %v7121 = vpow.pop %v7120
    %v7122 = vmul.f32 %v6928, 1.442695
    %v7123 = vpow.pop %v7122
    %v7124 = vmul.f32 %v6929, 1.442695
    %v7125 = vpow.pop %v7124
    %v7126 = vmul.f32 %v6930, 1.442695
    %v7127 = vpow.pop %v7126
    %v7128 = vmul.f32 %v6931, 1.442695
    %v7129 = vpow.pop %v7128
    %v7130 = vmul.f32 %v6932, 1.442695
    %v7131 = vpow.pop %v7130
    %v7132 = vmul.f32 %v6933, 1.442695
    %v7133 = vpow.pop %v7132
    %v7134 = vmul.f32 %v6934, 1.442695
    %v7135 = vpow.pop %v7134
    %v7136 = vmul.f32 %v6935, 1.442695
    %v7137 = vpow.pop %v7136
    %v7138 = vmul.f32 %v6936, 1.442695
    %v7139 = vpow.pop %v7138
    %v7140 = vmul.f32 %v6937, 1.442695
    %v7141 = vpow.pop %v7140
    %v7142 = vmul.f32 %v6938, 1.442695
    %v7143 = vpow.pop %v7142
    %v7144 = vmul.f32 %v6939, 1.442695
    %v7145 = vpow.pop %v7144
    %v7146 = vmul.f32 %v6940, 1.442695
    %v7147 = vpow.pop %v7146
    %v7148 = vmul.f32 %v6941, 1.442695
    %v7149 = vpow.pop %v7148
    %v7150 = vmul.f32 %v6942, 1.442695
    %v7151 = vpow.pop %v7150
    %v7152 = vmul.f32 %v6943, 1.442695
    %v7153 = vpow.pop %v7152
    %v7154 = vmul.f32 %v6944, 1.442695
    %v7155 = vpow.pop %v7154
    %v7156 = vmul.f32 %v6945, 1.442695
    %v7157 = vpow.pop %v7156
    %v7158 = vmul.f32 %v6946, 1.442695
    %v7159 = vpow.pop %v7158
    %v7160 = vmul.f32 %v6947, 1.442695
    %v7161 = vpow.pop %v7160
    %v7162 = vmul.f32 %v6948, 1.442695
    %v7163 = vpow.pop %v7162
    %v7164 = vmul.f32 %v6949, 1.442695
    %v7165 = vpow.pop %v7164
    %v7166 = vmul.f32 %v6950, 1.442695
    %v7167 = vpow.pop %v7166
    %v7168 = vmul.f32 %v6951, 1.442695
    %v7169 = vpow.pop %v7168
    %v7170 = vmul.f32 %v6952, 1.442695
    %v7171 = vpow.pop %v7170
    %v7172 = vmul.f32 %v6953, 1.442695
    %v7173 = vpow.pop %v7172
    %v7174 = vmul.f32 %v6954, 1.442695
    %v7175 = vpow.pop %v7174
    %v7176 = vmul.f32 %v6955, 1.442695
    %v7177 = vpow.pop %v7176
    %v7178 = vmul.f32 %v6956, 1.442695
    %v7179 = vpow.pop %v7178
    %v7180 = vmul.f32 %v6957, 1.442695
    %v7181 = vpow.pop %v7180
    %v7182 = vadd.f32 %v6959, 1.0
    %v7183 = vadd.f32 %v6961, 1.0
    %v7184 = vadd.f32 %v6963, 1.0
    %v7185 = vadd.f32 %v6965, 1.0
    %v7186 = vadd.f32 %v6967, 1.0
    %v7187 = vadd.f32 %v6969, 1.0
    %v7188 = vadd.f32 %v6971, 1.0
    %v7189 = vadd.f32 %v6973, 1.0
    %v7190 = vadd.f32 %v6975, 1.0
    %v7191 = vadd.f32 %v6977, 1.0
    %v7192 = vadd.f32 %v6979, 1.0
    %v7193 = vadd.f32 %v6981, 1.0
    %v7194 = vadd.f32 %v6983, 1.0
    %v7195 = vadd.f32 %v6985, 1.0
    %v7196 = vadd.f32 %v6987, 1.0
    %v7197 = vadd.f32 %v6989, 1.0
    %v7198 = vadd.f32 %v6991, 1.0
    %v7199 = vadd.f32 %v6993, 1.0
    %v7200 = vadd.f32 %v6995, 1.0
    %v7201 = vadd.f32 %v6997, 1.0
    %v7202 = vadd.f32 %v6999, 1.0
    %v7203 = vadd.f32 %v7001, 1.0
    %v7204 = vadd.f32 %v7003, 1.0
    %v7205 = vadd.f32 %v7005, 1.0
    %v7206 = vadd.f32 %v7007, 1.0
    %v7207 = vadd.f32 %v7009, 1.0
    %v7208 = vadd.f32 %v7011, 1.0
    %v7209 = vadd.f32 %v7013, 1.0
    %v7210 = vadd.f32 %v7015, 1.0
    %v7211 = vadd.f32 %v7017, 1.0
    %v7212 = vadd.f32 %v7019, 1.0
    %v7213 = vadd.f32 %v7021, 1.0
    %v7214 = vadd.f32 %v7023, 1.0
    %v7215 = vadd.f32 %v7025, 1.0
    %v7216 = vadd.f32 %v7027, 1.0
    %v7217 = vadd.f32 %v7029, 1.0
    %v7218 = vadd.f32 %v7031, 1.0
    %v7219 = vadd.f32 %v7033, 1.0
    %v7220 = vadd.f32 %v7035, 1.0
    %v7221 = vadd.f32 %v7037, 1.0
    %v7222 = vadd.f32 %v7039, 1.0
    %v7223 = vadd.f32 %v7041, 1.0
    %v7224 = vadd.f32 %v7043, 1.0
    %v7225 = vadd.f32 %v7045, 1.0
    %v7226 = vadd.f32 %v7047, 1.0
    %v7227 = vadd.f32 %v7049, 1.0
    %v7228 = vadd.f32 %v7051, 1.0
    %v7229 = vadd.f32 %v7053, 1.0
    %v7230 = vadd.f32 %v7055, 1.0
    %v7231 = vadd.f32 %v7057, 1.0
    %v7232 = vadd.f32 %v7059, 1.0
    %v7233 = vadd.f32 %v7061, 1.0
    %v7234 = vadd.f32 %v7063, 1.0
    %v7235 = vadd.f32 %v7065, 1.0
    %v7236 = vadd.f32 %v7067, 1.0
    %v7237 = vadd.f32 %v7069, 1.0
    %v7238 = vadd.f32 %v7071, 1.0
    %v7239 = vadd.f32 %v7073, 1.0
    %v7240 = vadd.f32 %v7075, 1.0
    %v7241 = vadd.f32 %v7077, 1.0
    %v7242 = vadd.f32 %v7079, 1.0
    %v7243 = vadd.f32 %v7081, 1.0
    %v7244 = vadd.f32 %v7083, 1.0
    %v7245 = vadd.f32 %v7085, 1.0
    %v7246 = vadd.f32 %v7087, 1.0
    %v7247 = vadd.f32 %v7089, 1.0
    %v7248 = vadd.f32 %v7091, 1.0
    %v7249 = vadd.f32 %v7093, 1.0
    %v7250 = vadd.f32 %v7095, 1.0
    %v7251 = vadd.f32 %v7097, 1.0
    %v7252 = vadd.f32 %v7099, 1.0
    %v7253 = vadd.f32 %v7101, 1.0
    %v7254 = vadd.f32 %v7103, 1.0
    %v7255 = vadd.f32 %v7105, 1.0
    %v7256 = vadd.f32 %v7107, 1.0
    %v7257 = vadd.f32 %v7109, 1.0
    %v7258 = vadd.f32 %v7111, 1.0
    %v7259 = vadd.f32 %v7113, 1.0
    %v7260 = vadd.f32 %v7115, 1.0
    %v7261 = vadd.f32 %v7117, 1.0
    %v7262 = vadd.f32 %v7119, 1.0
    %v7263 = vadd.f32 %v7121, 1.0
    %v7264 = vadd.f32 %v7123, 1.0
    %v7265 = vadd.f32 %v7125, 1.0
    %v7266 = vadd.f32 %v7127, 1.0
    %v7267 = vadd.f32 %v7129, 1.0
    %v7268 = vadd.f32 %v7131, 1.0
    %v7269 = vadd.f32 %v7133, 1.0
    %v7270 = vadd.f32 %v7135, 1.0
    %v7271 = vadd.f32 %v7137, 1.0
    %v7272 = vadd.f32 %v7139, 1.0
    %v7273 = vadd.f32 %v7141, 1.0
    %v7274 = vadd.f32 %v7143, 1.0
    %v7275 = vadd.f32 %v7145, 1.0
    %v7276 = vadd.f32 %v7147, 1.0
    %v7277 = vadd.f32 %v7149, 1.0
    %v7278 = vadd.f32 %v7151, 1.0
    %v7279 = vadd.f32 %v7153, 1.0
    %v7280 = vadd.f32 %v7155, 1.0
    %v7281 = vadd.f32 %v7157, 1.0
    %v7282 = vadd.f32 %v7159, 1.0
    %v7283 = vadd.f32 %v7161, 1.0
    %v7284 = vadd.f32 %v7163, 1.0
    %v7285 = vadd.f32 %v7165, 1.0
    %v7286 = vadd.f32 %v7167, 1.0
    %v7287 = vadd.f32 %v7169, 1.0
    %v7288 = vadd.f32 %v7171, 1.0
    %v7289 = vadd.f32 %v7173, 1.0
    %v7290 = vadd.f32 %v7175, 1.0
    %v7291 = vadd.f32 %v7177, 1.0
    %v7292 = vadd.f32 %v7179, 1.0
    %v7293 = vadd.f32 %v7181, 1.0
    %v7294 = vrcp.pop %v7182
    %v7295 = vmul.f32 1.0, %v7294
    %v7296 = vrcp.pop %v7183
    %v7297 = vmul.f32 1.0, %v7296
    %v7298 = vrcp.pop %v7184
    %v7299 = vmul.f32 1.0, %v7298
    %v7300 = vrcp.pop %v7185
    %v7301 = vmul.f32 1.0, %v7300
    %v7302 = vrcp.pop %v7186
    %v7303 = vmul.f32 1.0, %v7302
    %v7304 = vrcp.pop %v7187
    %v7305 = vmul.f32 1.0, %v7304
    %v7306 = vrcp.pop %v7188
    %v7307 = vmul.f32 1.0, %v7306
    %v7308 = vrcp.pop %v7189
    %v7309 = vmul.f32 1.0, %v7308
    %v7310 = vrcp.pop %v7190
    %v7311 = vmul.f32 1.0, %v7310
    %v7312 = vrcp.pop %v7191
    %v7313 = vmul.f32 1.0, %v7312
    %v7314 = vrcp.pop %v7192
    %v7315 = vmul.f32 1.0, %v7314
    %v7316 = vrcp.pop %v7193
    %v7317 = vmul.f32 1.0, %v7316
    %v7318 = vrcp.pop %v7194
    %v7319 = vmul.f32 1.0, %v7318
    %v7320 = vrcp.pop %v7195
    %v7321 = vmul.f32 1.0, %v7320
    %v7322 = vrcp.pop %v7196
    %v7323 = vmul.f32 1.0, %v7322
    %v7324 = vrcp.pop %v7197
    %v7325 = vmul.f32 1.0, %v7324
    %v7326 = vrcp.pop %v7198
    %v7327 = vmul.f32 1.0, %v7326
    %v7328 = vrcp.pop %v7199
    %v7329 = vmul.f32 1.0, %v7328
    %v7330 = vrcp.pop %v7200
    %v7331 = vmul.f32 1.0, %v7330
    %v7332 = vrcp.pop %v7201
    %v7333 = vmul.f32 1.0, %v7332
    %v7334 = vrcp.pop %v7202
    %v7335 = vmul.f32 1.0, %v7334
    %v7336 = vrcp.pop %v7203
    %v7337 = vmul.f32 1.0, %v7336
    %v7338 = vrcp.pop %v7204
    %v7339 = vmul.f32 1.0, %v7338
    %v7340 = vrcp.pop %v7205
    %v7341 = vmul.f32 1.0, %v7340
    %v7342 = vrcp.pop %v7206
    %v7343 = vmul.f32 1.0, %v7342
    %v7344 = vrcp.pop %v7207
    %v7345 = vmul.f32 1.0, %v7344
    %v7346 = vrcp.pop %v7208
    %v7347 = vmul.f32 1.0, %v7346
    %v7348 = vrcp.pop %v7209
    %v7349 = vmul.f32 1.0, %v7348
    %v7350 = vrcp.pop %v7210
    %v7351 = vmul.f32 1.0, %v7350
    %v7352 = vrcp.pop %v7211
    %v7353 = vmul.f32 1.0, %v7352
    %v7354 = vrcp.pop %v7212
    %v7355 = vmul.f32 1.0, %v7354
    %v7356 = vrcp.pop %v7213
    %v7357 = vmul.f32 1.0, %v7356
    %v7358 = vrcp.pop %v7214
    %v7359 = vmul.f32 1.0, %v7358
    %v7360 = vrcp.pop %v7215
    %v7361 = vmul.f32 1.0, %v7360
    %v7362 = vrcp.pop %v7216
    %v7363 = vmul.f32 1.0, %v7362
    %v7364 = vrcp.pop %v7217
    %v7365 = vmul.f32 1.0, %v7364
    %v7366 = vrcp.pop %v7218
    %v7367 = vmul.f32 1.0, %v7366
    %v7368 = vrcp.pop %v7219
    %v7369 = vmul.f32 1.0, %v7368
    %v7370 = vrcp.pop %v7220
    %v7371 = vmul.f32 1.0, %v7370
    %v7372 = vrcp.pop %v7221
    %v7373 = vmul.f32 1.0, %v7372
    %v7374 = vrcp.pop %v7222
    %v7375 = vmul.f32 1.0, %v7374
    %v7376 = vrcp.pop %v7223
    %v7377 = vmul.f32 1.0, %v7376
    %v7378 = vrcp.pop %v7224
    %v7379 = vmul.f32 1.0, %v7378
    %v7380 = vrcp.pop %v7225
    %v7381 = vmul.f32 1.0, %v7380
    %v7382 = vrcp.pop %v7226
    %v7383 = vmul.f32 1.0, %v7382
    %v7384 = vrcp.pop %v7227
    %v7385 = vmul.f32 1.0, %v7384
    %v7386 = vrcp.pop %v7228
    %v7387 = vmul.f32 1.0, %v7386
    %v7388 = vrcp.pop %v7229
    %v7389 = vmul.f32 1.0, %v7388
    %v7390 = vrcp.pop %v7230
    %v7391 = vmul.f32 1.0, %v7390
    %v7392 = vrcp.pop %v7231
    %v7393 = vmul.f32 1.0, %v7392
    %v7394 = vrcp.pop %v7232
    %v7395 = vmul.f32 1.0, %v7394
    %v7396 = vrcp.pop %v7233
    %v7397 = vmul.f32 1.0, %v7396
    %v7398 = vrcp.pop %v7234
    %v7399 = vmul.f32 1.0, %v7398
    %v7400 = vrcp.pop %v7235
    %v7401 = vmul.f32 1.0, %v7400
    %v7402 = vrcp.pop %v7236
    %v7403 = vmul.f32 1.0, %v7402
    %v7404 = vrcp.pop %v7237
    %v7405 = vmul.f32 1.0, %v7404
    %v7406 = vrcp.pop %v7238
    %v7407 = vmul.f32 1.0, %v7406
    %v7408 = vrcp.pop %v7239
    %v7409 = vmul.f32 1.0, %v7408
    %v7410 = vrcp.pop %v7240
    %v7411 = vmul.f32 1.0, %v7410
    %v7412 = vrcp.pop %v7241
    %v7413 = vmul.f32 1.0, %v7412
    %v7414 = vrcp.pop %v7242
    %v7415 = vmul.f32 1.0, %v7414
    %v7416 = vrcp.pop %v7243
    %v7417 = vmul.f32 1.0, %v7416
    %v7418 = vrcp.pop %v7244
    %v7419 = vmul.f32 1.0, %v7418
    %v7420 = vrcp.pop %v7245
    %v7421 = vmul.f32 1.0, %v7420
    %v7422 = vrcp.pop %v7246
    %v7423 = vmul.f32 1.0, %v7422
    %v7424 = vrcp.pop %v7247
    %v7425 = vmul.f32 1.0, %v7424
    %v7426 = vrcp.pop %v7248
    %v7427 = vmul.f32 1.0, %v7426
    %v7428 = vrcp.pop %v7249
    %v7429 = vmul.f32 1.0, %v7428
    %v7430 = vrcp.pop %v7250
    %v7431 = vmul.f32 1.0, %v7430
    %v7432 = vrcp.pop %v7251
    %v7433 = vmul.f32 1.0, %v7432
    %v7434 = vrcp.pop %v7252
    %v7435 = vmul.f32 1.0, %v7434
    %v7436 = vrcp.pop %v7253
    %v7437 = vmul.f32 1.0, %v7436
    %v7438 = vrcp.pop %v7254
    %v7439 = vmul.f32 1.0, %v7438
    %v7440 = vrcp.pop %v7255
    %v7441 = vmul.f32 1.0, %v7440
    %v7442 = vrcp.pop %v7256
    %v7443 = vmul.f32 1.0, %v7442
    %v7444 = vrcp.pop %v7257
    %v7445 = vmul.f32 1.0, %v7444
    %v7446 = vrcp.pop %v7258
    %v7447 = vmul.f32 1.0, %v7446
    %v7448 = vrcp.pop %v7259
    %v7449 = vmul.f32 1.0, %v7448
    %v7450 = vrcp.pop %v7260
    %v7451 = vmul.f32 1.0, %v7450
    %v7452 = vrcp.pop %v7261
    %v7453 = vmul.f32 1.0, %v7452
    %v7454 = vrcp.pop %v7262
    %v7455 = vmul.f32 1.0, %v7454
    %v7456 = vrcp.pop %v7263
    %v7457 = vmul.f32 1.0, %v7456
    %v7458 = vrcp.pop %v7264
    %v7459 = vmul.f32 1.0, %v7458
    %v7460 = vrcp.pop %v7265
    %v7461 = vmul.f32 1.0, %v7460
    %v7462 = vrcp.pop %v7266
    %v7463 = vmul.f32 1.0, %v7462
    %v7464 = vrcp.pop %v7267
    %v7465 = vmul.f32 1.0, %v7464
    %v7466 = vrcp.pop %v7268
    %v7467 = vmul.f32 1.0, %v7466
    %v7468 = vrcp.pop %v7269
    %v7469 = vmul.f32 1.0, %v7468
    %v7470 = vrcp.pop %v7270
    %v7471 = vmul.f32 1.0, %v7470
    %v7472 = vrcp.pop %v7271
    %v7473 = vmul.f32 1.0, %v7472
    %v7474 = vrcp.pop %v7272
    %v7475 = vmul.f32 1.0, %v7474
    %v7476 = vrcp.pop %v7273
    %v7477 = vmul.f32 1.0, %v7476
    %v7478 = vrcp.pop %v7274
    %v7479 = vmul.f32 1.0, %v7478
    %v7480 = vrcp.pop %v7275
    %v7481 = vmul.f32 1.0, %v7480
    %v7482 = vrcp.pop %v7276
    %v7483 = vmul.f32 1.0, %v7482
    %v7484 = vrcp.pop %v7277
    %v7485 = vmul.f32 1.0, %v7484
    %v7486 = vrcp.pop %v7278
    %v7487 = vmul.f32 1.0, %v7486
    %v7488 = vrcp.pop %v7279
    %v7489 = vmul.f32 1.0, %v7488
    %v7490 = vrcp.pop %v7280
    %v7491 = vmul.f32 1.0, %v7490
    %v7492 = vrcp.pop %v7281
    %v7493 = vmul.f32 1.0, %v7492
    %v7494 = vrcp.pop %v7282
    %v7495 = vmul.f32 1.0, %v7494
    %v7496 = vrcp.pop %v7283
    %v7497 = vmul.f32 1.0, %v7496
    %v7498 = vrcp.pop %v7284
    %v7499 = vmul.f32 1.0, %v7498
    %v7500 = vrcp.pop %v7285
    %v7501 = vmul.f32 1.0, %v7500
    %v7502 = vrcp.pop %v7286
    %v7503 = vmul.f32 1.0, %v7502
    %v7504 = vrcp.pop %v7287
    %v7505 = vmul.f32 1.0, %v7504
    %v7506 = vrcp.pop %v7288
    %v7507 = vmul.f32 1.0, %v7506
    %v7508 = vrcp.pop %v7289
    %v7509 = vmul.f32 1.0, %v7508
    %v7510 = vrcp.pop %v7290
    %v7511 = vmul.f32 1.0, %v7510
    %v7512 = vrcp.pop %v7291
    %v7513 = vmul.f32 1.0, %v7512
    %v7514 = vrcp.pop %v7292
    %v7515 = vmul.f32 1.0, %v7514
    %v7516 = vrcp.pop %v7293
    %v7517 = vmul.f32 1.0, %v7516
    %v7518 = vpack.c.bf16 %v7309, %v7295
    %v7519 = vpack.c.bf16 %v7311, %v7297
    %v7520 = vpack.c.bf16 %v7313, %v7299
    %v7521 = vpack.c.bf16 %v7315, %v7301
    %v7522 = vpack.c.bf16 %v7317, %v7303
    %v7523 = vpack.c.bf16 %v7319, %v7305
    %v7524 = vpack.c.bf16 %v7321, %v7307
    %v7525 = vpack.c.bf16 %v7337, %v7323
    %v7526 = vpack.c.bf16 %v7339, %v7325
    %v7527 = vpack.c.bf16 %v7341, %v7327
    %v7528 = vpack.c.bf16 %v7343, %v7329
    %v7529 = vpack.c.bf16 %v7345, %v7331
    %v7530 = vpack.c.bf16 %v7347, %v7333
    %v7531 = vpack.c.bf16 %v7349, %v7335
    %v7532 = vpack.c.bf16 %v7365, %v7351
    %v7533 = vpack.c.bf16 %v7367, %v7353
    %v7534 = vpack.c.bf16 %v7369, %v7355
    %v7535 = vpack.c.bf16 %v7371, %v7357
    %v7536 = vpack.c.bf16 %v7373, %v7359
    %v7537 = vpack.c.bf16 %v7375, %v7361
    %v7538 = vpack.c.bf16 %v7377, %v7363
    %v7539 = vpack.c.bf16 %v7393, %v7379
    %v7540 = vpack.c.bf16 %v7395, %v7381
    %v7541 = vpack.c.bf16 %v7397, %v7383
    %v7542 = vpack.c.bf16 %v7399, %v7385
    %v7543 = vpack.c.bf16 %v7401, %v7387
    %v7544 = vpack.c.bf16 %v7403, %v7389
    %v7545 = vpack.c.bf16 %v7405, %v7391
    %v7546 = vpack.c.bf16 %v7421, %v7407
    %v7547 = vpack.c.bf16 %v7423, %v7409
    %v7548 = vpack.c.bf16 %v7425, %v7411
    %v7549 = vpack.c.bf16 %v7427, %v7413
    %v7550 = vpack.c.bf16 %v7429, %v7415
    %v7551 = vpack.c.bf16 %v7431, %v7417
    %v7552 = vpack.c.bf16 %v7433, %v7419
    %v7553 = vpack.c.bf16 %v7449, %v7435
    %v7554 = vpack.c.bf16 %v7451, %v7437
    %v7555 = vpack.c.bf16 %v7453, %v7439
    %v7556 = vpack.c.bf16 %v7455, %v7441
    %v7557 = vpack.c.bf16 %v7457, %v7443
    %v7558 = vpack.c.bf16 %v7459, %v7445
    %v7559 = vpack.c.bf16 %v7461, %v7447
    %v7560 = vpack.c.bf16 %v7477, %v7463
    %v7561 = vpack.c.bf16 %v7479, %v7465
    %v7562 = vpack.c.bf16 %v7481, %v7467
    %v7563 = vpack.c.bf16 %v7483, %v7469
    %v7564 = vpack.c.bf16 %v7485, %v7471
    %v7565 = vpack.c.bf16 %v7487, %v7473
    %v7566 = vpack.c.bf16 %v7489, %v7475
    %v7567 = vpack.c.bf16 %v7505, %v7491
    %v7568 = vpack.c.bf16 %v7507, %v7493
    %v7569 = vpack.c.bf16 %v7509, %v7495
    %v7570 = vpack.c.bf16 %v7511, %v7497
    %v7571 = vpack.c.bf16 %v7513, %v7499
    %v7572 = vpack.c.bf16 %v7515, %v7501
    %v7573 = vpack.c.bf16 %v7517, %v7503
    %v7630 = vunpack.c.l.b16 %v7518
    %v7631 = vunpack.c.l.b16 %v7519
    %v7632 = vunpack.c.l.b16 %v7520
    %v7633 = vunpack.c.l.b16 %v7521
    %v7634 = vunpack.c.l.b16 %v7522
    %v7635 = vunpack.c.l.b16 %v7523
    %v7636 = vunpack.c.l.b16 %v7524
    %v7637 = vunpack.c.h.b16 %v7518
    %v7638 = vunpack.c.h.b16 %v7519
    %v7639 = vunpack.c.h.b16 %v7520
    %v7640 = vunpack.c.h.b16 %v7521
    %v7641 = vunpack.c.h.b16 %v7522
    %v7642 = vunpack.c.h.b16 %v7523
    %v7643 = vunpack.c.h.b16 %v7524
    %v7644 = vunpack.c.l.b16 %v7525
    %v7645 = vunpack.c.l.b16 %v7526
    %v7646 = vunpack.c.l.b16 %v7527
    %v7647 = vunpack.c.l.b16 %v7528
    %v7648 = vunpack.c.l.b16 %v7529
    %v7649 = vunpack.c.l.b16 %v7530
    %v7650 = vunpack.c.l.b16 %v7531
    %v7651 = vunpack.c.h.b16 %v7525
    %v7652 = vunpack.c.h.b16 %v7526
    %v7653 = vunpack.c.h.b16 %v7527
    %v7654 = vunpack.c.h.b16 %v7528
    %v7655 = vunpack.c.h.b16 %v7529
    %v7656 = vunpack.c.h.b16 %v7530
    %v7657 = vunpack.c.h.b16 %v7531
    %v7658 = vunpack.c.l.b16 %v7532
    %v7659 = vunpack.c.l.b16 %v7533
    %v7660 = vunpack.c.l.b16 %v7534
    %v7661 = vunpack.c.l.b16 %v7535
    %v7662 = vunpack.c.l.b16 %v7536
    %v7663 = vunpack.c.l.b16 %v7537
    %v7664 = vunpack.c.l.b16 %v7538
    %v7665 = vunpack.c.h.b16 %v7532
    %v7666 = vunpack.c.h.b16 %v7533
    %v7667 = vunpack.c.h.b16 %v7534
    %v7668 = vunpack.c.h.b16 %v7535
    %v7669 = vunpack.c.h.b16 %v7536
    %v7670 = vunpack.c.h.b16 %v7537
    %v7671 = vunpack.c.h.b16 %v7538
    %v7672 = vunpack.c.l.b16 %v7539
    %v7673 = vunpack.c.l.b16 %v7540
    %v7674 = vunpack.c.l.b16 %v7541
    %v7675 = vunpack.c.l.b16 %v7542
    %v7676 = vunpack.c.l.b16 %v7543
    %v7677 = vunpack.c.l.b16 %v7544
    %v7678 = vunpack.c.l.b16 %v7545
    %v7679 = vunpack.c.h.b16 %v7539
    %v7680 = vunpack.c.h.b16 %v7540
    %v7681 = vunpack.c.h.b16 %v7541
    %v7682 = vunpack.c.h.b16 %v7542
    %v7683 = vunpack.c.h.b16 %v7543
    %v7684 = vunpack.c.h.b16 %v7544
    %v7685 = vunpack.c.h.b16 %v7545
    %v7686 = vunpack.c.l.b16 %v7546
    %v7687 = vunpack.c.l.b16 %v7547
    %v7688 = vunpack.c.l.b16 %v7548
    %v7689 = vunpack.c.l.b16 %v7549
    %v7690 = vunpack.c.l.b16 %v7550
    %v7691 = vunpack.c.l.b16 %v7551
    %v7692 = vunpack.c.l.b16 %v7552
    %v7693 = vunpack.c.h.b16 %v7546
    %v7694 = vunpack.c.h.b16 %v7547
    %v7695 = vunpack.c.h.b16 %v7548
    %v7696 = vunpack.c.h.b16 %v7549
    %v7697 = vunpack.c.h.b16 %v7550
    %v7698 = vunpack.c.h.b16 %v7551
    %v7699 = vunpack.c.h.b16 %v7552
    %v7700 = vunpack.c.l.b16 %v7553
    %v7701 = vunpack.c.l.b16 %v7554
    %v7702 = vunpack.c.l.b16 %v7555
    %v7703 = vunpack.c.l.b16 %v7556
    %v7704 = vunpack.c.l.b16 %v7557
    %v7705 = vunpack.c.l.b16 %v7558
    %v7706 = vunpack.c.l.b16 %v7559
    %v7707 = vunpack.c.h.b16 %v7553
    %v7708 = vunpack.c.h.b16 %v7554
    %v7709 = vunpack.c.h.b16 %v7555
    %v7710 = vunpack.c.h.b16 %v7556
    %v7711 = vunpack.c.h.b16 %v7557
    %v7712 = vunpack.c.h.b16 %v7558
    %v7713 = vunpack.c.h.b16 %v7559
    %v7714 = vunpack.c.l.b16 %v7560
    %v7715 = vunpack.c.l.b16 %v7561
    %v7716 = vunpack.c.l.b16 %v7562
    %v7717 = vunpack.c.l.b16 %v7563
    %v7718 = vunpack.c.l.b16 %v7564
    %v7719 = vunpack.c.l.b16 %v7565
    %v7720 = vunpack.c.l.b16 %v7566
    %v7721 = vunpack.c.h.b16 %v7560
    %v7722 = vunpack.c.h.b16 %v7561
    %v7723 = vunpack.c.h.b16 %v7562
    %v7724 = vunpack.c.h.b16 %v7563
    %v7725 = vunpack.c.h.b16 %v7564
    %v7726 = vunpack.c.h.b16 %v7565
    %v7727 = vunpack.c.h.b16 %v7566
    %v7728 = vunpack.c.l.b16 %v7567
    %v7729 = vunpack.c.l.b16 %v7568
    %v7730 = vunpack.c.l.b16 %v7569
    %v7731 = vunpack.c.l.b16 %v7570
    %v7732 = vunpack.c.l.b16 %v7571
    %v7733 = vunpack.c.l.b16 %v7572
    %v7734 = vunpack.c.l.b16 %v7573
    %v7735 = vunpack.c.h.b16 %v7567
    %v7736 = vunpack.c.h.b16 %v7568
    %v7737 = vunpack.c.h.b16 %v7569
    %v7738 = vunpack.c.h.b16 %v7570
    %v7739 = vunpack.c.h.b16 %v7571
    %v7740 = vunpack.c.h.b16 %v7572
    %v7741 = vunpack.c.h.b16 %v7573
    %v7742 = vpack.c.b16 %v7631, %v7630
    %v7743 = vpack.c.b16 %v7633, %v7632
    %v7744 = vpack.c.b16 %v7635, %v7634
    %v7745 = vpack.c.b16 %v7636, %v7636
    %v7746 = vpack.c.b16 %v7638, %v7637
    %v7747 = vpack.c.b16 %v7640, %v7639
    %v7748 = vpack.c.b16 %v7642, %v7641
    %v7749 = vpack.c.b16 %v7643, %v7643
    %v7750 = vpack.c.b16 %v7645, %v7644
    %v7751 = vpack.c.b16 %v7647, %v7646
    %v7752 = vpack.c.b16 %v7649, %v7648
    %v7753 = vpack.c.b16 %v7650, %v7650
    %v7754 = vpack.c.b16 %v7652, %v7651
    %v7755 = vpack.c.b16 %v7654, %v7653
    %v7756 = vpack.c.b16 %v7656, %v7655
    %v7757 = vpack.c.b16 %v7657, %v7657
    %v7758 = vpack.c.b16 %v7659, %v7658
    %v7759 = vpack.c.b16 %v7661, %v7660
    %v7760 = vpack.c.b16 %v7663, %v7662
    %v7761 = vpack.c.b16 %v7664, %v7664
    %v7762 = vpack.c.b16 %v7666, %v7665
    %v7763 = vpack.c.b16 %v7668, %v7667
    %v7764 = vpack.c.b16 %v7670, %v7669
    %v7765 = vpack.c.b16 %v7671, %v7671
    %v7766 = vpack.c.b16 %v7673, %v7672
    %v7767 = vpack.c.b16 %v7675, %v7674
    %v7768 = vpack.c.b16 %v7677, %v7676
    %v7769 = vpack.c.b16 %v7678, %v7678
    %v7770 = vpack.c.b16 %v7680, %v7679
    %v7771 = vpack.c.b16 %v7682, %v7681
    %v7772 = vpack.c.b16 %v7684, %v7683
    %v7773 = vpack.c.b16 %v7685, %v7685
    %v7774 = vpack.c.b16 %v7687, %v7686
    %v7775 = vpack.c.b16 %v7689, %v7688
    %v7776 = vpack.c.b16 %v7691, %v7690
    %v7777 = vpack.c.b16 %v7692, %v7692
    %v7778 = vpack.c.b16 %v7694, %v7693
    %v7779 = vpack.c.b16 %v7696, %v7695
    %v7780 = vpack.c.b16 %v7698, %v7697
    %v7781 = vpack.c.b16 %v7699, %v7699
    %v7782 = vpack.c.b16 %v7701, %v7700
    %v7783 = vpack.c.b16 %v7703, %v7702
    %v7784 = vpack.c.b16 %v7705, %v7704
    %v7785 = vpack.c.b16 %v7706, %v7706
    %v7786 = vpack.c.b16 %v7708, %v7707
    %v7787 = vpack.c.b16 %v7710, %v7709
    %v7788 = vpack.c.b16 %v7712, %v7711
    %v7789 = vpack.c.b16 %v7713, %v7713
    %v7790 = vpack.c.b16 %v7715, %v7714
    %v7791 = vpack.c.b16 %v7717, %v7716
    %v7792 = vpack.c.b16 %v7719, %v7718
    %v7793 = vpack.c.b16 %v7720, %v7720
    %v7794 = vpack.c.b16 %v7722, %v7721
    %v7795 = vpack.c.b16 %v7724, %v7723
    %v7796 = vpack.c.b16 %v7726, %v7725
    %v7797 = vpack.c.b16 %v7727, %v7727
    %v7798 = vpack.c.b16 %v7729, %v7728
    %v7799 = vpack.c.b16 %v7731, %v7730
    %v7800 = vpack.c.b16 %v7733, %v7732
    %v7801 = vpack.c.b16 %v7734, %v7734
    %v7802 = vpack.c.b16 %v7736, %v7735
    %v7803 = vpack.c.b16 %v7738, %v7737
    %v7804 = vpack.c.b16 %v7740, %v7739
    %v7805 = vpack.c.b16 %v7741, %v7741
    %7870 = vst [vmem:[%s15] sm:$0xff] %v7742
    %7871 = vst [vmem:[%s15 + $0x8] sm:$0xff] %v7743
    %7872 = vst [vmem:[%s15 + $0x10] sm:$0xff] %v7744
    %7873 = vst [vmem:[%s15 + $0x18] sm:$0xf] %v7745
    %7874 = vst [vmem:[%s15 + $0x1c] sm:$0xff] %v7746
    %7875 = vst [vmem:[%s15 + $0x24] sm:$0xff] %v7747
    %7876 = vst [vmem:[%s15 + $0x2c] sm:$0xff] %v7748
    %7877 = vst [vmem:[%s15 + $0x34] sm:$0xf] %v7749
    %7878 = vst [vmem:[%s15 + $0x38] sm:$0xff] %v7750
    %7879 = vst [vmem:[%s15 + $0x40] sm:$0xff] %v7751
    %7880 = vst [vmem:[%s15 + $0x48] sm:$0xff] %v7752
    %7881 = vst [vmem:[%s15 + $0x50] sm:$0xf] %v7753
    %7882 = vst [vmem:[%s15 + $0x54] sm:$0xff] %v7754
    %7883 = vst [vmem:[%s15 + $0x5c] sm:$0xff] %v7755
    %7884 = vst [vmem:[%s15 + $0x64] sm:$0xff] %v7756
    %7885 = vst [vmem:[%s15 + $0x6c] sm:$0xf] %v7757
    %7886 = vst [vmem:[%s15 + $0x70] sm:$0xff] %v7758
    %7887 = vst [vmem:[%s15 + $0x78] sm:$0xff] %v7759
    %7888 = vst [vmem:[%s15 + $0x80] sm:$0xff] %v7760
    %7889 = vst [vmem:[%s15 + $0x88] sm:$0xf] %v7761
    %7890 = vst [vmem:[%s15 + $0x8c] sm:$0xff] %v7762
    %7891 = vst [vmem:[%s15 + $0x94] sm:$0xff] %v7763
    %7892 = vst [vmem:[%s15 + $0x9c] sm:$0xff] %v7764
    %7893 = vst [vmem:[%s15 + $0xa4] sm:$0xf] %v7765
    %7894 = vst [vmem:[%s15 + $0xa8] sm:$0xff] %v7766
    %7895 = vst [vmem:[%s15 + $0xb0] sm:$0xff] %v7767
    %7896 = vst [vmem:[%s15 + $0xb8] sm:$0xff] %v7768
    %7897 = vst [vmem:[%s15 + $0xc0] sm:$0xf] %v7769
    %7898 = vst [vmem:[%s15 + $0xc4] sm:$0xff] %v7770
    %7899 = vst [vmem:[%s15 + $0xcc] sm:$0xff] %v7771
    %7900 = vst [vmem:[%s15 + $0xd4] sm:$0xff] %v7772
    %7901 = vst [vmem:[%s15 + $0xdc] sm:$0xf] %v7773
    %7902 = vst [vmem:[%s15 + $0xe0] sm:$0xff] %v7774
    %7903 = vst [vmem:[%s15 + $0xe8] sm:$0xff] %v7775
    %7904 = vst [vmem:[%s15 + $0xf0] sm:$0xff] %v7776
    %7905 = vst [vmem:[%s15 + $0xf8] sm:$0xf] %v7777
    %7906 = vst [vmem:[%s15 + $0xfc] sm:$0xff] %v7778
    %7907 = vst [vmem:[%s15 + $0x104] sm:$0xff] %v7779
    %7908 = vst [vmem:[%s15 + $0x10c] sm:$0xff] %v7780
    %7909 = vst [vmem:[%s15 + $0x114] sm:$0xf] %v7781
    %7910 = vst [vmem:[%s15 + $0x118] sm:$0xff] %v7782
    %7911 = vst [vmem:[%s15 + $0x120] sm:$0xff] %v7783
    %7912 = vst [vmem:[%s15 + $0x128] sm:$0xff] %v7784
    %7913 = vst [vmem:[%s15 + $0x130] sm:$0xf] %v7785
    %7914 = vst [vmem:[%s15 + $0x134] sm:$0xff] %v7786
    %7915 = vst [vmem:[%s15 + $0x13c] sm:$0xff] %v7787
    %7916 = vst [vmem:[%s15 + $0x144] sm:$0xff] %v7788
    %7917 = vst [vmem:[%s15 + $0x14c] sm:$0xf] %v7789
    %7918 = vst [vmem:[%s15 + $0x150] sm:$0xff] %v7790
    %7919 = vst [vmem:[%s15 + $0x158] sm:$0xff] %v7791
    %7920 = vst [vmem:[%s15 + $0x160] sm:$0xff] %v7792
    %7921 = vst [vmem:[%s15 + $0x168] sm:$0xf] %v7793
    %7922 = vst [vmem:[%s15 + $0x16c] sm:$0xff] %v7794
    %7923 = vst [vmem:[%s15 + $0x174] sm:$0xff] %v7795
    %7924 = vst [vmem:[%s15 + $0x17c] sm:$0xff] %v7796
    %7925 = vst [vmem:[%s15 + $0x184] sm:$0xf] %v7797
    %7926 = vst [vmem:[%s15 + $0x188] sm:$0xff] %v7798
    %7927 = vst [vmem:[%s15 + $0x190] sm:$0xff] %v7799
    %7928 = vst [vmem:[%s15 + $0x198] sm:$0xff] %v7800
    %7929 = vst [vmem:[%s15 + $0x1a0] sm:$0xf] %v7801
    %7930 = vst [vmem:[%s15 + $0x1a4] sm:$0xff] %v7802
    %7931 = vst [vmem:[%s15 + $0x1ac] sm:$0xff] %v7803
    %7932 = vst [vmem:[%s15 + $0x1b4] sm:$0xff] %v7804
    %7933 = vst [vmem:[%s15 + $0x1bc] sm:$0xf] %v7805
    // Predicated region
    $region102: #{generator_forward.1} parent=1 // pred_check
      _
    $region103: #{generator_forward.1} parent=1 // pred_check_branch
      %7935 = sbr.rel (0) target = $region105
    $region104: #{generator_forward.1} parent=1 // pred_region
      _
    $region105: #{generator_forward.1} parent=1 // pred_fallthru
      _
    // Predicated region
    $region106: #{generator_forward.1} parent=1 // pred_check
      _
    $region107: #{generator_forward.1} parent=1 // pred_check_branch
      %7937 = sbr.rel (0) target = $region109
    $region108: #{generator_forward.1} parent=1 // pred_region
      _
    $region109: #{generator_forward.1} parent=1 // pred_fallthru
      _
    %7938 = vsyncpa [#allocation6], 1
    %7939 = vsyncpa [#allocation8], 1
    %7940 = vsyncpa [#allocation11], 1
    %7941 = vsyncpa [#allocation14], 1
    %7942 = vsyncpa [#allocation17], 1
    %7943 = vsyncpa [#allocation20], 1
    %7944 = vsyncpa [#allocation23], 1
  %7945 = vsyncmov [#allocation4]
  %s7946 = vpop.sfrf %7945
  %p7947 = scmp.eq.s32.totalorder %s7946, 0
  %p7948 = pneg %p7947
  %7950 = shalt.err (%p7948)
  %s7951 = scalar_lea.sflag [#allocation4], 1
  %7952 = vsyncmov %s7951
  %s7953 = vpop.sfrf %7952
  %p7954 = scmp.eq.s32.totalorder %s7953, 0
  %p7955 = pneg %p7954
  %7957 = shalt.err (%p7955)

</llo_original>
